<compile_context>
chip_gen: v7x
topology: tpu7x:2x2x1
jax: 0.10.0
libtpu: 0.0.40
codegen_flags: <defaults>
</compile_context>

<pallas_src>
import functools

import jax
import jax.numpy as jnp
from jax.experimental import pallas as pl
from jax.experimental.pallas import tpu as pltpu

LANE = 128


def _round_up(x, m):
    return (x + m - 1) // m * m


@functools.lru_cache(maxsize=None)
def _vmem_limit_bytes():
    # Review: raise the scoped-VMEM budget on v5e/v6e (128 MiB physical), keep
    # <= ~48 MiB on v7x (64 MiB physical).
    try:
        cap = int(pltpu.get_tpu_info().vmem_capacity_bytes)
    except Exception:
        cap = 128 * 1024 * 1024
    return int(min(cap * 3 // 4, 96 * 1024 * 1024))


def _cparams(semantics):
    return pltpu.CompilerParams(dimension_semantics=semantics,
                                vmem_limit_bytes=_vmem_limit_bytes())


# ----------------------------------------------------------------------------
# Pallas kernels
# ----------------------------------------------------------------------------
def _conv_pool_gemm_kernel(lhs_ref, msk_ref, w_ref, b_ref, o_ref, *, sn_pad, w1):
    """Fused conv (one GEMM over a real-channel im2col) + bias + ReLU +
    3x3/stride-2/pad-1 maxpool, for one output-channel tile.

    lhs_ref : (4*sn_pad, Kp) bf16  im2col rows in pool-phase order
    msk_ref : (4*sn_pad, 1)  f32   1 for real conv pixels, 0 for pool ring/pad
    w_ref   : (Kp, Toc)      bf16
    b_ref   : (1, Toc)       f32
    o_ref   : (sn_pad, Toc)  bf16  pooled rows on the (h1, w1) phase-00 grid
    """
    y = jnp.dot(lhs_ref[...], w_ref[...], preferred_element_type=jnp.float32)
    y = jnp.maximum(y + b_ref[...], 0.0) * msk_ref[...]

    # 9 pool taps.  Values are post-ReLU (>= 0), so the zeroed ring/pad rows
    # can never wrongly win the max (equivalent to PyTorch's -inf padding).
    def tap(base, d):
        return y[base + d:base + d + sn_pad, :]

    p = tap(0, 0)
    for d in (1, w1, w1 + 1):                 # phase (even h, even w)
        p = jnp.maximum(p, tap(0, d))
    for d in (0, w1):                         # phase (even h, odd w)
        p = jnp.maximum(p, tap(sn_pad, d))
    for d in (0, 1):                          # phase (odd h, even w)
        p = jnp.maximum(p, tap(2 * sn_pad, d))
    p = jnp.maximum(p, tap(3 * sn_pad, 0))    # phase (odd h, odd w)
    o_ref[...] = p.astype(o_ref.dtype)


def _conv_implicit_kernel(x_ref, w_ref, b_ref, o_ref, *, offsets, mout):
    """Implicit-GEMM stride-1 conv + bias + ReLU for one OC tile.  No scratch:
    taps accumulate into an f32 value initialized from tap 0 plus the bias."""
    x = x_ref[...]
    acc = jnp.dot(x[offsets[0]:offsets[0] + mout, :], w_ref[0],
                  preferred_element_type=jnp.float32) + b_ref[...]
    for k, d in enumerate(offsets[1:], start=1):
        acc = acc + jnp.dot(x[d:d + mout, :], w_ref[k],
                            preferred_element_type=jnp.float32)
    o_ref[...] = jnp.maximum(acc, 0.0).astype(o_ref.dtype)


def _classifier_kernel(x_ref, w0_ref, b0_ref, w1_ref, b1_ref, o_ref, *, n_classes):
    """maxpool2 (3x3 max over the 3x3 map) + linear0 + ReLU + linear1 + softmax."""
    pooled = jnp.max(x_ref[...], axis=1)                          # (N, Cp) bf16
    h = jnp.dot(pooled, w0_ref[...],
                preferred_element_type=jnp.float32) + b0_ref[...]
    h = jnp.maximum(h, 0.0)
    logits = jnp.dot(h.astype(jnp.bfloat16), w1_ref[...],
                     preferred_element_type=jnp.float32) + b1_ref[...]
    col = jax.lax.broadcasted_iota(jnp.int32, logits.shape, 1)
    logits = jnp.where(col < n_classes, logits, -jnp.inf)         # mask pad lanes
    m = jnp.max(logits, axis=-1, keepdims=True)
    e = jnp.exp(logits - m)
    s = jnp.sum(e, axis=-1, keepdims=True)
    o_ref[...] = (e * pl.reciprocal(s)).astype(o_ref.dtype)       # exact reciprocal


# ----------------------------------------------------------------------------
# pallas_call wrappers
# ----------------------------------------------------------------------------
def _conv_pool_gemm_call(lhs, msk, w, b, *, sn_pad, w1):
    m4p, kp = lhs.shape
    ocp = w.shape[1]
    toc = 256 if ocp % 256 == 0 else LANE
    nj = ocp // toc
    flops = 2 * m4p * kp * ocp + 9 * sn_pad * ocp
    bytes_accessed = (lhs.size + w.size + sn_pad * ocp) * 2 + (msk.size + b.size) * 4
    return pl.pallas_call(
        functools.partial(_conv_pool_gemm_kernel, sn_pad=sn_pad, w1=w1),
        out_shape=jax.ShapeDtypeStruct((sn_pad, ocp), jnp.bfloat16),
        grid=(nj,),
        in_specs=[
            pl.BlockSpec((m4p, kp), lambda j: (0, 0)),      # resident across OC tiles
            pl.BlockSpec((m4p, 1), lambda j: (0, 0)),
            pl.BlockSpec((kp, toc), lambda j: (0, j)),
            pl.BlockSpec((1, toc), lambda j: (0, j)),
        ],
        out_specs=pl.BlockSpec((sn_pad, toc), lambda j: (0, j)),
        compiler_params=_cparams(("parallel",)),
        cost_estimate=pl.CostEstimate(flops=int(flops), transcendentals=0,
                                      bytes_accessed=int(bytes_accessed)),
    )(lhs, msk, w, b)


def _conv_implicit_call(x_flat, w, b, *, offsets, mout):
    rows_in, cp = x_flat.shape
    kk, cp2, ocp = w.shape
    assert cp == cp2, (cp, cp2)
    toc = 256 if ocp % 256 == 0 else LANE
    nj = ocp // toc
    flops = 2 * mout * cp * ocp * kk
    bytes_accessed = (x_flat.size + w.size + mout * ocp) * 2 + b.size * 4
    return pl.pallas_call(
        functools.partial(_conv_implicit_kernel, offsets=offsets, mout=mout),
        out_shape=jax.ShapeDtypeStruct((mout, ocp), jnp.bfloat16),
        grid=(nj,),
        in_specs=[
            pl.BlockSpec((rows_in, cp), lambda j: (0, 0)),  # resident across OC tiles
            pl.BlockSpec((kk, cp, toc), lambda j: (0, 0, j)),
            pl.BlockSpec((1, toc), lambda j: (0, j)),
        ],
        out_specs=pl.BlockSpec((mout, toc), lambda j: (0, j)),
        compiler_params=_cparams(("parallel",)),
        cost_estimate=pl.CostEstimate(flops=int(flops), transcendentals=0,
                                      bytes_accessed=int(bytes_accessed)),
    )(x_flat, w, b)


def _classifier_call(x3, w0, b0, w1, b1, *, n_classes):
    n, hw, cp = x3.shape
    c1 = w0.shape[1]
    c2 = w1.shape[1]
    flops = 2 * n * cp * c1 + 2 * n * c1 * c2
    bytes_accessed = (x3.size + w0.size + w1.size) * 2 + (b0.size + b1.size + n * c2) * 4
    return pl.pallas_call(
        functools.partial(_classifier_kernel, n_classes=n_classes),
        out_shape=jax.ShapeDtypeStruct((n, c2), jnp.float32),
        grid=(1,),
        in_specs=[
            pl.BlockSpec((n, hw, cp), lambda i: (0, 0, 0)),
            pl.BlockSpec((cp, c1), lambda i: (0, 0)),
            pl.BlockSpec((1, c1), lambda i: (0, 0)),
            pl.BlockSpec((c1, c2), lambda i: (0, 0)),
            pl.BlockSpec((1, c2), lambda i: (0, 0)),
        ],
        out_specs=pl.BlockSpec((n, c2), lambda i: (0, 0)),
        compiler_params=_cparams(("arbitrary",)),
        cost_estimate=pl.CostEstimate(flops=int(flops), transcendentals=int(n * c2),
                                      bytes_accessed=int(bytes_accessed)),
    )(x3, w0, b0, w1, b1)


# ----------------------------------------------------------------------------
# Layer wrappers (cheap XLA glue on small bf16 tensors)
# ----------------------------------------------------------------------------
def conv_relu_pool(x, w, b, *, kernel, stride, padding):
    """Conv2d(kernel, stride, padding) + ReLU + MaxPool2d(3, stride=2, padding=1),
    fused into a single Pallas kernel.

    x : (N, H, W, Cin_real) bf16;  w : (Kp, OCp) bf16;  b : (1, OCp) f32
    -> (N, OH, OW, OCp) bf16   with OH = conv_out_h // 2, OW = conv_out_w // 2
    """
    n, h, wd, ic = x.shape
    if padding:
        x = jnp.pad(x, ((0, 0), (padding, padding), (padding, padding), (0, 0)))
    hc = (h + 2 * padding - kernel) // stride + 1
    wc = (wd + 2 * padding - kernel) // stride + 1
    assert hc % 2 == 0 and wc % 2 == 0, "fused pool assumes even conv output"

    # im2col over REAL channels only; only true conv-output pixels are formed
    # (stride handled here -> zero overcompute, no decimation pass anywhere).
    taps = [x[:, kh:kh + stride * (hc - 1) + 1:stride,
              kw:kw + stride * (wc - 1) + 1:stride, :]
            for kh in range(kernel) for kw in range(kernel)]
    patches = jnp.concatenate(taps, axis=-1)                  # (N, hc, wc, k*k*ic)
    kk_ic = kernel * kernel * ic

    # Pool padding = ring of zero patch rows (exact after ReLU).  Phase-split
    # the padded grid so the stride-2 pool becomes unit-offset shifted windows.
    patches = jnp.pad(patches, ((0, 0), (1, 1), (1, 1), (0, 0)))
    valid = jnp.pad(jnp.ones((n, hc, wc, 1), jnp.float32),
                    ((0, 0), (1, 1), (1, 1), (0, 0)))
    h1, w1 = (hc + 2) // 2, (wc + 2) // 2
    ph = jnp.stack([patches[:, a::2, bb::2, :] for a in (0, 1) for bb in (0, 1)], 0)
    vm = jnp.stack([valid[:, a::2, bb::2, :] for a in (0, 1) for bb in (0, 1)], 0)
    sn = n * h1 * w1
    sn_pad = _round_up(sn, 16)
    kp, ocp = w.shape
    lhs = jnp.pad(ph.reshape(4, sn, kk_ic),
                  ((0, 0), (0, sn_pad - sn), (0, kp - kk_ic))).reshape(4 * sn_pad, kp)
    msk = jnp.pad(vm.reshape(4, sn, 1),
                  ((0, 0), (0, sn_pad - sn), (0, 0))).reshape(4 * sn_pad, 1)

    out = _conv_pool_gemm_call(lhs.astype(jnp.bfloat16), msk, w, b,
                               sn_pad=sn_pad, w1=w1)
    oh, ow = hc // 2, wc // 2
    return out[:sn].reshape(n, h1, w1, ocp)[:, :oh, :ow, :]


def conv_relu(x, w, b, *, kernel, padding):
    """Conv2d(kernel, stride=1, padding) + ReLU as an implicit GEMM: the padded
    row-flattened bf16 feature map stays resident in VMEM; KH*KW shifted-window
    matmuls accumulate in an f32 value.

    x : (N, H, W, Cp) bf16;  w : (k*k, Cp, OCp) bf16;  b : (1, OCp) f32
    -> (N, H', W', OCp) bf16   with H' = H + 2*padding - kernel + 1
    """
    n, h, wd, cp = x.shape
    if padding:
        x = jnp.pad(x, ((0, 0), (padding, padding), (padding, padding), (0, 0)))
    hp, wp = h + 2 * padding, wd + 2 * padding
    nhw = n * hp * wp
    mout = _round_up(nhw, 16)
    dmax = (kernel - 1) * wp + (kernel - 1)
    rows_in = _round_up(mout + dmax, 16)
    x_flat = jnp.pad(x.reshape(nhw, cp), ((0, rows_in - nhw), (0, 0)))
    offsets = tuple(kh * wp + kw for kh in range(kernel) for kw in range(kernel))
    out_flat = _conv_implicit_call(x_flat, w, b, offsets=offsets, mout=mout)
    oh, ow = hp - kernel + 1, wp - kernel + 1
    ocp = w.shape[2]
    return out_flat[:nhw].reshape(n, hp, wp, ocp)[:, :oh, :ow, :]


# ----------------------------------------------------------------------------
# AlexNet model (structure table identical to the PyTorch module)
# ----------------------------------------------------------------------------
STRUCTURES = {
    1: [64, 192, 384, 256, 256, 2048], 2: [52, 128, 320, 128, 128, 1024],
    3: [49, 84, 268, 108, 80, 1024], 4: [45, 68, 220, 90, 64, 512],
    5: [42, 54, 206, 74, 52, 256], 6: [38, 46, 196, 64, 40, 256],
    7: [34, 43, 172, 52, 35, 128], 8: [32, 39, 156, 48, 30, 128],
    9: [30, 36, 140, 44, 28, 64], 10: [28, 34, 136, 39, 26, 64],
}


def _conv_layer_defs(input_channels, s):
    # (kernel, stride, padding, in_channels, out_channels) per conv layer
    return [
        (5, 1, 0, input_channels, s[0]),
        (5, 2, 1, s[0], s[1]),
        (3, 1, 1, s[1], s[2]),
        (3, 1, 1, s[2], s[3]),
        (3, 1, 1, s[3], s[4]),
    ]


def _uniform(key, shape, fan_in):
    bound = 1.0 / jnp.sqrt(jnp.float32(fan_in))
    return jax.random.uniform(key, shape, jnp.float32, -bound, bound)


def init_params(key, input_channels, out_classes, size=10):
    """PyTorch-default uniform(+-1/sqrt(fan_in)) init, real (unpadded) shapes."""
    s = STRUCTURES[size]
    conv_defs = _conv_layer_defs(input_channels, s)
    params = {}
    keys = jax.random.split(key, 2 * (len(conv_defs) + 2))
    ki = 0
    for i, (k, _, _, ic, oc) in enumerate(conv_defs):
        fan_in = k * k * ic
        params[f"w{i}"] = _uniform(keys[ki], (k, k, ic, oc), fan_in); ki += 1
        params[f"b{i}"] = _uniform(keys[ki], (oc,), fan_in); ki += 1
    params["wl0"] = _uniform(keys[ki], (s[4], s[5]), s[4]); ki += 1
    params["bl0"] = _uniform(keys[ki], (s[5],), s[4]); ki += 1
    params["wl1"] = _uniform(keys[ki], (s[5], out_classes), s[5]); ki += 1
    params["bl1"] = _uniform(keys[ki], (out_classes,), s[5]); ki += 1
    return params


def prepare_params(params, input_channels, out_classes, size=10):
    """Kernel layout: lane-dense (pad channel dims to 128), bf16 matmul weights.
    conv0/conv1 (fused conv+pool GEMM kernels) use (k*k*ic_real padded, OCp)
    weights; conv2..4 (implicit GEMM) use (k*k, Cp, OCp).  Padded slots are
    zero so padded activation lanes never contaminate real outputs."""
    s = STRUCTURES[size]
    conv_defs = _conv_layer_defs(input_channels, s)
    prep = {}
    for i, (k, _, _, ic, oc) in enumerate(conv_defs):
        ocp = _round_up(oc, LANE)
        if i < 2:
            kk_ic = k * k * ic
            kp = _round_up(kk_ic, LANE)
            wflat = params[f"w{i}"].reshape(kk_ic, oc)
            wpad = jnp.zeros((kp, ocp), jnp.float32).at[:kk_ic, :oc].set(wflat)
        else:
            cp = _round_up(ic, LANE)
            wpad = jnp.zeros((k * k, cp, ocp), jnp.float32)
            wpad = wpad.at[:, :ic, :oc].set(params[f"w{i}"].reshape(k * k, ic, oc))
        prep[f"w{i}"] = wpad.astype(jnp.bfloat16)
        prep[f"b{i}"] = jnp.zeros((1, ocp), jnp.float32).at[0, :oc].set(params[f"b{i}"])
    c4p, c5p = _round_up(s[4], LANE), _round_up(s[5], LANE)
    ncp = _round_up(out_classes, LANE)
    w0 = jnp.zeros((c4p, c5p), jnp.float32).at[:s[4], :s[5]].set(params["wl0"])
    w1 = jnp.zeros((c5p, ncp), jnp.float32).at[:s[5], :out_classes].set(params["wl1"])
    prep["wl0"] = w0.astype(jnp.bfloat16)
    prep["bl0"] = jnp.zeros((1, c5p), jnp.float32).at[0, :s[5]].set(params["bl0"])
    prep["wl1"] = w1.astype(jnp.bfloat16)
    prep["bl1"] = jnp.zeros((1, ncp), jnp.float32).at[0, :out_classes].set(params["bl1"])
    return prep


def alexnet_forward(prep, x_nchw, *, input_channels, out_classes, size=10):
    del input_channels  # real input channels are taken from x itself
    s = STRUCTURES[size]
    # PyTorch NCHW input -> NHWC, bf16, real channels (no lane padding needed
    # for the fused im2col layers).
    x = jnp.transpose(x_nchw, (0, 2, 3, 1)).astype(jnp.bfloat16)
    # conv0 + ReLU + maxpool0  (fused kernel)
    x = conv_relu_pool(x, prep["w0"], prep["b0"], kernel=5, stride=1, padding=0)
    # conv1 + ReLU + maxpool1  (fused kernel; im2col over the real s[0] channels)
    x = conv_relu_pool(x[..., :s[0]], prep["w1"], prep["b1"],
                       kernel=5, stride=2, padding=1)
    # conv2..conv4 + ReLU  (implicit GEMM; lane-padded channels flow through
    # with zeroed pad lanes, so no per-layer channel re-padding is needed)
    x = conv_relu(x, prep["w2"], prep["b2"], kernel=3, padding=1)
    x = conv_relu(x, prep["w3"], prep["b3"], kernel=3, padding=1)
    x = conv_relu(x, prep["w4"], prep["b4"], kernel=3, padding=1)
    n, hh, ww, cp = x.shape
    assert (hh, ww) == (3, 3), (hh, ww)   # maxpool2 (3x3,s1,p0) -> 1x1, fused below
    x3 = x.reshape(n, hh * ww, cp)
    out = _classifier_call(x3, prep["wl0"], prep["bl0"], prep["wl1"], prep["bl1"],
                           n_classes=out_classes)
    return out[:, :out_classes]


# ----------------------------------------------------------------------------
# Pure-XLA f32 reference (mirrors the PyTorch module) for the self-check
# ----------------------------------------------------------------------------
def _reference_forward(params, x_nchw):
    x = jnp.transpose(x_nchw, (0, 2, 3, 1)).astype(jnp.float32)

    def conv(x, w, b, stride, pad):
        out = jax.lax.conv_general_dilated(
            x, w, window_strides=(stride, stride),
            padding=((pad, pad), (pad, pad)),
            dimension_numbers=("NHWC", "HWIO", "NHWC"))
        return jax.nn.relu(out + b)

    def pool(x, k, stride, pad):
        if pad:
            x = jnp.pad(x, ((0, 0), (pad, pad), (pad, pad), (0, 0)),
                        constant_values=-jnp.inf)
        return jax.lax.reduce_window(x, -jnp.inf, jax.lax.max,
                                     (1, k, k, 1), (1, stride, stride, 1), "VALID")

    x = conv(x, params["w0"], params["b0"], 1, 0)
    x = pool(x, 3, 2, 1)
    x = conv(x, params["w1"], params["b1"], 2, 1)
    x = pool(x, 3, 2, 1)
    x = conv(x, params["w2"], params["b2"], 1, 1)
    x = conv(x, params["w3"], params["b3"], 1, 1)
    x = conv(x, params["w4"], params["b4"], 1, 1)
    x = pool(x, 3, 1, 0)
    x = x.reshape(x.shape[0], -1)
    x = jax.nn.relu(x @ params["wl0"] + params["bl0"])
    x = x @ params["wl1"] + params["bl1"]
    return jax.nn.softmax(x, axis=-1)


if __name__ == "__main__":
    key = jax.random.PRNGKey(0)
    k_param, k_x = jax.random.split(key)

    batch, in_ch, spatial, n_classes = 2, 3, 32, 10  # 32x32 -> 1x1 before classifier
    params = init_params(k_param, input_channels=in_ch, out_classes=n_classes, size=10)
    prep = prepare_params(params, input_channels=in_ch, out_classes=n_classes, size=10)
    x = jax.random.normal(k_x, (batch, in_ch, spatial, spatial), dtype=jnp.float32)

    fwd = jax.jit(functools.partial(alexnet_forward, input_channels=in_ch,
                                    out_classes=n_classes, size=10))
    out = jax.block_until_ready(fwd(prep, x))

    assert out.shape == (batch, n_classes), out.shape
    assert bool(jnp.all(jnp.isfinite(out)))
    # exact-reciprocal softmax -> rows sum to ~1 within f32 arithmetic
    assert bool(jnp.all(jnp.abs(jnp.sum(out, axis=1) - 1.0) < 2e-3))

    # cross-check against the pure-XLA f32 reference (bf16 activations/weights
    # in the Pallas path are intentional -> generous tolerance)
    ref = _reference_forward(params, x)
    max_err = float(jnp.max(jnp.abs(out - ref)))
    assert max_err < 7.5e-2, max_err

    print("KERNEL_OK")
</pallas_src>

<mosaic_0001>
module attributes {stable_mosaic.version = 11 : i64} {
  func.func @_conv_pool_gemm_kernel(%arg0: i32, %arg1: memref<1856x128xbf16, #tpu.memory_space<vmem>>, %arg2: memref<1856x1xf32, #tpu.memory_space<vmem>>, %arg3: memref<128x128xbf16, #tpu.memory_space<vmem>>, %arg4: memref<1x128xf32, #tpu.memory_space<vmem>>, %arg5: memref<464x128xbf16, #tpu.memory_space<vmem>>) attributes {dimension_semantics = [#tpu.dimension_semantics<parallel>], iteration_bounds = array<i64: 1>, scalar_prefetch = 0 : i64, scratch_operands = 0 : i64, tpu.core_type = #tpu.core_type<tc>, window_params = [{pipeline_mode = #tpu.pipeline_mode<synchronous>, transform_indices = @transform_0, window_bounds = array<i64: 1856, 128>}, {pipeline_mode = #tpu.pipeline_mode<synchronous>, transform_indices = @transform_1, window_bounds = array<i64: 1856, 1>}, {transform_indices = @transform_2, window_bounds = array<i64: 128, 128>}, {transform_indices = @transform_3, window_bounds = array<i64: 1, 128>}, {transform_indices = @transform_4, window_bounds = array<i64: 464, 128>}]} {
    %c0 = arith.constant 0 : index
    %c0_0 = arith.constant 0 : index
    %0 = vector.load %arg1[%c0, %c0_0] : memref<1856x128xbf16, #tpu.memory_space<vmem>>, vector<1856x128xbf16>
    %c0_1 = arith.constant 0 : index
    %c0_2 = arith.constant 0 : index
    %1 = vector.load %arg3[%c0_1, %c0_2] : memref<128x128xbf16, #tpu.memory_space<vmem>>, vector<128x128xbf16>
    %cst = arith.constant dense<0.000000e+00> : vector<1856x128xf32>
    %2 = tpu.matmul %0, %1, %cst {dimension_numbers = #tpu.dot_dimension_numbers<[1], [0], [0], [1], [0, 0, 1, 1], [], []>} : vector<1856x128xbf16>, vector<128x128xbf16>, vector<1856x128xf32> -> vector<1856x128xf32>
    %c0_3 = arith.constant 0 : index
    %c0_4 = arith.constant 0 : index
    %3 = vector.load %arg4[%c0_3, %c0_4] : memref<1x128xf32, #tpu.memory_space<vmem>>, vector<1x128xf32>
    %4 = vector.broadcast %3 : vector<1x128xf32> to vector<1856x128xf32>
    %5 = arith.addf %2, %4 : vector<1856x128xf32>
    %cst_5 = arith.constant 0.000000e+00 : f32
    %6 = vector.broadcast %cst_5 : f32 to vector<1856x128xf32>
    %7 = arith.maximumf %5, %6 : vector<1856x128xf32>
    %c0_6 = arith.constant 0 : index
    %c0_7 = arith.constant 0 : index
    %8 = vector.load %arg2[%c0_6, %c0_7] : memref<1856x1xf32, #tpu.memory_space<vmem>>, vector<1856x1xf32>
    %9 = vector.broadcast %8 : vector<1856x1xf32> to vector<1856x128xf32>
    %10 = arith.mulf %7, %9 : vector<1856x128xf32>
    %11 = vector.extract_strided_slice %10 {offsets = [0, 0], sizes = [464, 128], strides = [1, 1]} : vector<1856x128xf32> to vector<464x128xf32>
    %12 = vector.extract_strided_slice %10 {offsets = [1, 0], sizes = [464, 128], strides = [1, 1]} : vector<1856x128xf32> to vector<464x128xf32>
    %13 = arith.maximumf %11, %12 : vector<464x128xf32>
    %14 = vector.extract_strided_slice %10 {offsets = [15, 0], sizes = [464, 128], strides = [1, 1]} : vector<1856x128xf32> to vector<464x128xf32>
    %15 = arith.maximumf %13, %14 : vector<464x128xf32>
    %16 = vector.extract_strided_slice %10 {offsets = [16, 0], sizes = [464, 128], strides = [1, 1]} : vector<1856x128xf32> to vector<464x128xf32>
    %17 = arith.maximumf %15, %16 : vector<464x128xf32>
    %18 = vector.extract_strided_slice %10 {offsets = [464, 0], sizes = [464, 128], strides = [1, 1]} : vector<1856x128xf32> to vector<464x128xf32>
    %19 = arith.maximumf %17, %18 : vector<464x128xf32>
    %20 = vector.extract_strided_slice %10 {offsets = [479, 0], sizes = [464, 128], strides = [1, 1]} : vector<1856x128xf32> to vector<464x128xf32>
    %21 = arith.maximumf %19, %20 : vector<464x128xf32>
    %22 = vector.extract_strided_slice %10 {offsets = [928, 0], sizes = [464, 128], strides = [1, 1]} : vector<1856x128xf32> to vector<464x128xf32>
    %23 = arith.maximumf %21, %22 : vector<464x128xf32>
    %24 = vector.extract_strided_slice %10 {offsets = [929, 0], sizes = [464, 128], strides = [1, 1]} : vector<1856x128xf32> to vector<464x128xf32>
    %25 = arith.maximumf %23, %24 : vector<464x128xf32>
    %26 = vector.extract_strided_slice %10 {offsets = [1392, 0], sizes = [464, 128], strides = [1, 1]} : vector<1856x128xf32> to vector<464x128xf32>
    %27 = arith.maximumf %25, %26 : vector<464x128xf32>
    %28 = arith.truncf %27 : vector<464x128xf32> to vector<464x128xbf16>
    %c0_8 = arith.constant 0 : index
    %c0_9 = arith.constant 0 : index
    %29 = vector.load %arg5[%c0_8, %c0_9] : memref<464x128xbf16, #tpu.memory_space<vmem>>, vector<464x128xbf16>
    tpu.vector_store %arg5[%c0_8, %c0_9], %28 {strides = array<i32>} : memref<464x128xbf16, #tpu.memory_space<vmem>>, vector<464x128xbf16>,
    return
  }
  func.func @transform_0(%arg0: i32) -> (i32, i32) {
    %c0_i32 = arith.constant 0 : i32
    %c0_i32_0 = arith.constant 0 : i32
    %c0_i32_1 = arith.constant 0 : i32
    return %c0_i32, %c0_i32_0 : i32, i32
  }
  func.func @transform_1(%arg0: i32) -> (i32, i32) {
    %c0_i32 = arith.constant 0 : i32
    %c0_i32_0 = arith.constant 0 : i32
    %c0_i32_1 = arith.constant 0 : i32
    return %c0_i32, %c0_i32_0 : i32, i32
  }
  func.func @transform_2(%arg0: i32) -> (i32, i32) {
    %c0_i32 = arith.constant 0 : i32
    %c0_i32_0 = arith.constant 0 : i32
    return %c0_i32, %arg0 : i32, i32
  }
  func.func @transform_3(%arg0: i32) -> (i32, i32) {
    %c0_i32 = arith.constant 0 : i32
    %c0_i32_0 = arith.constant 0 : i32
    return %c0_i32, %arg0 : i32, i32
  }
  func.func @transform_4(%arg0: i32) -> (i32, i32) {
    %c0_i32 = arith.constant 0 : i32
    %c0_i32_0 = arith.constant 0 : i32
    return %c0_i32, %arg0 : i32, i32
  }
}

module attributes {stable_mosaic.version = 11 : i64} {
  func.func @_conv_pool_gemm_kernel(%arg0: i32, %arg1: memref<128x768xbf16, #tpu.memory_space<vmem>>, %arg2: memref<128x1xf32, #tpu.memory_space<vmem>>, %arg3: memref<768x128xbf16, #tpu.memory_space<vmem>>, %arg4: memref<1x128xf32, #tpu.memory_space<vmem>>, %arg5: memref<32x128xbf16, #tpu.memory_space<vmem>>) attributes {dimension_semantics = [#tpu.dimension_semantics<parallel>], iteration_bounds = array<i64: 1>, scalar_prefetch = 0 : i64, scratch_operands = 0 : i64, tpu.core_type = #tpu.core_type<tc>, window_params = [{pipeline_mode = #tpu.pipeline_mode<synchronous>, transform_indices = @transform_0, window_bounds = array<i64: 128, 768>}, {pipeline_mode = #tpu.pipeline_mode<synchronous>, transform_indices = @transform_1, window_bounds = array<i64: 128, 1>}, {transform_indices = @transform_2, window_bounds = array<i64: 768, 128>}, {transform_indices = @transform_3, window_bounds = array<i64: 1, 128>}, {transform_indices = @transform_4, window_bounds = array<i64: 32, 128>}]} {
    %c0 = arith.constant 0 : index
    %c0_0 = arith.constant 0 : index
    %0 = vector.load %arg1[%c0, %c0_0] : memref<128x768xbf16, #tpu.memory_space<vmem>>, vector<128x768xbf16>
    %c0_1 = arith.constant 0 : index
    %c0_2 = arith.constant 0 : index
    %1 = vector.load %arg3[%c0_1, %c0_2] : memref<768x128xbf16, #tpu.memory_space<vmem>>, vector<768x128xbf16>
    %cst = arith.constant dense<0.000000e+00> : vector<128x128xf32>
    %2 = tpu.matmul %0, %1, %cst {dimension_numbers = #tpu.dot_dimension_numbers<[1], [0], [0], [1], [0, 0, 1, 1], [], []>} : vector<128x768xbf16>, vector<768x128xbf16>, vector<128x128xf32> -> vector<128x128xf32>
    %c0_3 = arith.constant 0 : index
    %c0_4 = arith.constant 0 : index
    %3 = vector.load %arg4[%c0_3, %c0_4] : memref<1x128xf32, #tpu.memory_space<vmem>>, vector<1x128xf32>
    %4 = vector.broadcast %3 : vector<1x128xf32> to vector<128x128xf32>
    %5 = arith.addf %2, %4 : vector<128x128xf32>
    %cst_5 = arith.constant 0.000000e+00 : f32
    %6 = vector.broadcast %cst_5 : f32 to vector<128x128xf32>
    %7 = arith.maximumf %5, %6 : vector<128x128xf32>
    %c0_6 = arith.constant 0 : index
    %c0_7 = arith.constant 0 : index
    %8 = vector.load %arg2[%c0_6, %c0_7] : memref<128x1xf32, #tpu.memory_space<vmem>>, vector<128x1xf32>
    %9 = vector.broadcast %8 : vector<128x1xf32> to vector<128x128xf32>
    %10 = arith.mulf %7, %9 : vector<128x128xf32>
    %11 = vector.extract_strided_slice %10 {offsets = [0, 0], sizes = [32, 128], strides = [1, 1]} : vector<128x128xf32> to vector<32x128xf32>
    %12 = vector.extract_strided_slice %10 {offsets = [1, 0], sizes = [32, 128], strides = [1, 1]} : vector<128x128xf32> to vector<32x128xf32>
    %13 = arith.maximumf %11, %12 : vector<32x128xf32>
    %14 = vector.extract_strided_slice %10 {offsets = [4, 0], sizes = [32, 128], strides = [1, 1]} : vector<128x128xf32> to vector<32x128xf32>
    %15 = arith.maximumf %13, %14 : vector<32x128xf32>
    %16 = vector.extract_strided_slice %10 {offsets = [5, 0], sizes = [32, 128], strides = [1, 1]} : vector<128x128xf32> to vector<32x128xf32>
    %17 = arith.maximumf %15, %16 : vector<32x128xf32>
    %18 = vector.extract_strided_slice %10 {offsets = [32, 0], sizes = [32, 128], strides = [1, 1]} : vector<128x128xf32> to vector<32x128xf32>
    %19 = arith.maximumf %17, %18 : vector<32x128xf32>
    %20 = vector.extract_strided_slice %10 {offsets = [36, 0], sizes = [32, 128], strides = [1, 1]} : vector<128x128xf32> to vector<32x128xf32>
    %21 = arith.maximumf %19, %20 : vector<32x128xf32>
    %22 = vector.extract_strided_slice %10 {offsets = [64, 0], sizes = [32, 128], strides = [1, 1]} : vector<128x128xf32> to vector<32x128xf32>
    %23 = arith.maximumf %21, %22 : vector<32x128xf32>
    %24 = vector.extract_strided_slice %10 {offsets = [65, 0], sizes = [32, 128], strides = [1, 1]} : vector<128x128xf32> to vector<32x128xf32>
    %25 = arith.maximumf %23, %24 : vector<32x128xf32>
    %26 = vector.extract_strided_slice %10 {offsets = [96, 0], sizes = [32, 128], strides = [1, 1]} : vector<128x128xf32> to vector<32x128xf32>
    %27 = arith.maximumf %25, %26 : vector<32x128xf32>
    %28 = arith.truncf %27 : vector<32x128xf32> to vector<32x128xbf16>
    %c0_8 = arith.constant 0 : index
    %c0_9 = arith.constant 0 : index
    %29 = vector.load %arg5[%c0_8, %c0_9] : memref<32x128xbf16, #tpu.memory_space<vmem>>, vector<32x128xbf16>
    tpu.vector_store %arg5[%c0_8, %c0_9], %28 {strides = array<i32>} : memref<32x128xbf16, #tpu.memory_space<vmem>>, vector<32x128xbf16>,
    return
  }
  func.func @transform_0(%arg0: i32) -> (i32, i32) {
    %c0_i32 = arith.constant 0 : i32
    %c0_i32_0 = arith.constant 0 : i32
    %c0_i32_1 = arith.constant 0 : i32
    return %c0_i32, %c0_i32_0 : i32, i32
  }
  func.func @transform_1(%arg0: i32) -> (i32, i32) {
    %c0_i32 = arith.constant 0 : i32
    %c0_i32_0 = arith.constant 0 : i32
    %c0_i32_1 = arith.constant 0 : i32
    return %c0_i32, %c0_i32_0 : i32, i32
  }
  func.func @transform_2(%arg0: i32) -> (i32, i32) {
    %c0_i32 = arith.constant 0 : i32
    %c0_i32_0 = arith.constant 0 : i32
    return %c0_i32, %arg0 : i32, i32
  }
  func.func @transform_3(%arg0: i32) -> (i32, i32) {
    %c0_i32 = arith.constant 0 : i32
    %c0_i32_0 = arith.constant 0 : i32
    return %c0_i32, %arg0 : i32, i32
  }
  func.func @transform_4(%arg0: i32) -> (i32, i32) {
    %c0_i32 = arith.constant 0 : i32
    %c0_i32_0 = arith.constant 0 : i32
    return %c0_i32, %arg0 : i32, i32
  }
}

module attributes {stable_mosaic.version = 11 : i64} {
  func.func @_conv_implicit_kernel(%arg0: i32, %arg1: memref<80x128xbf16, #tpu.memory_space<vmem>>, %arg2: memref<9x128x256xbf16, #tpu.memory_space<vmem>>, %arg3: memref<1x256xf32, #tpu.memory_space<vmem>>, %arg4: memref<64x256xbf16, #tpu.memory_space<vmem>>) attributes {dimension_semantics = [#tpu.dimension_semantics<parallel>], iteration_bounds = array<i64: 1>, scalar_prefetch = 0 : i64, scratch_operands = 0 : i64, tpu.core_type = #tpu.core_type<tc>, window_params = [{pipeline_mode = #tpu.pipeline_mode<synchronous>, transform_indices = @transform_0, window_bounds = array<i64: 80, 128>}, {transform_indices = @transform_1, window_bounds = array<i64: 9, 128, 256>}, {transform_indices = @transform_2, window_bounds = array<i64: 1, 256>}, {transform_indices = @transform_3, window_bounds = array<i64: 64, 256>}]} {
    %c0 = arith.constant 0 : index
    %c0_0 = arith.constant 0 : index
    %0 = vector.load %arg1[%c0, %c0_0] : memref<80x128xbf16, #tpu.memory_space<vmem>>, vector<80x128xbf16>
    %1 = vector.extract_strided_slice %0 {offsets = [0, 0], sizes = [64, 128], strides = [1, 1]} : vector<80x128xbf16> to vector<64x128xbf16>
    %c0_1 = arith.constant 0 : index
    %c0_2 = arith.constant 0 : index
    %c0_3 = arith.constant 0 : index
    %2 = vector.load %arg2[%c0_1, %c0_2, %c0_3] : memref<9x128x256xbf16, #tpu.memory_space<vmem>>, vector<1x128x256xbf16>
    %3 = vector.shape_cast %2 : vector<1x128x256xbf16> to vector<128x256xbf16>
    %cst = arith.constant dense<0.000000e+00> : vector<64x256xf32>
    %4 = tpu.matmul %1, %3, %cst {dimension_numbers = #tpu.dot_dimension_numbers<[1], [0], [0], [1], [0, 0, 1, 1], [], []>} : vector<64x128xbf16>, vector<128x256xbf16>, vector<64x256xf32> -> vector<64x256xf32>
    %c0_4 = arith.constant 0 : index
    %c0_5 = arith.constant 0 : index
    %5 = vector.load %arg3[%c0_4, %c0_5] : memref<1x256xf32, #tpu.memory_space<vmem>>, vector<1x256xf32>
    %6 = vector.broadcast %5 : vector<1x256xf32> to vector<64x256xf32>
    %7 = arith.addf %4, %6 : vector<64x256xf32>
    %8 = vector.extract_strided_slice %0 {offsets = [1, 0], sizes = [64, 128], strides = [1, 1]} : vector<80x128xbf16> to vector<64x128xbf16>
    %c1 = arith.constant 1 : index
    %c0_6 = arith.constant 0 : index
    %c0_7 = arith.constant 0 : index
    %9 = vector.load %arg2[%c1, %c0_6, %c0_7] : memref<9x128x256xbf16, #tpu.memory_space<vmem>>, vector<1x128x256xbf16>
    %10 = vector.shape_cast %9 : vector<1x128x256xbf16> to vector<128x256xbf16>
    %cst_8 = arith.constant dense<0.000000e+00> : vector<64x256xf32>
    %11 = tpu.matmul %8, %10, %cst_8 {dimension_numbers = #tpu.dot_dimension_numbers<[1], [0], [0], [1], [0, 0, 1, 1], [], []>} : vector<64x128xbf16>, vector<128x256xbf16>, vector<64x256xf32> -> vector<64x256xf32>
    %12 = arith.addf %7, %11 : vector<64x256xf32>
    %13 = vector.extract_strided_slice %0 {offsets = [2, 0], sizes = [64, 128], strides = [1, 1]} : vector<80x128xbf16> to vector<64x128xbf16>
    %c2 = arith.constant 2 : index
    %c0_9 = arith.constant 0 : index
    %c0_10 = arith.constant 0 : index
    %14 = vector.load %arg2[%c2, %c0_9, %c0_10] : memref<9x128x256xbf16, #tpu.memory_space<vmem>>, vector<1x128x256xbf16>
    %15 = vector.shape_cast %14 : vector<1x128x256xbf16> to vector<128x256xbf16>
    %cst_11 = arith.constant dense<0.000000e+00> : vector<64x256xf32>
    %16 = tpu.matmul %13, %15, %cst_11 {dimension_numbers = #tpu.dot_dimension_numbers<[1], [0], [0], [1], [0, 0, 1, 1], [], []>} : vector<64x128xbf16>, vector<128x256xbf16>, vector<64x256xf32> -> vector<64x256xf32>
    %17 = arith.addf %12, %16 : vector<64x256xf32>
    %18 = vector.extract_strided_slice %0 {offsets = [5, 0], sizes = [64, 128], strides = [1, 1]} : vector<80x128xbf16> to vector<64x128xbf16>
    %c3 = arith.constant 3 : index
    %c0_12 = arith.constant 0 : index
    %c0_13 = arith.constant 0 : index
    %19 = vector.load %arg2[%c3, %c0_12, %c0_13] : memref<9x128x256xbf16, #tpu.memory_space<vmem>>, vector<1x128x256xbf16>
    %20 = vector.shape_cast %19 : vector<1x128x256xbf16> to vector<128x256xbf16>
    %cst_14 = arith.constant dense<0.000000e+00> : vector<64x256xf32>
    %21 = tpu.matmul %18, %20, %cst_14 {dimension_numbers = #tpu.dot_dimension_numbers<[1], [0], [0], [1], [0, 0, 1, 1], [], []>} : vector<64x128xbf16>, vector<128x256xbf16>, vector<64x256xf32> -> vector<64x256xf32>
    %22 = arith.addf %17, %21 : vector<64x256xf32>
    %23 = vector.extract_strided_slice %0 {offsets = [6, 0], sizes = [64, 128], strides = [1, 1]} : vector<80x128xbf16> to vector<64x128xbf16>
    %c4 = arith.constant 4 : index
    %c0_15 = arith.constant 0 : index
    %c0_16 = arith.constant 0 : index
    %24 = vector.load %arg2[%c4, %c0_15, %c0_16] : memref<9x128x256xbf16, #tpu.memory_space<vmem>>, vector<1x128x256xbf16>
    %25 = vector.shape_cast %24 : vector<1x128x256xbf16> to vector<128x256xbf16>
    %cst_17 = arith.constant dense<0.000000e+00> : vector<64x256xf32>
    %26 = tpu.matmul %23, %25, %cst_17 {dimension_numbers = #tpu.dot_dimension_numbers<[1], [0], [0], [1], [0, 0, 1, 1], [], []>} : vector<64x128xbf16>, vector<128x256xbf16>, vector<64x256xf32> -> vector<64x256xf32>
    %27 = arith.addf %22, %26 : vector<64x256xf32>
    %28 = vector.extract_strided_slice %0 {offsets = [7, 0], sizes = [64, 128], strides = [1, 1]} : vector<80x128xbf16> to vector<64x128xbf16>
    %c5 = arith.constant 5 : index
    %c0_18 = arith.constant 0 : index
    %c0_19 = arith.constant 0 : index
    %29 = vector.load %arg2[%c5, %c0_18, %c0_19] : memref<9x128x256xbf16, #tpu.memory_space<vmem>>, vector<1x128x256xbf16>
    %30 = vector.shape_cast %29 : vector<1x128x256xbf16> to vector<128x256xbf16>
    %cst_20 = arith.constant dense<0.000000e+00> : vector<64x256xf32>
    %31 = tpu.matmul %28, %30, %cst_20 {dimension_numbers = #tpu.dot_dimension_numbers<[1], [0], [0], [1], [0, 0, 1, 1], [], []>} : vector<64x128xbf16>, vector<128x256xbf16>, vector<64x256xf32> -> vector<64x256xf32>
    %32 = arith.addf %27, %31 : vector<64x256xf32>
    %33 = vector.extract_strided_slice %0 {offsets = [10, 0], sizes = [64, 128], strides = [1, 1]} : vector<80x128xbf16> to vector<64x128xbf16>
    %c6 = arith.constant 6 : index
    %c0_21 = arith.constant 0 : index
    %c0_22 = arith.constant 0 : index
    %34 = vector.load %arg2[%c6, %c0_21, %c0_22] : memref<9x128x256xbf16, #tpu.memory_space<vmem>>, vector<1x128x256xbf16>
    %35 = vector.shape_cast %34 : vector<1x128x256xbf16> to vector<128x256xbf16>
    %cst_23 = arith.constant dense<0.000000e+00> : vector<64x256xf32>
    %36 = tpu.matmul %33, %35, %cst_23 {dimension_numbers = #tpu.dot_dimension_numbers<[1], [0], [0], [1], [0, 0, 1, 1], [], []>} : vector<64x128xbf16>, vector<128x256xbf16>, vector<64x256xf32> -> vector<64x256xf32>
    %37 = arith.addf %32, %36 : vector<64x256xf32>
    %38 = vector.extract_strided_slice %0 {offsets = [11, 0], sizes = [64, 128], strides = [1, 1]} : vector<80x128xbf16> to vector<64x128xbf16>
    %c7 = arith.constant 7 : index
    %c0_24 = arith.constant 0 : index
    %c0_25 = arith.constant 0 : index
    %39 = vector.load %arg2[%c7, %c0_24, %c0_25] : memref<9x128x256xbf16, #tpu.memory_space<vmem>>, vector<1x128x256xbf16>
    %40 = vector.shape_cast %39 : vector<1x128x256xbf16> to vector<128x256xbf16>
    %cst_26 = arith.constant dense<0.000000e+00> : vector<64x256xf32>
    %41 = tpu.matmul %38, %40, %cst_26 {dimension_numbers = #tpu.dot_dimension_numbers<[1], [0], [0], [1], [0, 0, 1, 1], [], []>} : vector<64x128xbf16>, vector<128x256xbf16>, vector<64x256xf32> -> vector<64x256xf32>
    %42 = arith.addf %37, %41 : vector<64x256xf32>
    %43 = vector.extract_strided_slice %0 {offsets = [12, 0], sizes = [64, 128], strides = [1, 1]} : vector<80x128xbf16> to vector<64x128xbf16>
    %c8 = arith.constant 8 : index
    %c0_27 = arith.constant 0 : index
    %c0_28 = arith.constant 0 : index
    %44 = vector.load %arg2[%c8, %c0_27, %c0_28] : memref<9x128x256xbf16, #tpu.memory_space<vmem>>, vector<1x128x256xbf16>
    %45 = vector.shape_cast %44 : vector<1x128x256xbf16> to vector<128x256xbf16>
    %cst_29 = arith.constant dense<0.000000e+00> : vector<64x256xf32>
    %46 = tpu.matmul %43, %45, %cst_29 {dimension_numbers = #tpu.dot_dimension_numbers<[1], [0], [0], [1], [0, 0, 1, 1], [], []>} : vector<64x128xbf16>, vector<128x256xbf16>, vector<64x256xf32> -> vector<64x256xf32>
    %47 = arith.addf %42, %46 : vector<64x256xf32>
    %cst_30 = arith.constant 0.000000e+00 : f32
    %48 = vector.broadcast %cst_30 : f32 to vector<64x256xf32>
    %49 = arith.maximumf %47, %48 : vector<64x256xf32>
    %50 = arith.truncf %49 : vector<64x256xf32> to vector<64x256xbf16>
    %c0_31 = arith.constant 0 : index
    %c0_32 = arith.constant 0 : index
    %51 = vector.load %arg4[%c0_31, %c0_32] : memref<64x256xbf16, #tpu.memory_space<vmem>>, vector<64x256xbf16>
    tpu.vector_store %arg4[%c0_31, %c0_32], %50 {strides = array<i32>} : memref<64x256xbf16, #tpu.memory_space<vmem>>, vector<64x256xbf16>,
    return
  }
  func.func @transform_0(%arg0: i32) -> (i32, i32) {
    %c0_i32 = arith.constant 0 : i32
    %c0_i32_0 = arith.constant 0 : i32
    %c0_i32_1 = arith.constant 0 : i32
    return %c0_i32, %c0_i32_0 : i32, i32
  }
  func.func @transform_1(%arg0: i32) -> (i32, i32, i32) {
    %c0_i32 = arith.constant 0 : i32
    %c0_i32_0 = arith.constant 0 : i32
    %c0_i32_1 = arith.constant 0 : i32
    return %c0_i32, %c0_i32_0, %arg0 : i32, i32, i32
  }
  func.func @transform_2(%arg0: i32) -> (i32, i32) {
    %c0_i32 = arith.constant 0 : i32
    %c0_i32_0 = arith.constant 0 : i32
    return %c0_i32, %arg0 : i32, i32
  }
  func.func @transform_3(%arg0: i32) -> (i32, i32) {
    %c0_i32 = arith.constant 0 : i32
    %c0_i32_0 = arith.constant 0 : i32
    return %c0_i32, %arg0 : i32, i32
  }
}

module attributes {stable_mosaic.version = 11 : i64} {
  func.func @_conv_implicit_kernel(%arg0: i32, %arg1: memref<80x256xbf16, #tpu.memory_space<vmem>>, %arg2: memref<9x256x128xbf16, #tpu.memory_space<vmem>>, %arg3: memref<1x128xf32, #tpu.memory_space<vmem>>, %arg4: memref<64x128xbf16, #tpu.memory_space<vmem>>) attributes {dimension_semantics = [#tpu.dimension_semantics<parallel>], iteration_bounds = array<i64: 1>, scalar_prefetch = 0 : i64, scratch_operands = 0 : i64, tpu.core_type = #tpu.core_type<tc>, window_params = [{pipeline_mode = #tpu.pipeline_mode<synchronous>, transform_indices = @transform_0, window_bounds = array<i64: 80, 256>}, {transform_indices = @transform_1, window_bounds = array<i64: 9, 256, 128>}, {transform_indices = @transform_2, window_bounds = array<i64: 1, 128>}, {transform_indices = @transform_3, window_bounds = array<i64: 64, 128>}]} {
    %c0 = arith.constant 0 : index
    %c0_0 = arith.constant 0 : index
    %0 = vector.load %arg1[%c0, %c0_0] : memref<80x256xbf16, #tpu.memory_space<vmem>>, vector<80x256xbf16>
    %1 = vector.extract_strided_slice %0 {offsets = [0, 0], sizes = [64, 256], strides = [1, 1]} : vector<80x256xbf16> to vector<64x256xbf16>
    %c0_1 = arith.constant 0 : index
    %c0_2 = arith.constant 0 : index
    %c0_3 = arith.constant 0 : index
    %2 = vector.load %arg2[%c0_1, %c0_2, %c0_3] : memref<9x256x128xbf16, #tpu.memory_space<vmem>>, vector<1x256x128xbf16>
    %3 = vector.shape_cast %2 : vector<1x256x128xbf16> to vector<256x128xbf16>
    %cst = arith.constant dense<0.000000e+00> : vector<64x128xf32>
    %4 = tpu.matmul %1, %3, %cst {dimension_numbers = #tpu.dot_dimension_numbers<[1], [0], [0], [1], [0, 0, 1, 1], [], []>} : vector<64x256xbf16>, vector<256x128xbf16>, vector<64x128xf32> -> vector<64x128xf32>
    %c0_4 = arith.constant 0 : index
    %c0_5 = arith.constant 0 : index
    %5 = vector.load %arg3[%c0_4, %c0_5] : memref<1x128xf32, #tpu.memory_space<vmem>>, vector<1x128xf32>
    %6 = vector.broadcast %5 : vector<1x128xf32> to vector<64x128xf32>
    %7 = arith.addf %4, %6 : vector<64x128xf32>
    %8 = vector.extract_strided_slice %0 {offsets = [1, 0], sizes = [64, 256], strides = [1, 1]} : vector<80x256xbf16> to vector<64x256xbf16>
    %c1 = arith.constant 1 : index
    %c0_6 = arith.constant 0 : index
    %c0_7 = arith.constant 0 : index
    %9 = vector.load %arg2[%c1, %c0_6, %c0_7] : memref<9x256x128xbf16, #tpu.memory_space<vmem>>, vector<1x256x128xbf16>
    %10 = vector.shape_cast %9 : vector<1x256x128xbf16> to vector<256x128xbf16>
    %cst_8 = arith.constant dense<0.000000e+00> : vector<64x128xf32>
    %11 = tpu.matmul %8, %10, %cst_8 {dimension_numbers = #tpu.dot_dimension_numbers<[1], [0], [0], [1], [0, 0, 1, 1], [], []>} : vector<64x256xbf16>, vector<256x128xbf16>, vector<64x128xf32> -> vector<64x128xf32>
    %12 = arith.addf %7, %11 : vector<64x128xf32>
    %13 = vector.extract_strided_slice %0 {offsets = [2, 0], sizes = [64, 256], strides = [1, 1]} : vector<80x256xbf16> to vector<64x256xbf16>
    %c2 = arith.constant 2 : index
    %c0_9 = arith.constant 0 : index
    %c0_10 = arith.constant 0 : index
    %14 = vector.load %arg2[%c2, %c0_9, %c0_10] : memref<9x256x128xbf16, #tpu.memory_space<vmem>>, vector<1x256x128xbf16>
    %15 = vector.shape_cast %14 : vector<1x256x128xbf16> to vector<256x128xbf16>
    %cst_11 = arith.constant dense<0.000000e+00> : vector<64x128xf32>
    %16 = tpu.matmul %13, %15, %cst_11 {dimension_numbers = #tpu.dot_dimension_numbers<[1], [0], [0], [1], [0, 0, 1, 1], [], []>} : vector<64x256xbf16>, vector<256x128xbf16>, vector<64x128xf32> -> vector<64x128xf32>
    %17 = arith.addf %12, %16 : vector<64x128xf32>
    %18 = vector.extract_strided_slice %0 {offsets = [5, 0], sizes = [64, 256], strides = [1, 1]} : vector<80x256xbf16> to vector<64x256xbf16>
    %c3 = arith.constant 3 : index
    %c0_12 = arith.constant 0 : index
    %c0_13 = arith.constant 0 : index
    %19 = vector.load %arg2[%c3, %c0_12, %c0_13] : memref<9x256x128xbf16, #tpu.memory_space<vmem>>, vector<1x256x128xbf16>
    %20 = vector.shape_cast %19 : vector<1x256x128xbf16> to vector<256x128xbf16>
    %cst_14 = arith.constant dense<0.000000e+00> : vector<64x128xf32>
    %21 = tpu.matmul %18, %20, %cst_14 {dimension_numbers = #tpu.dot_dimension_numbers<[1], [0], [0], [1], [0, 0, 1, 1], [], []>} : vector<64x256xbf16>, vector<256x128xbf16>, vector<64x128xf32> -> vector<64x128xf32>
    %22 = arith.addf %17, %21 : vector<64x128xf32>
    %23 = vector.extract_strided_slice %0 {offsets = [6, 0], sizes = [64, 256], strides = [1, 1]} : vector<80x256xbf16> to vector<64x256xbf16>
    %c4 = arith.constant 4 : index
    %c0_15 = arith.constant 0 : index
    %c0_16 = arith.constant 0 : index
    %24 = vector.load %arg2[%c4, %c0_15, %c0_16] : memref<9x256x128xbf16, #tpu.memory_space<vmem>>, vector<1x256x128xbf16>
    %25 = vector.shape_cast %24 : vector<1x256x128xbf16> to vector<256x128xbf16>
    %cst_17 = arith.constant dense<0.000000e+00> : vector<64x128xf32>
    %26 = tpu.matmul %23, %25, %cst_17 {dimension_numbers = #tpu.dot_dimension_numbers<[1], [0], [0], [1], [0, 0, 1, 1], [], []>} : vector<64x256xbf16>, vector<256x128xbf16>, vector<64x128xf32> -> vector<64x128xf32>
    %27 = arith.addf %22, %26 : vector<64x128xf32>
    %28 = vector.extract_strided_slice %0 {offsets = [7, 0], sizes = [64, 256], strides = [1, 1]} : vector<80x256xbf16> to vector<64x256xbf16>
    %c5 = arith.constant 5 : index
    %c0_18 = arith.constant 0 : index
    %c0_19 = arith.constant 0 : index
    %29 = vector.load %arg2[%c5, %c0_18, %c0_19] : memref<9x256x128xbf16, #tpu.memory_space<vmem>>, vector<1x256x128xbf16>
    %30 = vector.shape_cast %29 : vector<1x256x128xbf16> to vector<256x128xbf16>
    %cst_20 = arith.constant dense<0.000000e+00> : vector<64x128xf32>
    %31 = tpu.matmul %28, %30, %cst_20 {dimension_numbers = #tpu.dot_dimension_numbers<[1], [0], [0], [1], [0, 0, 1, 1], [], []>} : vector<64x256xbf16>, vector<256x128xbf16>, vector<64x128xf32> -> vector<64x128xf32>
    %32 = arith.addf %27, %31 : vector<64x128xf32>
    %33 = vector.extract_strided_slice %0 {offsets = [10, 0], sizes = [64, 256], strides = [1, 1]} : vector<80x256xbf16> to vector<64x256xbf16>
    %c6 = arith.constant 6 : index
    %c0_21 = arith.constant 0 : index
    %c0_22 = arith.constant 0 : index
    %34 = vector.load %arg2[%c6, %c0_21, %c0_22] : memref<9x256x128xbf16, #tpu.memory_space<vmem>>, vector<1x256x128xbf16>
    %35 = vector.shape_cast %34 : vector<1x256x128xbf16> to vector<256x128xbf16>
    %cst_23 = arith.constant dense<0.000000e+00> : vector<64x128xf32>
    %36 = tpu.matmul %33, %35, %cst_23 {dimension_numbers = #tpu.dot_dimension_numbers<[1], [0], [0], [1], [0, 0, 1, 1], [], []>} : vector<64x256xbf16>, vector<256x128xbf16>, vector<64x128xf32> -> vector<64x128xf32>
    %37 = arith.addf %32, %36 : vector<64x128xf32>
    %38 = vector.extract_strided_slice %0 {offsets = [11, 0], sizes = [64, 256], strides = [1, 1]} : vector<80x256xbf16> to vector<64x256xbf16>
    %c7 = arith.constant 7 : index
    %c0_24 = arith.constant 0 : index
    %c0_25 = arith.constant 0 : index
    %39 = vector.load %arg2[%c7, %c0_24, %c0_25] : memref<9x256x128xbf16, #tpu.memory_space<vmem>>, vector<1x256x128xbf16>
    %40 = vector.shape_cast %39 : vector<1x256x128xbf16> to vector<256x128xbf16>
    %cst_26 = arith.constant dense<0.000000e+00> : vector<64x128xf32>
    %41 = tpu.matmul %38, %40, %cst_26 {dimension_numbers = #tpu.dot_dimension_numbers<[1], [0], [0], [1], [0, 0, 1, 1], [], []>} : vector<64x256xbf16>, vector<256x128xbf16>, vector<64x128xf32> -> vector<64x128xf32>
    %42 = arith.addf %37, %41 : vector<64x128xf32>
    %43 = vector.extract_strided_slice %0 {offsets = [12, 0], sizes = [64, 256], strides = [1, 1]} : vector<80x256xbf16> to vector<64x256xbf16>
    %c8 = arith.constant 8 : index
    %c0_27 = arith.constant 0 : index
    %c0_28 = arith.constant 0 : index
    %44 = vector.load %arg2[%c8, %c0_27, %c0_28] : memref<9x256x128xbf16, #tpu.memory_space<vmem>>, vector<1x256x128xbf16>
    %45 = vector.shape_cast %44 : vector<1x256x128xbf16> to vector<256x128xbf16>
    %cst_29 = arith.constant dense<0.000000e+00> : vector<64x128xf32>
    %46 = tpu.matmul %43, %45, %cst_29 {dimension_numbers = #tpu.dot_dimension_numbers<[1], [0], [0], [1], [0, 0, 1, 1], [], []>} : vector<64x256xbf16>, vector<256x128xbf16>, vector<64x128xf32> -> vector<64x128xf32>
    %47 = arith.addf %42, %46 : vector<64x128xf32>
    %cst_30 = arith.constant 0.000000e+00 : f32
    %48 = vector.broadcast %cst_30 : f32 to vector<64x128xf32>
    %49 = arith.maximumf %47, %48 : vector<64x128xf32>
    %50 = arith.truncf %49 : vector<64x128xf32> to vector<64x128xbf16>
    %c0_31 = arith.constant 0 : index
    %c0_32 = arith.constant 0 : index
    %51 = vector.load %arg4[%c0_31, %c0_32] : memref<64x128xbf16, #tpu.memory_space<vmem>>, vector<64x128xbf16>
    tpu.vector_store %arg4[%c0_31, %c0_32], %50 {strides = array<i32>} : memref<64x128xbf16, #tpu.memory_space<vmem>>, vector<64x128xbf16>,
    return
  }
  func.func @transform_0(%arg0: i32) -> (i32, i32) {
    %c0_i32 = arith.constant 0 : i32
    %c0_i32_0 = arith.constant 0 : i32
    %c0_i32_1 = arith.constant 0 : i32
    return %c0_i32, %c0_i32_0 : i32, i32
  }
  func.func @transform_1(%arg0: i32) -> (i32, i32, i32) {
    %c0_i32 = arith.constant 0 : i32
    %c0_i32_0 = arith.constant 0 : i32
    %c0_i32_1 = arith.constant 0 : i32
    return %c0_i32, %c0_i32_0, %arg0 : i32, i32, i32
  }
  func.func @transform_2(%arg0: i32) -> (i32, i32) {
    %c0_i32 = arith.constant 0 : i32
    %c0_i32_0 = arith.constant 0 : i32
    return %c0_i32, %arg0 : i32, i32
  }
  func.func @transform_3(%arg0: i32) -> (i32, i32) {
    %c0_i32 = arith.constant 0 : i32
    %c0_i32_0 = arith.constant 0 : i32
    return %c0_i32, %arg0 : i32, i32
  }
}

module attributes {stable_mosaic.version = 11 : i64} {
  func.func @_conv_implicit_kernel(%arg0: i32, %arg1: memref<80x128xbf16, #tpu.memory_space<vmem>>, %arg2: memref<9x128x128xbf16, #tpu.memory_space<vmem>>, %arg3: memref<1x128xf32, #tpu.memory_space<vmem>>, %arg4: memref<64x128xbf16, #tpu.memory_space<vmem>>) attributes {dimension_semantics = [#tpu.dimension_semantics<parallel>], iteration_bounds = array<i64: 1>, scalar_prefetch = 0 : i64, scratch_operands = 0 : i64, tpu.core_type = #tpu.core_type<tc>, window_params = [{pipeline_mode = #tpu.pipeline_mode<synchronous>, transform_indices = @transform_0, window_bounds = array<i64: 80, 128>}, {transform_indices = @transform_1, window_bounds = array<i64: 9, 128, 128>}, {transform_indices = @transform_2, window_bounds = array<i64: 1, 128>}, {transform_indices = @transform_3, window_bounds = array<i64: 64, 128>}]} {
    %c0 = arith.constant 0 : index
    %c0_0 = arith.constant 0 : index
    %0 = vector.load %arg1[%c0, %c0_0] : memref<80x128xbf16, #tpu.memory_space<vmem>>, vector<80x128xbf16>
    %1 = vector.extract_strided_slice %0 {offsets = [0, 0], sizes = [64, 128], strides = [1, 1]} : vector<80x128xbf16> to vector<64x128xbf16>
    %c0_1 = arith.constant 0 : index
    %c0_2 = arith.constant 0 : index
    %c0_3 = arith.constant 0 : index
    %2 = vector.load %arg2[%c0_1, %c0_2, %c0_3] : memref<9x128x128xbf16, #tpu.memory_space<vmem>>, vector<1x128x128xbf16>
    %3 = vector.shape_cast %2 : vector<1x128x128xbf16> to vector<128x128xbf16>
    %cst = arith.constant dense<0.000000e+00> : vector<64x128xf32>
    %4 = tpu.matmul %1, %3, %cst {dimension_numbers = #tpu.dot_dimension_numbers<[1], [0], [0], [1], [0, 0, 1, 1], [], []>} : vector<64x128xbf16>, vector<128x128xbf16>, vector<64x128xf32> -> vector<64x128xf32>
    %c0_4 = arith.constant 0 : index
    %c0_5 = arith.constant 0 : index
    %5 = vector.load %arg3[%c0_4, %c0_5] : memref<1x128xf32, #tpu.memory_space<vmem>>, vector<1x128xf32>
    %6 = vector.broadcast %5 : vector<1x128xf32> to vector<64x128xf32>
    %7 = arith.addf %4, %6 : vector<64x128xf32>
    %8 = vector.extract_strided_slice %0 {offsets = [1, 0], sizes = [64, 128], strides = [1, 1]} : vector<80x128xbf16> to vector<64x128xbf16>
    %c1 = arith.constant 1 : index
    %c0_6 = arith.constant 0 : index
    %c0_7 = arith.constant 0 : index
    %9 = vector.load %arg2[%c1, %c0_6, %c0_7] : memref<9x128x128xbf16, #tpu.memory_space<vmem>>, vector<1x128x128xbf16>
    %10 = vector.shape_cast %9 : vector<1x128x128xbf16> to vector<128x128xbf16>
    %cst_8 = arith.constant dense<0.000000e+00> : vector<64x128xf32>
    %11 = tpu.matmul %8, %10, %cst_8 {dimension_numbers = #tpu.dot_dimension_numbers<[1], [0], [0], [1], [0, 0, 1, 1], [], []>} : vector<64x128xbf16>, vector<128x128xbf16>, vector<64x128xf32> -> vector<64x128xf32>
    %12 = arith.addf %7, %11 : vector<64x128xf32>
    %13 = vector.extract_strided_slice %0 {offsets = [2, 0], sizes = [64, 128], strides = [1, 1]} : vector<80x128xbf16> to vector<64x128xbf16>
    %c2 = arith.constant 2 : index
    %c0_9 = arith.constant 0 : index
    %c0_10 = arith.constant 0 : index
    %14 = vector.load %arg2[%c2, %c0_9, %c0_10] : memref<9x128x128xbf16, #tpu.memory_space<vmem>>, vector<1x128x128xbf16>
    %15 = vector.shape_cast %14 : vector<1x128x128xbf16> to vector<128x128xbf16>
    %cst_11 = arith.constant dense<0.000000e+00> : vector<64x128xf32>
    %16 = tpu.matmul %13, %15, %cst_11 {dimension_numbers = #tpu.dot_dimension_numbers<[1], [0], [0], [1], [0, 0, 1, 1], [], []>} : vector<64x128xbf16>, vector<128x128xbf16>, vector<64x128xf32> -> vector<64x128xf32>
    %17 = arith.addf %12, %16 : vector<64x128xf32>
    %18 = vector.extract_strided_slice %0 {offsets = [5, 0], sizes = [64, 128], strides = [1, 1]} : vector<80x128xbf16> to vector<64x128xbf16>
    %c3 = arith.constant 3 : index
    %c0_12 = arith.constant 0 : index
    %c0_13 = arith.constant 0 : index
    %19 = vector.load %arg2[%c3, %c0_12, %c0_13] : memref<9x128x128xbf16, #tpu.memory_space<vmem>>, vector<1x128x128xbf16>
    %20 = vector.shape_cast %19 : vector<1x128x128xbf16> to vector<128x128xbf16>
    %cst_14 = arith.constant dense<0.000000e+00> : vector<64x128xf32>
    %21 = tpu.matmul %18, %20, %cst_14 {dimension_numbers = #tpu.dot_dimension_numbers<[1], [0], [0], [1], [0, 0, 1, 1], [], []>} : vector<64x128xbf16>, vector<128x128xbf16>, vector<64x128xf32> -> vector<64x128xf32>
    %22 = arith.addf %17, %21 : vector<64x128xf32>
    %23 = vector.extract_strided_slice %0 {offsets = [6, 0], sizes = [64, 128], strides = [1, 1]} : vector<80x128xbf16> to vector<64x128xbf16>
    %c4 = arith.constant 4 : index
    %c0_15 = arith.constant 0 : index
    %c0_16 = arith.constant 0 : index
    %24 = vector.load %arg2[%c4, %c0_15, %c0_16] : memref<9x128x128xbf16, #tpu.memory_space<vmem>>, vector<1x128x128xbf16>
    %25 = vector.shape_cast %24 : vector<1x128x128xbf16> to vector<128x128xbf16>
    %cst_17 = arith.constant dense<0.000000e+00> : vector<64x128xf32>
    %26 = tpu.matmul %23, %25, %cst_17 {dimension_numbers = #tpu.dot_dimension_numbers<[1], [0], [0], [1], [0, 0, 1, 1], [], []>} : vector<64x128xbf16>, vector<128x128xbf16>, vector<64x128xf32> -> vector<64x128xf32>
    %27 = arith.addf %22, %26 : vector<64x128xf32>
    %28 = vector.extract_strided_slice %0 {offsets = [7, 0], sizes = [64, 128], strides = [1, 1]} : vector<80x128xbf16> to vector<64x128xbf16>
    %c5 = arith.constant 5 : index
    %c0_18 = arith.constant 0 : index
    %c0_19 = arith.constant 0 : index
    %29 = vector.load %arg2[%c5, %c0_18, %c0_19] : memref<9x128x128xbf16, #tpu.memory_space<vmem>>, vector<1x128x128xbf16>
    %30 = vector.shape_cast %29 : vector<1x128x128xbf16> to vector<128x128xbf16>
    %cst_20 = arith.constant dense<0.000000e+00> : vector<64x128xf32>
    %31 = tpu.matmul %28, %30, %cst_20 {dimension_numbers = #tpu.dot_dimension_numbers<[1], [0], [0], [1], [0, 0, 1, 1], [], []>} : vector<64x128xbf16>, vector<128x128xbf16>, vector<64x128xf32> -> vector<64x128xf32>
    %32 = arith.addf %27, %31 : vector<64x128xf32>
    %33 = vector.extract_strided_slice %0 {offsets = [10, 0], sizes = [64, 128], strides = [1, 1]} : vector<80x128xbf16> to vector<64x128xbf16>
    %c6 = arith.constant 6 : index
    %c0_21 = arith.constant 0 : index
    %c0_22 = arith.constant 0 : index
    %34 = vector.load %arg2[%c6, %c0_21, %c0_22] : memref<9x128x128xbf16, #tpu.memory_space<vmem>>, vector<1x128x128xbf16>
    %35 = vector.shape_cast %34 : vector<1x128x128xbf16> to vector<128x128xbf16>
    %cst_23 = arith.constant dense<0.000000e+00> : vector<64x128xf32>
    %36 = tpu.matmul %33, %35, %cst_23 {dimension_numbers = #tpu.dot_dimension_numbers<[1], [0], [0], [1], [0, 0, 1, 1], [], []>} : vector<64x128xbf16>, vector<128x128xbf16>, vector<64x128xf32> -> vector<64x128xf32>
    %37 = arith.addf %32, %36 : vector<64x128xf32>
    %38 = vector.extract_strided_slice %0 {offsets = [11, 0], sizes = [64, 128], strides = [1, 1]} : vector<80x128xbf16> to vector<64x128xbf16>
    %c7 = arith.constant 7 : index
    %c0_24 = arith.constant 0 : index
    %c0_25 = arith.constant 0 : index
    %39 = vector.load %arg2[%c7, %c0_24, %c0_25] : memref<9x128x128xbf16, #tpu.memory_space<vmem>>, vector<1x128x128xbf16>
    %40 = vector.shape_cast %39 : vector<1x128x128xbf16> to vector<128x128xbf16>
    %cst_26 = arith.constant dense<0.000000e+00> : vector<64x128xf32>
    %41 = tpu.matmul %38, %40, %cst_26 {dimension_numbers = #tpu.dot_dimension_numbers<[1], [0], [0], [1], [0, 0, 1, 1], [], []>} : vector<64x128xbf16>, vector<128x128xbf16>, vector<64x128xf32> -> vector<64x128xf32>
    %42 = arith.addf %37, %41 : vector<64x128xf32>
    %43 = vector.extract_strided_slice %0 {offsets = [12, 0], sizes = [64, 128], strides = [1, 1]} : vector<80x128xbf16> to vector<64x128xbf16>
    %c8 = arith.constant 8 : index
    %c0_27 = arith.constant 0 : index
    %c0_28 = arith.constant 0 : index
    %44 = vector.load %arg2[%c8, %c0_27, %c0_28] : memref<9x128x128xbf16, #tpu.memory_space<vmem>>, vector<1x128x128xbf16>
    %45 = vector.shape_cast %44 : vector<1x128x128xbf16> to vector<128x128xbf16>
    %cst_29 = arith.constant dense<0.000000e+00> : vector<64x128xf32>
    %46 = tpu.matmul %43, %45, %cst_29 {dimension_numbers = #tpu.dot_dimension_numbers<[1], [0], [0], [1], [0, 0, 1, 1], [], []>} : vector<64x128xbf16>, vector<128x128xbf16>, vector<64x128xf32> -> vector<64x128xf32>
    %47 = arith.addf %42, %46 : vector<64x128xf32>
    %cst_30 = arith.constant 0.000000e+00 : f32
    %48 = vector.broadcast %cst_30 : f32 to vector<64x128xf32>
    %49 = arith.maximumf %47, %48 : vector<64x128xf32>
    %50 = arith.truncf %49 : vector<64x128xf32> to vector<64x128xbf16>
    %c0_31 = arith.constant 0 : index
    %c0_32 = arith.constant 0 : index
    %51 = vector.load %arg4[%c0_31, %c0_32] : memref<64x128xbf16, #tpu.memory_space<vmem>>, vector<64x128xbf16>
    tpu.vector_store %arg4[%c0_31, %c0_32], %50 {strides = array<i32>} : memref<64x128xbf16, #tpu.memory_space<vmem>>, vector<64x128xbf16>,
    return
  }
  func.func @transform_0(%arg0: i32) -> (i32, i32) {
    %c0_i32 = arith.constant 0 : i32
    %c0_i32_0 = arith.constant 0 : i32
    %c0_i32_1 = arith.constant 0 : i32
    return %c0_i32, %c0_i32_0 : i32, i32
  }
  func.func @transform_1(%arg0: i32) -> (i32, i32, i32) {
    %c0_i32 = arith.constant 0 : i32
    %c0_i32_0 = arith.constant 0 : i32
    %c0_i32_1 = arith.constant 0 : i32
    return %c0_i32, %c0_i32_0, %arg0 : i32, i32, i32
  }
  func.func @transform_2(%arg0: i32) -> (i32, i32) {
    %c0_i32 = arith.constant 0 : i32
    %c0_i32_0 = arith.constant 0 : i32
    return %c0_i32, %arg0 : i32, i32
  }
  func.func @transform_3(%arg0: i32) -> (i32, i32) {
    %c0_i32 = arith.constant 0 : i32
    %c0_i32_0 = arith.constant 0 : i32
    return %c0_i32, %arg0 : i32, i32
  }
}

module attributes {stable_mosaic.version = 11 : i64} {
  func.func @_classifier_kernel(%arg0: i32, %arg1: memref<2x9x128xbf16, #tpu.memory_space<vmem>>, %arg2: memref<128x128xbf16, #tpu.memory_space<vmem>>, %arg3: memref<1x128xf32, #tpu.memory_space<vmem>>, %arg4: memref<128x128xbf16, #tpu.memory_space<vmem>>, %arg5: memref<1x128xf32, #tpu.memory_space<vmem>>, %arg6: memref<2x128xf32, #tpu.memory_space<vmem>>) attributes {dimension_semantics = [#tpu.dimension_semantics<arbitrary>], iteration_bounds = array<i64: 1>, scalar_prefetch = 0 : i64, scratch_operands = 0 : i64, tpu.core_type = #tpu.core_type<tc>, window_params = [{pipeline_mode = #tpu.pipeline_mode<synchronous>, transform_indices = @transform_0, window_bounds = array<i64: 2, 9, 128>}, {pipeline_mode = #tpu.pipeline_mode<synchronous>, transform_indices = @transform_1, window_bounds = array<i64: 128, 128>}, {pipeline_mode = #tpu.pipeline_mode<synchronous>, transform_indices = @transform_2, window_bounds = array<i64: 1, 128>}, {pipeline_mode = #tpu.pipeline_mode<synchronous>, transform_indices = @transform_3, window_bounds = array<i64: 128, 128>}, {pipeline_mode = #tpu.pipeline_mode<synchronous>, transform_indices = @transform_4, window_bounds = array<i64: 1, 128>}, {pipeline_mode = #tpu.pipeline_mode<synchronous>, transform_indices = @transform_5, window_bounds = array<i64: 2, 128>}]} {
    %c0 = arith.constant 0 : index
    %c0_0 = arith.constant 0 : index
    %c0_1 = arith.constant 0 : index
    %0 = vector.load %arg1[%c0, %c0_0, %c0_1] : memref<2x9x128xbf16, #tpu.memory_space<vmem>>, vector<2x9x128xbf16>
    %cst = arith.constant dense<0xFF80> : vector<2x128xbf16>
    %1 = vector.multi_reduction <maximumf>, %0, %cst [1] : vector<2x9x128xbf16> to vector<2x128xbf16>
    %c0_2 = arith.constant 0 : index
    %c0_3 = arith.constant 0 : index
    %2 = vector.load %arg2[%c0_2, %c0_3] : memref<128x128xbf16, #tpu.memory_space<vmem>>, vector<128x128xbf16>
    %cst_4 = arith.constant dense<0.000000e+00> : vector<2x128xf32>
    %3 = tpu.matmul %1, %2, %cst_4 {dimension_numbers = #tpu.dot_dimension_numbers<[1], [0], [0], [1], [0, 0, 1, 1], [], []>} : vector<2x128xbf16>, vector<128x128xbf16>, vector<2x128xf32> -> vector<2x128xf32>
    %c0_5 = arith.constant 0 : index
    %c0_6 = arith.constant 0 : index
    %4 = vector.load %arg3[%c0_5, %c0_6] : memref<1x128xf32, #tpu.memory_space<vmem>>, vector<1x128xf32>
    %5 = vector.broadcast %4 : vector<1x128xf32> to vector<2x128xf32>
    %6 = arith.addf %3, %5 : vector<2x128xf32>
    %cst_7 = arith.constant 0.000000e+00 : f32
    %7 = vector.broadcast %cst_7 : f32 to vector<2x128xf32>
    %8 = arith.maximumf %6, %7 : vector<2x128xf32>
    %9 = arith.truncf %8 : vector<2x128xf32> to vector<2x128xbf16>
    %c0_8 = arith.constant 0 : index
    %c0_9 = arith.constant 0 : index
    %10 = vector.load %arg4[%c0_8, %c0_9] : memref<128x128xbf16, #tpu.memory_space<vmem>>, vector<128x128xbf16>
    %cst_10 = arith.constant dense<0.000000e+00> : vector<2x128xf32>
    %11 = tpu.matmul %9, %10, %cst_10 {dimension_numbers = #tpu.dot_dimension_numbers<[1], [0], [0], [1], [0, 0, 1, 1], [], []>} : vector<2x128xbf16>, vector<128x128xbf16>, vector<2x128xf32> -> vector<2x128xf32>
    %c0_11 = arith.constant 0 : index
    %c0_12 = arith.constant 0 : index
    %12 = vector.load %arg5[%c0_11, %c0_12] : memref<1x128xf32, #tpu.memory_space<vmem>>, vector<1x128xf32>
    %13 = vector.broadcast %12 : vector<1x128xf32> to vector<2x128xf32>
    %14 = arith.addf %11, %13 : vector<2x128xf32>
    %15 = tpu.iota {dimensions = array<i32: 1>} : vector<2x128xi32>
    %c10_i32 = arith.constant 10 : i32
    %16 = vector.broadcast %c10_i32 : i32 to vector<2x128xi32>
    %17 = arith.cmpi slt, %15, %16 : vector<2x128xi32>
    %cst_13 = arith.constant 0xFF800000 : f32
    %18 = vector.broadcast %cst_13 : f32 to vector<2x128xf32>
    %19 = arith.select %17, %14, %18 : vector<2x128xi1>, vector<2x128xf32>
    %cst_14 = arith.constant dense<0xFF800000> : vector<2xf32>
    %20 = vector.multi_reduction <maximumf>, %19, %cst_14 [1] : vector<2x128xf32> to vector<2xf32>
    %21 = vector.shape_cast %20 : vector<2xf32> to vector<2x1xf32>
    %22 = vector.broadcast %21 : vector<2x1xf32> to vector<2x128xf32>
    %23 = arith.subf %19, %22 : vector<2x128xf32>
    %24 = math.exp %23 : vector<2x128xf32>
    %cst_15 = arith.constant dense<0.000000e+00> : vector<2xf32>
    %25 = vector.multi_reduction <add>, %24, %cst_15 [1] : vector<2x128xf32> to vector<2xf32>
    %26 = vector.shape_cast %25 : vector<2xf32> to vector<2x1xf32>
    %27 = tpu.reciprocal %26 : vector<2x1xf32> -> vector<2x1xf32>
    %28 = vector.broadcast %27 : vector<2x1xf32> to vector<2x128xf32>
    %29 = arith.mulf %24, %28 : vector<2x128xf32>
    %c0_16 = arith.constant 0 : index
    %c0_17 = arith.constant 0 : index
    %30 = vector.load %arg6[%c0_16, %c0_17] : memref<2x128xf32, #tpu.memory_space<vmem>>, vector<2x128xf32>
    tpu.vector_store %arg6[%c0_16, %c0_17], %29 {strides = array<i32>} : memref<2x128xf32, #tpu.memory_space<vmem>>, vector<2x128xf32>,
    return
  }
  func.func @transform_0(%arg0: i32) -> (i32, i32, i32) {
    %c0_i32 = arith.constant 0 : i32
    %c0_i32_0 = arith.constant 0 : i32
    %c0_i32_1 = arith.constant 0 : i32
    %c0_i32_2 = arith.constant 0 : i32
    return %c0_i32, %c0_i32_0, %c0_i32_1 : i32, i32, i32
  }
  func.func @transform_1(%arg0: i32) -> (i32, i32) {
    %c0_i32 = arith.constant 0 : i32
    %c0_i32_0 = arith.constant 0 : i32
    %c0_i32_1 = arith.constant 0 : i32
    return %c0_i32, %c0_i32_0 : i32, i32
  }
  func.func @transform_2(%arg0: i32) -> (i32, i32) {
    %c0_i32 = arith.constant 0 : i32
    %c0_i32_0 = arith.constant 0 : i32
    %c0_i32_1 = arith.constant 0 : i32
    return %c0_i32, %c0_i32_0 : i32, i32
  }
  func.func @transform_3(%arg0: i32) -> (i32, i32) {
    %c0_i32 = arith.constant 0 : i32
    %c0_i32_0 = arith.constant 0 : i32
    %c0_i32_1 = arith.constant 0 : i32
    return %c0_i32, %c0_i32_0 : i32, i32
  }
  func.func @transform_4(%arg0: i32) -> (i32, i32) {
    %c0_i32 = arith.constant 0 : i32
    %c0_i32_0 = arith.constant 0 : i32
    %c0_i32_1 = arith.constant 0 : i32
    return %c0_i32, %c0_i32_0 : i32, i32
  }
  func.func @transform_5(%arg0: i32) -> (i32, i32) {
    %c0_i32 = arith.constant 0 : i32
    %c0_i32_0 = arith.constant 0 : i32
    %c0_i32_1 = arith.constant 0 : i32
    return %c0_i32, %c0_i32_0 : i32, i32
  }
}

</mosaic_0001>

<llo_original>
// kernel: alexnet_forward.6
$region0: #{alexnet_forward.6}
  #allocation0 [shape = 'u32[]', space=smem, size = 0x4, offset = 0x4, fixed_abs, tag = 'smem constant byte address 0x4 - core index']
  #allocation1 [shape = 'u32[144,128]{1,0:T(1,128)}', space=vmem, size = 0x12000, scoped, tag = 'internal scratch']
  %s0 = inlined_call_operand.hbm [shape: bf16[1856,128], index: 0, kind: input, shape index: {}]
  %s1 = inlined_call_operand.hbm [shape: f32[1856,1], index: 1, kind: input, shape index: {}]
  %s2 = inlined_call_operand.hbm [shape: bf16[128,128], index: 2, kind: input, shape index: {}]
  %s3 = inlined_call_operand.hbm [shape: f32[1,128], index: 3, kind: input, shape index: {}]
  %s4 = inlined_call_operand.hbm [shape: bf16[464,128], index: 4, kind: output, shape index: {}]
  %s5 = sld [smem:[#allocation0]]
  $region42: #{alexnet_forward.6} parent=0
    _
  %s7 = ssub.s32 1, %s5
  %s8 = scalar_select 0, %s7, %s5
  $region1: #{alexnet_forward.6} parent=0
    #allocation2 [shape = 'u8[475136]{0}', space=vmem, size = 0x74000, scoped, tag = 'input window, operand 0, single buffered']
    #allocation3 [shape = 's32[1]{0}', space=sflag, size = 0x4, scoped, tag = 'scoped memory for alexnet_forward.6']
    #allocation4 [shape = 's32[1]{0}', space=sflag, size = 0x4, scoped, tag = 'scoped memory for alexnet_forward.6']
    #allocation5 [shape = 'u8[950272]{0}', space=vmem, size = 0xe8000, scoped, tag = 'input window, operand 1, single buffered']
    #allocation6 [shape = 's32[1]{0}', space=sflag, size = 0x4, scoped, tag = 'scoped memory for alexnet_forward.6']
    #allocation7 [shape = 'u8[32768]{0}', space=vmem, size = 0x8000, scoped, tag = 'input window, operand 2, single buffered']
    #allocation8 [shape = 'u8[512]{0}', space=vmem, size = 0x400, scoped, tag = 'input window, operand 3, single buffered']
    #allocation9 [shape = 's32[1]{0}', space=sflag, size = 0x4, scoped, tag = 'scoped memory for alexnet_forward.6']
    #allocation10 [shape = 'u8[118784]{0}', space=vmem, size = 0x1d000, scoped, tag = 'output window, operand 0, single buffered']
    %9 = vsyncpa [#allocation3], 0
    %10 = vsyncpa [#allocation6], 0
    %11 = vsyncpa [#allocation9], 0
    %12 = vsyncpa [#allocation4], 0
    // Predicated region
    $region2: #{alexnet_forward.6} parent=1 // pred_check
      _
    $region3: #{alexnet_forward.6} parent=1 // pred_check_branch
      %14 = sbr.rel (0) target = $region5
    $region4: #{alexnet_forward.6} parent=1 // pred_region
      %s16 = ssub.s32 14848, 14848
      %17 = vsyncadd [#allocation3], %s16
      %s18 = sshll.u32 [#allocation2], 4
      %s19 = int_to_ptr.vmem [resolvable:$true] %s18
      %24 = dma.hbm_to_vmem [thread:$0]  %s0, 14848, %s19, [#allocation3], 64, 64, 4
    $region5: #{alexnet_forward.6} parent=1 // pred_fallthru
      _
    // Predicated region
    $region6: #{alexnet_forward.6} parent=1 // pred_check
      _
    $region7: #{alexnet_forward.6} parent=1 // pred_check_branch
      %26 = sbr.rel (0) target = $region9
    $region8: #{alexnet_forward.6} parent=1 // pred_region
      %s28 = ssub.s32 29696, 29696
      %29 = vsyncadd [#allocation6], %s28
      %s30 = sshll.u32 [#allocation5], 4
      %s31 = int_to_ptr.vmem [resolvable:$true] %s30
      %36 = dma.hbm_to_vmem [thread:$0]  %s1, 29696, %s31, [#allocation6], 128, 128, 8
    $region9: #{alexnet_forward.6} parent=1 // pred_fallthru
      _
    // Predicated region
    $region10: #{alexnet_forward.6} parent=1 // pred_check
      _
    $region11: #{alexnet_forward.6} parent=1 // pred_check_branch
      %38 = sbr.rel (0) target = $region13
    $region12: #{alexnet_forward.6} parent=1 // pred_region
      %s40 = ssub.s32 1024, 1024
      %41 = vsyncadd [#allocation6], %s40
      %s42 = sshll.u32 [#allocation7], 4
      %s43 = int_to_ptr.vmem [resolvable:$true] %s42
      %48 = dma.hbm_to_vmem [thread:$0]  %s2, 1024, %s43, [#allocation6], 64, 64, 4
    $region13: #{alexnet_forward.6} parent=1 // pred_fallthru
      _
    // Predicated region
    $region14: #{alexnet_forward.6} parent=1 // pred_check
      _
    $region15: #{alexnet_forward.6} parent=1 // pred_check_branch
      %50 = sbr.rel (0) target = $region17
    $region16: #{alexnet_forward.6} parent=1 // pred_region
      %s52 = ssub.s32 16, 16
      %53 = vsyncadd [#allocation9], %s52
      %s55 = sshll.u32 [#allocation8], 4
      %s56 = int_to_ptr.vmem [resolvable:$true] %s55
      %58 = dma.hbm_to_vmem [thread:$0]  %s3, 16, %s56, [#allocation9]
    $region17: #{alexnet_forward.6} parent=1 // pred_fallthru
      _
    // Predicated region
    $region18: #{alexnet_forward.6} parent=1 // pred_check
      _
    $region19: #{alexnet_forward.6} parent=1 // pred_check_branch
      %60 = sbr.rel (0) target = $region21
    $region20: #{alexnet_forward.6} parent=1 // pred_region
      %61 = dma.done [#allocation3], 14848
    $region21: #{alexnet_forward.6} parent=1 // pred_fallthru
      _
    // Predicated region
    $region22: #{alexnet_forward.6} parent=1 // pred_check
      _
    $region23: #{alexnet_forward.6} parent=1 // pred_check_branch
      %63 = sbr.rel (0) target = $region25
    $region24: #{alexnet_forward.6} parent=1 // pred_region
      %64 = dma.done [#allocation6], 29696
    $region25: #{alexnet_forward.6} parent=1 // pred_fallthru
      _
    // Predicated region
    $region26: #{alexnet_forward.6} parent=1 // pred_check
      _
    $region27: #{alexnet_forward.6} parent=1 // pred_check_branch
      %66 = sbr.rel (0) target = $region29
    $region28: #{alexnet_forward.6} parent=1 // pred_region
      %67 = dma.done [#allocation6], 1024
    $region29: #{alexnet_forward.6} parent=1 // pred_fallthru
      _
    // Predicated region
    $region30: #{alexnet_forward.6} parent=1 // pred_check
      _
    $region31: #{alexnet_forward.6} parent=1 // pred_check_branch
      %69 = sbr.rel (0) target = $region33
    $region32: #{alexnet_forward.6} parent=1 // pred_region
      %70 = dma.done [#allocation9], 16
    $region33: #{alexnet_forward.6} parent=1 // pred_fallthru
      _
    %v72 = vld [vmem:[#allocation2] sm:$0xf]
    %v73 = vld [vmem:[#allocation2 + $0x4] sm:$0xf]
    %v74 = vld [vmem:[#allocation2 + $0x8] sm:$0xf]
    %v75 = vld [vmem:[#allocation2 + $0xc] sm:$0xf]
    %v76 = vld [vmem:[#allocation2 + $0x10] sm:$0xf]
    %v77 = vld [vmem:[#allocation2 + $0x14] sm:$0xf]
    %v78 = vld [vmem:[#allocation2 + $0x18] sm:$0xf]
    %v79 = vld [vmem:[#allocation2 + $0x1c] sm:$0xf]
    %v80 = vld [vmem:[#allocation2 + $0x20] sm:$0xf]
    %v81 = vld [vmem:[#allocation2 + $0x24] sm:$0xf]
    %v82 = vld [vmem:[#allocation2 + $0x28] sm:$0xf]
    %v83 = vld [vmem:[#allocation2 + $0x2c] sm:$0xf]
    %v84 = vld [vmem:[#allocation2 + $0x30] sm:$0xf]
    %v85 = vld [vmem:[#allocation2 + $0x34] sm:$0xf]
    %v86 = vld [vmem:[#allocation2 + $0x38] sm:$0xf]
    %v87 = vld [vmem:[#allocation2 + $0x3c] sm:$0xf]
    %v88 = vld [vmem:[#allocation2 + $0x40] sm:$0xf]
    %v89 = vld [vmem:[#allocation2 + $0x44] sm:$0xf]
    %v90 = vld [vmem:[#allocation2 + $0x48] sm:$0xf]
    %v91 = vld [vmem:[#allocation2 + $0x4c] sm:$0xf]
    %v92 = vld [vmem:[#allocation2 + $0x50] sm:$0xf]
    %v93 = vld [vmem:[#allocation2 + $0x54] sm:$0xf]
    %v94 = vld [vmem:[#allocation2 + $0x58] sm:$0xf]
    %v95 = vld [vmem:[#allocation2 + $0x5c] sm:$0xf]
    %v96 = vld [vmem:[#allocation2 + $0x60] sm:$0xf]
    %v97 = vld [vmem:[#allocation2 + $0x64] sm:$0xf]
    %v98 = vld [vmem:[#allocation2 + $0x68] sm:$0xf]
    %v99 = vld [vmem:[#allocation2 + $0x6c] sm:$0xf]
    %v100 = vld [vmem:[#allocation2 + $0x70] sm:$0xf]
    %v101 = vld [vmem:[#allocation2 + $0x74] sm:$0xf]
    %v102 = vld [vmem:[#allocation2 + $0x78] sm:$0xf]
    %v103 = vld [vmem:[#allocation2 + $0x7c] sm:$0xf]
    %v104 = vld [vmem:[#allocation2 + $0x80] sm:$0xf]
    %v105 = vld [vmem:[#allocation2 + $0x84] sm:$0xf]
    %v106 = vld [vmem:[#allocation2 + $0x88] sm:$0xf]
    %v107 = vld [vmem:[#allocation2 + $0x8c] sm:$0xf]
    %v108 = vld [vmem:[#allocation2 + $0x90] sm:$0xf]
    %v109 = vld [vmem:[#allocation2 + $0x94] sm:$0xf]
    %v110 = vld [vmem:[#allocation2 + $0x98] sm:$0xf]
    %v111 = vld [vmem:[#allocation2 + $0x9c] sm:$0xf]
    %v112 = vld [vmem:[#allocation2 + $0xa0] sm:$0xf]
    %v113 = vld [vmem:[#allocation2 + $0xa4] sm:$0xf]
    %v114 = vld [vmem:[#allocation2 + $0xa8] sm:$0xf]
    %v115 = vld [vmem:[#allocation2 + $0xac] sm:$0xf]
    %v116 = vld [vmem:[#allocation2 + $0xb0] sm:$0xf]
    %v117 = vld [vmem:[#allocation2 + $0xb4] sm:$0xf]
    %v118 = vld [vmem:[#allocation2 + $0xb8] sm:$0xf]
    %v119 = vld [vmem:[#allocation2 + $0xbc] sm:$0xf]
    %v120 = vld [vmem:[#allocation2 + $0xc0] sm:$0xf]
    %v121 = vld [vmem:[#allocation2 + $0xc4] sm:$0xf]
    %v122 = vld [vmem:[#allocation2 + $0xc8] sm:$0xf]
    %v123 = vld [vmem:[#allocation2 + $0xcc] sm:$0xf]
    %v124 = vld [vmem:[#allocation2 + $0xd0] sm:$0xf]
    %v125 = vld [vmem:[#allocation2 + $0xd4] sm:$0xf]
    %v126 = vld [vmem:[#allocation2 + $0xd8] sm:$0xf]
    %v127 = vld [vmem:[#allocation2 + $0xdc] sm:$0xf]
    %v128 = vld [vmem:[#allocation2 + $0xe0] sm:$0xf]
    %v129 = vld [vmem:[#allocation2 + $0xe4] sm:$0xf]
    %v130 = vld [vmem:[#allocation2 + $0xe8] sm:$0xf]
    %v131 = vld [vmem:[#allocation2 + $0xec] sm:$0xf]
    %v132 = vld [vmem:[#allocation2 + $0xf0] sm:$0xf]
    %v133 = vld [vmem:[#allocation2 + $0xf4] sm:$0xf]
    %v134 = vld [vmem:[#allocation2 + $0xf8] sm:$0xf]
    %v135 = vld [vmem:[#allocation2 + $0xfc] sm:$0xf]
    %v136 = vld [vmem:[#allocation2 + $0x100] sm:$0xf]
    %v137 = vld [vmem:[#allocation2 + $0x104] sm:$0xf]
    %v138 = vld [vmem:[#allocation2 + $0x108] sm:$0xf]
    %v139 = vld [vmem:[#allocation2 + $0x10c] sm:$0xf]
    %v140 = vld [vmem:[#allocation2 + $0x110] sm:$0xf]
    %v141 = vld [vmem:[#allocation2 + $0x114] sm:$0xf]
    %v142 = vld [vmem:[#allocation2 + $0x118] sm:$0xf]
    %v143 = vld [vmem:[#allocation2 + $0x11c] sm:$0xf]
    %v144 = vld [vmem:[#allocation2 + $0x120] sm:$0xf]
    %v145 = vld [vmem:[#allocation2 + $0x124] sm:$0xf]
    %v146 = vld [vmem:[#allocation2 + $0x128] sm:$0xf]
    %v147 = vld [vmem:[#allocation2 + $0x12c] sm:$0xf]
    %v148 = vld [vmem:[#allocation2 + $0x130] sm:$0xf]
    %v149 = vld [vmem:[#allocation2 + $0x134] sm:$0xf]
    %v150 = vld [vmem:[#allocation2 + $0x138] sm:$0xf]
    %v151 = vld [vmem:[#allocation2 + $0x13c] sm:$0xf]
    %v152 = vld [vmem:[#allocation2 + $0x140] sm:$0xf]
    %v153 = vld [vmem:[#allocation2 + $0x144] sm:$0xf]
    %v154 = vld [vmem:[#allocation2 + $0x148] sm:$0xf]
    %v155 = vld [vmem:[#allocation2 + $0x14c] sm:$0xf]
    %v156 = vld [vmem:[#allocation2 + $0x150] sm:$0xf]
    %v157 = vld [vmem:[#allocation2 + $0x154] sm:$0xf]
    %v158 = vld [vmem:[#allocation2 + $0x158] sm:$0xf]
    %v159 = vld [vmem:[#allocation2 + $0x15c] sm:$0xf]
    %v160 = vld [vmem:[#allocation2 + $0x160] sm:$0xf]
    %v161 = vld [vmem:[#allocation2 + $0x164] sm:$0xf]
    %v162 = vld [vmem:[#allocation2 + $0x168] sm:$0xf]
    %v163 = vld [vmem:[#allocation2 + $0x16c] sm:$0xf]
    %v164 = vld [vmem:[#allocation2 + $0x170] sm:$0xf]
    %v165 = vld [vmem:[#allocation2 + $0x174] sm:$0xf]
    %v166 = vld [vmem:[#allocation2 + $0x178] sm:$0xf]
    %v167 = vld [vmem:[#allocation2 + $0x17c] sm:$0xf]
    %v168 = vld [vmem:[#allocation2 + $0x180] sm:$0xf]
    %v169 = vld [vmem:[#allocation2 + $0x184] sm:$0xf]
    %v170 = vld [vmem:[#allocation2 + $0x188] sm:$0xf]
    %v171 = vld [vmem:[#allocation2 + $0x18c] sm:$0xf]
    %v172 = vld [vmem:[#allocation2 + $0x190] sm:$0xf]
    %v173 = vld [vmem:[#allocation2 + $0x194] sm:$0xf]
    %v174 = vld [vmem:[#allocation2 + $0x198] sm:$0xf]
    %v175 = vld [vmem:[#allocation2 + $0x19c] sm:$0xf]
    %v176 = vld [vmem:[#allocation2 + $0x1a0] sm:$0xf]
    %v177 = vld [vmem:[#allocation2 + $0x1a4] sm:$0xf]
    %v178 = vld [vmem:[#allocation2 + $0x1a8] sm:$0xf]
    %v179 = vld [vmem:[#allocation2 + $0x1ac] sm:$0xf]
    %v180 = vld [vmem:[#allocation2 + $0x1b0] sm:$0xf]
    %v181 = vld [vmem:[#allocation2 + $0x1b4] sm:$0xf]
    %v182 = vld [vmem:[#allocation2 + $0x1b8] sm:$0xf]
    %v183 = vld [vmem:[#allocation2 + $0x1bc] sm:$0xf]
    %v184 = vld [vmem:[#allocation2 + $0x1c0] sm:$0xf]
    %v185 = vld [vmem:[#allocation2 + $0x1c4] sm:$0xf]
    %v186 = vld [vmem:[#allocation2 + $0x1c8] sm:$0xf]
    %v187 = vld [vmem:[#allocation2 + $0x1cc] sm:$0xf]
    %v188 = vld [vmem:[#allocation2 + $0x1d0] sm:$0xf]
    %v189 = vld [vmem:[#allocation2 + $0x1d4] sm:$0xf]
    %v190 = vld [vmem:[#allocation2 + $0x1d8] sm:$0xf]
    %v191 = vld [vmem:[#allocation2 + $0x1dc] sm:$0xf]
    %v192 = vld [vmem:[#allocation2 + $0x1e0] sm:$0xf]
    %v193 = vld [vmem:[#allocation2 + $0x1e4] sm:$0xf]
    %v194 = vld [vmem:[#allocation2 + $0x1e8] sm:$0xf]
    %v195 = vld [vmem:[#allocation2 + $0x1ec] sm:$0xf]
    %v196 = vld [vmem:[#allocation2 + $0x1f0] sm:$0xf]
    %v197 = vld [vmem:[#allocation2 + $0x1f4] sm:$0xf]
    %v198 = vld [vmem:[#allocation2 + $0x1f8] sm:$0xf]
    %v199 = vld [vmem:[#allocation2 + $0x1fc] sm:$0xf]
    %v200 = vld [vmem:[#allocation2 + $0x200] sm:$0xf]
    %v201 = vld [vmem:[#allocation2 + $0x204] sm:$0xf]
    %v202 = vld [vmem:[#allocation2 + $0x208] sm:$0xf]
    %v203 = vld [vmem:[#allocation2 + $0x20c] sm:$0xf]
    %v204 = vld [vmem:[#allocation2 + $0x210] sm:$0xf]
    %v205 = vld [vmem:[#allocation2 + $0x214] sm:$0xf]
    %v206 = vld [vmem:[#allocation2 + $0x218] sm:$0xf]
    %v207 = vld [vmem:[#allocation2 + $0x21c] sm:$0xf]
    %v208 = vld [vmem:[#allocation2 + $0x220] sm:$0xf]
    %v209 = vld [vmem:[#allocation2 + $0x224] sm:$0xf]
    %v210 = vld [vmem:[#allocation2 + $0x228] sm:$0xf]
    %v211 = vld [vmem:[#allocation2 + $0x22c] sm:$0xf]
    %v212 = vld [vmem:[#allocation2 + $0x230] sm:$0xf]
    %v213 = vld [vmem:[#allocation2 + $0x234] sm:$0xf]
    %v214 = vld [vmem:[#allocation2 + $0x238] sm:$0xf]
    %v215 = vld [vmem:[#allocation2 + $0x23c] sm:$0xf]
    %v216 = vld [vmem:[#allocation2 + $0x240] sm:$0xf]
    %v217 = vld [vmem:[#allocation2 + $0x244] sm:$0xf]
    %v218 = vld [vmem:[#allocation2 + $0x248] sm:$0xf]
    %v219 = vld [vmem:[#allocation2 + $0x24c] sm:$0xf]
    %v220 = vld [vmem:[#allocation2 + $0x250] sm:$0xf]
    %v221 = vld [vmem:[#allocation2 + $0x254] sm:$0xf]
    %v222 = vld [vmem:[#allocation2 + $0x258] sm:$0xf]
    %v223 = vld [vmem:[#allocation2 + $0x25c] sm:$0xf]
    %v224 = vld [vmem:[#allocation2 + $0x260] sm:$0xf]
    %v225 = vld [vmem:[#allocation2 + $0x264] sm:$0xf]
    %v226 = vld [vmem:[#allocation2 + $0x268] sm:$0xf]
    %v227 = vld [vmem:[#allocation2 + $0x26c] sm:$0xf]
    %v228 = vld [vmem:[#allocation2 + $0x270] sm:$0xf]
    %v229 = vld [vmem:[#allocation2 + $0x274] sm:$0xf]
    %v230 = vld [vmem:[#allocation2 + $0x278] sm:$0xf]
    %v231 = vld [vmem:[#allocation2 + $0x27c] sm:$0xf]
    %v232 = vld [vmem:[#allocation2 + $0x280] sm:$0xf]
    %v233 = vld [vmem:[#allocation2 + $0x284] sm:$0xf]
    %v234 = vld [vmem:[#allocation2 + $0x288] sm:$0xf]
    %v235 = vld [vmem:[#allocation2 + $0x28c] sm:$0xf]
    %v236 = vld [vmem:[#allocation2 + $0x290] sm:$0xf]
    %v237 = vld [vmem:[#allocation2 + $0x294] sm:$0xf]
    %v238 = vld [vmem:[#allocation2 + $0x298] sm:$0xf]
    %v239 = vld [vmem:[#allocation2 + $0x29c] sm:$0xf]
    %v240 = vld [vmem:[#allocation2 + $0x2a0] sm:$0xf]
    %v241 = vld [vmem:[#allocation2 + $0x2a4] sm:$0xf]
    %v242 = vld [vmem:[#allocation2 + $0x2a8] sm:$0xf]
    %v243 = vld [vmem:[#allocation2 + $0x2ac] sm:$0xf]
    %v244 = vld [vmem:[#allocation2 + $0x2b0] sm:$0xf]
    %v245 = vld [vmem:[#allocation2 + $0x2b4] sm:$0xf]
    %v246 = vld [vmem:[#allocation2 + $0x2b8] sm:$0xf]
    %v247 = vld [vmem:[#allocation2 + $0x2bc] sm:$0xf]
    %v248 = vld [vmem:[#allocation2 + $0x2c0] sm:$0xf]
    %v249 = vld [vmem:[#allocation2 + $0x2c4] sm:$0xf]
    %v250 = vld [vmem:[#allocation2 + $0x2c8] sm:$0xf]
    %v251 = vld [vmem:[#allocation2 + $0x2cc] sm:$0xf]
    %v252 = vld [vmem:[#allocation2 + $0x2d0] sm:$0xf]
    %v253 = vld [vmem:[#allocation2 + $0x2d4] sm:$0xf]
    %v254 = vld [vmem:[#allocation2 + $0x2d8] sm:$0xf]
    %v255 = vld [vmem:[#allocation2 + $0x2dc] sm:$0xf]
    %v256 = vld [vmem:[#allocation2 + $0x2e0] sm:$0xf]
    %v257 = vld [vmem:[#allocation2 + $0x2e4] sm:$0xf]
    %v258 = vld [vmem:[#allocation2 + $0x2e8] sm:$0xf]
    %v259 = vld [vmem:[#allocation2 + $0x2ec] sm:$0xf]
    %v260 = vld [vmem:[#allocation2 + $0x2f0] sm:$0xf]
    %v261 = vld [vmem:[#allocation2 + $0x2f4] sm:$0xf]
    %v262 = vld [vmem:[#allocation2 + $0x2f8] sm:$0xf]
    %v263 = vld [vmem:[#allocation2 + $0x2fc] sm:$0xf]
    %v264 = vld [vmem:[#allocation2 + $0x300] sm:$0xf]
    %v265 = vld [vmem:[#allocation2 + $0x304] sm:$0xf]
    %v266 = vld [vmem:[#allocation2 + $0x308] sm:$0xf]
    %v267 = vld [vmem:[#allocation2 + $0x30c] sm:$0xf]
    %v268 = vld [vmem:[#allocation2 + $0x310] sm:$0xf]
    %v269 = vld [vmem:[#allocation2 + $0x314] sm:$0xf]
    %v270 = vld [vmem:[#allocation2 + $0x318] sm:$0xf]
    %v271 = vld [vmem:[#allocation2 + $0x31c] sm:$0xf]
    %v272 = vld [vmem:[#allocation2 + $0x320] sm:$0xf]
    %v273 = vld [vmem:[#allocation2 + $0x324] sm:$0xf]
    %v274 = vld [vmem:[#allocation2 + $0x328] sm:$0xf]
    %v275 = vld [vmem:[#allocation2 + $0x32c] sm:$0xf]
    %v276 = vld [vmem:[#allocation2 + $0x330] sm:$0xf]
    %v277 = vld [vmem:[#allocation2 + $0x334] sm:$0xf]
    %v278 = vld [vmem:[#allocation2 + $0x338] sm:$0xf]
    %v279 = vld [vmem:[#allocation2 + $0x33c] sm:$0xf]
    %v280 = vld [vmem:[#allocation2 + $0x340] sm:$0xf]
    %v281 = vld [vmem:[#allocation2 + $0x344] sm:$0xf]
    %v282 = vld [vmem:[#allocation2 + $0x348] sm:$0xf]
    %v283 = vld [vmem:[#allocation2 + $0x34c] sm:$0xf]
    %v284 = vld [vmem:[#allocation2 + $0x350] sm:$0xf]
    %v285 = vld [vmem:[#allocation2 + $0x354] sm:$0xf]
    %v286 = vld [vmem:[#allocation2 + $0x358] sm:$0xf]
    %v287 = vld [vmem:[#allocation2 + $0x35c] sm:$0xf]
    %v288 = vld [vmem:[#allocation2 + $0x360] sm:$0xf]
    %v289 = vld [vmem:[#allocation2 + $0x364] sm:$0xf]
    %v290 = vld [vmem:[#allocation2 + $0x368] sm:$0xf]
    %v291 = vld [vmem:[#allocation2 + $0x36c] sm:$0xf]
    %v292 = vld [vmem:[#allocation2 + $0x370] sm:$0xf]
    %v293 = vld [vmem:[#allocation2 + $0x374] sm:$0xf]
    %v294 = vld [vmem:[#allocation2 + $0x378] sm:$0xf]
    %v295 = vld [vmem:[#allocation2 + $0x37c] sm:$0xf]
    %v296 = vld [vmem:[#allocation2 + $0x380] sm:$0xf]
    %v297 = vld [vmem:[#allocation2 + $0x384] sm:$0xf]
    %v298 = vld [vmem:[#allocation2 + $0x388] sm:$0xf]
    %v299 = vld [vmem:[#allocation2 + $0x38c] sm:$0xf]
    %v300 = vld [vmem:[#allocation2 + $0x390] sm:$0xf]
    %v301 = vld [vmem:[#allocation2 + $0x394] sm:$0xf]
    %v302 = vld [vmem:[#allocation2 + $0x398] sm:$0xf]
    %v303 = vld [vmem:[#allocation2 + $0x39c] sm:$0xf]
    %v304 = vld [vmem:[#allocation7] sm:$0xf]
    %v305 = vld [vmem:[#allocation7 + $0x4] sm:$0xf]
    %v306 = vld [vmem:[#allocation7 + $0x8] sm:$0xf]
    %v307 = vld [vmem:[#allocation7 + $0xc] sm:$0xf]
    %v308 = vld [vmem:[#allocation7 + $0x10] sm:$0xf]
    %v309 = vld [vmem:[#allocation7 + $0x14] sm:$0xf]
    %v310 = vld [vmem:[#allocation7 + $0x18] sm:$0xf]
    %v311 = vld [vmem:[#allocation7 + $0x1c] sm:$0xf]
    %v312 = vld [vmem:[#allocation7 + $0x20] sm:$0xf]
    %v313 = vld [vmem:[#allocation7 + $0x24] sm:$0xf]
    %v314 = vld [vmem:[#allocation7 + $0x28] sm:$0xf]
    %v315 = vld [vmem:[#allocation7 + $0x2c] sm:$0xf]
    %v316 = vld [vmem:[#allocation7 + $0x30] sm:$0xf]
    %v317 = vld [vmem:[#allocation7 + $0x34] sm:$0xf]
    %v318 = vld [vmem:[#allocation7 + $0x38] sm:$0xf]
    %v319 = vld [vmem:[#allocation7 + $0x3c] sm:$0xf]
    %v320 = vld [vmem:[#allocation8] sm:$0x1]
    %v322 = vlaneseq
    %v323 = vshrl.u32 %v322, 7
    %v324 = vsub.s32 0, %v323
    %v325 = vrot.slane %v320, %v324
    %v559 = vunpack.c.l.b16 %v72
    %v560 = vunpack.c.l.b16 %v73
    %v561 = vunpack.c.l.b16 %v74
    %v562 = vunpack.c.l.b16 %v75
    %v563 = vunpack.c.l.b16 %v76
    %v564 = vunpack.c.l.b16 %v77
    %v565 = vunpack.c.l.b16 %v78
    %v566 = vunpack.c.l.b16 %v79
    %v567 = vunpack.c.l.b16 %v80
    %v568 = vunpack.c.l.b16 %v81
    %v569 = vunpack.c.l.b16 %v82
    %v570 = vunpack.c.l.b16 %v83
    %v571 = vunpack.c.l.b16 %v84
    %v572 = vunpack.c.l.b16 %v85
    %v573 = vunpack.c.l.b16 %v86
    %v574 = vunpack.c.l.b16 %v87
    %v575 = vunpack.c.l.b16 %v88
    %v576 = vunpack.c.l.b16 %v89
    %v577 = vunpack.c.l.b16 %v90
    %v578 = vunpack.c.l.b16 %v91
    %v579 = vunpack.c.l.b16 %v92
    %v580 = vunpack.c.l.b16 %v93
    %v581 = vunpack.c.l.b16 %v94
    %v582 = vunpack.c.l.b16 %v95
    %v583 = vunpack.c.l.b16 %v96
    %v584 = vunpack.c.l.b16 %v97
    %v585 = vunpack.c.l.b16 %v98
    %v586 = vunpack.c.l.b16 %v99
    %v587 = vunpack.c.l.b16 %v100
    %v588 = vunpack.c.l.b16 %v101
    %v589 = vunpack.c.l.b16 %v102
    %v590 = vunpack.c.l.b16 %v103
    %v591 = vunpack.c.l.b16 %v104
    %v592 = vunpack.c.l.b16 %v105
    %v593 = vunpack.c.l.b16 %v106
    %v594 = vunpack.c.l.b16 %v107
    %v595 = vunpack.c.l.b16 %v108
    %v596 = vunpack.c.l.b16 %v109
    %v597 = vunpack.c.l.b16 %v110
    %v598 = vunpack.c.l.b16 %v111
    %v599 = vunpack.c.l.b16 %v112
    %v600 = vunpack.c.l.b16 %v113
    %v601 = vunpack.c.l.b16 %v114
    %v602 = vunpack.c.l.b16 %v115
    %v603 = vunpack.c.l.b16 %v116
    %v604 = vunpack.c.l.b16 %v117
    %v605 = vunpack.c.l.b16 %v118
    %v606 = vunpack.c.l.b16 %v119
    %v607 = vunpack.c.l.b16 %v120
    %v608 = vunpack.c.l.b16 %v121
    %v609 = vunpack.c.l.b16 %v122
    %v610 = vunpack.c.l.b16 %v123
    %v611 = vunpack.c.l.b16 %v124
    %v612 = vunpack.c.l.b16 %v125
    %v613 = vunpack.c.l.b16 %v126
    %v614 = vunpack.c.l.b16 %v127
    %v615 = vunpack.c.l.b16 %v128
    %v616 = vunpack.c.l.b16 %v129
    %v617 = vunpack.c.l.b16 %v130
    %v618 = vunpack.c.l.b16 %v131
    %v619 = vunpack.c.l.b16 %v132
    %v620 = vunpack.c.l.b16 %v133
    %v621 = vunpack.c.l.b16 %v134
    %v622 = vunpack.c.l.b16 %v135
    %v623 = vunpack.c.l.b16 %v136
    %v624 = vunpack.c.l.b16 %v137
    %v625 = vunpack.c.l.b16 %v138
    %v626 = vunpack.c.l.b16 %v139
    %v627 = vunpack.c.l.b16 %v140
    %v628 = vunpack.c.l.b16 %v141
    %v629 = vunpack.c.l.b16 %v142
    %v630 = vunpack.c.l.b16 %v143
    %v631 = vunpack.c.l.b16 %v144
    %v632 = vunpack.c.l.b16 %v145
    %v633 = vunpack.c.l.b16 %v146
    %v634 = vunpack.c.l.b16 %v147
    %v635 = vunpack.c.l.b16 %v148
    %v636 = vunpack.c.l.b16 %v149
    %v637 = vunpack.c.l.b16 %v150
    %v638 = vunpack.c.l.b16 %v151
    %v639 = vunpack.c.l.b16 %v152
    %v640 = vunpack.c.l.b16 %v153
    %v641 = vunpack.c.l.b16 %v154
    %v642 = vunpack.c.l.b16 %v155
    %v643 = vunpack.c.l.b16 %v156
    %v644 = vunpack.c.l.b16 %v157
    %v645 = vunpack.c.l.b16 %v158
    %v646 = vunpack.c.l.b16 %v159
    %v647 = vunpack.c.l.b16 %v160
    %v648 = vunpack.c.l.b16 %v161
    %v649 = vunpack.c.l.b16 %v162
    %v650 = vunpack.c.l.b16 %v163
    %v651 = vunpack.c.l.b16 %v164
    %v652 = vunpack.c.l.b16 %v165
    %v653 = vunpack.c.l.b16 %v166
    %v654 = vunpack.c.l.b16 %v167
    %v655 = vunpack.c.l.b16 %v168
    %v656 = vunpack.c.l.b16 %v169
    %v657 = vunpack.c.l.b16 %v170
    %v658 = vunpack.c.l.b16 %v171
    %v659 = vunpack.c.l.b16 %v172
    %v660 = vunpack.c.l.b16 %v173
    %v661 = vunpack.c.l.b16 %v174
    %v662 = vunpack.c.l.b16 %v175
    %v663 = vunpack.c.l.b16 %v176
    %v664 = vunpack.c.l.b16 %v177
    %v665 = vunpack.c.l.b16 %v178
    %v666 = vunpack.c.l.b16 %v179
    %v667 = vunpack.c.l.b16 %v180
    %v668 = vunpack.c.l.b16 %v181
    %v669 = vunpack.c.l.b16 %v182
    %v670 = vunpack.c.l.b16 %v183
    %v671 = vunpack.c.l.b16 %v184
    %v672 = vunpack.c.l.b16 %v185
    %v673 = vunpack.c.l.b16 %v186
    %v674 = vunpack.c.l.b16 %v187
    %v675 = vunpack.c.l.b16 %v188
    %v676 = vunpack.c.l.b16 %v189
    %v677 = vunpack.c.l.b16 %v190
    %v678 = vunpack.c.l.b16 %v191
    %v679 = vunpack.c.l.b16 %v192
    %v680 = vunpack.c.l.b16 %v193
    %v681 = vunpack.c.l.b16 %v194
    %v682 = vunpack.c.l.b16 %v195
    %v683 = vunpack.c.l.b16 %v196
    %v684 = vunpack.c.l.b16 %v197
    %v685 = vunpack.c.l.b16 %v198
    %v686 = vunpack.c.l.b16 %v199
    %v687 = vunpack.c.l.b16 %v200
    %v688 = vunpack.c.l.b16 %v201
    %v689 = vunpack.c.l.b16 %v202
    %v690 = vunpack.c.l.b16 %v203
    %v691 = vunpack.c.l.b16 %v204
    %v692 = vunpack.c.l.b16 %v205
    %v693 = vunpack.c.l.b16 %v206
    %v694 = vunpack.c.l.b16 %v207
    %v695 = vunpack.c.l.b16 %v208
    %v696 = vunpack.c.l.b16 %v209
    %v697 = vunpack.c.l.b16 %v210
    %v698 = vunpack.c.l.b16 %v211
    %v699 = vunpack.c.l.b16 %v212
    %v700 = vunpack.c.l.b16 %v213
    %v701 = vunpack.c.l.b16 %v214
    %v702 = vunpack.c.l.b16 %v215
    %v703 = vunpack.c.l.b16 %v216
    %v704 = vunpack.c.l.b16 %v217
    %v705 = vunpack.c.l.b16 %v218
    %v706 = vunpack.c.l.b16 %v219
    %v707 = vunpack.c.l.b16 %v220
    %v708 = vunpack.c.l.b16 %v221
    %v709 = vunpack.c.l.b16 %v222
    %v710 = vunpack.c.l.b16 %v223
    %v711 = vunpack.c.l.b16 %v224
    %v712 = vunpack.c.l.b16 %v225
    %v713 = vunpack.c.l.b16 %v226
    %v714 = vunpack.c.l.b16 %v227
    %v715 = vunpack.c.l.b16 %v228
    %v716 = vunpack.c.l.b16 %v229
    %v717 = vunpack.c.l.b16 %v230
    %v718 = vunpack.c.l.b16 %v231
    %v719 = vunpack.c.l.b16 %v232
    %v720 = vunpack.c.l.b16 %v233
    %v721 = vunpack.c.l.b16 %v234
    %v722 = vunpack.c.l.b16 %v235
    %v723 = vunpack.c.l.b16 %v236
    %v724 = vunpack.c.l.b16 %v237
    %v725 = vunpack.c.l.b16 %v238
    %v726 = vunpack.c.l.b16 %v239
    %v727 = vunpack.c.l.b16 %v240
    %v728 = vunpack.c.l.b16 %v241
    %v729 = vunpack.c.l.b16 %v242
    %v730 = vunpack.c.l.b16 %v243
    %v731 = vunpack.c.l.b16 %v244
    %v732 = vunpack.c.l.b16 %v245
    %v733 = vunpack.c.l.b16 %v246
    %v734 = vunpack.c.l.b16 %v247
    %v735 = vunpack.c.l.b16 %v248
    %v736 = vunpack.c.l.b16 %v249
    %v737 = vunpack.c.l.b16 %v250
    %v738 = vunpack.c.l.b16 %v251
    %v739 = vunpack.c.l.b16 %v252
    %v740 = vunpack.c.l.b16 %v253
    %v741 = vunpack.c.l.b16 %v254
    %v742 = vunpack.c.l.b16 %v255
    %v743 = vunpack.c.l.b16 %v256
    %v744 = vunpack.c.l.b16 %v257
    %v745 = vunpack.c.l.b16 %v258
    %v746 = vunpack.c.l.b16 %v259
    %v747 = vunpack.c.l.b16 %v260
    %v748 = vunpack.c.l.b16 %v261
    %v749 = vunpack.c.l.b16 %v262
    %v750 = vunpack.c.l.b16 %v263
    %v751 = vunpack.c.l.b16 %v264
    %v752 = vunpack.c.l.b16 %v265
    %v753 = vunpack.c.l.b16 %v266
    %v754 = vunpack.c.l.b16 %v267
    %v755 = vunpack.c.l.b16 %v268
    %v756 = vunpack.c.l.b16 %v269
    %v757 = vunpack.c.l.b16 %v270
    %v758 = vunpack.c.l.b16 %v271
    %v759 = vunpack.c.l.b16 %v272
    %v760 = vunpack.c.l.b16 %v273
    %v761 = vunpack.c.l.b16 %v274
    %v762 = vunpack.c.l.b16 %v275
    %v763 = vunpack.c.l.b16 %v276
    %v764 = vunpack.c.l.b16 %v277
    %v765 = vunpack.c.l.b16 %v278
    %v766 = vunpack.c.l.b16 %v279
    %v767 = vunpack.c.l.b16 %v280
    %v768 = vunpack.c.l.b16 %v281
    %v769 = vunpack.c.l.b16 %v282
    %v770 = vunpack.c.l.b16 %v283
    %v771 = vunpack.c.l.b16 %v284
    %v772 = vunpack.c.l.b16 %v285
    %v773 = vunpack.c.l.b16 %v286
    %v774 = vunpack.c.l.b16 %v287
    %v775 = vunpack.c.l.b16 %v288
    %v776 = vunpack.c.l.b16 %v289
    %v777 = vunpack.c.l.b16 %v290
    %v778 = vunpack.c.l.b16 %v291
    %v779 = vunpack.c.l.b16 %v292
    %v780 = vunpack.c.l.b16 %v293
    %v781 = vunpack.c.l.b16 %v294
    %v782 = vunpack.c.l.b16 %v295
    %v783 = vunpack.c.l.b16 %v296
    %v784 = vunpack.c.l.b16 %v297
    %v785 = vunpack.c.l.b16 %v298
    %v786 = vunpack.c.l.b16 %v299
    %v787 = vunpack.c.l.b16 %v300
    %v788 = vunpack.c.l.b16 %v301
    %v789 = vunpack.c.l.b16 %v302
    %v790 = vunpack.c.l.b16 %v303
    %v791 = vpack.c.b16 %v560, %v559
    %v792 = vpack.c.b16 %v562, %v561
    %v793 = vpack.c.b16 %v564, %v563
    %v794 = vpack.c.b16 %v566, %v565
    %v795 = vpack.c.b16 %v568, %v567
    %v796 = vpack.c.b16 %v570, %v569
    %v797 = vpack.c.b16 %v572, %v571
    %v798 = vpack.c.b16 %v574, %v573
    %v799 = vpack.c.b16 %v576, %v575
    %v800 = vpack.c.b16 %v578, %v577
    %v801 = vpack.c.b16 %v580, %v579
    %v802 = vpack.c.b16 %v582, %v581
    %v803 = vpack.c.b16 %v584, %v583
    %v804 = vpack.c.b16 %v586, %v585
    %v805 = vpack.c.b16 %v588, %v587
    %v806 = vpack.c.b16 %v590, %v589
    %v807 = vpack.c.b16 %v592, %v591
    %v808 = vpack.c.b16 %v594, %v593
    %v809 = vpack.c.b16 %v596, %v595
    %v810 = vpack.c.b16 %v598, %v597
    %v811 = vpack.c.b16 %v600, %v599
    %v812 = vpack.c.b16 %v602, %v601
    %v813 = vpack.c.b16 %v604, %v603
    %v814 = vpack.c.b16 %v606, %v605
    %v815 = vpack.c.b16 %v608, %v607
    %v816 = vpack.c.b16 %v610, %v609
    %v817 = vpack.c.b16 %v612, %v611
    %v818 = vpack.c.b16 %v614, %v613
    %v819 = vpack.c.b16 %v616, %v615
    %v820 = vpack.c.b16 %v618, %v617
    %v821 = vpack.c.b16 %v620, %v619
    %v822 = vpack.c.b16 %v622, %v621
    %v823 = vpack.c.b16 %v624, %v623
    %v824 = vpack.c.b16 %v626, %v625
    %v825 = vpack.c.b16 %v628, %v627
    %v826 = vpack.c.b16 %v630, %v629
    %v827 = vpack.c.b16 %v632, %v631
    %v828 = vpack.c.b16 %v634, %v633
    %v829 = vpack.c.b16 %v636, %v635
    %v830 = vpack.c.b16 %v638, %v637
    %v831 = vpack.c.b16 %v640, %v639
    %v832 = vpack.c.b16 %v642, %v641
    %v833 = vpack.c.b16 %v644, %v643
    %v834 = vpack.c.b16 %v646, %v645
    %v835 = vpack.c.b16 %v648, %v647
    %v836 = vpack.c.b16 %v650, %v649
    %v837 = vpack.c.b16 %v652, %v651
    %v838 = vpack.c.b16 %v654, %v653
    %v839 = vpack.c.b16 %v656, %v655
    %v840 = vpack.c.b16 %v658, %v657
    %v841 = vpack.c.b16 %v660, %v659
    %v842 = vpack.c.b16 %v662, %v661
    %v843 = vpack.c.b16 %v664, %v663
    %v844 = vpack.c.b16 %v666, %v665
    %v845 = vpack.c.b16 %v668, %v667
    %v846 = vpack.c.b16 %v670, %v669
    %v847 = vpack.c.b16 %v672, %v671
    %v848 = vpack.c.b16 %v674, %v673
    %v849 = vpack.c.b16 %v676, %v675
    %v850 = vpack.c.b16 %v678, %v677
    %v851 = vpack.c.b16 %v680, %v679
    %v852 = vpack.c.b16 %v682, %v681
    %v853 = vpack.c.b16 %v684, %v683
    %v854 = vpack.c.b16 %v686, %v685
    %v855 = vpack.c.b16 %v688, %v687
    %v856 = vpack.c.b16 %v690, %v689
    %v857 = vpack.c.b16 %v692, %v691
    %v858 = vpack.c.b16 %v694, %v693
    %v859 = vpack.c.b16 %v696, %v695
    %v860 = vpack.c.b16 %v698, %v697
    %v861 = vpack.c.b16 %v700, %v699
    %v862 = vpack.c.b16 %v702, %v701
    %v863 = vpack.c.b16 %v704, %v703
    %v864 = vpack.c.b16 %v706, %v705
    %v865 = vpack.c.b16 %v708, %v707
    %v866 = vpack.c.b16 %v710, %v709
    %v867 = vpack.c.b16 %v712, %v711
    %v868 = vpack.c.b16 %v714, %v713
    %v869 = vpack.c.b16 %v716, %v715
    %v870 = vpack.c.b16 %v718, %v717
    %v871 = vpack.c.b16 %v720, %v719
    %v872 = vpack.c.b16 %v722, %v721
    %v873 = vpack.c.b16 %v724, %v723
    %v874 = vpack.c.b16 %v726, %v725
    %v875 = vpack.c.b16 %v728, %v727
    %v876 = vpack.c.b16 %v730, %v729
    %v877 = vpack.c.b16 %v732, %v731
    %v878 = vpack.c.b16 %v734, %v733
    %v879 = vpack.c.b16 %v736, %v735
    %v880 = vpack.c.b16 %v738, %v737
    %v881 = vpack.c.b16 %v740, %v739
    %v882 = vpack.c.b16 %v742, %v741
    %v883 = vpack.c.b16 %v744, %v743
    %v884 = vpack.c.b16 %v746, %v745
    %v885 = vpack.c.b16 %v748, %v747
    %v886 = vpack.c.b16 %v750, %v749
    %v887 = vpack.c.b16 %v752, %v751
    %v888 = vpack.c.b16 %v754, %v753
    %v889 = vpack.c.b16 %v756, %v755
    %v890 = vpack.c.b16 %v758, %v757
    %v891 = vpack.c.b16 %v760, %v759
    %v892 = vpack.c.b16 %v762, %v761
    %v893 = vpack.c.b16 %v764, %v763
    %v894 = vpack.c.b16 %v766, %v765
    %v895 = vpack.c.b16 %v768, %v767
    %v896 = vpack.c.b16 %v770, %v769
    %v897 = vpack.c.b16 %v772, %v771
    %v898 = vpack.c.b16 %v774, %v773
    %v899 = vpack.c.b16 %v776, %v775
    %v900 = vpack.c.b16 %v778, %v777
    %v901 = vpack.c.b16 %v780, %v779
    %v902 = vpack.c.b16 %v782, %v781
    %v903 = vpack.c.b16 %v784, %v783
    %v904 = vpack.c.b16 %v786, %v785
    %v905 = vpack.c.b16 %v788, %v787
    %v906 = vpack.c.b16 %v790, %v789
    %v1039 = vunpack.c.l.b16 %v304
    %v1040 = vunpack.c.l.b16 %v305
    %v1041 = vunpack.c.l.b16 %v306
    %v1042 = vunpack.c.l.b16 %v307
    %v1043 = vunpack.c.l.b16 %v308
    %v1044 = vunpack.c.l.b16 %v309
    %v1045 = vunpack.c.l.b16 %v310
    %v1046 = vunpack.c.l.b16 %v311
    %v1047 = vunpack.c.l.b16 %v312
    %v1048 = vunpack.c.l.b16 %v313
    %v1049 = vunpack.c.l.b16 %v314
    %v1050 = vunpack.c.l.b16 %v315
    %v1051 = vunpack.c.l.b16 %v316
    %v1052 = vunpack.c.l.b16 %v317
    %v1053 = vunpack.c.l.b16 %v318
    %v1054 = vunpack.c.l.b16 %v319
    %v1055 = vpack.c.b16 %v1040, %v1039
    %v1056 = vpack.c.b16 %v1042, %v1041
    %v1057 = vpack.c.b16 %v1044, %v1043
    %v1058 = vpack.c.b16 %v1046, %v1045
    %v1059 = vpack.c.b16 %v1048, %v1047
    %v1060 = vpack.c.b16 %v1050, %v1049
    %v1061 = vpack.c.b16 %v1052, %v1051
    %v1062 = vpack.c.b16 %v1054, %v1053
    %1071 = vmatprep.subr.bf16.mxu0 0
    %1072 = vmatpush1.bf16.msra.mxu0 %v1055
    %1073 = vmatprep.subr.bf16.mxu0 0
    %1074 = vmatpush1.bf16.msra.mxu0 %v1056
    %1075 = vmatprep.subr.bf16.mxu0 0
    %1076 = vmatpush1.bf16.msra.mxu0 %v1057
    %1077 = vmatprep.subr.bf16.mxu0 0
    %1078 = vmatpush1.bf16.msra.mxu0 %v1058
    %1079 = vmatprep.subr.bf16.mxu0 0
    %1080 = vmatpush1.bf16.msra.mxu0 %v1059
    %1081 = vmatprep.subr.bf16.mxu0 0
    %1082 = vmatpush1.bf16.msra.mxu0 %v1060
    %1083 = vmatprep.subr.bf16.mxu0 0
    %1084 = vmatpush1.bf16.msra.mxu0 %v1061
    %1085 = vmatprep.subr.bf16.mxu0 0
    %1086 = vmatpush1.bf16.msra.mxu0 %v1062
    %1087 = vmatprep.subr.bf16.mxu0 0
    %1088 = vmatpush1.bf16.msra.mxu0 0
    %1089 = vmatprep.subr.bf16.mxu0 0
    %1090 = vmatpush1.bf16.msra.mxu0 0
    %1091 = vmatprep.subr.bf16.mxu0 0
    %1092 = vmatpush1.bf16.msra.mxu0 0
    %1093 = vmatprep.subr.bf16.mxu0 0
    %1094 = vmatpush1.bf16.msra.mxu0 0
    %1095 = vmatprep.subr.bf16.mxu0 0
    %1096 = vmatpush1.bf16.msra.mxu0 0
    %1097 = vmatprep.subr.bf16.mxu0 0
    %1098 = vmatpush1.bf16.msra.mxu0 0
    %1099 = vmatprep.subr.bf16.mxu0 0
    %1100 = vmatpush1.bf16.msra.mxu0 0
    %1101 = vmatprep.subr.bf16.mxu0 0
    %1102 = vmatpush1.bf16.msra.mxu0 0
    %1103 = vmatprep.mubr.bf16.mxu0 0
    %1104 = vmatmul.mubr.bf16.gmra.mrb[0].mxu0 %v791
    %v1105 = vpop.f32.mrb[0].mxu0
    %v1106 = vadd.f32 %v325, %v1105
    %v1107 = vpop.f32.mrb[0].mxu0
    %v1108 = vpop.f32.mrb[0].mxu0
    %v1109 = vadd.f32 %v325, %v1108
    %v1110 = vpop.f32.mrb[0].mxu0
    %1111 = vmatprep.mubr.bf16.mxu0 0
    %1112 = vmatmul.mubr.bf16.gmra.mrb[0].mxu0 %v792
    %v1113 = vpop.f32.mrb[0].mxu0
    %v1114 = vadd.f32 %v325, %v1113
    %v1115 = vpop.f32.mrb[0].mxu0
    %v1116 = vpop.f32.mrb[0].mxu0
    %v1117 = vadd.f32 %v325, %v1116
    %v1118 = vpop.f32.mrb[0].mxu0
    %1119 = vmatprep.mubr.bf16.mxu0 0
    %1120 = vmatmul.mubr.bf16.gmra.mrb[0].mxu0 %v793
    %v1121 = vpop.f32.mrb[0].mxu0
    %v1122 = vadd.f32 %v325, %v1121
    %v1123 = vpop.f32.mrb[0].mxu0
    %v1124 = vpop.f32.mrb[0].mxu0
    %v1125 = vadd.f32 %v325, %v1124
    %v1126 = vpop.f32.mrb[0].mxu0
    %1127 = vmatprep.mubr.bf16.mxu0 0
    %1128 = vmatmul.mubr.bf16.gmra.mrb[0].mxu0 %v794
    %v1129 = vpop.f32.mrb[0].mxu0
    %v1130 = vadd.f32 %v325, %v1129
    %v1131 = vpop.f32.mrb[0].mxu0
    %v1132 = vpop.f32.mrb[0].mxu0
    %v1133 = vadd.f32 %v325, %v1132
    %v1134 = vpop.f32.mrb[0].mxu0
    %1135 = vmatprep.mubr.bf16.mxu0 0
    %1136 = vmatmul.mubr.bf16.gmra.mrb[0].mxu0 %v795
    %v1137 = vpop.f32.mrb[0].mxu0
    %v1138 = vadd.f32 %v325, %v1137
    %v1139 = vpop.f32.mrb[0].mxu0
    %v1140 = vpop.f32.mrb[0].mxu0
    %v1141 = vadd.f32 %v325, %v1140
    %v1142 = vpop.f32.mrb[0].mxu0
    %1143 = vmatprep.mubr.bf16.mxu0 0
    %1144 = vmatmul.mubr.bf16.gmra.mrb[0].mxu0 %v796
    %v1145 = vpop.f32.mrb[0].mxu0
    %v1146 = vadd.f32 %v325, %v1145
    %v1147 = vpop.f32.mrb[0].mxu0
    %v1148 = vpop.f32.mrb[0].mxu0
    %v1149 = vadd.f32 %v325, %v1148
    %v1150 = vpop.f32.mrb[0].mxu0
    %1151 = vmatprep.mubr.bf16.mxu0 0
    %1152 = vmatmul.mubr.bf16.gmra.mrb[0].mxu0 %v797
    %v1153 = vpop.f32.mrb[0].mxu0
    %v1154 = vadd.f32 %v325, %v1153
    %v1155 = vpop.f32.mrb[0].mxu0
    %v1156 = vpop.f32.mrb[0].mxu0
    %v1157 = vadd.f32 %v325, %v1156
    %v1158 = vpop.f32.mrb[0].mxu0
    %1159 = vmatprep.mubr.bf16.mxu0 0
    %1160 = vmatmul.mubr.bf16.gmra.mrb[0].mxu0 %v798
    %v1161 = vpop.f32.mrb[0].mxu0
    %v1162 = vadd.f32 %v325, %v1161
    %v1163 = vpop.f32.mrb[0].mxu0
    %v1164 = vpop.f32.mrb[0].mxu0
    %v1165 = vadd.f32 %v325, %v1164
    %v1166 = vpop.f32.mrb[0].mxu0
    %1167 = vmatprep.mubr.bf16.mxu0 0
    %1168 = vmatmul.mubr.bf16.gmra.mrb[0].mxu0 %v799
    %v1169 = vpop.f32.mrb[0].mxu0
    %v1170 = vadd.f32 %v325, %v1169
    %v1171 = vpop.f32.mrb[0].mxu0
    %v1172 = vpop.f32.mrb[0].mxu0
    %v1173 = vadd.f32 %v325, %v1172
    %v1174 = vpop.f32.mrb[0].mxu0
    %1175 = vmatprep.mubr.bf16.mxu0 0
    %1176 = vmatmul.mubr.bf16.gmra.mrb[0].mxu0 %v800
    %v1177 = vpop.f32.mrb[0].mxu0
    %v1178 = vadd.f32 %v325, %v1177
    %v1179 = vpop.f32.mrb[0].mxu0
    %v1180 = vpop.f32.mrb[0].mxu0
    %v1181 = vadd.f32 %v325, %v1180
    %v1182 = vpop.f32.mrb[0].mxu0
    %1183 = vmatprep.mubr.bf16.mxu0 0
    %1184 = vmatmul.mubr.bf16.gmra.mrb[0].mxu0 %v801
    %v1185 = vpop.f32.mrb[0].mxu0
    %v1186 = vadd.f32 %v325, %v1185
    %v1187 = vpop.f32.mrb[0].mxu0
    %v1188 = vpop.f32.mrb[0].mxu0
    %v1189 = vadd.f32 %v325, %v1188
    %v1190 = vpop.f32.mrb[0].mxu0
    %1191 = vmatprep.mubr.bf16.mxu0 0
    %1192 = vmatmul.mubr.bf16.gmra.mrb[0].mxu0 %v802
    %v1193 = vpop.f32.mrb[0].mxu0
    %v1194 = vadd.f32 %v325, %v1193
    %v1195 = vpop.f32.mrb[0].mxu0
    %v1196 = vpop.f32.mrb[0].mxu0
    %v1197 = vadd.f32 %v325, %v1196
    %v1198 = vpop.f32.mrb[0].mxu0
    %1199 = vmatprep.mubr.bf16.mxu0 0
    %1200 = vmatmul.mubr.bf16.gmra.mrb[0].mxu0 %v803
    %v1201 = vpop.f32.mrb[0].mxu0
    %v1202 = vadd.f32 %v325, %v1201
    %v1203 = vpop.f32.mrb[0].mxu0
    %v1204 = vpop.f32.mrb[0].mxu0
    %v1205 = vadd.f32 %v325, %v1204
    %v1206 = vpop.f32.mrb[0].mxu0
    %1207 = vmatprep.mubr.bf16.mxu0 0
    %1208 = vmatmul.mubr.bf16.gmra.mrb[0].mxu0 %v804
    %v1209 = vpop.f32.mrb[0].mxu0
    %v1210 = vadd.f32 %v325, %v1209
    %v1211 = vpop.f32.mrb[0].mxu0
    %v1212 = vpop.f32.mrb[0].mxu0
    %v1213 = vadd.f32 %v325, %v1212
    %v1214 = vpop.f32.mrb[0].mxu0
    %1215 = vmatprep.mubr.bf16.mxu0 0
    %1216 = vmatmul.mubr.bf16.gmra.mrb[0].mxu0 %v805
    %v1217 = vpop.f32.mrb[0].mxu0
    %v1218 = vadd.f32 %v325, %v1217
    %v1219 = vpop.f32.mrb[0].mxu0
    %v1220 = vpop.f32.mrb[0].mxu0
    %v1221 = vadd.f32 %v325, %v1220
    %v1222 = vpop.f32.mrb[0].mxu0
    %1223 = vmatprep.mubr.bf16.mxu0 0
    %1224 = vmatmul.mubr.bf16.gmra.mrb[0].mxu0 %v806
    %v1225 = vpop.f32.mrb[0].mxu0
    %v1226 = vadd.f32 %v325, %v1225
    %v1227 = vpop.f32.mrb[0].mxu0
    %v1228 = vpop.f32.mrb[0].mxu0
    %v1229 = vadd.f32 %v325, %v1228
    %v1230 = vpop.f32.mrb[0].mxu0
    %1231 = vmatprep.mubr.bf16.mxu0 0
    %1232 = vmatmul.mubr.bf16.gmra.mrb[0].mxu0 %v807
    %v1233 = vpop.f32.mrb[0].mxu0
    %v1234 = vadd.f32 %v325, %v1233
    %v1235 = vpop.f32.mrb[0].mxu0
    %v1236 = vpop.f32.mrb[0].mxu0
    %v1237 = vadd.f32 %v325, %v1236
    %v1238 = vpop.f32.mrb[0].mxu0
    %1239 = vmatprep.mubr.bf16.mxu0 0
    %1240 = vmatmul.mubr.bf16.gmra.mrb[0].mxu0 %v808
    %v1241 = vpop.f32.mrb[0].mxu0
    %v1242 = vadd.f32 %v325, %v1241
    %v1243 = vpop.f32.mrb[0].mxu0
    %v1244 = vpop.f32.mrb[0].mxu0
    %v1245 = vadd.f32 %v325, %v1244
    %v1246 = vpop.f32.mrb[0].mxu0
    %1247 = vmatprep.mubr.bf16.mxu0 0
    %1248 = vmatmul.mubr.bf16.gmra.mrb[0].mxu0 %v809
    %v1249 = vpop.f32.mrb[0].mxu0
    %v1250 = vadd.f32 %v325, %v1249
    %v1251 = vpop.f32.mrb[0].mxu0
    %v1252 = vpop.f32.mrb[0].mxu0
    %v1253 = vadd.f32 %v325, %v1252
    %v1254 = vpop.f32.mrb[0].mxu0
    %1255 = vmatprep.mubr.bf16.mxu0 0
    %1256 = vmatmul.mubr.bf16.gmra.mrb[0].mxu0 %v810
    %v1257 = vpop.f32.mrb[0].mxu0
    %v1258 = vadd.f32 %v325, %v1257
    %v1259 = vpop.f32.mrb[0].mxu0
    %v1260 = vpop.f32.mrb[0].mxu0
    %v1261 = vadd.f32 %v325, %v1260
    %v1262 = vpop.f32.mrb[0].mxu0
    %1263 = vmatprep.mubr.bf16.mxu0 0
    %1264 = vmatmul.mubr.bf16.gmra.mrb[0].mxu0 %v811
    %v1265 = vpop.f32.mrb[0].mxu0
    %v1266 = vadd.f32 %v325, %v1265
    %v1267 = vpop.f32.mrb[0].mxu0
    %v1268 = vpop.f32.mrb[0].mxu0
    %v1269 = vadd.f32 %v325, %v1268
    %v1270 = vpop.f32.mrb[0].mxu0
    %1271 = vmatprep.mubr.bf16.mxu0 0
    %1272 = vmatmul.mubr.bf16.gmra.mrb[0].mxu0 %v812
    %v1273 = vpop.f32.mrb[0].mxu0
    %v1274 = vadd.f32 %v325, %v1273
    %v1275 = vpop.f32.mrb[0].mxu0
    %v1276 = vpop.f32.mrb[0].mxu0
    %v1277 = vadd.f32 %v325, %v1276
    %v1278 = vpop.f32.mrb[0].mxu0
    %1279 = vmatprep.mubr.bf16.mxu0 0
    %1280 = vmatmul.mubr.bf16.gmra.mrb[0].mxu0 %v813
    %v1281 = vpop.f32.mrb[0].mxu0
    %v1282 = vadd.f32 %v325, %v1281
    %v1283 = vpop.f32.mrb[0].mxu0
    %v1284 = vpop.f32.mrb[0].mxu0
    %v1285 = vadd.f32 %v325, %v1284
    %v1286 = vpop.f32.mrb[0].mxu0
    %1287 = vmatprep.mubr.bf16.mxu0 0
    %1288 = vmatmul.mubr.bf16.gmra.mrb[0].mxu0 %v814
    %v1289 = vpop.f32.mrb[0].mxu0
    %v1290 = vadd.f32 %v325, %v1289
    %v1291 = vpop.f32.mrb[0].mxu0
    %v1292 = vpop.f32.mrb[0].mxu0
    %v1293 = vadd.f32 %v325, %v1292
    %v1294 = vpop.f32.mrb[0].mxu0
    %1295 = vmatprep.mubr.bf16.mxu0 0
    %1296 = vmatmul.mubr.bf16.gmra.mrb[0].mxu0 %v815
    %v1297 = vpop.f32.mrb[0].mxu0
    %v1298 = vadd.f32 %v325, %v1297
    %v1299 = vpop.f32.mrb[0].mxu0
    %v1300 = vpop.f32.mrb[0].mxu0
    %v1301 = vadd.f32 %v325, %v1300
    %v1302 = vpop.f32.mrb[0].mxu0
    %1303 = vmatprep.mubr.bf16.mxu0 0
    %1304 = vmatmul.mubr.bf16.gmra.mrb[0].mxu0 %v816
    %v1305 = vpop.f32.mrb[0].mxu0
    %v1306 = vadd.f32 %v325, %v1305
    %v1307 = vpop.f32.mrb[0].mxu0
    %v1308 = vpop.f32.mrb[0].mxu0
    %v1309 = vadd.f32 %v325, %v1308
    %v1310 = vpop.f32.mrb[0].mxu0
    %1311 = vmatprep.mubr.bf16.mxu0 0
    %1312 = vmatmul.mubr.bf16.gmra.mrb[0].mxu0 %v817
    %v1313 = vpop.f32.mrb[0].mxu0
    %v1314 = vadd.f32 %v325, %v1313
    %v1315 = vpop.f32.mrb[0].mxu0
    %v1316 = vpop.f32.mrb[0].mxu0
    %v1317 = vadd.f32 %v325, %v1316
    %v1318 = vpop.f32.mrb[0].mxu0
    %1319 = vmatprep.mubr.bf16.mxu0 0
    %1320 = vmatmul.mubr.bf16.gmra.mrb[0].mxu0 %v818
    %v1321 = vpop.f32.mrb[0].mxu0
    %v1322 = vadd.f32 %v325, %v1321
    %v1323 = vpop.f32.mrb[0].mxu0
    %v1324 = vpop.f32.mrb[0].mxu0
    %v1325 = vadd.f32 %v325, %v1324
    %v1326 = vpop.f32.mrb[0].mxu0
    %1327 = vmatprep.mubr.bf16.mxu0 0
    %1328 = vmatmul.mubr.bf16.gmra.mrb[0].mxu0 %v819
    %v1329 = vpop.f32.mrb[0].mxu0
    %v1330 = vadd.f32 %v325, %v1329
    %v1331 = vpop.f32.mrb[0].mxu0
    %v1332 = vpop.f32.mrb[0].mxu0
    %v1333 = vadd.f32 %v325, %v1332
    %v1334 = vpop.f32.mrb[0].mxu0
    %1335 = vmatprep.mubr.bf16.mxu0 0
    %1336 = vmatmul.mubr.bf16.gmra.mrb[0].mxu0 %v820
    %v1337 = vpop.f32.mrb[0].mxu0
    %v1338 = vadd.f32 %v325, %v1337
    %v1339 = vpop.f32.mrb[0].mxu0
    %v1340 = vpop.f32.mrb[0].mxu0
    %v1341 = vadd.f32 %v325, %v1340
    %v1342 = vpop.f32.mrb[0].mxu0
    %1343 = vmatprep.mubr.bf16.mxu0 0
    %1344 = vmatmul.mubr.bf16.gmra.mrb[0].mxu0 %v821
    %v1345 = vpop.f32.mrb[0].mxu0
    %v1346 = vadd.f32 %v325, %v1345
    %v1347 = vpop.f32.mrb[0].mxu0
    %v1348 = vpop.f32.mrb[0].mxu0
    %v1349 = vadd.f32 %v325, %v1348
    %v1350 = vpop.f32.mrb[0].mxu0
    %1351 = vmatprep.mubr.bf16.mxu0 0
    %1352 = vmatmul.mubr.bf16.gmra.mrb[0].mxu0 %v822
    %v1353 = vpop.f32.mrb[0].mxu0
    %v1354 = vadd.f32 %v325, %v1353
    %v1355 = vpop.f32.mrb[0].mxu0
    %v1356 = vpop.f32.mrb[0].mxu0
    %v1357 = vadd.f32 %v325, %v1356
    %v1358 = vpop.f32.mrb[0].mxu0
    %1359 = vmatprep.mubr.bf16.mxu0 0
    %1360 = vmatmul.mubr.bf16.gmra.mrb[0].mxu0 %v823
    %v1361 = vpop.f32.mrb[0].mxu0
    %v1362 = vadd.f32 %v325, %v1361
    %v1363 = vpop.f32.mrb[0].mxu0
    %v1364 = vpop.f32.mrb[0].mxu0
    %v1365 = vadd.f32 %v325, %v1364
    %v1366 = vpop.f32.mrb[0].mxu0
    %1367 = vmatprep.mubr.bf16.mxu0 0
    %1368 = vmatmul.mubr.bf16.gmra.mrb[0].mxu0 %v824
    %v1369 = vpop.f32.mrb[0].mxu0
    %v1370 = vadd.f32 %v325, %v1369
    %v1371 = vpop.f32.mrb[0].mxu0
    %v1372 = vpop.f32.mrb[0].mxu0
    %v1373 = vadd.f32 %v325, %v1372
    %v1374 = vpop.f32.mrb[0].mxu0
    %1375 = vmatprep.mubr.bf16.mxu0 0
    %1376 = vmatmul.mubr.bf16.gmra.mrb[0].mxu0 %v825
    %v1377 = vpop.f32.mrb[0].mxu0
    %v1378 = vadd.f32 %v325, %v1377
    %v1379 = vpop.f32.mrb[0].mxu0
    %v1380 = vpop.f32.mrb[0].mxu0
    %v1381 = vadd.f32 %v325, %v1380
    %v1382 = vpop.f32.mrb[0].mxu0
    %1383 = vmatprep.mubr.bf16.mxu0 0
    %1384 = vmatmul.mubr.bf16.gmra.mrb[0].mxu0 %v826
    %v1385 = vpop.f32.mrb[0].mxu0
    %v1386 = vadd.f32 %v325, %v1385
    %v1387 = vpop.f32.mrb[0].mxu0
    %v1388 = vpop.f32.mrb[0].mxu0
    %v1389 = vadd.f32 %v325, %v1388
    %v1390 = vpop.f32.mrb[0].mxu0
    %1391 = vmatprep.mubr.bf16.mxu0 0
    %1392 = vmatmul.mubr.bf16.gmra.mrb[0].mxu0 %v827
    %v1393 = vpop.f32.mrb[0].mxu0
    %v1394 = vadd.f32 %v325, %v1393
    %v1395 = vpop.f32.mrb[0].mxu0
    %v1396 = vpop.f32.mrb[0].mxu0
    %v1397 = vadd.f32 %v325, %v1396
    %v1398 = vpop.f32.mrb[0].mxu0
    %1399 = vmatprep.mubr.bf16.mxu0 0
    %1400 = vmatmul.mubr.bf16.gmra.mrb[0].mxu0 %v828
    %v1401 = vpop.f32.mrb[0].mxu0
    %v1402 = vadd.f32 %v325, %v1401
    %v1403 = vpop.f32.mrb[0].mxu0
    %v1404 = vpop.f32.mrb[0].mxu0
    %v1405 = vadd.f32 %v325, %v1404
    %v1406 = vpop.f32.mrb[0].mxu0
    %1407 = vmatprep.mubr.bf16.mxu0 0
    %1408 = vmatmul.mubr.bf16.gmra.mrb[0].mxu0 %v829
    %v1409 = vpop.f32.mrb[0].mxu0
    %v1410 = vadd.f32 %v325, %v1409
    %v1411 = vpop.f32.mrb[0].mxu0
    %v1412 = vpop.f32.mrb[0].mxu0
    %v1413 = vadd.f32 %v325, %v1412
    %v1414 = vpop.f32.mrb[0].mxu0
    %1415 = vmatprep.mubr.bf16.mxu0 0
    %1416 = vmatmul.mubr.bf16.gmra.mrb[0].mxu0 %v830
    %v1417 = vpop.f32.mrb[0].mxu0
    %v1418 = vadd.f32 %v325, %v1417
    %v1419 = vpop.f32.mrb[0].mxu0
    %v1420 = vpop.f32.mrb[0].mxu0
    %v1421 = vadd.f32 %v325, %v1420
    %v1422 = vpop.f32.mrb[0].mxu0
    %1423 = vmatprep.mubr.bf16.mxu0 0
    %1424 = vmatmul.mubr.bf16.gmra.mrb[0].mxu0 %v831
    %v1425 = vpop.f32.mrb[0].mxu0
    %v1426 = vadd.f32 %v325, %v1425
    %v1427 = vpop.f32.mrb[0].mxu0
    %v1428 = vpop.f32.mrb[0].mxu0
    %v1429 = vadd.f32 %v325, %v1428
    %v1430 = vpop.f32.mrb[0].mxu0
    %1431 = vmatprep.mubr.bf16.mxu0 0
    %1432 = vmatmul.mubr.bf16.gmra.mrb[0].mxu0 %v832
    %v1433 = vpop.f32.mrb[0].mxu0
    %v1434 = vadd.f32 %v325, %v1433
    %v1435 = vpop.f32.mrb[0].mxu0
    %v1436 = vpop.f32.mrb[0].mxu0
    %v1437 = vadd.f32 %v325, %v1436
    %v1438 = vpop.f32.mrb[0].mxu0
    %1439 = vmatprep.mubr.bf16.mxu0 0
    %1440 = vmatmul.mubr.bf16.gmra.mrb[0].mxu0 %v833
    %v1441 = vpop.f32.mrb[0].mxu0
    %v1442 = vadd.f32 %v325, %v1441
    %v1443 = vpop.f32.mrb[0].mxu0
    %v1444 = vpop.f32.mrb[0].mxu0
    %v1445 = vadd.f32 %v325, %v1444
    %v1446 = vpop.f32.mrb[0].mxu0
    %1447 = vmatprep.mubr.bf16.mxu0 0
    %1448 = vmatmul.mubr.bf16.gmra.mrb[0].mxu0 %v834
    %v1449 = vpop.f32.mrb[0].mxu0
    %v1450 = vadd.f32 %v325, %v1449
    %v1451 = vpop.f32.mrb[0].mxu0
    %v1452 = vpop.f32.mrb[0].mxu0
    %v1453 = vadd.f32 %v325, %v1452
    %v1454 = vpop.f32.mrb[0].mxu0
    %1455 = vmatprep.mubr.bf16.mxu0 0
    %1456 = vmatmul.mubr.bf16.gmra.mrb[0].mxu0 %v835
    %v1457 = vpop.f32.mrb[0].mxu0
    %v1458 = vadd.f32 %v325, %v1457
    %v1459 = vpop.f32.mrb[0].mxu0
    %v1460 = vpop.f32.mrb[0].mxu0
    %v1461 = vadd.f32 %v325, %v1460
    %v1462 = vpop.f32.mrb[0].mxu0
    %1463 = vmatprep.mubr.bf16.mxu0 0
    %1464 = vmatmul.mubr.bf16.gmra.mrb[0].mxu0 %v836
    %v1465 = vpop.f32.mrb[0].mxu0
    %v1466 = vadd.f32 %v325, %v1465
    %v1467 = vpop.f32.mrb[0].mxu0
    %v1468 = vpop.f32.mrb[0].mxu0
    %v1469 = vadd.f32 %v325, %v1468
    %v1470 = vpop.f32.mrb[0].mxu0
    %1471 = vmatprep.mubr.bf16.mxu0 0
    %1472 = vmatmul.mubr.bf16.gmra.mrb[0].mxu0 %v837
    %v1473 = vpop.f32.mrb[0].mxu0
    %v1474 = vadd.f32 %v325, %v1473
    %v1475 = vpop.f32.mrb[0].mxu0
    %v1476 = vpop.f32.mrb[0].mxu0
    %v1477 = vadd.f32 %v325, %v1476
    %v1478 = vpop.f32.mrb[0].mxu0
    %1479 = vmatprep.mubr.bf16.mxu0 0
    %1480 = vmatmul.mubr.bf16.gmra.mrb[0].mxu0 %v838
    %v1481 = vpop.f32.mrb[0].mxu0
    %v1482 = vadd.f32 %v325, %v1481
    %v1483 = vpop.f32.mrb[0].mxu0
    %v1484 = vpop.f32.mrb[0].mxu0
    %v1485 = vadd.f32 %v325, %v1484
    %v1486 = vpop.f32.mrb[0].mxu0
    %1487 = vmatprep.mubr.bf16.mxu0 0
    %1488 = vmatmul.mubr.bf16.gmra.mrb[0].mxu0 %v839
    %v1489 = vpop.f32.mrb[0].mxu0
    %v1490 = vadd.f32 %v325, %v1489
    %v1491 = vpop.f32.mrb[0].mxu0
    %v1492 = vpop.f32.mrb[0].mxu0
    %v1493 = vadd.f32 %v325, %v1492
    %v1494 = vpop.f32.mrb[0].mxu0
    %1495 = vmatprep.mubr.bf16.mxu0 0
    %1496 = vmatmul.mubr.bf16.gmra.mrb[0].mxu0 %v840
    %v1497 = vpop.f32.mrb[0].mxu0
    %v1498 = vadd.f32 %v325, %v1497
    %v1499 = vpop.f32.mrb[0].mxu0
    %v1500 = vpop.f32.mrb[0].mxu0
    %v1501 = vadd.f32 %v325, %v1500
    %v1502 = vpop.f32.mrb[0].mxu0
    %1503 = vmatprep.mubr.bf16.mxu0 0
    %1504 = vmatmul.mubr.bf16.gmra.mrb[0].mxu0 %v841
    %v1505 = vpop.f32.mrb[0].mxu0
    %v1506 = vadd.f32 %v325, %v1505
    %v1507 = vpop.f32.mrb[0].mxu0
    %v1508 = vpop.f32.mrb[0].mxu0
    %v1509 = vadd.f32 %v325, %v1508
    %v1510 = vpop.f32.mrb[0].mxu0
    %1511 = vmatprep.mubr.bf16.mxu0 0
    %1512 = vmatmul.mubr.bf16.gmra.mrb[0].mxu0 %v842
    %v1513 = vpop.f32.mrb[0].mxu0
    %v1514 = vadd.f32 %v325, %v1513
    %v1515 = vpop.f32.mrb[0].mxu0
    %v1516 = vpop.f32.mrb[0].mxu0
    %v1517 = vadd.f32 %v325, %v1516
    %v1518 = vpop.f32.mrb[0].mxu0
    %1519 = vmatprep.mubr.bf16.mxu0 0
    %1520 = vmatmul.mubr.bf16.gmra.mrb[0].mxu0 %v843
    %v1521 = vpop.f32.mrb[0].mxu0
    %v1522 = vadd.f32 %v325, %v1521
    %v1523 = vpop.f32.mrb[0].mxu0
    %v1524 = vpop.f32.mrb[0].mxu0
    %v1525 = vadd.f32 %v325, %v1524
    %v1526 = vpop.f32.mrb[0].mxu0
    %1527 = vmatprep.mubr.bf16.mxu0 0
    %1528 = vmatmul.mubr.bf16.gmra.mrb[0].mxu0 %v844
    %v1529 = vpop.f32.mrb[0].mxu0
    %v1530 = vadd.f32 %v325, %v1529
    %v1531 = vpop.f32.mrb[0].mxu0
    %v1532 = vpop.f32.mrb[0].mxu0
    %v1533 = vadd.f32 %v325, %v1532
    %v1534 = vpop.f32.mrb[0].mxu0
    %1535 = vmatprep.mubr.bf16.mxu0 0
    %1536 = vmatmul.mubr.bf16.gmra.mrb[0].mxu0 %v845
    %v1537 = vpop.f32.mrb[0].mxu0
    %v1538 = vadd.f32 %v325, %v1537
    %v1539 = vpop.f32.mrb[0].mxu0
    %v1540 = vpop.f32.mrb[0].mxu0
    %v1541 = vadd.f32 %v325, %v1540
    %v1542 = vpop.f32.mrb[0].mxu0
    %1543 = vmatprep.mubr.bf16.mxu0 0
    %1544 = vmatmul.mubr.bf16.gmra.mrb[0].mxu0 %v846
    %v1545 = vpop.f32.mrb[0].mxu0
    %v1546 = vadd.f32 %v325, %v1545
    %v1547 = vpop.f32.mrb[0].mxu0
    %v1548 = vpop.f32.mrb[0].mxu0
    %v1549 = vadd.f32 %v325, %v1548
    %v1550 = vpop.f32.mrb[0].mxu0
    %1551 = vmatprep.mubr.bf16.mxu0 0
    %1552 = vmatmul.mubr.bf16.gmra.mrb[0].mxu0 %v847
    %v1553 = vpop.f32.mrb[0].mxu0
    %v1554 = vadd.f32 %v325, %v1553
    %v1555 = vpop.f32.mrb[0].mxu0
    %v1556 = vpop.f32.mrb[0].mxu0
    %v1557 = vadd.f32 %v325, %v1556
    %v1558 = vpop.f32.mrb[0].mxu0
    %1559 = vmatprep.mubr.bf16.mxu0 0
    %1560 = vmatmul.mubr.bf16.gmra.mrb[0].mxu0 %v848
    %v1561 = vpop.f32.mrb[0].mxu0
    %v1562 = vadd.f32 %v325, %v1561
    %v1563 = vpop.f32.mrb[0].mxu0
    %v1564 = vpop.f32.mrb[0].mxu0
    %v1565 = vadd.f32 %v325, %v1564
    %v1566 = vpop.f32.mrb[0].mxu0
    %1567 = vmatprep.mubr.bf16.mxu0 0
    %1568 = vmatmul.mubr.bf16.gmra.mrb[0].mxu0 %v849
    %v1569 = vpop.f32.mrb[0].mxu0
    %v1570 = vadd.f32 %v325, %v1569
    %v1571 = vpop.f32.mrb[0].mxu0
    %v1572 = vpop.f32.mrb[0].mxu0
    %v1573 = vadd.f32 %v325, %v1572
    %v1574 = vpop.f32.mrb[0].mxu0
    %1575 = vmatprep.mubr.bf16.mxu0 0
    %1576 = vmatmul.mubr.bf16.gmra.mrb[0].mxu0 %v850
    %v1577 = vpop.f32.mrb[0].mxu0
    %v1578 = vadd.f32 %v325, %v1577
    %v1579 = vpop.f32.mrb[0].mxu0
    %v1580 = vpop.f32.mrb[0].mxu0
    %v1581 = vadd.f32 %v325, %v1580
    %v1582 = vpop.f32.mrb[0].mxu0
    %1583 = vmatprep.mubr.bf16.mxu0 0
    %1584 = vmatmul.mubr.bf16.gmra.mrb[0].mxu0 %v851
    %v1585 = vpop.f32.mrb[0].mxu0
    %v1586 = vadd.f32 %v325, %v1585
    %v1587 = vpop.f32.mrb[0].mxu0
    %v1588 = vpop.f32.mrb[0].mxu0
    %v1589 = vadd.f32 %v325, %v1588
    %v1590 = vpop.f32.mrb[0].mxu0
    %1591 = vmatprep.mubr.bf16.mxu0 0
    %1592 = vmatmul.mubr.bf16.gmra.mrb[0].mxu0 %v852
    %v1593 = vpop.f32.mrb[0].mxu0
    %v1594 = vadd.f32 %v325, %v1593
    %v1595 = vpop.f32.mrb[0].mxu0
    %v1596 = vpop.f32.mrb[0].mxu0
    %v1597 = vadd.f32 %v325, %v1596
    %v1598 = vpop.f32.mrb[0].mxu0
    %1599 = vmatprep.mubr.bf16.mxu0 0
    %1600 = vmatmul.mubr.bf16.gmra.mrb[0].mxu0 %v853
    %v1601 = vpop.f32.mrb[0].mxu0
    %v1602 = vadd.f32 %v325, %v1601
    %v1603 = vpop.f32.mrb[0].mxu0
    %v1604 = vpop.f32.mrb[0].mxu0
    %v1605 = vadd.f32 %v325, %v1604
    %v1606 = vpop.f32.mrb[0].mxu0
    %1607 = vmatprep.mubr.bf16.mxu0 0
    %1608 = vmatmul.mubr.bf16.gmra.mrb[0].mxu0 %v854
    %v1609 = vpop.f32.mrb[0].mxu0
    %v1610 = vadd.f32 %v325, %v1609
    %v1611 = vpop.f32.mrb[0].mxu0
    %v1612 = vpop.f32.mrb[0].mxu0
    %v1613 = vadd.f32 %v325, %v1612
    %v1614 = vpop.f32.mrb[0].mxu0
    %1615 = vmatprep.mubr.bf16.mxu0 0
    %1616 = vmatmul.mubr.bf16.gmra.mrb[0].mxu0 %v855
    %v1617 = vpop.f32.mrb[0].mxu0
    %v1618 = vadd.f32 %v325, %v1617
    %v1619 = vpop.f32.mrb[0].mxu0
    %v1620 = vpop.f32.mrb[0].mxu0
    %v1621 = vadd.f32 %v325, %v1620
    %v1622 = vpop.f32.mrb[0].mxu0
    %1623 = vmatprep.mubr.bf16.mxu0 0
    %1624 = vmatmul.mubr.bf16.gmra.mrb[0].mxu0 %v856
    %v1625 = vpop.f32.mrb[0].mxu0
    %v1626 = vadd.f32 %v325, %v1625
    %v1627 = vpop.f32.mrb[0].mxu0
    %v1628 = vpop.f32.mrb[0].mxu0
    %v1629 = vadd.f32 %v325, %v1628
    %v1630 = vpop.f32.mrb[0].mxu0
    %1631 = vmatprep.mubr.bf16.mxu0 0
    %1632 = vmatmul.mubr.bf16.gmra.mrb[0].mxu0 %v857
    %v1633 = vpop.f32.mrb[0].mxu0
    %v1634 = vadd.f32 %v325, %v1633
    %v1635 = vpop.f32.mrb[0].mxu0
    %v1636 = vpop.f32.mrb[0].mxu0
    %v1637 = vadd.f32 %v325, %v1636
    %v1638 = vpop.f32.mrb[0].mxu0
    %1639 = vmatprep.mubr.bf16.mxu0 0
    %1640 = vmatmul.mubr.bf16.gmra.mrb[0].mxu0 %v858
    %v1641 = vpop.f32.mrb[0].mxu0
    %v1642 = vadd.f32 %v325, %v1641
    %v1643 = vpop.f32.mrb[0].mxu0
    %v1644 = vpop.f32.mrb[0].mxu0
    %v1645 = vadd.f32 %v325, %v1644
    %v1646 = vpop.f32.mrb[0].mxu0
    %1647 = vmatprep.mubr.bf16.mxu0 0
    %1648 = vmatmul.mubr.bf16.gmra.mrb[0].mxu0 %v859
    %v1649 = vpop.f32.mrb[0].mxu0
    %v1650 = vadd.f32 %v325, %v1649
    %v1651 = vpop.f32.mrb[0].mxu0
    %v1652 = vpop.f32.mrb[0].mxu0
    %v1653 = vadd.f32 %v325, %v1652
    %v1654 = vpop.f32.mrb[0].mxu0
    %1655 = vmatprep.mubr.bf16.mxu0 0
    %1656 = vmatmul.mubr.bf16.gmra.mrb[0].mxu0 %v860
    %v1657 = vpop.f32.mrb[0].mxu0
    %v1658 = vadd.f32 %v325, %v1657
    %v1659 = vpop.f32.mrb[0].mxu0
    %v1660 = vpop.f32.mrb[0].mxu0
    %v1661 = vadd.f32 %v325, %v1660
    %v1662 = vpop.f32.mrb[0].mxu0
    %1663 = vmatprep.mubr.bf16.mxu0 0
    %1664 = vmatmul.mubr.bf16.gmra.mrb[0].mxu0 %v861
    %v1665 = vpop.f32.mrb[0].mxu0
    %v1666 = vadd.f32 %v325, %v1665
    %v1667 = vpop.f32.mrb[0].mxu0
    %v1668 = vpop.f32.mrb[0].mxu0
    %v1669 = vadd.f32 %v325, %v1668
    %v1670 = vpop.f32.mrb[0].mxu0
    %1671 = vmatprep.mubr.bf16.mxu0 0
    %1672 = vmatmul.mubr.bf16.gmra.mrb[0].mxu0 %v862
    %v1673 = vpop.f32.mrb[0].mxu0
    %v1674 = vadd.f32 %v325, %v1673
    %v1675 = vpop.f32.mrb[0].mxu0
    %v1676 = vpop.f32.mrb[0].mxu0
    %v1677 = vadd.f32 %v325, %v1676
    %v1678 = vpop.f32.mrb[0].mxu0
    %1679 = vmatprep.mubr.bf16.mxu0 0
    %1680 = vmatmul.mubr.bf16.gmra.mrb[0].mxu0 %v863
    %v1681 = vpop.f32.mrb[0].mxu0
    %v1682 = vadd.f32 %v325, %v1681
    %v1683 = vpop.f32.mrb[0].mxu0
    %v1684 = vpop.f32.mrb[0].mxu0
    %v1685 = vadd.f32 %v325, %v1684
    %v1686 = vpop.f32.mrb[0].mxu0
    %1687 = vmatprep.mubr.bf16.mxu0 0
    %1688 = vmatmul.mubr.bf16.gmra.mrb[0].mxu0 %v864
    %v1689 = vpop.f32.mrb[0].mxu0
    %v1690 = vadd.f32 %v325, %v1689
    %v1691 = vpop.f32.mrb[0].mxu0
    %v1692 = vpop.f32.mrb[0].mxu0
    %v1693 = vadd.f32 %v325, %v1692
    %v1694 = vpop.f32.mrb[0].mxu0
    %1695 = vmatprep.mubr.bf16.mxu0 0
    %1696 = vmatmul.mubr.bf16.gmra.mrb[0].mxu0 %v865
    %v1697 = vpop.f32.mrb[0].mxu0
    %v1698 = vadd.f32 %v325, %v1697
    %v1699 = vpop.f32.mrb[0].mxu0
    %v1700 = vpop.f32.mrb[0].mxu0
    %v1701 = vadd.f32 %v325, %v1700
    %v1702 = vpop.f32.mrb[0].mxu0
    %1703 = vmatprep.mubr.bf16.mxu0 0
    %1704 = vmatmul.mubr.bf16.gmra.mrb[0].mxu0 %v866
    %v1705 = vpop.f32.mrb[0].mxu0
    %v1706 = vadd.f32 %v325, %v1705
    %v1707 = vpop.f32.mrb[0].mxu0
    %v1708 = vpop.f32.mrb[0].mxu0
    %v1709 = vadd.f32 %v325, %v1708
    %v1710 = vpop.f32.mrb[0].mxu0
    %1711 = vmatprep.mubr.bf16.mxu0 0
    %1712 = vmatmul.mubr.bf16.gmra.mrb[0].mxu0 %v867
    %v1713 = vpop.f32.mrb[0].mxu0
    %v1714 = vadd.f32 %v325, %v1713
    %v1715 = vpop.f32.mrb[0].mxu0
    %v1716 = vpop.f32.mrb[0].mxu0
    %v1717 = vadd.f32 %v325, %v1716
    %v1718 = vpop.f32.mrb[0].mxu0
    %1719 = vmatprep.mubr.bf16.mxu0 0
    %1720 = vmatmul.mubr.bf16.gmra.mrb[0].mxu0 %v868
    %v1721 = vpop.f32.mrb[0].mxu0
    %v1722 = vadd.f32 %v325, %v1721
    %v1723 = vpop.f32.mrb[0].mxu0
    %v1724 = vpop.f32.mrb[0].mxu0
    %v1725 = vadd.f32 %v325, %v1724
    %v1726 = vpop.f32.mrb[0].mxu0
    %1727 = vmatprep.mubr.bf16.mxu0 0
    %1728 = vmatmul.mubr.bf16.gmra.mrb[0].mxu0 %v869
    %v1729 = vpop.f32.mrb[0].mxu0
    %v1730 = vadd.f32 %v325, %v1729
    %v1731 = vpop.f32.mrb[0].mxu0
    %v1732 = vpop.f32.mrb[0].mxu0
    %v1733 = vadd.f32 %v325, %v1732
    %v1734 = vpop.f32.mrb[0].mxu0
    %1735 = vmatprep.mubr.bf16.mxu0 0
    %1736 = vmatmul.mubr.bf16.gmra.mrb[0].mxu0 %v870
    %v1737 = vpop.f32.mrb[0].mxu0
    %v1738 = vadd.f32 %v325, %v1737
    %v1739 = vpop.f32.mrb[0].mxu0
    %v1740 = vpop.f32.mrb[0].mxu0
    %v1741 = vadd.f32 %v325, %v1740
    %v1742 = vpop.f32.mrb[0].mxu0
    %1743 = vmatprep.mubr.bf16.mxu0 0
    %1744 = vmatmul.mubr.bf16.gmra.mrb[0].mxu0 %v871
    %v1745 = vpop.f32.mrb[0].mxu0
    %v1746 = vadd.f32 %v325, %v1745
    %v1747 = vpop.f32.mrb[0].mxu0
    %v1748 = vpop.f32.mrb[0].mxu0
    %v1749 = vadd.f32 %v325, %v1748
    %v1750 = vpop.f32.mrb[0].mxu0
    %1751 = vmatprep.mubr.bf16.mxu0 0
    %1752 = vmatmul.mubr.bf16.gmra.mrb[0].mxu0 %v872
    %v1753 = vpop.f32.mrb[0].mxu0
    %v1754 = vadd.f32 %v325, %v1753
    %v1755 = vpop.f32.mrb[0].mxu0
    %v1756 = vpop.f32.mrb[0].mxu0
    %v1757 = vadd.f32 %v325, %v1756
    %v1758 = vpop.f32.mrb[0].mxu0
    %1759 = vmatprep.mubr.bf16.mxu0 0
    %1760 = vmatmul.mubr.bf16.gmra.mrb[0].mxu0 %v873
    %v1761 = vpop.f32.mrb[0].mxu0
    %v1762 = vadd.f32 %v325, %v1761
    %v1763 = vpop.f32.mrb[0].mxu0
    %v1764 = vpop.f32.mrb[0].mxu0
    %v1765 = vadd.f32 %v325, %v1764
    %v1766 = vpop.f32.mrb[0].mxu0
    %1767 = vmatprep.mubr.bf16.mxu0 0
    %1768 = vmatmul.mubr.bf16.gmra.mrb[0].mxu0 %v874
    %v1769 = vpop.f32.mrb[0].mxu0
    %v1770 = vadd.f32 %v325, %v1769
    %v1771 = vpop.f32.mrb[0].mxu0
    %v1772 = vpop.f32.mrb[0].mxu0
    %v1773 = vadd.f32 %v325, %v1772
    %v1774 = vpop.f32.mrb[0].mxu0
    %1775 = vmatprep.mubr.bf16.mxu0 0
    %1776 = vmatmul.mubr.bf16.gmra.mrb[0].mxu0 %v875
    %v1777 = vpop.f32.mrb[0].mxu0
    %v1778 = vadd.f32 %v325, %v1777
    %v1779 = vpop.f32.mrb[0].mxu0
    %v1780 = vpop.f32.mrb[0].mxu0
    %v1781 = vadd.f32 %v325, %v1780
    %v1782 = vpop.f32.mrb[0].mxu0
    %1783 = vmatprep.mubr.bf16.mxu0 0
    %1784 = vmatmul.mubr.bf16.gmra.mrb[0].mxu0 %v876
    %v1785 = vpop.f32.mrb[0].mxu0
    %v1786 = vadd.f32 %v325, %v1785
    %v1787 = vpop.f32.mrb[0].mxu0
    %v1788 = vpop.f32.mrb[0].mxu0
    %v1789 = vadd.f32 %v325, %v1788
    %v1790 = vpop.f32.mrb[0].mxu0
    %1791 = vmatprep.mubr.bf16.mxu0 0
    %1792 = vmatmul.mubr.bf16.gmra.mrb[0].mxu0 %v877
    %v1793 = vpop.f32.mrb[0].mxu0
    %v1794 = vadd.f32 %v325, %v1793
    %v1795 = vpop.f32.mrb[0].mxu0
    %v1796 = vpop.f32.mrb[0].mxu0
    %v1797 = vadd.f32 %v325, %v1796
    %v1798 = vpop.f32.mrb[0].mxu0
    %1799 = vmatprep.mubr.bf16.mxu0 0
    %1800 = vmatmul.mubr.bf16.gmra.mrb[0].mxu0 %v878
    %v1801 = vpop.f32.mrb[0].mxu0
    %v1802 = vadd.f32 %v325, %v1801
    %v1803 = vpop.f32.mrb[0].mxu0
    %v1804 = vpop.f32.mrb[0].mxu0
    %v1805 = vadd.f32 %v325, %v1804
    %v1806 = vpop.f32.mrb[0].mxu0
    %1807 = vmatprep.mubr.bf16.mxu0 0
    %1808 = vmatmul.mubr.bf16.gmra.mrb[0].mxu0 %v879
    %v1809 = vpop.f32.mrb[0].mxu0
    %v1810 = vadd.f32 %v325, %v1809
    %v1811 = vpop.f32.mrb[0].mxu0
    %v1812 = vpop.f32.mrb[0].mxu0
    %v1813 = vadd.f32 %v325, %v1812
    %v1814 = vpop.f32.mrb[0].mxu0
    %1815 = vmatprep.mubr.bf16.mxu0 0
    %1816 = vmatmul.mubr.bf16.gmra.mrb[0].mxu0 %v880
    %v1817 = vpop.f32.mrb[0].mxu0
    %v1818 = vadd.f32 %v325, %v1817
    %v1819 = vpop.f32.mrb[0].mxu0
    %v1820 = vpop.f32.mrb[0].mxu0
    %v1821 = vadd.f32 %v325, %v1820
    %v1822 = vpop.f32.mrb[0].mxu0
    %1823 = vmatprep.mubr.bf16.mxu0 0
    %1824 = vmatmul.mubr.bf16.gmra.mrb[0].mxu0 %v881
    %v1825 = vpop.f32.mrb[0].mxu0
    %v1826 = vadd.f32 %v325, %v1825
    %v1827 = vpop.f32.mrb[0].mxu0
    %v1828 = vpop.f32.mrb[0].mxu0
    %v1829 = vadd.f32 %v325, %v1828
    %v1830 = vpop.f32.mrb[0].mxu0
    %1831 = vmatprep.mubr.bf16.mxu0 0
    %1832 = vmatmul.mubr.bf16.gmra.mrb[0].mxu0 %v882
    %v1833 = vpop.f32.mrb[0].mxu0
    %v1834 = vadd.f32 %v325, %v1833
    %v1835 = vpop.f32.mrb[0].mxu0
    %v1836 = vpop.f32.mrb[0].mxu0
    %v1837 = vadd.f32 %v325, %v1836
    %v1838 = vpop.f32.mrb[0].mxu0
    %1839 = vmatprep.mubr.bf16.mxu0 0
    %1840 = vmatmul.mubr.bf16.gmra.mrb[0].mxu0 %v883
    %v1841 = vpop.f32.mrb[0].mxu0
    %v1842 = vadd.f32 %v325, %v1841
    %v1843 = vpop.f32.mrb[0].mxu0
    %v1844 = vpop.f32.mrb[0].mxu0
    %v1845 = vadd.f32 %v325, %v1844
    %v1846 = vpop.f32.mrb[0].mxu0
    %1847 = vmatprep.mubr.bf16.mxu0 0
    %1848 = vmatmul.mubr.bf16.gmra.mrb[0].mxu0 %v884
    %v1849 = vpop.f32.mrb[0].mxu0
    %v1850 = vadd.f32 %v325, %v1849
    %v1851 = vpop.f32.mrb[0].mxu0
    %v1852 = vpop.f32.mrb[0].mxu0
    %v1853 = vadd.f32 %v325, %v1852
    %v1854 = vpop.f32.mrb[0].mxu0
    %1855 = vmatprep.mubr.bf16.mxu0 0
    %1856 = vmatmul.mubr.bf16.gmra.mrb[0].mxu0 %v885
    %v1857 = vpop.f32.mrb[0].mxu0
    %v1858 = vadd.f32 %v325, %v1857
    %v1859 = vpop.f32.mrb[0].mxu0
    %v1860 = vpop.f32.mrb[0].mxu0
    %v1861 = vadd.f32 %v325, %v1860
    %v1862 = vpop.f32.mrb[0].mxu0
    %1863 = vmatprep.mubr.bf16.mxu0 0
    %1864 = vmatmul.mubr.bf16.gmra.mrb[0].mxu0 %v886
    %v1865 = vpop.f32.mrb[0].mxu0
    %v1866 = vadd.f32 %v325, %v1865
    %v1867 = vpop.f32.mrb[0].mxu0
    %v1868 = vpop.f32.mrb[0].mxu0
    %v1869 = vadd.f32 %v325, %v1868
    %v1870 = vpop.f32.mrb[0].mxu0
    %1871 = vmatprep.mubr.bf16.mxu0 0
    %1872 = vmatmul.mubr.bf16.gmra.mrb[0].mxu0 %v887
    %v1873 = vpop.f32.mrb[0].mxu0
    %v1874 = vadd.f32 %v325, %v1873
    %v1875 = vpop.f32.mrb[0].mxu0
    %v1876 = vpop.f32.mrb[0].mxu0
    %v1877 = vadd.f32 %v325, %v1876
    %v1878 = vpop.f32.mrb[0].mxu0
    %1879 = vmatprep.mubr.bf16.mxu0 0
    %1880 = vmatmul.mubr.bf16.gmra.mrb[0].mxu0 %v888
    %v1881 = vpop.f32.mrb[0].mxu0
    %v1882 = vadd.f32 %v325, %v1881
    %v1883 = vpop.f32.mrb[0].mxu0
    %v1884 = vpop.f32.mrb[0].mxu0
    %v1885 = vadd.f32 %v325, %v1884
    %v1886 = vpop.f32.mrb[0].mxu0
    %1887 = vmatprep.mubr.bf16.mxu0 0
    %1888 = vmatmul.mubr.bf16.gmra.mrb[0].mxu0 %v889
    %v1889 = vpop.f32.mrb[0].mxu0
    %v1890 = vadd.f32 %v325, %v1889
    %v1891 = vpop.f32.mrb[0].mxu0
    %v1892 = vpop.f32.mrb[0].mxu0
    %v1893 = vadd.f32 %v325, %v1892
    %v1894 = vpop.f32.mrb[0].mxu0
    %1895 = vmatprep.mubr.bf16.mxu0 0
    %1896 = vmatmul.mubr.bf16.gmra.mrb[0].mxu0 %v890
    %v1897 = vpop.f32.mrb[0].mxu0
    %v1898 = vadd.f32 %v325, %v1897
    %v1899 = vpop.f32.mrb[0].mxu0
    %v1900 = vpop.f32.mrb[0].mxu0
    %v1901 = vadd.f32 %v325, %v1900
    %v1902 = vpop.f32.mrb[0].mxu0
    %1903 = vmatprep.mubr.bf16.mxu0 0
    %1904 = vmatmul.mubr.bf16.gmra.mrb[0].mxu0 %v891
    %v1905 = vpop.f32.mrb[0].mxu0
    %v1906 = vadd.f32 %v325, %v1905
    %v1907 = vpop.f32.mrb[0].mxu0
    %v1908 = vpop.f32.mrb[0].mxu0
    %v1909 = vadd.f32 %v325, %v1908
    %v1910 = vpop.f32.mrb[0].mxu0
    %1911 = vmatprep.mubr.bf16.mxu0 0
    %1912 = vmatmul.mubr.bf16.gmra.mrb[0].mxu0 %v892
    %v1913 = vpop.f32.mrb[0].mxu0
    %v1914 = vadd.f32 %v325, %v1913
    %v1915 = vpop.f32.mrb[0].mxu0
    %v1916 = vpop.f32.mrb[0].mxu0
    %v1917 = vadd.f32 %v325, %v1916
    %v1918 = vpop.f32.mrb[0].mxu0
    %1919 = vmatprep.mubr.bf16.mxu0 0
    %1920 = vmatmul.mubr.bf16.gmra.mrb[0].mxu0 %v893
    %v1921 = vpop.f32.mrb[0].mxu0
    %v1922 = vadd.f32 %v325, %v1921
    %v1923 = vpop.f32.mrb[0].mxu0
    %v1924 = vpop.f32.mrb[0].mxu0
    %v1925 = vadd.f32 %v325, %v1924
    %v1926 = vpop.f32.mrb[0].mxu0
    %1927 = vmatprep.mubr.bf16.mxu0 0
    %1928 = vmatmul.mubr.bf16.gmra.mrb[0].mxu0 %v894
    %v1929 = vpop.f32.mrb[0].mxu0
    %v1930 = vadd.f32 %v325, %v1929
    %v1931 = vpop.f32.mrb[0].mxu0
    %v1932 = vpop.f32.mrb[0].mxu0
    %v1933 = vadd.f32 %v325, %v1932
    %v1934 = vpop.f32.mrb[0].mxu0
    %1935 = vmatprep.mubr.bf16.mxu0 0
    %1936 = vmatmul.mubr.bf16.gmra.mrb[0].mxu0 %v895
    %v1937 = vpop.f32.mrb[0].mxu0
    %v1938 = vadd.f32 %v325, %v1937
    %v1939 = vpop.f32.mrb[0].mxu0
    %v1940 = vpop.f32.mrb[0].mxu0
    %v1941 = vadd.f32 %v325, %v1940
    %v1942 = vpop.f32.mrb[0].mxu0
    %1943 = vmatprep.mubr.bf16.mxu0 0
    %1944 = vmatmul.mubr.bf16.gmra.mrb[0].mxu0 %v896
    %v1945 = vpop.f32.mrb[0].mxu0
    %v1946 = vadd.f32 %v325, %v1945
    %v1947 = vpop.f32.mrb[0].mxu0
    %v1948 = vpop.f32.mrb[0].mxu0
    %v1949 = vadd.f32 %v325, %v1948
    %v1950 = vpop.f32.mrb[0].mxu0
    %1951 = vmatprep.mubr.bf16.mxu0 0
    %1952 = vmatmul.mubr.bf16.gmra.mrb[0].mxu0 %v897
    %v1953 = vpop.f32.mrb[0].mxu0
    %v1954 = vadd.f32 %v325, %v1953
    %v1955 = vpop.f32.mrb[0].mxu0
    %v1956 = vpop.f32.mrb[0].mxu0
    %v1957 = vadd.f32 %v325, %v1956
    %v1958 = vpop.f32.mrb[0].mxu0
    %1959 = vmatprep.mubr.bf16.mxu0 0
    %1960 = vmatmul.mubr.bf16.gmra.mrb[0].mxu0 %v898
    %v1961 = vpop.f32.mrb[0].mxu0
    %v1962 = vadd.f32 %v325, %v1961
    %v1963 = vpop.f32.mrb[0].mxu0
    %v1964 = vpop.f32.mrb[0].mxu0
    %v1965 = vadd.f32 %v325, %v1964
    %v1966 = vpop.f32.mrb[0].mxu0
    %1967 = vmatprep.mubr.bf16.mxu0 0
    %1968 = vmatmul.mubr.bf16.gmra.mrb[0].mxu0 %v899
    %v1969 = vpop.f32.mrb[0].mxu0
    %v1970 = vadd.f32 %v325, %v1969
    %v1971 = vpop.f32.mrb[0].mxu0
    %v1972 = vpop.f32.mrb[0].mxu0
    %v1973 = vadd.f32 %v325, %v1972
    %v1974 = vpop.f32.mrb[0].mxu0
    %1975 = vmatprep.mubr.bf16.mxu0 0
    %1976 = vmatmul.mubr.bf16.gmra.mrb[0].mxu0 %v900
    %v1977 = vpop.f32.mrb[0].mxu0
    %v1978 = vadd.f32 %v325, %v1977
    %v1979 = vpop.f32.mrb[0].mxu0
    %v1980 = vpop.f32.mrb[0].mxu0
    %v1981 = vadd.f32 %v325, %v1980
    %v1982 = vpop.f32.mrb[0].mxu0
    %1983 = vmatprep.mubr.bf16.mxu0 0
    %1984 = vmatmul.mubr.bf16.gmra.mrb[0].mxu0 %v901
    %v1985 = vpop.f32.mrb[0].mxu0
    %v1986 = vadd.f32 %v325, %v1985
    %v1987 = vpop.f32.mrb[0].mxu0
    %v1988 = vpop.f32.mrb[0].mxu0
    %v1989 = vadd.f32 %v325, %v1988
    %v1990 = vpop.f32.mrb[0].mxu0
    %1991 = vmatprep.mubr.bf16.mxu0 0
    %1992 = vmatmul.mubr.bf16.gmra.mrb[0].mxu0 %v902
    %v1993 = vpop.f32.mrb[0].mxu0
    %v1994 = vadd.f32 %v325, %v1993
    %v1995 = vpop.f32.mrb[0].mxu0
    %v1996 = vpop.f32.mrb[0].mxu0
    %v1997 = vadd.f32 %v325, %v1996
    %v1998 = vpop.f32.mrb[0].mxu0
    %1999 = vmatprep.mubr.bf16.mxu0 0
    %2000 = vmatmul.mubr.bf16.gmra.mrb[0].mxu0 %v903
    %v2001 = vpop.f32.mrb[0].mxu0
    %v2002 = vadd.f32 %v325, %v2001
    %v2003 = vpop.f32.mrb[0].mxu0
    %v2004 = vpop.f32.mrb[0].mxu0
    %v2005 = vadd.f32 %v325, %v2004
    %v2006 = vpop.f32.mrb[0].mxu0
    %2007 = vmatprep.mubr.bf16.mxu0 0
    %2008 = vmatmul.mubr.bf16.gmra.mrb[0].mxu0 %v904
    %v2009 = vpop.f32.mrb[0].mxu0
    %v2010 = vadd.f32 %v325, %v2009
    %v2011 = vpop.f32.mrb[0].mxu0
    %v2012 = vpop.f32.mrb[0].mxu0
    %v2013 = vadd.f32 %v325, %v2012
    %v2014 = vpop.f32.mrb[0].mxu0
    %2015 = vmatprep.mubr.bf16.mxu0 0
    %2016 = vmatmul.mubr.bf16.gmra.mrb[0].mxu0 %v905
    %v2017 = vpop.f32.mrb[0].mxu0
    %v2018 = vadd.f32 %v325, %v2017
    %v2019 = vpop.f32.mrb[0].mxu0
    %v2020 = vpop.f32.mrb[0].mxu0
    %v2021 = vadd.f32 %v325, %v2020
    %v2022 = vpop.f32.mrb[0].mxu0
    %2023 = vmatprep.mubr.bf16.mxu0 0
    %2024 = vmatmul.mubr.bf16.gmra.mrb[0].mxu0 %v906
    %v2025 = vpop.f32.mrb[0].mxu0
    %v2026 = vadd.f32 %v325, %v2025
    %v2027 = vpop.f32.mrb[0].mxu0
    %v2028 = vpop.f32.mrb[0].mxu0
    %v2029 = vadd.f32 %v325, %v2028
    %v2030 = vpop.f32.mrb[0].mxu0
    %2031 = vdwg.mxu0
    %v2032 = vmax.f32 %v1106, 0.0
    %v2033 = vmax.f32 %v1109, 0.0
    %v2034 = vmax.f32 %v1114, 0.0
    %v2035 = vmax.f32 %v1117, 0.0
    %v2036 = vmax.f32 %v1122, 0.0
    %v2037 = vmax.f32 %v1125, 0.0
    %v2038 = vmax.f32 %v1130, 0.0
    %v2039 = vmax.f32 %v1133, 0.0
    %v2040 = vmax.f32 %v1138, 0.0
    %v2041 = vmax.f32 %v1141, 0.0
    %v2042 = vmax.f32 %v1146, 0.0
    %v2043 = vmax.f32 %v1149, 0.0
    %v2044 = vmax.f32 %v1154, 0.0
    %v2045 = vmax.f32 %v1157, 0.0
    %v2046 = vmax.f32 %v1162, 0.0
    %v2047 = vmax.f32 %v1165, 0.0
    %v2048 = vmax.f32 %v1170, 0.0
    %v2049 = vmax.f32 %v1173, 0.0
    %v2050 = vmax.f32 %v1178, 0.0
    %v2051 = vmax.f32 %v1181, 0.0
    %v2052 = vmax.f32 %v1186, 0.0
    %v2053 = vmax.f32 %v1189, 0.0
    %v2054 = vmax.f32 %v1194, 0.0
    %v2055 = vmax.f32 %v1197, 0.0
    %v2056 = vmax.f32 %v1202, 0.0
    %v2057 = vmax.f32 %v1205, 0.0
    %v2058 = vmax.f32 %v1210, 0.0
    %v2059 = vmax.f32 %v1213, 0.0
    %v2060 = vmax.f32 %v1218, 0.0
    %v2061 = vmax.f32 %v1221, 0.0
    %v2062 = vmax.f32 %v1226, 0.0
    %v2063 = vmax.f32 %v1229, 0.0
    %v2064 = vmax.f32 %v1234, 0.0
    %v2065 = vmax.f32 %v1237, 0.0
    %v2066 = vmax.f32 %v1242, 0.0
    %v2067 = vmax.f32 %v1245, 0.0
    %v2068 = vmax.f32 %v1250, 0.0
    %v2069 = vmax.f32 %v1253, 0.0
    %v2070 = vmax.f32 %v1258, 0.0
    %v2071 = vmax.f32 %v1261, 0.0
    %v2072 = vmax.f32 %v1266, 0.0
    %v2073 = vmax.f32 %v1269, 0.0
    %v2074 = vmax.f32 %v1274, 0.0
    %v2075 = vmax.f32 %v1277, 0.0
    %v2076 = vmax.f32 %v1282, 0.0
    %v2077 = vmax.f32 %v1285, 0.0
    %v2078 = vmax.f32 %v1290, 0.0
    %v2079 = vmax.f32 %v1293, 0.0
    %v2080 = vmax.f32 %v1298, 0.0
    %v2081 = vmax.f32 %v1301, 0.0
    %v2082 = vmax.f32 %v1306, 0.0
    %v2083 = vmax.f32 %v1309, 0.0
    %v2084 = vmax.f32 %v1314, 0.0
    %v2085 = vmax.f32 %v1317, 0.0
    %v2086 = vmax.f32 %v1322, 0.0
    %v2087 = vmax.f32 %v1325, 0.0
    %v2088 = vmax.f32 %v1330, 0.0
    %v2089 = vmax.f32 %v1333, 0.0
    %v2090 = vmax.f32 %v1338, 0.0
    %v2091 = vmax.f32 %v1341, 0.0
    %v2092 = vmax.f32 %v1346, 0.0
    %v2093 = vmax.f32 %v1349, 0.0
    %v2094 = vmax.f32 %v1354, 0.0
    %v2095 = vmax.f32 %v1357, 0.0
    %v2096 = vmax.f32 %v1362, 0.0
    %v2097 = vmax.f32 %v1365, 0.0
    %v2098 = vmax.f32 %v1370, 0.0
    %v2099 = vmax.f32 %v1373, 0.0
    %v2100 = vmax.f32 %v1378, 0.0
    %v2101 = vmax.f32 %v1381, 0.0
    %v2102 = vmax.f32 %v1386, 0.0
    %v2103 = vmax.f32 %v1389, 0.0
    %v2104 = vmax.f32 %v1394, 0.0
    %v2105 = vmax.f32 %v1397, 0.0
    %v2106 = vmax.f32 %v1402, 0.0
    %v2107 = vmax.f32 %v1405, 0.0
    %v2108 = vmax.f32 %v1410, 0.0
    %v2109 = vmax.f32 %v1413, 0.0
    %v2110 = vmax.f32 %v1418, 0.0
    %v2111 = vmax.f32 %v1421, 0.0
    %v2112 = vmax.f32 %v1426, 0.0
    %v2113 = vmax.f32 %v1429, 0.0
    %v2114 = vmax.f32 %v1434, 0.0
    %v2115 = vmax.f32 %v1437, 0.0
    %v2116 = vmax.f32 %v1442, 0.0
    %v2117 = vmax.f32 %v1445, 0.0
    %v2118 = vmax.f32 %v1450, 0.0
    %v2119 = vmax.f32 %v1453, 0.0
    %v2120 = vmax.f32 %v1458, 0.0
    %v2121 = vmax.f32 %v1461, 0.0
    %v2122 = vmax.f32 %v1466, 0.0
    %v2123 = vmax.f32 %v1469, 0.0
    %v2124 = vmax.f32 %v1474, 0.0
    %v2125 = vmax.f32 %v1477, 0.0
    %v2126 = vmax.f32 %v1482, 0.0
    %v2127 = vmax.f32 %v1485, 0.0
    %v2128 = vmax.f32 %v1490, 0.0
    %v2129 = vmax.f32 %v1493, 0.0
    %v2130 = vmax.f32 %v1498, 0.0
    %v2131 = vmax.f32 %v1501, 0.0
    %v2132 = vmax.f32 %v1506, 0.0
    %v2133 = vmax.f32 %v1509, 0.0
    %v2134 = vmax.f32 %v1514, 0.0
    %v2135 = vmax.f32 %v1517, 0.0
    %v2136 = vmax.f32 %v1522, 0.0
    %v2137 = vmax.f32 %v1525, 0.0
    %v2138 = vmax.f32 %v1530, 0.0
    %v2139 = vmax.f32 %v1533, 0.0
    %v2140 = vmax.f32 %v1538, 0.0
    %v2141 = vmax.f32 %v1541, 0.0
    %v2142 = vmax.f32 %v1546, 0.0
    %v2143 = vmax.f32 %v1549, 0.0
    %v2144 = vmax.f32 %v1554, 0.0
    %v2145 = vmax.f32 %v1557, 0.0
    %v2146 = vmax.f32 %v1562, 0.0
    %v2147 = vmax.f32 %v1565, 0.0
    %v2148 = vmax.f32 %v1570, 0.0
    %v2149 = vmax.f32 %v1573, 0.0
    %v2150 = vmax.f32 %v1578, 0.0
    %v2151 = vmax.f32 %v1581, 0.0
    %v2152 = vmax.f32 %v1586, 0.0
    %v2153 = vmax.f32 %v1589, 0.0
    %v2154 = vmax.f32 %v1594, 0.0
    %v2155 = vmax.f32 %v1597, 0.0
    %v2156 = vmax.f32 %v1602, 0.0
    %v2157 = vmax.f32 %v1605, 0.0
    %v2158 = vmax.f32 %v1610, 0.0
    %v2159 = vmax.f32 %v1613, 0.0
    %v2160 = vmax.f32 %v1618, 0.0
    %v2161 = vmax.f32 %v1621, 0.0
    %v2162 = vmax.f32 %v1626, 0.0
    %v2163 = vmax.f32 %v1629, 0.0
    %v2164 = vmax.f32 %v1634, 0.0
    %v2165 = vmax.f32 %v1637, 0.0
    %v2166 = vmax.f32 %v1642, 0.0
    %v2167 = vmax.f32 %v1645, 0.0
    %v2168 = vmax.f32 %v1650, 0.0
    %v2169 = vmax.f32 %v1653, 0.0
    %v2170 = vmax.f32 %v1658, 0.0
    %v2171 = vmax.f32 %v1661, 0.0
    %v2172 = vmax.f32 %v1666, 0.0
    %v2173 = vmax.f32 %v1669, 0.0
    %v2174 = vmax.f32 %v1674, 0.0
    %v2175 = vmax.f32 %v1677, 0.0
    %v2176 = vmax.f32 %v1682, 0.0
    %v2177 = vmax.f32 %v1685, 0.0
    %v2178 = vmax.f32 %v1690, 0.0
    %v2179 = vmax.f32 %v1693, 0.0
    %v2180 = vmax.f32 %v1698, 0.0
    %v2181 = vmax.f32 %v1701, 0.0
    %v2182 = vmax.f32 %v1706, 0.0
    %v2183 = vmax.f32 %v1709, 0.0
    %v2184 = vmax.f32 %v1714, 0.0
    %v2185 = vmax.f32 %v1717, 0.0
    %v2186 = vmax.f32 %v1722, 0.0
    %v2187 = vmax.f32 %v1725, 0.0
    %v2188 = vmax.f32 %v1730, 0.0
    %v2189 = vmax.f32 %v1733, 0.0
    %v2190 = vmax.f32 %v1738, 0.0
    %v2191 = vmax.f32 %v1741, 0.0
    %v2192 = vmax.f32 %v1746, 0.0
    %v2193 = vmax.f32 %v1749, 0.0
    %v2194 = vmax.f32 %v1754, 0.0
    %v2195 = vmax.f32 %v1757, 0.0
    %v2196 = vmax.f32 %v1762, 0.0
    %v2197 = vmax.f32 %v1765, 0.0
    %v2198 = vmax.f32 %v1770, 0.0
    %v2199 = vmax.f32 %v1773, 0.0
    %v2200 = vmax.f32 %v1778, 0.0
    %v2201 = vmax.f32 %v1781, 0.0
    %v2202 = vmax.f32 %v1786, 0.0
    %v2203 = vmax.f32 %v1789, 0.0
    %v2204 = vmax.f32 %v1794, 0.0
    %v2205 = vmax.f32 %v1797, 0.0
    %v2206 = vmax.f32 %v1802, 0.0
    %v2207 = vmax.f32 %v1805, 0.0
    %v2208 = vmax.f32 %v1810, 0.0
    %v2209 = vmax.f32 %v1813, 0.0
    %v2210 = vmax.f32 %v1818, 0.0
    %v2211 = vmax.f32 %v1821, 0.0
    %v2212 = vmax.f32 %v1826, 0.0
    %v2213 = vmax.f32 %v1829, 0.0
    %v2214 = vmax.f32 %v1834, 0.0
    %v2215 = vmax.f32 %v1837, 0.0
    %v2216 = vmax.f32 %v1842, 0.0
    %v2217 = vmax.f32 %v1845, 0.0
    %v2218 = vmax.f32 %v1850, 0.0
    %v2219 = vmax.f32 %v1853, 0.0
    %v2220 = vmax.f32 %v1858, 0.0
    %v2221 = vmax.f32 %v1861, 0.0
    %v2222 = vmax.f32 %v1866, 0.0
    %v2223 = vmax.f32 %v1869, 0.0
    %v2224 = vmax.f32 %v1874, 0.0
    %v2225 = vmax.f32 %v1877, 0.0
    %v2226 = vmax.f32 %v1882, 0.0
    %v2227 = vmax.f32 %v1885, 0.0
    %v2228 = vmax.f32 %v1890, 0.0
    %v2229 = vmax.f32 %v1893, 0.0
    %v2230 = vmax.f32 %v1898, 0.0
    %v2231 = vmax.f32 %v1901, 0.0
    %v2232 = vmax.f32 %v1906, 0.0
    %v2233 = vmax.f32 %v1909, 0.0
    %v2234 = vmax.f32 %v1914, 0.0
    %v2235 = vmax.f32 %v1917, 0.0
    %v2236 = vmax.f32 %v1922, 0.0
    %v2237 = vmax.f32 %v1925, 0.0
    %v2238 = vmax.f32 %v1930, 0.0
    %v2239 = vmax.f32 %v1933, 0.0
    %v2240 = vmax.f32 %v1938, 0.0
    %v2241 = vmax.f32 %v1941, 0.0
    %v2242 = vmax.f32 %v1946, 0.0
    %v2243 = vmax.f32 %v1949, 0.0
    %v2244 = vmax.f32 %v1954, 0.0
    %v2245 = vmax.f32 %v1957, 0.0
    %v2246 = vmax.f32 %v1962, 0.0
    %v2247 = vmax.f32 %v1965, 0.0
    %v2248 = vmax.f32 %v1970, 0.0
    %v2249 = vmax.f32 %v1973, 0.0
    %v2250 = vmax.f32 %v1978, 0.0
    %v2251 = vmax.f32 %v1981, 0.0
    %v2252 = vmax.f32 %v1986, 0.0
    %v2253 = vmax.f32 %v1989, 0.0
    %v2254 = vmax.f32 %v1994, 0.0
    %v2255 = vmax.f32 %v1997, 0.0
    %v2256 = vmax.f32 %v2002, 0.0
    %v2257 = vmax.f32 %v2005, 0.0
    %v2258 = vmax.f32 %v2010, 0.0
    %v2259 = vmax.f32 %v2013, 0.0
    %v2260 = vmax.f32 %v2018, 0.0
    %v2261 = vmax.f32 %v2021, 0.0
    %v2262 = vmax.f32 %v2026, 0.0
    %v2263 = vmax.f32 %v2029, 0.0
    %v2264 = vld [vmem:[#allocation5] sm:$0xff]
    %v2265 = vld [vmem:[#allocation5 + $0x8] sm:$0xff]
    %v2266 = vld [vmem:[#allocation5 + $0x10] sm:$0xff]
    %v2267 = vld [vmem:[#allocation5 + $0x18] sm:$0xff]
    %v2268 = vld [vmem:[#allocation5 + $0x20] sm:$0xff]
    %v2269 = vld [vmem:[#allocation5 + $0x28] sm:$0xff]
    %v2270 = vld [vmem:[#allocation5 + $0x30] sm:$0xff]
    %v2271 = vld [vmem:[#allocation5 + $0x38] sm:$0xff]
    %v2272 = vld [vmem:[#allocation5 + $0x40] sm:$0xff]
    %v2273 = vld [vmem:[#allocation5 + $0x48] sm:$0xff]
    %v2274 = vld [vmem:[#allocation5 + $0x50] sm:$0xff]
    %v2275 = vld [vmem:[#allocation5 + $0x58] sm:$0xff]
    %v2276 = vld [vmem:[#allocation5 + $0x60] sm:$0xff]
    %v2277 = vld [vmem:[#allocation5 + $0x68] sm:$0xff]
    %v2278 = vld [vmem:[#allocation5 + $0x70] sm:$0xff]
    %v2279 = vld [vmem:[#allocation5 + $0x78] sm:$0xff]
    %v2280 = vld [vmem:[#allocation5 + $0x80] sm:$0xff]
    %v2281 = vld [vmem:[#allocation5 + $0x88] sm:$0xff]
    %v2282 = vld [vmem:[#allocation5 + $0x90] sm:$0xff]
    %v2283 = vld [vmem:[#allocation5 + $0x98] sm:$0xff]
    %v2284 = vld [vmem:[#allocation5 + $0xa0] sm:$0xff]
    %v2285 = vld [vmem:[#allocation5 + $0xa8] sm:$0xff]
    %v2286 = vld [vmem:[#allocation5 + $0xb0] sm:$0xff]
    %v2287 = vld [vmem:[#allocation5 + $0xb8] sm:$0xff]
    %v2288 = vld [vmem:[#allocation5 + $0xc0] sm:$0xff]
    %v2289 = vld [vmem:[#allocation5 + $0xc8] sm:$0xff]
    %v2290 = vld [vmem:[#allocation5 + $0xd0] sm:$0xff]
    %v2291 = vld [vmem:[#allocation5 + $0xd8] sm:$0xff]
    %v2292 = vld [vmem:[#allocation5 + $0xe0] sm:$0xff]
    %v2293 = vld [vmem:[#allocation5 + $0xe8] sm:$0xff]
    %v2294 = vld [vmem:[#allocation5 + $0xf0] sm:$0xff]
    %v2295 = vld [vmem:[#allocation5 + $0xf8] sm:$0xff]
    %v2296 = vld [vmem:[#allocation5 + $0x100] sm:$0xff]
    %v2297 = vld [vmem:[#allocation5 + $0x108] sm:$0xff]
    %v2298 = vld [vmem:[#allocation5 + $0x110] sm:$0xff]
    %v2299 = vld [vmem:[#allocation5 + $0x118] sm:$0xff]
    %v2300 = vld [vmem:[#allocation5 + $0x120] sm:$0xff]
    %v2301 = vld [vmem:[#allocation5 + $0x128] sm:$0xff]
    %v2302 = vld [vmem:[#allocation5 + $0x130] sm:$0xff]
    %v2303 = vld [vmem:[#allocation5 + $0x138] sm:$0xff]
    %v2304 = vld [vmem:[#allocation5 + $0x140] sm:$0xff]
    %v2305 = vld [vmem:[#allocation5 + $0x148] sm:$0xff]
    %v2306 = vld [vmem:[#allocation5 + $0x150] sm:$0xff]
    %v2307 = vld [vmem:[#allocation5 + $0x158] sm:$0xff]
    %v2308 = vld [vmem:[#allocation5 + $0x160] sm:$0xff]
    %v2309 = vld [vmem:[#allocation5 + $0x168] sm:$0xff]
    %v2310 = vld [vmem:[#allocation5 + $0x170] sm:$0xff]
    %v2311 = vld [vmem:[#allocation5 + $0x178] sm:$0xff]
    %v2312 = vld [vmem:[#allocation5 + $0x180] sm:$0xff]
    %v2313 = vld [vmem:[#allocation5 + $0x188] sm:$0xff]
    %v2314 = vld [vmem:[#allocation5 + $0x190] sm:$0xff]
    %v2315 = vld [vmem:[#allocation5 + $0x198] sm:$0xff]
    %v2316 = vld [vmem:[#allocation5 + $0x1a0] sm:$0xff]
    %v2317 = vld [vmem:[#allocation5 + $0x1a8] sm:$0xff]
    %v2318 = vld [vmem:[#allocation5 + $0x1b0] sm:$0xff]
    %v2319 = vld [vmem:[#allocation5 + $0x1b8] sm:$0xff]
    %v2320 = vld [vmem:[#allocation5 + $0x1c0] sm:$0xff]
    %v2321 = vld [vmem:[#allocation5 + $0x1c8] sm:$0xff]
    %v2322 = vld [vmem:[#allocation5 + $0x1d0] sm:$0xff]
    %v2323 = vld [vmem:[#allocation5 + $0x1d8] sm:$0xff]
    %v2324 = vld [vmem:[#allocation5 + $0x1e0] sm:$0xff]
    %v2325 = vld [vmem:[#allocation5 + $0x1e8] sm:$0xff]
    %v2326 = vld [vmem:[#allocation5 + $0x1f0] sm:$0xff]
    %v2327 = vld [vmem:[#allocation5 + $0x1f8] sm:$0xff]
    %v2328 = vld [vmem:[#allocation5 + $0x200] sm:$0xff]
    %v2329 = vld [vmem:[#allocation5 + $0x208] sm:$0xff]
    %v2330 = vld [vmem:[#allocation5 + $0x210] sm:$0xff]
    %v2331 = vld [vmem:[#allocation5 + $0x218] sm:$0xff]
    %v2332 = vld [vmem:[#allocation5 + $0x220] sm:$0xff]
    %v2333 = vld [vmem:[#allocation5 + $0x228] sm:$0xff]
    %v2334 = vld [vmem:[#allocation5 + $0x230] sm:$0xff]
    %v2335 = vld [vmem:[#allocation5 + $0x238] sm:$0xff]
    %v2336 = vld [vmem:[#allocation5 + $0x240] sm:$0xff]
    %v2337 = vld [vmem:[#allocation5 + $0x248] sm:$0xff]
    %v2338 = vld [vmem:[#allocation5 + $0x250] sm:$0xff]
    %v2339 = vld [vmem:[#allocation5 + $0x258] sm:$0xff]
    %v2340 = vld [vmem:[#allocation5 + $0x260] sm:$0xff]
    %v2341 = vld [vmem:[#allocation5 + $0x268] sm:$0xff]
    %v2342 = vld [vmem:[#allocation5 + $0x270] sm:$0xff]
    %v2343 = vld [vmem:[#allocation5 + $0x278] sm:$0xff]
    %v2344 = vld [vmem:[#allocation5 + $0x280] sm:$0xff]
    %v2345 = vld [vmem:[#allocation5 + $0x288] sm:$0xff]
    %v2346 = vld [vmem:[#allocation5 + $0x290] sm:$0xff]
    %v2347 = vld [vmem:[#allocation5 + $0x298] sm:$0xff]
    %v2348 = vld [vmem:[#allocation5 + $0x2a0] sm:$0xff]
    %v2349 = vld [vmem:[#allocation5 + $0x2a8] sm:$0xff]
    %v2350 = vld [vmem:[#allocation5 + $0x2b0] sm:$0xff]
    %v2351 = vld [vmem:[#allocation5 + $0x2b8] sm:$0xff]
    %v2352 = vld [vmem:[#allocation5 + $0x2c0] sm:$0xff]
    %v2353 = vld [vmem:[#allocation5 + $0x2c8] sm:$0xff]
    %v2354 = vld [vmem:[#allocation5 + $0x2d0] sm:$0xff]
    %v2355 = vld [vmem:[#allocation5 + $0x2d8] sm:$0xff]
    %v2356 = vld [vmem:[#allocation5 + $0x2e0] sm:$0xff]
    %v2357 = vld [vmem:[#allocation5 + $0x2e8] sm:$0xff]
    %v2358 = vld [vmem:[#allocation5 + $0x2f0] sm:$0xff]
    %v2359 = vld [vmem:[#allocation5 + $0x2f8] sm:$0xff]
    %v2360 = vld [vmem:[#allocation5 + $0x300] sm:$0xff]
    %v2361 = vld [vmem:[#allocation5 + $0x308] sm:$0xff]
    %v2362 = vld [vmem:[#allocation5 + $0x310] sm:$0xff]
    %v2363 = vld [vmem:[#allocation5 + $0x318] sm:$0xff]
    %v2364 = vld [vmem:[#allocation5 + $0x320] sm:$0xff]
    %v2365 = vld [vmem:[#allocation5 + $0x328] sm:$0xff]
    %v2366 = vld [vmem:[#allocation5 + $0x330] sm:$0xff]
    %v2367 = vld [vmem:[#allocation5 + $0x338] sm:$0xff]
    %v2368 = vld [vmem:[#allocation5 + $0x340] sm:$0xff]
    %v2369 = vld [vmem:[#allocation5 + $0x348] sm:$0xff]
    %v2370 = vld [vmem:[#allocation5 + $0x350] sm:$0xff]
    %v2371 = vld [vmem:[#allocation5 + $0x358] sm:$0xff]
    %v2372 = vld [vmem:[#allocation5 + $0x360] sm:$0xff]
    %v2373 = vld [vmem:[#allocation5 + $0x368] sm:$0xff]
    %v2374 = vld [vmem:[#allocation5 + $0x370] sm:$0xff]
    %v2375 = vld [vmem:[#allocation5 + $0x378] sm:$0xff]
    %v2376 = vld [vmem:[#allocation5 + $0x380] sm:$0xff]
    %v2377 = vld [vmem:[#allocation5 + $0x388] sm:$0xff]
    %v2378 = vld [vmem:[#allocation5 + $0x390] sm:$0xff]
    %v2379 = vld [vmem:[#allocation5 + $0x398] sm:$0xff]
    %v2380 = vld [vmem:[#allocation5 + $0x3a0] sm:$0xff]
    %v2381 = vld [vmem:[#allocation5 + $0x3a8] sm:$0xff]
    %v2382 = vld [vmem:[#allocation5 + $0x3b0] sm:$0xff]
    %v2383 = vld [vmem:[#allocation5 + $0x3b8] sm:$0xff]
    %v2384 = vld [vmem:[#allocation5 + $0x3c0] sm:$0xff]
    %v2385 = vld [vmem:[#allocation5 + $0x3c8] sm:$0xff]
    %v2386 = vld [vmem:[#allocation5 + $0x3d0] sm:$0xff]
    %v2387 = vld [vmem:[#allocation5 + $0x3d8] sm:$0xff]
    %v2388 = vld [vmem:[#allocation5 + $0x3e0] sm:$0xff]
    %v2389 = vld [vmem:[#allocation5 + $0x3e8] sm:$0xff]
    %v2390 = vld [vmem:[#allocation5 + $0x3f0] sm:$0xff]
    %v2391 = vld [vmem:[#allocation5 + $0x3f8] sm:$0xff]
    %v2392 = vld [vmem:[#allocation5 + $0x400] sm:$0xff]
    %v2393 = vld [vmem:[#allocation5 + $0x408] sm:$0xff]
    %v2394 = vld [vmem:[#allocation5 + $0x410] sm:$0xff]
    %v2395 = vld [vmem:[#allocation5 + $0x418] sm:$0xff]
    %v2396 = vld [vmem:[#allocation5 + $0x420] sm:$0xff]
    %v2397 = vld [vmem:[#allocation5 + $0x428] sm:$0xff]
    %v2398 = vld [vmem:[#allocation5 + $0x430] sm:$0xff]
    %v2399 = vld [vmem:[#allocation5 + $0x438] sm:$0xff]
    %v2400 = vld [vmem:[#allocation5 + $0x440] sm:$0xff]
    %v2401 = vld [vmem:[#allocation5 + $0x448] sm:$0xff]
    %v2402 = vld [vmem:[#allocation5 + $0x450] sm:$0xff]
    %v2403 = vld [vmem:[#allocation5 + $0x458] sm:$0xff]
    %v2404 = vld [vmem:[#allocation5 + $0x460] sm:$0xff]
    %v2405 = vld [vmem:[#allocation5 + $0x468] sm:$0xff]
    %v2406 = vld [vmem:[#allocation5 + $0x470] sm:$0xff]
    %v2407 = vld [vmem:[#allocation5 + $0x478] sm:$0xff]
    %v2408 = vld [vmem:[#allocation5 + $0x480] sm:$0xff]
    %v2409 = vld [vmem:[#allocation5 + $0x488] sm:$0xff]
    %v2410 = vld [vmem:[#allocation5 + $0x490] sm:$0xff]
    %v2411 = vld [vmem:[#allocation5 + $0x498] sm:$0xff]
    %v2412 = vld [vmem:[#allocation5 + $0x4a0] sm:$0xff]
    %v2413 = vld [vmem:[#allocation5 + $0x4a8] sm:$0xff]
    %v2414 = vld [vmem:[#allocation5 + $0x4b0] sm:$0xff]
    %v2415 = vld [vmem:[#allocation5 + $0x4b8] sm:$0xff]
    %v2416 = vld [vmem:[#allocation5 + $0x4c0] sm:$0xff]
    %v2417 = vld [vmem:[#allocation5 + $0x4c8] sm:$0xff]
    %v2418 = vld [vmem:[#allocation5 + $0x4d0] sm:$0xff]
    %v2419 = vld [vmem:[#allocation5 + $0x4d8] sm:$0xff]
    %v2420 = vld [vmem:[#allocation5 + $0x4e0] sm:$0xff]
    %v2421 = vld [vmem:[#allocation5 + $0x4e8] sm:$0xff]
    %v2422 = vld [vmem:[#allocation5 + $0x4f0] sm:$0xff]
    %v2423 = vld [vmem:[#allocation5 + $0x4f8] sm:$0xff]
    %v2424 = vld [vmem:[#allocation5 + $0x500] sm:$0xff]
    %v2425 = vld [vmem:[#allocation5 + $0x508] sm:$0xff]
    %v2426 = vld [vmem:[#allocation5 + $0x510] sm:$0xff]
    %v2427 = vld [vmem:[#allocation5 + $0x518] sm:$0xff]
    %v2428 = vld [vmem:[#allocation5 + $0x520] sm:$0xff]
    %v2429 = vld [vmem:[#allocation5 + $0x528] sm:$0xff]
    %v2430 = vld [vmem:[#allocation5 + $0x530] sm:$0xff]
    %v2431 = vld [vmem:[#allocation5 + $0x538] sm:$0xff]
    %v2432 = vld [vmem:[#allocation5 + $0x540] sm:$0xff]
    %v2433 = vld [vmem:[#allocation5 + $0x548] sm:$0xff]
    %v2434 = vld [vmem:[#allocation5 + $0x550] sm:$0xff]
    %v2435 = vld [vmem:[#allocation5 + $0x558] sm:$0xff]
    %v2436 = vld [vmem:[#allocation5 + $0x560] sm:$0xff]
    %v2437 = vld [vmem:[#allocation5 + $0x568] sm:$0xff]
    %v2438 = vld [vmem:[#allocation5 + $0x570] sm:$0xff]
    %v2439 = vld [vmem:[#allocation5 + $0x578] sm:$0xff]
    %v2440 = vld [vmem:[#allocation5 + $0x580] sm:$0xff]
    %v2441 = vld [vmem:[#allocation5 + $0x588] sm:$0xff]
    %v2442 = vld [vmem:[#allocation5 + $0x590] sm:$0xff]
    %v2443 = vld [vmem:[#allocation5 + $0x598] sm:$0xff]
    %v2444 = vld [vmem:[#allocation5 + $0x5a0] sm:$0xff]
    %v2445 = vld [vmem:[#allocation5 + $0x5a8] sm:$0xff]
    %v2446 = vld [vmem:[#allocation5 + $0x5b0] sm:$0xff]
    %v2447 = vld [vmem:[#allocation5 + $0x5b8] sm:$0xff]
    %v2448 = vld [vmem:[#allocation5 + $0x5c0] sm:$0xff]
    %v2449 = vld [vmem:[#allocation5 + $0x5c8] sm:$0xff]
    %v2450 = vld [vmem:[#allocation5 + $0x5d0] sm:$0xff]
    %v2451 = vld [vmem:[#allocation5 + $0x5d8] sm:$0xff]
    %v2452 = vld [vmem:[#allocation5 + $0x5e0] sm:$0xff]
    %v2453 = vld [vmem:[#allocation5 + $0x5e8] sm:$0xff]
    %v2454 = vld [vmem:[#allocation5 + $0x5f0] sm:$0xff]
    %v2455 = vld [vmem:[#allocation5 + $0x5f8] sm:$0xff]
    %v2456 = vld [vmem:[#allocation5 + $0x600] sm:$0xff]
    %v2457 = vld [vmem:[#allocation5 + $0x608] sm:$0xff]
    %v2458 = vld [vmem:[#allocation5 + $0x610] sm:$0xff]
    %v2459 = vld [vmem:[#allocation5 + $0x618] sm:$0xff]
    %v2460 = vld [vmem:[#allocation5 + $0x620] sm:$0xff]
    %v2461 = vld [vmem:[#allocation5 + $0x628] sm:$0xff]
    %v2462 = vld [vmem:[#allocation5 + $0x630] sm:$0xff]
    %v2463 = vld [vmem:[#allocation5 + $0x638] sm:$0xff]
    %v2464 = vld [vmem:[#allocation5 + $0x640] sm:$0xff]
    %v2465 = vld [vmem:[#allocation5 + $0x648] sm:$0xff]
    %v2466 = vld [vmem:[#allocation5 + $0x650] sm:$0xff]
    %v2467 = vld [vmem:[#allocation5 + $0x658] sm:$0xff]
    %v2468 = vld [vmem:[#allocation5 + $0x660] sm:$0xff]
    %v2469 = vld [vmem:[#allocation5 + $0x668] sm:$0xff]
    %v2470 = vld [vmem:[#allocation5 + $0x670] sm:$0xff]
    %v2471 = vld [vmem:[#allocation5 + $0x678] sm:$0xff]
    %v2472 = vld [vmem:[#allocation5 + $0x680] sm:$0xff]
    %v2473 = vld [vmem:[#allocation5 + $0x688] sm:$0xff]
    %v2474 = vld [vmem:[#allocation5 + $0x690] sm:$0xff]
    %v2475 = vld [vmem:[#allocation5 + $0x698] sm:$0xff]
    %v2476 = vld [vmem:[#allocation5 + $0x6a0] sm:$0xff]
    %v2477 = vld [vmem:[#allocation5 + $0x6a8] sm:$0xff]
    %v2478 = vld [vmem:[#allocation5 + $0x6b0] sm:$0xff]
    %v2479 = vld [vmem:[#allocation5 + $0x6b8] sm:$0xff]
    %v2480 = vld [vmem:[#allocation5 + $0x6c0] sm:$0xff]
    %v2481 = vld [vmem:[#allocation5 + $0x6c8] sm:$0xff]
    %v2482 = vld [vmem:[#allocation5 + $0x6d0] sm:$0xff]
    %v2483 = vld [vmem:[#allocation5 + $0x6d8] sm:$0xff]
    %v2484 = vld [vmem:[#allocation5 + $0x6e0] sm:$0xff]
    %v2485 = vld [vmem:[#allocation5 + $0x6e8] sm:$0xff]
    %v2486 = vld [vmem:[#allocation5 + $0x6f0] sm:$0xff]
    %v2487 = vld [vmem:[#allocation5 + $0x6f8] sm:$0xff]
    %v2488 = vld [vmem:[#allocation5 + $0x700] sm:$0xff]
    %v2489 = vld [vmem:[#allocation5 + $0x708] sm:$0xff]
    %v2490 = vld [vmem:[#allocation5 + $0x710] sm:$0xff]
    %v2491 = vld [vmem:[#allocation5 + $0x718] sm:$0xff]
    %v2492 = vld [vmem:[#allocation5 + $0x720] sm:$0xff]
    %v2493 = vld [vmem:[#allocation5 + $0x728] sm:$0xff]
    %v2494 = vld [vmem:[#allocation5 + $0x730] sm:$0xff]
    %v2495 = vld [vmem:[#allocation5 + $0x738] sm:$0xff]
    %2497 = vset.pattern.permute.xlu0 0
    %2498 = vperm.xlu0 %2497, %v2264
    %v2499 = vpop.permute.xlu0 %2498
    %2502 = vset.pattern.permute.xlu0 0
    %2503 = vperm.xlu0 %2502, %v2265
    %v2504 = vpop.permute.xlu0 %2503
    %2507 = vset.pattern.permute.xlu0 0
    %2508 = vperm.xlu0 %2507, %v2266
    %v2509 = vpop.permute.xlu0 %2508
    %2512 = vset.pattern.permute.xlu0 0
    %2513 = vperm.xlu0 %2512, %v2267
    %v2514 = vpop.permute.xlu0 %2513
    %2517 = vset.pattern.permute.xlu0 0
    %2518 = vperm.xlu0 %2517, %v2268
    %v2519 = vpop.permute.xlu0 %2518
    %2522 = vset.pattern.permute.xlu0 0
    %2523 = vperm.xlu0 %2522, %v2269
    %v2524 = vpop.permute.xlu0 %2523
    %2527 = vset.pattern.permute.xlu0 0
    %2528 = vperm.xlu0 %2527, %v2270
    %v2529 = vpop.permute.xlu0 %2528
    %2532 = vset.pattern.permute.xlu0 0
    %2533 = vperm.xlu0 %2532, %v2271
    %v2534 = vpop.permute.xlu0 %2533
    %2537 = vset.pattern.permute.xlu0 0
    %2538 = vperm.xlu0 %2537, %v2272
    %v2539 = vpop.permute.xlu0 %2538
    %2542 = vset.pattern.permute.xlu0 0
    %2543 = vperm.xlu0 %2542, %v2273
    %v2544 = vpop.permute.xlu0 %2543
    %2547 = vset.pattern.permute.xlu0 0
    %2548 = vperm.xlu0 %2547, %v2274
    %v2549 = vpop.permute.xlu0 %2548
    %2552 = vset.pattern.permute.xlu0 0
    %2553 = vperm.xlu0 %2552, %v2275
    %v2554 = vpop.permute.xlu0 %2553
    %2557 = vset.pattern.permute.xlu0 0
    %2558 = vperm.xlu0 %2557, %v2276
    %v2559 = vpop.permute.xlu0 %2558
    %2562 = vset.pattern.permute.xlu0 0
    %2563 = vperm.xlu0 %2562, %v2277
    %v2564 = vpop.permute.xlu0 %2563
    %2567 = vset.pattern.permute.xlu0 0
    %2568 = vperm.xlu0 %2567, %v2278
    %v2569 = vpop.permute.xlu0 %2568
    %2572 = vset.pattern.permute.xlu0 0
    %2573 = vperm.xlu0 %2572, %v2279
    %v2574 = vpop.permute.xlu0 %2573
    %2577 = vset.pattern.permute.xlu0 0
    %2578 = vperm.xlu0 %2577, %v2280
    %v2579 = vpop.permute.xlu0 %2578
    %2582 = vset.pattern.permute.xlu0 0
    %2583 = vperm.xlu0 %2582, %v2281
    %v2584 = vpop.permute.xlu0 %2583
    %2587 = vset.pattern.permute.xlu0 0
    %2588 = vperm.xlu0 %2587, %v2282
    %v2589 = vpop.permute.xlu0 %2588
    %2592 = vset.pattern.permute.xlu0 0
    %2593 = vperm.xlu0 %2592, %v2283
    %v2594 = vpop.permute.xlu0 %2593
    %2597 = vset.pattern.permute.xlu0 0
    %2598 = vperm.xlu0 %2597, %v2284
    %v2599 = vpop.permute.xlu0 %2598
    %2602 = vset.pattern.permute.xlu0 0
    %2603 = vperm.xlu0 %2602, %v2285
    %v2604 = vpop.permute.xlu0 %2603
    %2607 = vset.pattern.permute.xlu0 0
    %2608 = vperm.xlu0 %2607, %v2286
    %v2609 = vpop.permute.xlu0 %2608
    %2612 = vset.pattern.permute.xlu0 0
    %2613 = vperm.xlu0 %2612, %v2287
    %v2614 = vpop.permute.xlu0 %2613
    %2617 = vset.pattern.permute.xlu0 0
    %2618 = vperm.xlu0 %2617, %v2288
    %v2619 = vpop.permute.xlu0 %2618
    %2622 = vset.pattern.permute.xlu0 0
    %2623 = vperm.xlu0 %2622, %v2289
    %v2624 = vpop.permute.xlu0 %2623
    %2627 = vset.pattern.permute.xlu0 0
    %2628 = vperm.xlu0 %2627, %v2290
    %v2629 = vpop.permute.xlu0 %2628
    %2632 = vset.pattern.permute.xlu0 0
    %2633 = vperm.xlu0 %2632, %v2291
    %v2634 = vpop.permute.xlu0 %2633
    %2637 = vset.pattern.permute.xlu0 0
    %2638 = vperm.xlu0 %2637, %v2292
    %v2639 = vpop.permute.xlu0 %2638
    %2642 = vset.pattern.permute.xlu0 0
    %2643 = vperm.xlu0 %2642, %v2293
    %v2644 = vpop.permute.xlu0 %2643
    %2647 = vset.pattern.permute.xlu0 0
    %2648 = vperm.xlu0 %2647, %v2294
    %v2649 = vpop.permute.xlu0 %2648
    %2652 = vset.pattern.permute.xlu0 0
    %2653 = vperm.xlu0 %2652, %v2295
    %v2654 = vpop.permute.xlu0 %2653
    %2657 = vset.pattern.permute.xlu0 0
    %2658 = vperm.xlu0 %2657, %v2296
    %v2659 = vpop.permute.xlu0 %2658
    %2662 = vset.pattern.permute.xlu0 0
    %2663 = vperm.xlu0 %2662, %v2297
    %v2664 = vpop.permute.xlu0 %2663
    %2667 = vset.pattern.permute.xlu0 0
    %2668 = vperm.xlu0 %2667, %v2298
    %v2669 = vpop.permute.xlu0 %2668
    %2672 = vset.pattern.permute.xlu0 0
    %2673 = vperm.xlu0 %2672, %v2299
    %v2674 = vpop.permute.xlu0 %2673
    %2677 = vset.pattern.permute.xlu0 0
    %2678 = vperm.xlu0 %2677, %v2300
    %v2679 = vpop.permute.xlu0 %2678
    %2682 = vset.pattern.permute.xlu0 0
    %2683 = vperm.xlu0 %2682, %v2301
    %v2684 = vpop.permute.xlu0 %2683
    %2687 = vset.pattern.permute.xlu0 0
    %2688 = vperm.xlu0 %2687, %v2302
    %v2689 = vpop.permute.xlu0 %2688
    %2692 = vset.pattern.permute.xlu0 0
    %2693 = vperm.xlu0 %2692, %v2303
    %v2694 = vpop.permute.xlu0 %2693
    %2697 = vset.pattern.permute.xlu0 0
    %2698 = vperm.xlu0 %2697, %v2304
    %v2699 = vpop.permute.xlu0 %2698
    %2702 = vset.pattern.permute.xlu0 0
    %2703 = vperm.xlu0 %2702, %v2305
    %v2704 = vpop.permute.xlu0 %2703
    %2707 = vset.pattern.permute.xlu0 0
    %2708 = vperm.xlu0 %2707, %v2306
    %v2709 = vpop.permute.xlu0 %2708
    %2712 = vset.pattern.permute.xlu0 0
    %2713 = vperm.xlu0 %2712, %v2307
    %v2714 = vpop.permute.xlu0 %2713
    %2717 = vset.pattern.permute.xlu0 0
    %2718 = vperm.xlu0 %2717, %v2308
    %v2719 = vpop.permute.xlu0 %2718
    %2722 = vset.pattern.permute.xlu0 0
    %2723 = vperm.xlu0 %2722, %v2309
    %v2724 = vpop.permute.xlu0 %2723
    %2727 = vset.pattern.permute.xlu0 0
    %2728 = vperm.xlu0 %2727, %v2310
    %v2729 = vpop.permute.xlu0 %2728
    %2732 = vset.pattern.permute.xlu0 0
    %2733 = vperm.xlu0 %2732, %v2311
    %v2734 = vpop.permute.xlu0 %2733
    %2737 = vset.pattern.permute.xlu0 0
    %2738 = vperm.xlu0 %2737, %v2312
    %v2739 = vpop.permute.xlu0 %2738
    %2742 = vset.pattern.permute.xlu0 0
    %2743 = vperm.xlu0 %2742, %v2313
    %v2744 = vpop.permute.xlu0 %2743
    %2747 = vset.pattern.permute.xlu0 0
    %2748 = vperm.xlu0 %2747, %v2314
    %v2749 = vpop.permute.xlu0 %2748
    %2752 = vset.pattern.permute.xlu0 0
    %2753 = vperm.xlu0 %2752, %v2315
    %v2754 = vpop.permute.xlu0 %2753
    %2757 = vset.pattern.permute.xlu0 0
    %2758 = vperm.xlu0 %2757, %v2316
    %v2759 = vpop.permute.xlu0 %2758
    %2762 = vset.pattern.permute.xlu0 0
    %2763 = vperm.xlu0 %2762, %v2317
    %v2764 = vpop.permute.xlu0 %2763
    %2767 = vset.pattern.permute.xlu0 0
    %2768 = vperm.xlu0 %2767, %v2318
    %v2769 = vpop.permute.xlu0 %2768
    %2772 = vset.pattern.permute.xlu0 0
    %2773 = vperm.xlu0 %2772, %v2319
    %v2774 = vpop.permute.xlu0 %2773
    %2777 = vset.pattern.permute.xlu0 0
    %2778 = vperm.xlu0 %2777, %v2320
    %v2779 = vpop.permute.xlu0 %2778
    %2782 = vset.pattern.permute.xlu0 0
    %2783 = vperm.xlu0 %2782, %v2321
    %v2784 = vpop.permute.xlu0 %2783
    %2787 = vset.pattern.permute.xlu0 0
    %2788 = vperm.xlu0 %2787, %v2322
    %v2789 = vpop.permute.xlu0 %2788
    %2792 = vset.pattern.permute.xlu0 0
    %2793 = vperm.xlu0 %2792, %v2323
    %v2794 = vpop.permute.xlu0 %2793
    %2797 = vset.pattern.permute.xlu0 0
    %2798 = vperm.xlu0 %2797, %v2324
    %v2799 = vpop.permute.xlu0 %2798
    %2802 = vset.pattern.permute.xlu0 0
    %2803 = vperm.xlu0 %2802, %v2325
    %v2804 = vpop.permute.xlu0 %2803
    %2807 = vset.pattern.permute.xlu0 0
    %2808 = vperm.xlu0 %2807, %v2326
    %v2809 = vpop.permute.xlu0 %2808
    %2812 = vset.pattern.permute.xlu0 0
    %2813 = vperm.xlu0 %2812, %v2327
    %v2814 = vpop.permute.xlu0 %2813
    %2817 = vset.pattern.permute.xlu0 0
    %2818 = vperm.xlu0 %2817, %v2328
    %v2819 = vpop.permute.xlu0 %2818
    %2822 = vset.pattern.permute.xlu0 0
    %2823 = vperm.xlu0 %2822, %v2329
    %v2824 = vpop.permute.xlu0 %2823
    %2827 = vset.pattern.permute.xlu0 0
    %2828 = vperm.xlu0 %2827, %v2330
    %v2829 = vpop.permute.xlu0 %2828
    %2832 = vset.pattern.permute.xlu0 0
    %2833 = vperm.xlu0 %2832, %v2331
    %v2834 = vpop.permute.xlu0 %2833
    %2837 = vset.pattern.permute.xlu0 0
    %2838 = vperm.xlu0 %2837, %v2332
    %v2839 = vpop.permute.xlu0 %2838
    %2842 = vset.pattern.permute.xlu0 0
    %2843 = vperm.xlu0 %2842, %v2333
    %v2844 = vpop.permute.xlu0 %2843
    %2847 = vset.pattern.permute.xlu0 0
    %2848 = vperm.xlu0 %2847, %v2334
    %v2849 = vpop.permute.xlu0 %2848
    %2852 = vset.pattern.permute.xlu0 0
    %2853 = vperm.xlu0 %2852, %v2335
    %v2854 = vpop.permute.xlu0 %2853
    %2857 = vset.pattern.permute.xlu0 0
    %2858 = vperm.xlu0 %2857, %v2336
    %v2859 = vpop.permute.xlu0 %2858
    %2862 = vset.pattern.permute.xlu0 0
    %2863 = vperm.xlu0 %2862, %v2337
    %v2864 = vpop.permute.xlu0 %2863
    %2867 = vset.pattern.permute.xlu0 0
    %2868 = vperm.xlu0 %2867, %v2338
    %v2869 = vpop.permute.xlu0 %2868
    %2872 = vset.pattern.permute.xlu0 0
    %2873 = vperm.xlu0 %2872, %v2339
    %v2874 = vpop.permute.xlu0 %2873
    %2877 = vset.pattern.permute.xlu0 0
    %2878 = vperm.xlu0 %2877, %v2340
    %v2879 = vpop.permute.xlu0 %2878
    %2882 = vset.pattern.permute.xlu0 0
    %2883 = vperm.xlu0 %2882, %v2341
    %v2884 = vpop.permute.xlu0 %2883
    %2887 = vset.pattern.permute.xlu0 0
    %2888 = vperm.xlu0 %2887, %v2342
    %v2889 = vpop.permute.xlu0 %2888
    %2892 = vset.pattern.permute.xlu0 0
    %2893 = vperm.xlu0 %2892, %v2343
    %v2894 = vpop.permute.xlu0 %2893
    %2897 = vset.pattern.permute.xlu0 0
    %2898 = vperm.xlu0 %2897, %v2344
    %v2899 = vpop.permute.xlu0 %2898
    %2902 = vset.pattern.permute.xlu0 0
    %2903 = vperm.xlu0 %2902, %v2345
    %v2904 = vpop.permute.xlu0 %2903
    %2907 = vset.pattern.permute.xlu0 0
    %2908 = vperm.xlu0 %2907, %v2346
    %v2909 = vpop.permute.xlu0 %2908
    %2912 = vset.pattern.permute.xlu0 0
    %2913 = vperm.xlu0 %2912, %v2347
    %v2914 = vpop.permute.xlu0 %2913
    %2917 = vset.pattern.permute.xlu0 0
    %2918 = vperm.xlu0 %2917, %v2348
    %v2919 = vpop.permute.xlu0 %2918
    %2922 = vset.pattern.permute.xlu0 0
    %2923 = vperm.xlu0 %2922, %v2349
    %v2924 = vpop.permute.xlu0 %2923
    %2927 = vset.pattern.permute.xlu0 0
    %2928 = vperm.xlu0 %2927, %v2350
    %v2929 = vpop.permute.xlu0 %2928
    %2932 = vset.pattern.permute.xlu0 0
    %2933 = vperm.xlu0 %2932, %v2351
    %v2934 = vpop.permute.xlu0 %2933
    %2937 = vset.pattern.permute.xlu0 0
    %2938 = vperm.xlu0 %2937, %v2352
    %v2939 = vpop.permute.xlu0 %2938
    %2942 = vset.pattern.permute.xlu0 0
    %2943 = vperm.xlu0 %2942, %v2353
    %v2944 = vpop.permute.xlu0 %2943
    %2947 = vset.pattern.permute.xlu0 0
    %2948 = vperm.xlu0 %2947, %v2354
    %v2949 = vpop.permute.xlu0 %2948
    %2952 = vset.pattern.permute.xlu0 0
    %2953 = vperm.xlu0 %2952, %v2355
    %v2954 = vpop.permute.xlu0 %2953
    %2957 = vset.pattern.permute.xlu0 0
    %2958 = vperm.xlu0 %2957, %v2356
    %v2959 = vpop.permute.xlu0 %2958
    %2962 = vset.pattern.permute.xlu0 0
    %2963 = vperm.xlu0 %2962, %v2357
    %v2964 = vpop.permute.xlu0 %2963
    %2967 = vset.pattern.permute.xlu0 0
    %2968 = vperm.xlu0 %2967, %v2358
    %v2969 = vpop.permute.xlu0 %2968
    %2972 = vset.pattern.permute.xlu0 0
    %2973 = vperm.xlu0 %2972, %v2359
    %v2974 = vpop.permute.xlu0 %2973
    %2977 = vset.pattern.permute.xlu0 0
    %2978 = vperm.xlu0 %2977, %v2360
    %v2979 = vpop.permute.xlu0 %2978
    %2982 = vset.pattern.permute.xlu0 0
    %2983 = vperm.xlu0 %2982, %v2361
    %v2984 = vpop.permute.xlu0 %2983
    %2987 = vset.pattern.permute.xlu0 0
    %2988 = vperm.xlu0 %2987, %v2362
    %v2989 = vpop.permute.xlu0 %2988
    %2992 = vset.pattern.permute.xlu0 0
    %2993 = vperm.xlu0 %2992, %v2363
    %v2994 = vpop.permute.xlu0 %2993
    %2997 = vset.pattern.permute.xlu0 0
    %2998 = vperm.xlu0 %2997, %v2364
    %v2999 = vpop.permute.xlu0 %2998
    %3002 = vset.pattern.permute.xlu0 0
    %3003 = vperm.xlu0 %3002, %v2365
    %v3004 = vpop.permute.xlu0 %3003
    %3007 = vset.pattern.permute.xlu0 0
    %3008 = vperm.xlu0 %3007, %v2366
    %v3009 = vpop.permute.xlu0 %3008
    %3012 = vset.pattern.permute.xlu0 0
    %3013 = vperm.xlu0 %3012, %v2367
    %v3014 = vpop.permute.xlu0 %3013
    %3017 = vset.pattern.permute.xlu0 0
    %3018 = vperm.xlu0 %3017, %v2368
    %v3019 = vpop.permute.xlu0 %3018
    %3022 = vset.pattern.permute.xlu0 0
    %3023 = vperm.xlu0 %3022, %v2369
    %v3024 = vpop.permute.xlu0 %3023
    %3027 = vset.pattern.permute.xlu0 0
    %3028 = vperm.xlu0 %3027, %v2370
    %v3029 = vpop.permute.xlu0 %3028
    %3032 = vset.pattern.permute.xlu0 0
    %3033 = vperm.xlu0 %3032, %v2371
    %v3034 = vpop.permute.xlu0 %3033
    %3037 = vset.pattern.permute.xlu0 0
    %3038 = vperm.xlu0 %3037, %v2372
    %v3039 = vpop.permute.xlu0 %3038
    %3042 = vset.pattern.permute.xlu0 0
    %3043 = vperm.xlu0 %3042, %v2373
    %v3044 = vpop.permute.xlu0 %3043
    %3047 = vset.pattern.permute.xlu0 0
    %3048 = vperm.xlu0 %3047, %v2374
    %v3049 = vpop.permute.xlu0 %3048
    %3052 = vset.pattern.permute.xlu0 0
    %3053 = vperm.xlu0 %3052, %v2375
    %v3054 = vpop.permute.xlu0 %3053
    %3057 = vset.pattern.permute.xlu0 0
    %3058 = vperm.xlu0 %3057, %v2376
    %v3059 = vpop.permute.xlu0 %3058
    %3062 = vset.pattern.permute.xlu0 0
    %3063 = vperm.xlu0 %3062, %v2377
    %v3064 = vpop.permute.xlu0 %3063
    %3067 = vset.pattern.permute.xlu0 0
    %3068 = vperm.xlu0 %3067, %v2378
    %v3069 = vpop.permute.xlu0 %3068
    %3072 = vset.pattern.permute.xlu0 0
    %3073 = vperm.xlu0 %3072, %v2379
    %v3074 = vpop.permute.xlu0 %3073
    %3077 = vset.pattern.permute.xlu0 0
    %3078 = vperm.xlu0 %3077, %v2380
    %v3079 = vpop.permute.xlu0 %3078
    %3082 = vset.pattern.permute.xlu0 0
    %3083 = vperm.xlu0 %3082, %v2381
    %v3084 = vpop.permute.xlu0 %3083
    %3087 = vset.pattern.permute.xlu0 0
    %3088 = vperm.xlu0 %3087, %v2382
    %v3089 = vpop.permute.xlu0 %3088
    %3092 = vset.pattern.permute.xlu0 0
    %3093 = vperm.xlu0 %3092, %v2383
    %v3094 = vpop.permute.xlu0 %3093
    %3097 = vset.pattern.permute.xlu0 0
    %3098 = vperm.xlu0 %3097, %v2384
    %v3099 = vpop.permute.xlu0 %3098
    %3102 = vset.pattern.permute.xlu0 0
    %3103 = vperm.xlu0 %3102, %v2385
    %v3104 = vpop.permute.xlu0 %3103
    %3107 = vset.pattern.permute.xlu0 0
    %3108 = vperm.xlu0 %3107, %v2386
    %v3109 = vpop.permute.xlu0 %3108
    %3112 = vset.pattern.permute.xlu0 0
    %3113 = vperm.xlu0 %3112, %v2387
    %v3114 = vpop.permute.xlu0 %3113
    %3117 = vset.pattern.permute.xlu0 0
    %3118 = vperm.xlu0 %3117, %v2388
    %v3119 = vpop.permute.xlu0 %3118
    %3122 = vset.pattern.permute.xlu0 0
    %3123 = vperm.xlu0 %3122, %v2389
    %v3124 = vpop.permute.xlu0 %3123
    %3127 = vset.pattern.permute.xlu0 0
    %3128 = vperm.xlu0 %3127, %v2390
    %v3129 = vpop.permute.xlu0 %3128
    %3132 = vset.pattern.permute.xlu0 0
    %3133 = vperm.xlu0 %3132, %v2391
    %v3134 = vpop.permute.xlu0 %3133
    %3137 = vset.pattern.permute.xlu0 0
    %3138 = vperm.xlu0 %3137, %v2392
    %v3139 = vpop.permute.xlu0 %3138
    %3142 = vset.pattern.permute.xlu0 0
    %3143 = vperm.xlu0 %3142, %v2393
    %v3144 = vpop.permute.xlu0 %3143
    %3147 = vset.pattern.permute.xlu0 0
    %3148 = vperm.xlu0 %3147, %v2394
    %v3149 = vpop.permute.xlu0 %3148
    %3152 = vset.pattern.permute.xlu0 0
    %3153 = vperm.xlu0 %3152, %v2395
    %v3154 = vpop.permute.xlu0 %3153
    %3157 = vset.pattern.permute.xlu0 0
    %3158 = vperm.xlu0 %3157, %v2396
    %v3159 = vpop.permute.xlu0 %3158
    %3162 = vset.pattern.permute.xlu0 0
    %3163 = vperm.xlu0 %3162, %v2397
    %v3164 = vpop.permute.xlu0 %3163
    %3167 = vset.pattern.permute.xlu0 0
    %3168 = vperm.xlu0 %3167, %v2398
    %v3169 = vpop.permute.xlu0 %3168
    %3172 = vset.pattern.permute.xlu0 0
    %3173 = vperm.xlu0 %3172, %v2399
    %v3174 = vpop.permute.xlu0 %3173
    %3177 = vset.pattern.permute.xlu0 0
    %3178 = vperm.xlu0 %3177, %v2400
    %v3179 = vpop.permute.xlu0 %3178
    %3182 = vset.pattern.permute.xlu0 0
    %3183 = vperm.xlu0 %3182, %v2401
    %v3184 = vpop.permute.xlu0 %3183
    %3187 = vset.pattern.permute.xlu0 0
    %3188 = vperm.xlu0 %3187, %v2402
    %v3189 = vpop.permute.xlu0 %3188
    %3192 = vset.pattern.permute.xlu0 0
    %3193 = vperm.xlu0 %3192, %v2403
    %v3194 = vpop.permute.xlu0 %3193
    %3197 = vset.pattern.permute.xlu0 0
    %3198 = vperm.xlu0 %3197, %v2404
    %v3199 = vpop.permute.xlu0 %3198
    %3202 = vset.pattern.permute.xlu0 0
    %3203 = vperm.xlu0 %3202, %v2405
    %v3204 = vpop.permute.xlu0 %3203
    %3207 = vset.pattern.permute.xlu0 0
    %3208 = vperm.xlu0 %3207, %v2406
    %v3209 = vpop.permute.xlu0 %3208
    %3212 = vset.pattern.permute.xlu0 0
    %3213 = vperm.xlu0 %3212, %v2407
    %v3214 = vpop.permute.xlu0 %3213
    %3217 = vset.pattern.permute.xlu0 0
    %3218 = vperm.xlu0 %3217, %v2408
    %v3219 = vpop.permute.xlu0 %3218
    %3222 = vset.pattern.permute.xlu0 0
    %3223 = vperm.xlu0 %3222, %v2409
    %v3224 = vpop.permute.xlu0 %3223
    %3227 = vset.pattern.permute.xlu0 0
    %3228 = vperm.xlu0 %3227, %v2410
    %v3229 = vpop.permute.xlu0 %3228
    %3232 = vset.pattern.permute.xlu0 0
    %3233 = vperm.xlu0 %3232, %v2411
    %v3234 = vpop.permute.xlu0 %3233
    %3237 = vset.pattern.permute.xlu0 0
    %3238 = vperm.xlu0 %3237, %v2412
    %v3239 = vpop.permute.xlu0 %3238
    %3242 = vset.pattern.permute.xlu0 0
    %3243 = vperm.xlu0 %3242, %v2413
    %v3244 = vpop.permute.xlu0 %3243
    %3247 = vset.pattern.permute.xlu0 0
    %3248 = vperm.xlu0 %3247, %v2414
    %v3249 = vpop.permute.xlu0 %3248
    %3252 = vset.pattern.permute.xlu0 0
    %3253 = vperm.xlu0 %3252, %v2415
    %v3254 = vpop.permute.xlu0 %3253
    %3257 = vset.pattern.permute.xlu0 0
    %3258 = vperm.xlu0 %3257, %v2416
    %v3259 = vpop.permute.xlu0 %3258
    %3262 = vset.pattern.permute.xlu0 0
    %3263 = vperm.xlu0 %3262, %v2417
    %v3264 = vpop.permute.xlu0 %3263
    %3267 = vset.pattern.permute.xlu0 0
    %3268 = vperm.xlu0 %3267, %v2418
    %v3269 = vpop.permute.xlu0 %3268
    %3272 = vset.pattern.permute.xlu0 0
    %3273 = vperm.xlu0 %3272, %v2419
    %v3274 = vpop.permute.xlu0 %3273
    %3277 = vset.pattern.permute.xlu0 0
    %3278 = vperm.xlu0 %3277, %v2420
    %v3279 = vpop.permute.xlu0 %3278
    %3282 = vset.pattern.permute.xlu0 0
    %3283 = vperm.xlu0 %3282, %v2421
    %v3284 = vpop.permute.xlu0 %3283
    %3287 = vset.pattern.permute.xlu0 0
    %3288 = vperm.xlu0 %3287, %v2422
    %v3289 = vpop.permute.xlu0 %3288
    %3292 = vset.pattern.permute.xlu0 0
    %3293 = vperm.xlu0 %3292, %v2423
    %v3294 = vpop.permute.xlu0 %3293
    %3297 = vset.pattern.permute.xlu0 0
    %3298 = vperm.xlu0 %3297, %v2424
    %v3299 = vpop.permute.xlu0 %3298
    %3302 = vset.pattern.permute.xlu0 0
    %3303 = vperm.xlu0 %3302, %v2425
    %v3304 = vpop.permute.xlu0 %3303
    %3307 = vset.pattern.permute.xlu0 0
    %3308 = vperm.xlu0 %3307, %v2426
    %v3309 = vpop.permute.xlu0 %3308
    %3312 = vset.pattern.permute.xlu0 0
    %3313 = vperm.xlu0 %3312, %v2427
    %v3314 = vpop.permute.xlu0 %3313
    %3317 = vset.pattern.permute.xlu0 0
    %3318 = vperm.xlu0 %3317, %v2428
    %v3319 = vpop.permute.xlu0 %3318
    %3322 = vset.pattern.permute.xlu0 0
    %3323 = vperm.xlu0 %3322, %v2429
    %v3324 = vpop.permute.xlu0 %3323
    %3327 = vset.pattern.permute.xlu0 0
    %3328 = vperm.xlu0 %3327, %v2430
    %v3329 = vpop.permute.xlu0 %3328
    %3332 = vset.pattern.permute.xlu0 0
    %3333 = vperm.xlu0 %3332, %v2431
    %v3334 = vpop.permute.xlu0 %3333
    %3337 = vset.pattern.permute.xlu0 0
    %3338 = vperm.xlu0 %3337, %v2432
    %v3339 = vpop.permute.xlu0 %3338
    %3342 = vset.pattern.permute.xlu0 0
    %3343 = vperm.xlu0 %3342, %v2433
    %v3344 = vpop.permute.xlu0 %3343
    %3347 = vset.pattern.permute.xlu0 0
    %3348 = vperm.xlu0 %3347, %v2434
    %v3349 = vpop.permute.xlu0 %3348
    %3352 = vset.pattern.permute.xlu0 0
    %3353 = vperm.xlu0 %3352, %v2435
    %v3354 = vpop.permute.xlu0 %3353
    %3357 = vset.pattern.permute.xlu0 0
    %3358 = vperm.xlu0 %3357, %v2436
    %v3359 = vpop.permute.xlu0 %3358
    %3362 = vset.pattern.permute.xlu0 0
    %3363 = vperm.xlu0 %3362, %v2437
    %v3364 = vpop.permute.xlu0 %3363
    %3367 = vset.pattern.permute.xlu0 0
    %3368 = vperm.xlu0 %3367, %v2438
    %v3369 = vpop.permute.xlu0 %3368
    %3372 = vset.pattern.permute.xlu0 0
    %3373 = vperm.xlu0 %3372, %v2439
    %v3374 = vpop.permute.xlu0 %3373
    %3377 = vset.pattern.permute.xlu0 0
    %3378 = vperm.xlu0 %3377, %v2440
    %v3379 = vpop.permute.xlu0 %3378
    %3382 = vset.pattern.permute.xlu0 0
    %3383 = vperm.xlu0 %3382, %v2441
    %v3384 = vpop.permute.xlu0 %3383
    %3387 = vset.pattern.permute.xlu0 0
    %3388 = vperm.xlu0 %3387, %v2442
    %v3389 = vpop.permute.xlu0 %3388
    %3392 = vset.pattern.permute.xlu0 0
    %3393 = vperm.xlu0 %3392, %v2443
    %v3394 = vpop.permute.xlu0 %3393
    %3397 = vset.pattern.permute.xlu0 0
    %3398 = vperm.xlu0 %3397, %v2444
    %v3399 = vpop.permute.xlu0 %3398
    %3402 = vset.pattern.permute.xlu0 0
    %3403 = vperm.xlu0 %3402, %v2445
    %v3404 = vpop.permute.xlu0 %3403
    %3407 = vset.pattern.permute.xlu0 0
    %3408 = vperm.xlu0 %3407, %v2446
    %v3409 = vpop.permute.xlu0 %3408
    %3412 = vset.pattern.permute.xlu0 0
    %3413 = vperm.xlu0 %3412, %v2447
    %v3414 = vpop.permute.xlu0 %3413
    %3417 = vset.pattern.permute.xlu0 0
    %3418 = vperm.xlu0 %3417, %v2448
    %v3419 = vpop.permute.xlu0 %3418
    %3422 = vset.pattern.permute.xlu0 0
    %3423 = vperm.xlu0 %3422, %v2449
    %v3424 = vpop.permute.xlu0 %3423
    %3427 = vset.pattern.permute.xlu0 0
    %3428 = vperm.xlu0 %3427, %v2450
    %v3429 = vpop.permute.xlu0 %3428
    %3432 = vset.pattern.permute.xlu0 0
    %3433 = vperm.xlu0 %3432, %v2451
    %v3434 = vpop.permute.xlu0 %3433
    %3437 = vset.pattern.permute.xlu0 0
    %3438 = vperm.xlu0 %3437, %v2452
    %v3439 = vpop.permute.xlu0 %3438
    %3442 = vset.pattern.permute.xlu0 0
    %3443 = vperm.xlu0 %3442, %v2453
    %v3444 = vpop.permute.xlu0 %3443
    %3447 = vset.pattern.permute.xlu0 0
    %3448 = vperm.xlu0 %3447, %v2454
    %v3449 = vpop.permute.xlu0 %3448
    %3452 = vset.pattern.permute.xlu0 0
    %3453 = vperm.xlu0 %3452, %v2455
    %v3454 = vpop.permute.xlu0 %3453
    %3457 = vset.pattern.permute.xlu0 0
    %3458 = vperm.xlu0 %3457, %v2456
    %v3459 = vpop.permute.xlu0 %3458
    %3462 = vset.pattern.permute.xlu0 0
    %3463 = vperm.xlu0 %3462, %v2457
    %v3464 = vpop.permute.xlu0 %3463
    %3467 = vset.pattern.permute.xlu0 0
    %3468 = vperm.xlu0 %3467, %v2458
    %v3469 = vpop.permute.xlu0 %3468
    %3472 = vset.pattern.permute.xlu0 0
    %3473 = vperm.xlu0 %3472, %v2459
    %v3474 = vpop.permute.xlu0 %3473
    %3477 = vset.pattern.permute.xlu0 0
    %3478 = vperm.xlu0 %3477, %v2460
    %v3479 = vpop.permute.xlu0 %3478
    %3482 = vset.pattern.permute.xlu0 0
    %3483 = vperm.xlu0 %3482, %v2461
    %v3484 = vpop.permute.xlu0 %3483
    %3487 = vset.pattern.permute.xlu0 0
    %3488 = vperm.xlu0 %3487, %v2462
    %v3489 = vpop.permute.xlu0 %3488
    %3492 = vset.pattern.permute.xlu0 0
    %3493 = vperm.xlu0 %3492, %v2463
    %v3494 = vpop.permute.xlu0 %3493
    %3497 = vset.pattern.permute.xlu0 0
    %3498 = vperm.xlu0 %3497, %v2464
    %v3499 = vpop.permute.xlu0 %3498
    %3502 = vset.pattern.permute.xlu0 0
    %3503 = vperm.xlu0 %3502, %v2465
    %v3504 = vpop.permute.xlu0 %3503
    %3507 = vset.pattern.permute.xlu0 0
    %3508 = vperm.xlu0 %3507, %v2466
    %v3509 = vpop.permute.xlu0 %3508
    %3512 = vset.pattern.permute.xlu0 0
    %3513 = vperm.xlu0 %3512, %v2467
    %v3514 = vpop.permute.xlu0 %3513
    %3517 = vset.pattern.permute.xlu0 0
    %3518 = vperm.xlu0 %3517, %v2468
    %v3519 = vpop.permute.xlu0 %3518
    %3522 = vset.pattern.permute.xlu0 0
    %3523 = vperm.xlu0 %3522, %v2469
    %v3524 = vpop.permute.xlu0 %3523
    %3527 = vset.pattern.permute.xlu0 0
    %3528 = vperm.xlu0 %3527, %v2470
    %v3529 = vpop.permute.xlu0 %3528
    %3532 = vset.pattern.permute.xlu0 0
    %3533 = vperm.xlu0 %3532, %v2471
    %v3534 = vpop.permute.xlu0 %3533
    %3537 = vset.pattern.permute.xlu0 0
    %3538 = vperm.xlu0 %3537, %v2472
    %v3539 = vpop.permute.xlu0 %3538
    %3542 = vset.pattern.permute.xlu0 0
    %3543 = vperm.xlu0 %3542, %v2473
    %v3544 = vpop.permute.xlu0 %3543
    %3547 = vset.pattern.permute.xlu0 0
    %3548 = vperm.xlu0 %3547, %v2474
    %v3549 = vpop.permute.xlu0 %3548
    %3552 = vset.pattern.permute.xlu0 0
    %3553 = vperm.xlu0 %3552, %v2475
    %v3554 = vpop.permute.xlu0 %3553
    %3557 = vset.pattern.permute.xlu0 0
    %3558 = vperm.xlu0 %3557, %v2476
    %v3559 = vpop.permute.xlu0 %3558
    %3562 = vset.pattern.permute.xlu0 0
    %3563 = vperm.xlu0 %3562, %v2477
    %v3564 = vpop.permute.xlu0 %3563
    %3567 = vset.pattern.permute.xlu0 0
    %3568 = vperm.xlu0 %3567, %v2478
    %v3569 = vpop.permute.xlu0 %3568
    %3572 = vset.pattern.permute.xlu0 0
    %3573 = vperm.xlu0 %3572, %v2479
    %v3574 = vpop.permute.xlu0 %3573
    %3577 = vset.pattern.permute.xlu0 0
    %3578 = vperm.xlu0 %3577, %v2480
    %v3579 = vpop.permute.xlu0 %3578
    %3582 = vset.pattern.permute.xlu0 0
    %3583 = vperm.xlu0 %3582, %v2481
    %v3584 = vpop.permute.xlu0 %3583
    %3587 = vset.pattern.permute.xlu0 0
    %3588 = vperm.xlu0 %3587, %v2482
    %v3589 = vpop.permute.xlu0 %3588
    %3592 = vset.pattern.permute.xlu0 0
    %3593 = vperm.xlu0 %3592, %v2483
    %v3594 = vpop.permute.xlu0 %3593
    %3597 = vset.pattern.permute.xlu0 0
    %3598 = vperm.xlu0 %3597, %v2484
    %v3599 = vpop.permute.xlu0 %3598
    %3602 = vset.pattern.permute.xlu0 0
    %3603 = vperm.xlu0 %3602, %v2485
    %v3604 = vpop.permute.xlu0 %3603
    %3607 = vset.pattern.permute.xlu0 0
    %3608 = vperm.xlu0 %3607, %v2486
    %v3609 = vpop.permute.xlu0 %3608
    %3612 = vset.pattern.permute.xlu0 0
    %3613 = vperm.xlu0 %3612, %v2487
    %v3614 = vpop.permute.xlu0 %3613
    %3617 = vset.pattern.permute.xlu0 0
    %3618 = vperm.xlu0 %3617, %v2488
    %v3619 = vpop.permute.xlu0 %3618
    %3622 = vset.pattern.permute.xlu0 0
    %3623 = vperm.xlu0 %3622, %v2489
    %v3624 = vpop.permute.xlu0 %3623
    %3627 = vset.pattern.permute.xlu0 0
    %3628 = vperm.xlu0 %3627, %v2490
    %v3629 = vpop.permute.xlu0 %3628
    %3632 = vset.pattern.permute.xlu0 0
    %3633 = vperm.xlu0 %3632, %v2491
    %v3634 = vpop.permute.xlu0 %3633
    %3637 = vset.pattern.permute.xlu0 0
    %3638 = vperm.xlu0 %3637, %v2492
    %v3639 = vpop.permute.xlu0 %3638
    %3642 = vset.pattern.permute.xlu0 0
    %3643 = vperm.xlu0 %3642, %v2493
    %v3644 = vpop.permute.xlu0 %3643
    %3647 = vset.pattern.permute.xlu0 0
    %3648 = vperm.xlu0 %3647, %v2494
    %v3649 = vpop.permute.xlu0 %3648
    %3652 = vset.pattern.permute.xlu0 0
    %3653 = vperm.xlu0 %3652, %v2495
    %v3654 = vpop.permute.xlu0 %3653
    %v3656 = vmul.f32 %v2032, %v2499
    %v3657 = vmul.f32 %v2033, %v2504
    %v3658 = vmul.f32 %v2034, %v2509
    %v3659 = vmul.f32 %v2035, %v2514
    %v3660 = vmul.f32 %v2036, %v2519
    %v3661 = vmul.f32 %v2037, %v2524
    %v3662 = vmul.f32 %v2038, %v2529
    %v3663 = vmul.f32 %v2039, %v2534
    %v3664 = vmul.f32 %v2040, %v2539
    %v3665 = vmul.f32 %v2041, %v2544
    %v3666 = vmul.f32 %v2042, %v2549
    %v3667 = vmul.f32 %v2043, %v2554
    %v3668 = vmul.f32 %v2044, %v2559
    %v3669 = vmul.f32 %v2045, %v2564
    %v3670 = vmul.f32 %v2046, %v2569
    %v3671 = vmul.f32 %v2047, %v2574
    %v3672 = vmul.f32 %v2048, %v2579
    %v3673 = vmul.f32 %v2049, %v2584
    %v3674 = vmul.f32 %v2050, %v2589
    %v3675 = vmul.f32 %v2051, %v2594
    %v3676 = vmul.f32 %v2052, %v2599
    %v3677 = vmul.f32 %v2053, %v2604
    %v3678 = vmul.f32 %v2054, %v2609
    %v3679 = vmul.f32 %v2055, %v2614
    %v3680 = vmul.f32 %v2056, %v2619
    %v3681 = vmul.f32 %v2057, %v2624
    %v3682 = vmul.f32 %v2058, %v2629
    %v3683 = vmul.f32 %v2059, %v2634
    %v3684 = vmul.f32 %v2060, %v2639
    %v3685 = vmul.f32 %v2061, %v2644
    %v3686 = vmul.f32 %v2062, %v2649
    %v3687 = vmul.f32 %v2063, %v2654
    %v3688 = vmul.f32 %v2064, %v2659
    %v3689 = vmul.f32 %v2065, %v2664
    %v3690 = vmul.f32 %v2066, %v2669
    %v3691 = vmul.f32 %v2067, %v2674
    %v3692 = vmul.f32 %v2068, %v2679
    %v3693 = vmul.f32 %v2069, %v2684
    %v3694 = vmul.f32 %v2070, %v2689
    %v3695 = vmul.f32 %v2071, %v2694
    %v3696 = vmul.f32 %v2072, %v2699
    %v3697 = vmul.f32 %v2073, %v2704
    %v3698 = vmul.f32 %v2074, %v2709
    %v3699 = vmul.f32 %v2075, %v2714
    %v3700 = vmul.f32 %v2076, %v2719
    %v3701 = vmul.f32 %v2077, %v2724
    %v3702 = vmul.f32 %v2078, %v2729
    %v3703 = vmul.f32 %v2079, %v2734
    %v3704 = vmul.f32 %v2080, %v2739
    %v3705 = vmul.f32 %v2081, %v2744
    %v3706 = vmul.f32 %v2082, %v2749
    %v3707 = vmul.f32 %v2083, %v2754
    %v3708 = vmul.f32 %v2084, %v2759
    %v3709 = vmul.f32 %v2085, %v2764
    %v3710 = vmul.f32 %v2086, %v2769
    %v3711 = vmul.f32 %v2087, %v2774
    %v3712 = vmul.f32 %v2088, %v2779
    %v3713 = vmul.f32 %v2089, %v2784
    %v3714 = vmul.f32 %v2090, %v2789
    %v3715 = vmul.f32 %v2091, %v2794
    %v3716 = vmul.f32 %v2092, %v2799
    %v3717 = vmul.f32 %v2093, %v2804
    %v3718 = vmul.f32 %v2094, %v2809
    %v3719 = vmul.f32 %v2095, %v2814
    %v3720 = vmul.f32 %v2096, %v2819
    %v3721 = vmul.f32 %v2097, %v2824
    %v3722 = vmul.f32 %v2098, %v2829
    %v3723 = vmul.f32 %v2099, %v2834
    %v3724 = vmul.f32 %v2100, %v2839
    %v3725 = vmul.f32 %v2101, %v2844
    %v3726 = vmul.f32 %v2102, %v2849
    %v3727 = vmul.f32 %v2103, %v2854
    %v3728 = vmul.f32 %v2104, %v2859
    %v3729 = vmul.f32 %v2105, %v2864
    %v3730 = vmul.f32 %v2106, %v2869
    %v3731 = vmul.f32 %v2107, %v2874
    %v3732 = vmul.f32 %v2108, %v2879
    %v3733 = vmul.f32 %v2109, %v2884
    %v3734 = vmul.f32 %v2110, %v2889
    %v3735 = vmul.f32 %v2111, %v2894
    %v3736 = vmul.f32 %v2112, %v2899
    %v3737 = vmul.f32 %v2113, %v2904
    %v3738 = vmul.f32 %v2114, %v2909
    %v3739 = vmul.f32 %v2115, %v2914
    %v3740 = vmul.f32 %v2116, %v2919
    %v3741 = vmul.f32 %v2117, %v2924
    %v3742 = vmul.f32 %v2118, %v2929
    %v3743 = vmul.f32 %v2119, %v2934
    %v3744 = vmul.f32 %v2120, %v2939
    %v3745 = vmul.f32 %v2121, %v2944
    %v3746 = vmul.f32 %v2122, %v2949
    %v3747 = vmul.f32 %v2123, %v2954
    %v3748 = vmul.f32 %v2124, %v2959
    %v3749 = vmul.f32 %v2125, %v2964
    %v3750 = vmul.f32 %v2126, %v2969
    %v3751 = vmul.f32 %v2127, %v2974
    %v3752 = vmul.f32 %v2128, %v2979
    %v3753 = vmul.f32 %v2129, %v2984
    %v3754 = vmul.f32 %v2130, %v2989
    %v3755 = vmul.f32 %v2131, %v2994
    %v3756 = vmul.f32 %v2132, %v2999
    %v3757 = vmul.f32 %v2133, %v3004
    %v3758 = vmul.f32 %v2134, %v3009
    %v3759 = vmul.f32 %v2135, %v3014
    %v3760 = vmul.f32 %v2136, %v3019
    %v3761 = vmul.f32 %v2137, %v3024
    %v3762 = vmul.f32 %v2138, %v3029
    %v3763 = vmul.f32 %v2139, %v3034
    %v3764 = vmul.f32 %v2140, %v3039
    %v3765 = vmul.f32 %v2141, %v3044
    %v3766 = vmul.f32 %v2142, %v3049
    %v3767 = vmul.f32 %v2143, %v3054
    %v3768 = vmul.f32 %v2144, %v3059
    %v3769 = vmul.f32 %v2145, %v3064
    %v3770 = vmul.f32 %v2146, %v3069
    %v3771 = vmul.f32 %v2147, %v3074
    %v3772 = vmul.f32 %v2148, %v3079
    %v3773 = vmul.f32 %v2149, %v3084
    %v3774 = vmul.f32 %v2150, %v3089
    %v3775 = vmul.f32 %v2151, %v3094
    %v3776 = vmul.f32 %v2152, %v3099
    %v3777 = vmul.f32 %v2153, %v3104
    %v3778 = vmul.f32 %v2154, %v3109
    %v3779 = vmul.f32 %v2155, %v3114
    %v3780 = vmul.f32 %v2156, %v3119
    %v3781 = vmul.f32 %v2157, %v3124
    %v3782 = vmul.f32 %v2158, %v3129
    %v3783 = vmul.f32 %v2159, %v3134
    %v3784 = vmul.f32 %v2160, %v3139
    %v3785 = vmul.f32 %v2161, %v3144
    %v3786 = vmul.f32 %v2162, %v3149
    %v3787 = vmul.f32 %v2163, %v3154
    %v3788 = vmul.f32 %v2164, %v3159
    %v3789 = vmul.f32 %v2165, %v3164
    %v3790 = vmul.f32 %v2166, %v3169
    %v3791 = vmul.f32 %v2167, %v3174
    %v3792 = vmul.f32 %v2168, %v3179
    %v3793 = vmul.f32 %v2169, %v3184
    %v3794 = vmul.f32 %v2170, %v3189
    %v3795 = vmul.f32 %v2171, %v3194
    %v3796 = vmul.f32 %v2172, %v3199
    %v3797 = vmul.f32 %v2173, %v3204
    %v3798 = vmul.f32 %v2174, %v3209
    %v3799 = vmul.f32 %v2175, %v3214
    %v3800 = vmul.f32 %v2176, %v3219
    %v3801 = vmul.f32 %v2177, %v3224
    %v3802 = vmul.f32 %v2178, %v3229
    %v3803 = vmul.f32 %v2179, %v3234
    %v3804 = vmul.f32 %v2180, %v3239
    %v3805 = vmul.f32 %v2181, %v3244
    %v3806 = vmul.f32 %v2182, %v3249
    %v3807 = vmul.f32 %v2183, %v3254
    %v3808 = vmul.f32 %v2184, %v3259
    %v3809 = vmul.f32 %v2185, %v3264
    %v3810 = vmul.f32 %v2186, %v3269
    %v3811 = vmul.f32 %v2187, %v3274
    %v3812 = vmul.f32 %v2188, %v3279
    %v3813 = vmul.f32 %v2189, %v3284
    %v3814 = vmul.f32 %v2190, %v3289
    %v3815 = vmul.f32 %v2191, %v3294
    %v3816 = vmul.f32 %v2192, %v3299
    %v3817 = vmul.f32 %v2193, %v3304
    %v3818 = vmul.f32 %v2194, %v3309
    %v3819 = vmul.f32 %v2195, %v3314
    %v3820 = vmul.f32 %v2196, %v3319
    %v3821 = vmul.f32 %v2197, %v3324
    %v3822 = vmul.f32 %v2198, %v3329
    %v3823 = vmul.f32 %v2199, %v3334
    %v3824 = vmul.f32 %v2200, %v3339
    %v3825 = vmul.f32 %v2201, %v3344
    %v3826 = vmul.f32 %v2202, %v3349
    %v3827 = vmul.f32 %v2203, %v3354
    %v3828 = vmul.f32 %v2204, %v3359
    %v3829 = vmul.f32 %v2205, %v3364
    %v3830 = vmul.f32 %v2206, %v3369
    %v3831 = vmul.f32 %v2207, %v3374
    %v3832 = vmul.f32 %v2208, %v3379
    %v3833 = vmul.f32 %v2209, %v3384
    %v3834 = vmul.f32 %v2210, %v3389
    %v3835 = vmul.f32 %v2211, %v3394
    %v3836 = vmul.f32 %v2212, %v3399
    %v3837 = vmul.f32 %v2213, %v3404
    %v3838 = vmul.f32 %v2214, %v3409
    %v3839 = vmul.f32 %v2215, %v3414
    %v3840 = vmul.f32 %v2216, %v3419
    %v3841 = vmul.f32 %v2217, %v3424
    %v3842 = vmul.f32 %v2218, %v3429
    %v3843 = vmul.f32 %v2219, %v3434
    %v3844 = vmul.f32 %v2220, %v3439
    %v3845 = vmul.f32 %v2221, %v3444
    %v3846 = vmul.f32 %v2222, %v3449
    %v3847 = vmul.f32 %v2223, %v3454
    %v3848 = vmul.f32 %v2224, %v3459
    %v3849 = vmul.f32 %v2225, %v3464
    %v3850 = vmul.f32 %v2226, %v3469
    %v3851 = vmul.f32 %v2227, %v3474
    %v3852 = vmul.f32 %v2228, %v3479
    %v3853 = vmul.f32 %v2229, %v3484
    %v3854 = vmul.f32 %v2230, %v3489
    %v3855 = vmul.f32 %v2231, %v3494
    %v3856 = vmul.f32 %v2232, %v3499
    %v3857 = vmul.f32 %v2233, %v3504
    %v3858 = vmul.f32 %v2234, %v3509
    %v3859 = vmul.f32 %v2235, %v3514
    %v3860 = vmul.f32 %v2236, %v3519
    %v3861 = vmul.f32 %v2237, %v3524
    %v3862 = vmul.f32 %v2238, %v3529
    %v3863 = vmul.f32 %v2239, %v3534
    %v3864 = vmul.f32 %v2240, %v3539
    %v3865 = vmul.f32 %v2241, %v3544
    %v3866 = vmul.f32 %v2242, %v3549
    %v3867 = vmul.f32 %v2243, %v3554
    %v3868 = vmul.f32 %v2244, %v3559
    %v3869 = vmul.f32 %v2245, %v3564
    %v3870 = vmul.f32 %v2246, %v3569
    %v3871 = vmul.f32 %v2247, %v3574
    %v3872 = vmul.f32 %v2248, %v3579
    %v3873 = vmul.f32 %v2249, %v3584
    %v3874 = vmul.f32 %v2250, %v3589
    %v3875 = vmul.f32 %v2251, %v3594
    %v3876 = vmul.f32 %v2252, %v3599
    %v3877 = vmul.f32 %v2253, %v3604
    %v3878 = vmul.f32 %v2254, %v3609
    %v3879 = vmul.f32 %v2255, %v3614
    %v3880 = vmul.f32 %v2256, %v3619
    %v3881 = vmul.f32 %v2257, %v3624
    %v3882 = vmul.f32 %v2258, %v3629
    %v3883 = vmul.f32 %v2259, %v3634
    %v3884 = vmul.f32 %v2260, %v3639
    %v3885 = vmul.f32 %v2261, %v3644
    %v3886 = vmul.f32 %v2262, %v3649
    %v3887 = vmul.f32 %v2263, %v3654
    %vm3947 = vcmask 1046528
    %v3948 = vrot.slane %v3656, 1
    %v3949 = vrot.slane %v3657, 1
    %v3950 = vsel %vm3947, %v3948, %v3949
    %v3951 = vrot.slane %v3658, 1
    %v3952 = vsel %vm3947, %v3949, %v3951
    %v3953 = vrot.slane %v3659, 1
    %v3954 = vsel %vm3947, %v3951, %v3953
    %v3955 = vrot.slane %v3660, 1
    %v3956 = vsel %vm3947, %v3953, %v3955
    %v3957 = vrot.slane %v3661, 1
    %v3958 = vsel %vm3947, %v3955, %v3957
    %v3959 = vrot.slane %v3662, 1
    %v3960 = vsel %vm3947, %v3957, %v3959
    %v3961 = vrot.slane %v3663, 1
    %v3962 = vsel %vm3947, %v3959, %v3961
    %v3963 = vrot.slane %v3664, 1
    %v3964 = vsel %vm3947, %v3961, %v3963
    %v3965 = vrot.slane %v3665, 1
    %v3966 = vsel %vm3947, %v3963, %v3965
    %v3967 = vrot.slane %v3666, 1
    %v3968 = vsel %vm3947, %v3965, %v3967
    %v3969 = vrot.slane %v3667, 1
    %v3970 = vsel %vm3947, %v3967, %v3969
    %v3971 = vrot.slane %v3668, 1
    %v3972 = vsel %vm3947, %v3969, %v3971
    %v3973 = vrot.slane %v3669, 1
    %v3974 = vsel %vm3947, %v3971, %v3973
    %v3975 = vrot.slane %v3670, 1
    %v3976 = vsel %vm3947, %v3973, %v3975
    %v3977 = vrot.slane %v3671, 1
    %v3978 = vsel %vm3947, %v3975, %v3977
    %v3979 = vrot.slane %v3672, 1
    %v3980 = vsel %vm3947, %v3977, %v3979
    %v3981 = vrot.slane %v3673, 1
    %v3982 = vsel %vm3947, %v3979, %v3981
    %v3983 = vrot.slane %v3674, 1
    %v3984 = vsel %vm3947, %v3981, %v3983
    %v3985 = vrot.slane %v3675, 1
    %v3986 = vsel %vm3947, %v3983, %v3985
    %v3987 = vrot.slane %v3676, 1
    %v3988 = vsel %vm3947, %v3985, %v3987
    %v3989 = vrot.slane %v3677, 1
    %v3990 = vsel %vm3947, %v3987, %v3989
    %v3991 = vrot.slane %v3678, 1
    %v3992 = vsel %vm3947, %v3989, %v3991
    %v3993 = vrot.slane %v3679, 1
    %v3994 = vsel %vm3947, %v3991, %v3993
    %v3995 = vrot.slane %v3680, 1
    %v3996 = vsel %vm3947, %v3993, %v3995
    %v3997 = vrot.slane %v3681, 1
    %v3998 = vsel %vm3947, %v3995, %v3997
    %v3999 = vrot.slane %v3682, 1
    %v4000 = vsel %vm3947, %v3997, %v3999
    %v4001 = vrot.slane %v3683, 1
    %v4002 = vsel %vm3947, %v3999, %v4001
    %v4003 = vrot.slane %v3684, 1
    %v4004 = vsel %vm3947, %v4001, %v4003
    %v4005 = vrot.slane %v3685, 1
    %v4006 = vsel %vm3947, %v4003, %v4005
    %v4007 = vrot.slane %v3686, 1
    %v4008 = vsel %vm3947, %v4005, %v4007
    %v4009 = vrot.slane %v3687, 1
    %v4010 = vsel %vm3947, %v4007, %v4009
    %v4011 = vrot.slane %v3688, 1
    %v4012 = vsel %vm3947, %v4009, %v4011
    %v4013 = vrot.slane %v3689, 1
    %v4014 = vsel %vm3947, %v4011, %v4013
    %v4015 = vrot.slane %v3690, 1
    %v4016 = vsel %vm3947, %v4013, %v4015
    %v4017 = vrot.slane %v3691, 1
    %v4018 = vsel %vm3947, %v4015, %v4017
    %v4019 = vrot.slane %v3692, 1
    %v4020 = vsel %vm3947, %v4017, %v4019
    %v4021 = vrot.slane %v3693, 1
    %v4022 = vsel %vm3947, %v4019, %v4021
    %v4023 = vrot.slane %v3694, 1
    %v4024 = vsel %vm3947, %v4021, %v4023
    %v4025 = vrot.slane %v3695, 1
    %v4026 = vsel %vm3947, %v4023, %v4025
    %v4027 = vrot.slane %v3696, 1
    %v4028 = vsel %vm3947, %v4025, %v4027
    %v4029 = vrot.slane %v3697, 1
    %v4030 = vsel %vm3947, %v4027, %v4029
    %v4031 = vrot.slane %v3698, 1
    %v4032 = vsel %vm3947, %v4029, %v4031
    %v4033 = vrot.slane %v3699, 1
    %v4034 = vsel %vm3947, %v4031, %v4033
    %v4035 = vrot.slane %v3700, 1
    %v4036 = vsel %vm3947, %v4033, %v4035
    %v4037 = vrot.slane %v3701, 1
    %v4038 = vsel %vm3947, %v4035, %v4037
    %v4039 = vrot.slane %v3702, 1
    %v4040 = vsel %vm3947, %v4037, %v4039
    %v4041 = vrot.slane %v3703, 1
    %v4042 = vsel %vm3947, %v4039, %v4041
    %v4043 = vrot.slane %v3704, 1
    %v4044 = vsel %vm3947, %v4041, %v4043
    %v4045 = vrot.slane %v3705, 1
    %v4046 = vsel %vm3947, %v4043, %v4045
    %v4047 = vrot.slane %v3706, 1
    %v4048 = vsel %vm3947, %v4045, %v4047
    %v4049 = vrot.slane %v3707, 1
    %v4050 = vsel %vm3947, %v4047, %v4049
    %v4051 = vrot.slane %v3708, 1
    %v4052 = vsel %vm3947, %v4049, %v4051
    %v4053 = vrot.slane %v3709, 1
    %v4054 = vsel %vm3947, %v4051, %v4053
    %v4055 = vrot.slane %v3710, 1
    %v4056 = vsel %vm3947, %v4053, %v4055
    %v4057 = vrot.slane %v3711, 1
    %v4058 = vsel %vm3947, %v4055, %v4057
    %v4059 = vrot.slane %v3712, 1
    %v4060 = vsel %vm3947, %v4057, %v4059
    %v4061 = vrot.slane %v3713, 1
    %v4062 = vsel %vm3947, %v4059, %v4061
    %v4063 = vrot.slane %v3714, 1
    %v4064 = vsel %vm3947, %v4061, %v4063
    %v4123 = vmax.f32 %v3656, %v3950
    %v4124 = vmax.f32 %v3657, %v3952
    %v4125 = vmax.f32 %v3658, %v3954
    %v4126 = vmax.f32 %v3659, %v3956
    %v4127 = vmax.f32 %v3660, %v3958
    %v4128 = vmax.f32 %v3661, %v3960
    %v4129 = vmax.f32 %v3662, %v3962
    %v4130 = vmax.f32 %v3663, %v3964
    %v4131 = vmax.f32 %v3664, %v3966
    %v4132 = vmax.f32 %v3665, %v3968
    %v4133 = vmax.f32 %v3666, %v3970
    %v4134 = vmax.f32 %v3667, %v3972
    %v4135 = vmax.f32 %v3668, %v3974
    %v4136 = vmax.f32 %v3669, %v3976
    %v4137 = vmax.f32 %v3670, %v3978
    %v4138 = vmax.f32 %v3671, %v3980
    %v4139 = vmax.f32 %v3672, %v3982
    %v4140 = vmax.f32 %v3673, %v3984
    %v4141 = vmax.f32 %v3674, %v3986
    %v4142 = vmax.f32 %v3675, %v3988
    %v4143 = vmax.f32 %v3676, %v3990
    %v4144 = vmax.f32 %v3677, %v3992
    %v4145 = vmax.f32 %v3678, %v3994
    %v4146 = vmax.f32 %v3679, %v3996
    %v4147 = vmax.f32 %v3680, %v3998
    %v4148 = vmax.f32 %v3681, %v4000
    %v4149 = vmax.f32 %v3682, %v4002
    %v4150 = vmax.f32 %v3683, %v4004
    %v4151 = vmax.f32 %v3684, %v4006
    %v4152 = vmax.f32 %v3685, %v4008
    %v4153 = vmax.f32 %v3686, %v4010
    %v4154 = vmax.f32 %v3687, %v4012
    %v4155 = vmax.f32 %v3688, %v4014
    %v4156 = vmax.f32 %v3689, %v4016
    %v4157 = vmax.f32 %v3690, %v4018
    %v4158 = vmax.f32 %v3691, %v4020
    %v4159 = vmax.f32 %v3692, %v4022
    %v4160 = vmax.f32 %v3693, %v4024
    %v4161 = vmax.f32 %v3694, %v4026
    %v4162 = vmax.f32 %v3695, %v4028
    %v4163 = vmax.f32 %v3696, %v4030
    %v4164 = vmax.f32 %v3697, %v4032
    %v4165 = vmax.f32 %v3698, %v4034
    %v4166 = vmax.f32 %v3699, %v4036
    %v4167 = vmax.f32 %v3700, %v4038
    %v4168 = vmax.f32 %v3701, %v4040
    %v4169 = vmax.f32 %v3702, %v4042
    %v4170 = vmax.f32 %v3703, %v4044
    %v4171 = vmax.f32 %v3704, %v4046
    %v4172 = vmax.f32 %v3705, %v4048
    %v4173 = vmax.f32 %v3706, %v4050
    %v4174 = vmax.f32 %v3707, %v4052
    %v4175 = vmax.f32 %v3708, %v4054
    %v4176 = vmax.f32 %v3709, %v4056
    %v4177 = vmax.f32 %v3710, %v4058
    %v4178 = vmax.f32 %v3711, %v4060
    %v4179 = vmax.f32 %v3712, %v4062
    %v4180 = vmax.f32 %v3713, %v4064
    %vm4182 = vcmask 1040384
    %v4183 = vrot.slane %v3657, 7
    %v4184 = vrot.slane %v3658, 7
    %v4185 = vsel %vm4182, %v4183, %v4184
    %v4186 = vrot.slane %v3659, 7
    %v4187 = vsel %vm4182, %v4184, %v4186
    %v4188 = vrot.slane %v3660, 7
    %v4189 = vsel %vm4182, %v4186, %v4188
    %v4190 = vrot.slane %v3661, 7
    %v4191 = vsel %vm4182, %v4188, %v4190
    %v4192 = vrot.slane %v3662, 7
    %v4193 = vsel %vm4182, %v4190, %v4192
    %v4194 = vrot.slane %v3663, 7
    %v4195 = vsel %vm4182, %v4192, %v4194
    %v4196 = vrot.slane %v3664, 7
    %v4197 = vsel %vm4182, %v4194, %v4196
    %v4198 = vrot.slane %v3665, 7
    %v4199 = vsel %vm4182, %v4196, %v4198
    %v4200 = vrot.slane %v3666, 7
    %v4201 = vsel %vm4182, %v4198, %v4200
    %v4202 = vrot.slane %v3667, 7
    %v4203 = vsel %vm4182, %v4200, %v4202
    %v4204 = vrot.slane %v3668, 7
    %v4205 = vsel %vm4182, %v4202, %v4204
    %v4206 = vrot.slane %v3669, 7
    %v4207 = vsel %vm4182, %v4204, %v4206
    %v4208 = vrot.slane %v3670, 7
    %v4209 = vsel %vm4182, %v4206, %v4208
    %v4210 = vrot.slane %v3671, 7
    %v4211 = vsel %vm4182, %v4208, %v4210
    %v4212 = vrot.slane %v3672, 7
    %v4213 = vsel %vm4182, %v4210, %v4212
    %v4214 = vrot.slane %v3673, 7
    %v4215 = vsel %vm4182, %v4212, %v4214
    %v4216 = vrot.slane %v3674, 7
    %v4217 = vsel %vm4182, %v4214, %v4216
    %v4218 = vrot.slane %v3675, 7
    %v4219 = vsel %vm4182, %v4216, %v4218
    %v4220 = vrot.slane %v3676, 7
    %v4221 = vsel %vm4182, %v4218, %v4220
    %v4222 = vrot.slane %v3677, 7
    %v4223 = vsel %vm4182, %v4220, %v4222
    %v4224 = vrot.slane %v3678, 7
    %v4225 = vsel %vm4182, %v4222, %v4224
    %v4226 = vrot.slane %v3679, 7
    %v4227 = vsel %vm4182, %v4224, %v4226
    %v4228 = vrot.slane %v3680, 7
    %v4229 = vsel %vm4182, %v4226, %v4228
    %v4230 = vrot.slane %v3681, 7
    %v4231 = vsel %vm4182, %v4228, %v4230
    %v4232 = vrot.slane %v3682, 7
    %v4233 = vsel %vm4182, %v4230, %v4232
    %v4234 = vrot.slane %v3683, 7
    %v4235 = vsel %vm4182, %v4232, %v4234
    %v4236 = vrot.slane %v3684, 7
    %v4237 = vsel %vm4182, %v4234, %v4236
    %v4238 = vrot.slane %v3685, 7
    %v4239 = vsel %vm4182, %v4236, %v4238
    %v4240 = vrot.slane %v3686, 7
    %v4241 = vsel %vm4182, %v4238, %v4240
    %v4242 = vrot.slane %v3687, 7
    %v4243 = vsel %vm4182, %v4240, %v4242
    %v4244 = vrot.slane %v3688, 7
    %v4245 = vsel %vm4182, %v4242, %v4244
    %v4246 = vrot.slane %v3689, 7
    %v4247 = vsel %vm4182, %v4244, %v4246
    %v4248 = vrot.slane %v3690, 7
    %v4249 = vsel %vm4182, %v4246, %v4248
    %v4250 = vrot.slane %v3691, 7
    %v4251 = vsel %vm4182, %v4248, %v4250
    %v4252 = vrot.slane %v3692, 7
    %v4253 = vsel %vm4182, %v4250, %v4252
    %v4254 = vrot.slane %v3693, 7
    %v4255 = vsel %vm4182, %v4252, %v4254
    %v4256 = vrot.slane %v3694, 7
    %v4257 = vsel %vm4182, %v4254, %v4256
    %v4258 = vrot.slane %v3695, 7
    %v4259 = vsel %vm4182, %v4256, %v4258
    %v4260 = vrot.slane %v3696, 7
    %v4261 = vsel %vm4182, %v4258, %v4260
    %v4262 = vrot.slane %v3697, 7
    %v4263 = vsel %vm4182, %v4260, %v4262
    %v4264 = vrot.slane %v3698, 7
    %v4265 = vsel %vm4182, %v4262, %v4264
    %v4266 = vrot.slane %v3699, 7
    %v4267 = vsel %vm4182, %v4264, %v4266
    %v4268 = vrot.slane %v3700, 7
    %v4269 = vsel %vm4182, %v4266, %v4268
    %v4270 = vrot.slane %v3701, 7
    %v4271 = vsel %vm4182, %v4268, %v4270
    %v4272 = vrot.slane %v3702, 7
    %v4273 = vsel %vm4182, %v4270, %v4272
    %v4274 = vrot.slane %v3703, 7
    %v4275 = vsel %vm4182, %v4272, %v4274
    %v4276 = vrot.slane %v3704, 7
    %v4277 = vsel %vm4182, %v4274, %v4276
    %v4278 = vrot.slane %v3705, 7
    %v4279 = vsel %vm4182, %v4276, %v4278
    %v4280 = vrot.slane %v3706, 7
    %v4281 = vsel %vm4182, %v4278, %v4280
    %v4282 = vrot.slane %v3707, 7
    %v4283 = vsel %vm4182, %v4280, %v4282
    %v4284 = vrot.slane %v3708, 7
    %v4285 = vsel %vm4182, %v4282, %v4284
    %v4286 = vrot.slane %v3709, 7
    %v4287 = vsel %vm4182, %v4284, %v4286
    %v4288 = vrot.slane %v3710, 7
    %v4289 = vsel %vm4182, %v4286, %v4288
    %v4290 = vrot.slane %v3711, 7
    %v4291 = vsel %vm4182, %v4288, %v4290
    %v4292 = vrot.slane %v3712, 7
    %v4293 = vsel %vm4182, %v4290, %v4292
    %v4294 = vrot.slane %v3713, 7
    %v4295 = vsel %vm4182, %v4292, %v4294
    %v4296 = vrot.slane %v3714, 7
    %v4297 = vsel %vm4182, %v4294, %v4296
    %v4298 = vrot.slane %v3715, 7
    %v4299 = vsel %vm4182, %v4296, %v4298
    %v4358 = vmax.f32 %v4123, %v4185
    %v4359 = vmax.f32 %v4124, %v4187
    %v4360 = vmax.f32 %v4125, %v4189
    %v4361 = vmax.f32 %v4126, %v4191
    %v4362 = vmax.f32 %v4127, %v4193
    %v4363 = vmax.f32 %v4128, %v4195
    %v4364 = vmax.f32 %v4129, %v4197
    %v4365 = vmax.f32 %v4130, %v4199
    %v4366 = vmax.f32 %v4131, %v4201
    %v4367 = vmax.f32 %v4132, %v4203
    %v4368 = vmax.f32 %v4133, %v4205
    %v4369 = vmax.f32 %v4134, %v4207
    %v4370 = vmax.f32 %v4135, %v4209
    %v4371 = vmax.f32 %v4136, %v4211
    %v4372 = vmax.f32 %v4137, %v4213
    %v4373 = vmax.f32 %v4138, %v4215
    %v4374 = vmax.f32 %v4139, %v4217
    %v4375 = vmax.f32 %v4140, %v4219
    %v4376 = vmax.f32 %v4141, %v4221
    %v4377 = vmax.f32 %v4142, %v4223
    %v4378 = vmax.f32 %v4143, %v4225
    %v4379 = vmax.f32 %v4144, %v4227
    %v4380 = vmax.f32 %v4145, %v4229
    %v4381 = vmax.f32 %v4146, %v4231
    %v4382 = vmax.f32 %v4147, %v4233
    %v4383 = vmax.f32 %v4148, %v4235
    %v4384 = vmax.f32 %v4149, %v4237
    %v4385 = vmax.f32 %v4150, %v4239
    %v4386 = vmax.f32 %v4151, %v4241
    %v4387 = vmax.f32 %v4152, %v4243
    %v4388 = vmax.f32 %v4153, %v4245
    %v4389 = vmax.f32 %v4154, %v4247
    %v4390 = vmax.f32 %v4155, %v4249
    %v4391 = vmax.f32 %v4156, %v4251
    %v4392 = vmax.f32 %v4157, %v4253
    %v4393 = vmax.f32 %v4158, %v4255
    %v4394 = vmax.f32 %v4159, %v4257
    %v4395 = vmax.f32 %v4160, %v4259
    %v4396 = vmax.f32 %v4161, %v4261
    %v4397 = vmax.f32 %v4162, %v4263
    %v4398 = vmax.f32 %v4163, %v4265
    %v4399 = vmax.f32 %v4164, %v4267
    %v4400 = vmax.f32 %v4165, %v4269
    %v4401 = vmax.f32 %v4166, %v4271
    %v4402 = vmax.f32 %v4167, %v4273
    %v4403 = vmax.f32 %v4168, %v4275
    %v4404 = vmax.f32 %v4169, %v4277
    %v4405 = vmax.f32 %v4170, %v4279
    %v4406 = vmax.f32 %v4171, %v4281
    %v4407 = vmax.f32 %v4172, %v4283
    %v4408 = vmax.f32 %v4173, %v4285
    %v4409 = vmax.f32 %v4174, %v4287
    %v4410 = vmax.f32 %v4175, %v4289
    %v4411 = vmax.f32 %v4176, %v4291
    %v4412 = vmax.f32 %v4177, %v4293
    %v4413 = vmax.f32 %v4178, %v4295
    %v4414 = vmax.f32 %v4179, %v4297
    %v4415 = vmax.f32 %v4180, %v4299
    %v4416 = vmax.f32 %v4358, %v3658
    %v4417 = vmax.f32 %v4359, %v3659
    %v4418 = vmax.f32 %v4360, %v3660
    %v4419 = vmax.f32 %v4361, %v3661
    %v4420 = vmax.f32 %v4362, %v3662
    %v4421 = vmax.f32 %v4363, %v3663
    %v4422 = vmax.f32 %v4364, %v3664
    %v4423 = vmax.f32 %v4365, %v3665
    %v4424 = vmax.f32 %v4366, %v3666
    %v4425 = vmax.f32 %v4367, %v3667
    %v4426 = vmax.f32 %v4368, %v3668
    %v4427 = vmax.f32 %v4369, %v3669
    %v4428 = vmax.f32 %v4370, %v3670
    %v4429 = vmax.f32 %v4371, %v3671
    %v4430 = vmax.f32 %v4372, %v3672
    %v4431 = vmax.f32 %v4373, %v3673
    %v4432 = vmax.f32 %v4374, %v3674
    %v4433 = vmax.f32 %v4375, %v3675
    %v4434 = vmax.f32 %v4376, %v3676
    %v4435 = vmax.f32 %v4377, %v3677
    %v4436 = vmax.f32 %v4378, %v3678
    %v4437 = vmax.f32 %v4379, %v3679
    %v4438 = vmax.f32 %v4380, %v3680
    %v4439 = vmax.f32 %v4381, %v3681
    %v4440 = vmax.f32 %v4382, %v3682
    %v4441 = vmax.f32 %v4383, %v3683
    %v4442 = vmax.f32 %v4384, %v3684
    %v4443 = vmax.f32 %v4385, %v3685
    %v4444 = vmax.f32 %v4386, %v3686
    %v4445 = vmax.f32 %v4387, %v3687
    %v4446 = vmax.f32 %v4388, %v3688
    %v4447 = vmax.f32 %v4389, %v3689
    %v4448 = vmax.f32 %v4390, %v3690
    %v4449 = vmax.f32 %v4391, %v3691
    %v4450 = vmax.f32 %v4392, %v3692
    %v4451 = vmax.f32 %v4393, %v3693
    %v4452 = vmax.f32 %v4394, %v3694
    %v4453 = vmax.f32 %v4395, %v3695
    %v4454 = vmax.f32 %v4396, %v3696
    %v4455 = vmax.f32 %v4397, %v3697
    %v4456 = vmax.f32 %v4398, %v3698
    %v4457 = vmax.f32 %v4399, %v3699
    %v4458 = vmax.f32 %v4400, %v3700
    %v4459 = vmax.f32 %v4401, %v3701
    %v4460 = vmax.f32 %v4402, %v3702
    %v4461 = vmax.f32 %v4403, %v3703
    %v4462 = vmax.f32 %v4404, %v3704
    %v4463 = vmax.f32 %v4405, %v3705
    %v4464 = vmax.f32 %v4406, %v3706
    %v4465 = vmax.f32 %v4407, %v3707
    %v4466 = vmax.f32 %v4408, %v3708
    %v4467 = vmax.f32 %v4409, %v3709
    %v4468 = vmax.f32 %v4410, %v3710
    %v4469 = vmax.f32 %v4411, %v3711
    %v4470 = vmax.f32 %v4412, %v3712
    %v4471 = vmax.f32 %v4413, %v3713
    %v4472 = vmax.f32 %v4414, %v3714
    %v4473 = vmax.f32 %v4415, %v3715
    %v4474 = vmax.f32 %v4416, %v3714
    %v4475 = vmax.f32 %v4417, %v3715
    %v4476 = vmax.f32 %v4418, %v3716
    %v4477 = vmax.f32 %v4419, %v3717
    %v4478 = vmax.f32 %v4420, %v3718
    %v4479 = vmax.f32 %v4421, %v3719
    %v4480 = vmax.f32 %v4422, %v3720
    %v4481 = vmax.f32 %v4423, %v3721
    %v4482 = vmax.f32 %v4424, %v3722
    %v4483 = vmax.f32 %v4425, %v3723
    %v4484 = vmax.f32 %v4426, %v3724
    %v4485 = vmax.f32 %v4427, %v3725
    %v4486 = vmax.f32 %v4428, %v3726
    %v4487 = vmax.f32 %v4429, %v3727
    %v4488 = vmax.f32 %v4430, %v3728
    %v4489 = vmax.f32 %v4431, %v3729
    %v4490 = vmax.f32 %v4432, %v3730
    %v4491 = vmax.f32 %v4433, %v3731
    %v4492 = vmax.f32 %v4434, %v3732
    %v4493 = vmax.f32 %v4435, %v3733
    %v4494 = vmax.f32 %v4436, %v3734
    %v4495 = vmax.f32 %v4437, %v3735
    %v4496 = vmax.f32 %v4438, %v3736
    %v4497 = vmax.f32 %v4439, %v3737
    %v4498 = vmax.f32 %v4440, %v3738
    %v4499 = vmax.f32 %v4441, %v3739
    %v4500 = vmax.f32 %v4442, %v3740
    %v4501 = vmax.f32 %v4443, %v3741
    %v4502 = vmax.f32 %v4444, %v3742
    %v4503 = vmax.f32 %v4445, %v3743
    %v4504 = vmax.f32 %v4446, %v3744
    %v4505 = vmax.f32 %v4447, %v3745
    %v4506 = vmax.f32 %v4448, %v3746
    %v4507 = vmax.f32 %v4449, %v3747
    %v4508 = vmax.f32 %v4450, %v3748
    %v4509 = vmax.f32 %v4451, %v3749
    %v4510 = vmax.f32 %v4452, %v3750
    %v4511 = vmax.f32 %v4453, %v3751
    %v4512 = vmax.f32 %v4454, %v3752
    %v4513 = vmax.f32 %v4455, %v3753
    %v4514 = vmax.f32 %v4456, %v3754
    %v4515 = vmax.f32 %v4457, %v3755
    %v4516 = vmax.f32 %v4458, %v3756
    %v4517 = vmax.f32 %v4459, %v3757
    %v4518 = vmax.f32 %v4460, %v3758
    %v4519 = vmax.f32 %v4461, %v3759
    %v4520 = vmax.f32 %v4462, %v3760
    %v4521 = vmax.f32 %v4463, %v3761
    %v4522 = vmax.f32 %v4464, %v3762
    %v4523 = vmax.f32 %v4465, %v3763
    %v4524 = vmax.f32 %v4466, %v3764
    %v4525 = vmax.f32 %v4467, %v3765
    %v4526 = vmax.f32 %v4468, %v3766
    %v4527 = vmax.f32 %v4469, %v3767
    %v4528 = vmax.f32 %v4470, %v3768
    %v4529 = vmax.f32 %v4471, %v3769
    %v4530 = vmax.f32 %v4472, %v3770
    %v4531 = vmax.f32 %v4473, %v3771
    %v4590 = vrot.slane %v3716, 7
    %v4591 = vsel %vm4182, %v4298, %v4590
    %v4592 = vrot.slane %v3717, 7
    %v4593 = vsel %vm4182, %v4590, %v4592
    %v4594 = vrot.slane %v3718, 7
    %v4595 = vsel %vm4182, %v4592, %v4594
    %v4596 = vrot.slane %v3719, 7
    %v4597 = vsel %vm4182, %v4594, %v4596
    %v4598 = vrot.slane %v3720, 7
    %v4599 = vsel %vm4182, %v4596, %v4598
    %v4600 = vrot.slane %v3721, 7
    %v4601 = vsel %vm4182, %v4598, %v4600
    %v4602 = vrot.slane %v3722, 7
    %v4603 = vsel %vm4182, %v4600, %v4602
    %v4604 = vrot.slane %v3723, 7
    %v4605 = vsel %vm4182, %v4602, %v4604
    %v4606 = vrot.slane %v3724, 7
    %v4607 = vsel %vm4182, %v4604, %v4606
    %v4608 = vrot.slane %v3725, 7
    %v4609 = vsel %vm4182, %v4606, %v4608
    %v4610 = vrot.slane %v3726, 7
    %v4611 = vsel %vm4182, %v4608, %v4610
    %v4612 = vrot.slane %v3727, 7
    %v4613 = vsel %vm4182, %v4610, %v4612
    %v4614 = vrot.slane %v3728, 7
    %v4615 = vsel %vm4182, %v4612, %v4614
    %v4616 = vrot.slane %v3729, 7
    %v4617 = vsel %vm4182, %v4614, %v4616
    %v4618 = vrot.slane %v3730, 7
    %v4619 = vsel %vm4182, %v4616, %v4618
    %v4620 = vrot.slane %v3731, 7
    %v4621 = vsel %vm4182, %v4618, %v4620
    %v4622 = vrot.slane %v3732, 7
    %v4623 = vsel %vm4182, %v4620, %v4622
    %v4624 = vrot.slane %v3733, 7
    %v4625 = vsel %vm4182, %v4622, %v4624
    %v4626 = vrot.slane %v3734, 7
    %v4627 = vsel %vm4182, %v4624, %v4626
    %v4628 = vrot.slane %v3735, 7
    %v4629 = vsel %vm4182, %v4626, %v4628
    %v4630 = vrot.slane %v3736, 7
    %v4631 = vsel %vm4182, %v4628, %v4630
    %v4632 = vrot.slane %v3737, 7
    %v4633 = vsel %vm4182, %v4630, %v4632
    %v4634 = vrot.slane %v3738, 7
    %v4635 = vsel %vm4182, %v4632, %v4634
    %v4636 = vrot.slane %v3739, 7
    %v4637 = vsel %vm4182, %v4634, %v4636
    %v4638 = vrot.slane %v3740, 7
    %v4639 = vsel %vm4182, %v4636, %v4638
    %v4640 = vrot.slane %v3741, 7
    %v4641 = vsel %vm4182, %v4638, %v4640
    %v4642 = vrot.slane %v3742, 7
    %v4643 = vsel %vm4182, %v4640, %v4642
    %v4644 = vrot.slane %v3743, 7
    %v4645 = vsel %vm4182, %v4642, %v4644
    %v4646 = vrot.slane %v3744, 7
    %v4647 = vsel %vm4182, %v4644, %v4646
    %v4648 = vrot.slane %v3745, 7
    %v4649 = vsel %vm4182, %v4646, %v4648
    %v4650 = vrot.slane %v3746, 7
    %v4651 = vsel %vm4182, %v4648, %v4650
    %v4652 = vrot.slane %v3747, 7
    %v4653 = vsel %vm4182, %v4650, %v4652
    %v4654 = vrot.slane %v3748, 7
    %v4655 = vsel %vm4182, %v4652, %v4654
    %v4656 = vrot.slane %v3749, 7
    %v4657 = vsel %vm4182, %v4654, %v4656
    %v4658 = vrot.slane %v3750, 7
    %v4659 = vsel %vm4182, %v4656, %v4658
    %v4660 = vrot.slane %v3751, 7
    %v4661 = vsel %vm4182, %v4658, %v4660
    %v4662 = vrot.slane %v3752, 7
    %v4663 = vsel %vm4182, %v4660, %v4662
    %v4664 = vrot.slane %v3753, 7
    %v4665 = vsel %vm4182, %v4662, %v4664
    %v4666 = vrot.slane %v3754, 7
    %v4667 = vsel %vm4182, %v4664, %v4666
    %v4668 = vrot.slane %v3755, 7
    %v4669 = vsel %vm4182, %v4666, %v4668
    %v4670 = vrot.slane %v3756, 7
    %v4671 = vsel %vm4182, %v4668, %v4670
    %v4672 = vrot.slane %v3757, 7
    %v4673 = vsel %vm4182, %v4670, %v4672
    %v4674 = vrot.slane %v3758, 7
    %v4675 = vsel %vm4182, %v4672, %v4674
    %v4676 = vrot.slane %v3759, 7
    %v4677 = vsel %vm4182, %v4674, %v4676
    %v4678 = vrot.slane %v3760, 7
    %v4679 = vsel %vm4182, %v4676, %v4678
    %v4680 = vrot.slane %v3761, 7
    %v4681 = vsel %vm4182, %v4678, %v4680
    %v4682 = vrot.slane %v3762, 7
    %v4683 = vsel %vm4182, %v4680, %v4682
    %v4684 = vrot.slane %v3763, 7
    %v4685 = vsel %vm4182, %v4682, %v4684
    %v4686 = vrot.slane %v3764, 7
    %v4687 = vsel %vm4182, %v4684, %v4686
    %v4688 = vrot.slane %v3765, 7
    %v4689 = vsel %vm4182, %v4686, %v4688
    %v4690 = vrot.slane %v3766, 7
    %v4691 = vsel %vm4182, %v4688, %v4690
    %v4692 = vrot.slane %v3767, 7
    %v4693 = vsel %vm4182, %v4690, %v4692
    %v4694 = vrot.slane %v3768, 7
    %v4695 = vsel %vm4182, %v4692, %v4694
    %v4696 = vrot.slane %v3769, 7
    %v4697 = vsel %vm4182, %v4694, %v4696
    %v4698 = vrot.slane %v3770, 7
    %v4699 = vsel %vm4182, %v4696, %v4698
    %v4700 = vrot.slane %v3771, 7
    %v4701 = vsel %vm4182, %v4698, %v4700
    %v4702 = vrot.slane %v3772, 7
    %v4703 = vsel %vm4182, %v4700, %v4702
    %v4704 = vrot.slane %v3773, 7
    %v4705 = vsel %vm4182, %v4702, %v4704
    %v4764 = vmax.f32 %v4474, %v4591
    %v4765 = vmax.f32 %v4475, %v4593
    %v4766 = vmax.f32 %v4476, %v4595
    %v4767 = vmax.f32 %v4477, %v4597
    %v4768 = vmax.f32 %v4478, %v4599
    %v4769 = vmax.f32 %v4479, %v4601
    %v4770 = vmax.f32 %v4480, %v4603
    %v4771 = vmax.f32 %v4481, %v4605
    %v4772 = vmax.f32 %v4482, %v4607
    %v4773 = vmax.f32 %v4483, %v4609
    %v4774 = vmax.f32 %v4484, %v4611
    %v4775 = vmax.f32 %v4485, %v4613
    %v4776 = vmax.f32 %v4486, %v4615
    %v4777 = vmax.f32 %v4487, %v4617
    %v4778 = vmax.f32 %v4488, %v4619
    %v4779 = vmax.f32 %v4489, %v4621
    %v4780 = vmax.f32 %v4490, %v4623
    %v4781 = vmax.f32 %v4491, %v4625
    %v4782 = vmax.f32 %v4492, %v4627
    %v4783 = vmax.f32 %v4493, %v4629
    %v4784 = vmax.f32 %v4494, %v4631
    %v4785 = vmax.f32 %v4495, %v4633
    %v4786 = vmax.f32 %v4496, %v4635
    %v4787 = vmax.f32 %v4497, %v4637
    %v4788 = vmax.f32 %v4498, %v4639
    %v4789 = vmax.f32 %v4499, %v4641
    %v4790 = vmax.f32 %v4500, %v4643
    %v4791 = vmax.f32 %v4501, %v4645
    %v4792 = vmax.f32 %v4502, %v4647
    %v4793 = vmax.f32 %v4503, %v4649
    %v4794 = vmax.f32 %v4504, %v4651
    %v4795 = vmax.f32 %v4505, %v4653
    %v4796 = vmax.f32 %v4506, %v4655
    %v4797 = vmax.f32 %v4507, %v4657
    %v4798 = vmax.f32 %v4508, %v4659
    %v4799 = vmax.f32 %v4509, %v4661
    %v4800 = vmax.f32 %v4510, %v4663
    %v4801 = vmax.f32 %v4511, %v4665
    %v4802 = vmax.f32 %v4512, %v4667
    %v4803 = vmax.f32 %v4513, %v4669
    %v4804 = vmax.f32 %v4514, %v4671
    %v4805 = vmax.f32 %v4515, %v4673
    %v4806 = vmax.f32 %v4516, %v4675
    %v4807 = vmax.f32 %v4517, %v4677
    %v4808 = vmax.f32 %v4518, %v4679
    %v4809 = vmax.f32 %v4519, %v4681
    %v4810 = vmax.f32 %v4520, %v4683
    %v4811 = vmax.f32 %v4521, %v4685
    %v4812 = vmax.f32 %v4522, %v4687
    %v4813 = vmax.f32 %v4523, %v4689
    %v4814 = vmax.f32 %v4524, %v4691
    %v4815 = vmax.f32 %v4525, %v4693
    %v4816 = vmax.f32 %v4526, %v4695
    %v4817 = vmax.f32 %v4527, %v4697
    %v4818 = vmax.f32 %v4528, %v4699
    %v4819 = vmax.f32 %v4529, %v4701
    %v4820 = vmax.f32 %v4530, %v4703
    %v4821 = vmax.f32 %v4531, %v4705
    %v4822 = vmax.f32 %v4764, %v3772
    %v4823 = vmax.f32 %v4765, %v3773
    %v4824 = vmax.f32 %v4766, %v3774
    %v4825 = vmax.f32 %v4767, %v3775
    %v4826 = vmax.f32 %v4768, %v3776
    %v4827 = vmax.f32 %v4769, %v3777
    %v4828 = vmax.f32 %v4770, %v3778
    %v4829 = vmax.f32 %v4771, %v3779
    %v4830 = vmax.f32 %v4772, %v3780
    %v4831 = vmax.f32 %v4773, %v3781
    %v4832 = vmax.f32 %v4774, %v3782
    %v4833 = vmax.f32 %v4775, %v3783
    %v4834 = vmax.f32 %v4776, %v3784
    %v4835 = vmax.f32 %v4777, %v3785
    %v4836 = vmax.f32 %v4778, %v3786
    %v4837 = vmax.f32 %v4779, %v3787
    %v4838 = vmax.f32 %v4780, %v3788
    %v4839 = vmax.f32 %v4781, %v3789
    %v4840 = vmax.f32 %v4782, %v3790
    %v4841 = vmax.f32 %v4783, %v3791
    %v4842 = vmax.f32 %v4784, %v3792
    %v4843 = vmax.f32 %v4785, %v3793
    %v4844 = vmax.f32 %v4786, %v3794
    %v4845 = vmax.f32 %v4787, %v3795
    %v4846 = vmax.f32 %v4788, %v3796
    %v4847 = vmax.f32 %v4789, %v3797
    %v4848 = vmax.f32 %v4790, %v3798
    %v4849 = vmax.f32 %v4791, %v3799
    %v4850 = vmax.f32 %v4792, %v3800
    %v4851 = vmax.f32 %v4793, %v3801
    %v4852 = vmax.f32 %v4794, %v3802
    %v4853 = vmax.f32 %v4795, %v3803
    %v4854 = vmax.f32 %v4796, %v3804
    %v4855 = vmax.f32 %v4797, %v3805
    %v4856 = vmax.f32 %v4798, %v3806
    %v4857 = vmax.f32 %v4799, %v3807
    %v4858 = vmax.f32 %v4800, %v3808
    %v4859 = vmax.f32 %v4801, %v3809
    %v4860 = vmax.f32 %v4802, %v3810
    %v4861 = vmax.f32 %v4803, %v3811
    %v4862 = vmax.f32 %v4804, %v3812
    %v4863 = vmax.f32 %v4805, %v3813
    %v4864 = vmax.f32 %v4806, %v3814
    %v4865 = vmax.f32 %v4807, %v3815
    %v4866 = vmax.f32 %v4808, %v3816
    %v4867 = vmax.f32 %v4809, %v3817
    %v4868 = vmax.f32 %v4810, %v3818
    %v4869 = vmax.f32 %v4811, %v3819
    %v4870 = vmax.f32 %v4812, %v3820
    %v4871 = vmax.f32 %v4813, %v3821
    %v4872 = vmax.f32 %v4814, %v3822
    %v4873 = vmax.f32 %v4815, %v3823
    %v4874 = vmax.f32 %v4816, %v3824
    %v4875 = vmax.f32 %v4817, %v3825
    %v4876 = vmax.f32 %v4818, %v3826
    %v4877 = vmax.f32 %v4819, %v3827
    %v4878 = vmax.f32 %v4820, %v3828
    %v4879 = vmax.f32 %v4821, %v3829
    %v4937 = vrot.slane %v3772, 1
    %v4938 = vrot.slane %v3773, 1
    %v4939 = vsel %vm3947, %v4937, %v4938
    %v4940 = vrot.slane %v3774, 1
    %v4941 = vsel %vm3947, %v4938, %v4940
    %v4942 = vrot.slane %v3775, 1
    %v4943 = vsel %vm3947, %v4940, %v4942
    %v4944 = vrot.slane %v3776, 1
    %v4945 = vsel %vm3947, %v4942, %v4944
    %v4946 = vrot.slane %v3777, 1
    %v4947 = vsel %vm3947, %v4944, %v4946
    %v4948 = vrot.slane %v3778, 1
    %v4949 = vsel %vm3947, %v4946, %v4948
    %v4950 = vrot.slane %v3779, 1
    %v4951 = vsel %vm3947, %v4948, %v4950
    %v4952 = vrot.slane %v3780, 1
    %v4953 = vsel %vm3947, %v4950, %v4952
    %v4954 = vrot.slane %v3781, 1
    %v4955 = vsel %vm3947, %v4952, %v4954
    %v4956 = vrot.slane %v3782, 1
    %v4957 = vsel %vm3947, %v4954, %v4956
    %v4958 = vrot.slane %v3783, 1
    %v4959 = vsel %vm3947, %v4956, %v4958
    %v4960 = vrot.slane %v3784, 1
    %v4961 = vsel %vm3947, %v4958, %v4960
    %v4962 = vrot.slane %v3785, 1
    %v4963 = vsel %vm3947, %v4960, %v4962
    %v4964 = vrot.slane %v3786, 1
    %v4965 = vsel %vm3947, %v4962, %v4964
    %v4966 = vrot.slane %v3787, 1
    %v4967 = vsel %vm3947, %v4964, %v4966
    %v4968 = vrot.slane %v3788, 1
    %v4969 = vsel %vm3947, %v4966, %v4968
    %v4970 = vrot.slane %v3789, 1
    %v4971 = vsel %vm3947, %v4968, %v4970
    %v4972 = vrot.slane %v3790, 1
    %v4973 = vsel %vm3947, %v4970, %v4972
    %v4974 = vrot.slane %v3791, 1
    %v4975 = vsel %vm3947, %v4972, %v4974
    %v4976 = vrot.slane %v3792, 1
    %v4977 = vsel %vm3947, %v4974, %v4976
    %v4978 = vrot.slane %v3793, 1
    %v4979 = vsel %vm3947, %v4976, %v4978
    %v4980 = vrot.slane %v3794, 1
    %v4981 = vsel %vm3947, %v4978, %v4980
    %v4982 = vrot.slane %v3795, 1
    %v4983 = vsel %vm3947, %v4980, %v4982
    %v4984 = vrot.slane %v3796, 1
    %v4985 = vsel %vm3947, %v4982, %v4984
    %v4986 = vrot.slane %v3797, 1
    %v4987 = vsel %vm3947, %v4984, %v4986
    %v4988 = vrot.slane %v3798, 1
    %v4989 = vsel %vm3947, %v4986, %v4988
    %v4990 = vrot.slane %v3799, 1
    %v4991 = vsel %vm3947, %v4988, %v4990
    %v4992 = vrot.slane %v3800, 1
    %v4993 = vsel %vm3947, %v4990, %v4992
    %v4994 = vrot.slane %v3801, 1
    %v4995 = vsel %vm3947, %v4992, %v4994
    %v4996 = vrot.slane %v3802, 1
    %v4997 = vsel %vm3947, %v4994, %v4996
    %v4998 = vrot.slane %v3803, 1
    %v4999 = vsel %vm3947, %v4996, %v4998
    %v5000 = vrot.slane %v3804, 1
    %v5001 = vsel %vm3947, %v4998, %v5000
    %v5002 = vrot.slane %v3805, 1
    %v5003 = vsel %vm3947, %v5000, %v5002
    %v5004 = vrot.slane %v3806, 1
    %v5005 = vsel %vm3947, %v5002, %v5004
    %v5006 = vrot.slane %v3807, 1
    %v5007 = vsel %vm3947, %v5004, %v5006
    %v5008 = vrot.slane %v3808, 1
    %v5009 = vsel %vm3947, %v5006, %v5008
    %v5010 = vrot.slane %v3809, 1
    %v5011 = vsel %vm3947, %v5008, %v5010
    %v5012 = vrot.slane %v3810, 1
    %v5013 = vsel %vm3947, %v5010, %v5012
    %v5014 = vrot.slane %v3811, 1
    %v5015 = vsel %vm3947, %v5012, %v5014
    %v5016 = vrot.slane %v3812, 1
    %v5017 = vsel %vm3947, %v5014, %v5016
    %v5018 = vrot.slane %v3813, 1
    %v5019 = vsel %vm3947, %v5016, %v5018
    %v5020 = vrot.slane %v3814, 1
    %v5021 = vsel %vm3947, %v5018, %v5020
    %v5022 = vrot.slane %v3815, 1
    %v5023 = vsel %vm3947, %v5020, %v5022
    %v5024 = vrot.slane %v3816, 1
    %v5025 = vsel %vm3947, %v5022, %v5024
    %v5026 = vrot.slane %v3817, 1
    %v5027 = vsel %vm3947, %v5024, %v5026
    %v5028 = vrot.slane %v3818, 1
    %v5029 = vsel %vm3947, %v5026, %v5028
    %v5030 = vrot.slane %v3819, 1
    %v5031 = vsel %vm3947, %v5028, %v5030
    %v5032 = vrot.slane %v3820, 1
    %v5033 = vsel %vm3947, %v5030, %v5032
    %v5034 = vrot.slane %v3821, 1
    %v5035 = vsel %vm3947, %v5032, %v5034
    %v5036 = vrot.slane %v3822, 1
    %v5037 = vsel %vm3947, %v5034, %v5036
    %v5038 = vrot.slane %v3823, 1
    %v5039 = vsel %vm3947, %v5036, %v5038
    %v5040 = vrot.slane %v3824, 1
    %v5041 = vsel %vm3947, %v5038, %v5040
    %v5042 = vrot.slane %v3825, 1
    %v5043 = vsel %vm3947, %v5040, %v5042
    %v5044 = vrot.slane %v3826, 1
    %v5045 = vsel %vm3947, %v5042, %v5044
    %v5046 = vrot.slane %v3827, 1
    %v5047 = vsel %vm3947, %v5044, %v5046
    %v5048 = vrot.slane %v3828, 1
    %v5049 = vsel %vm3947, %v5046, %v5048
    %v5050 = vrot.slane %v3829, 1
    %v5051 = vsel %vm3947, %v5048, %v5050
    %v5052 = vrot.slane %v3830, 1
    %v5053 = vsel %vm3947, %v5050, %v5052
    %v5112 = vmax.f32 %v4822, %v4939
    %v5113 = vmax.f32 %v4823, %v4941
    %v5114 = vmax.f32 %v4824, %v4943
    %v5115 = vmax.f32 %v4825, %v4945
    %v5116 = vmax.f32 %v4826, %v4947
    %v5117 = vmax.f32 %v4827, %v4949
    %v5118 = vmax.f32 %v4828, %v4951
    %v5119 = vmax.f32 %v4829, %v4953
    %v5120 = vmax.f32 %v4830, %v4955
    %v5121 = vmax.f32 %v4831, %v4957
    %v5122 = vmax.f32 %v4832, %v4959
    %v5123 = vmax.f32 %v4833, %v4961
    %v5124 = vmax.f32 %v4834, %v4963
    %v5125 = vmax.f32 %v4835, %v4965
    %v5126 = vmax.f32 %v4836, %v4967
    %v5127 = vmax.f32 %v4837, %v4969
    %v5128 = vmax.f32 %v4838, %v4971
    %v5129 = vmax.f32 %v4839, %v4973
    %v5130 = vmax.f32 %v4840, %v4975
    %v5131 = vmax.f32 %v4841, %v4977
    %v5132 = vmax.f32 %v4842, %v4979
    %v5133 = vmax.f32 %v4843, %v4981
    %v5134 = vmax.f32 %v4844, %v4983
    %v5135 = vmax.f32 %v4845, %v4985
    %v5136 = vmax.f32 %v4846, %v4987
    %v5137 = vmax.f32 %v4847, %v4989
    %v5138 = vmax.f32 %v4848, %v4991
    %v5139 = vmax.f32 %v4849, %v4993
    %v5140 = vmax.f32 %v4850, %v4995
    %v5141 = vmax.f32 %v4851, %v4997
    %v5142 = vmax.f32 %v4852, %v4999
    %v5143 = vmax.f32 %v4853, %v5001
    %v5144 = vmax.f32 %v4854, %v5003
    %v5145 = vmax.f32 %v4855, %v5005
    %v5146 = vmax.f32 %v4856, %v5007
    %v5147 = vmax.f32 %v4857, %v5009
    %v5148 = vmax.f32 %v4858, %v5011
    %v5149 = vmax.f32 %v4859, %v5013
    %v5150 = vmax.f32 %v4860, %v5015
    %v5151 = vmax.f32 %v4861, %v5017
    %v5152 = vmax.f32 %v4862, %v5019
    %v5153 = vmax.f32 %v4863, %v5021
    %v5154 = vmax.f32 %v4864, %v5023
    %v5155 = vmax.f32 %v4865, %v5025
    %v5156 = vmax.f32 %v4866, %v5027
    %v5157 = vmax.f32 %v4867, %v5029
    %v5158 = vmax.f32 %v4868, %v5031
    %v5159 = vmax.f32 %v4869, %v5033
    %v5160 = vmax.f32 %v4870, %v5035
    %v5161 = vmax.f32 %v4871, %v5037
    %v5162 = vmax.f32 %v4872, %v5039
    %v5163 = vmax.f32 %v4873, %v5041
    %v5164 = vmax.f32 %v4874, %v5043
    %v5165 = vmax.f32 %v4875, %v5045
    %v5166 = vmax.f32 %v4876, %v5047
    %v5167 = vmax.f32 %v4877, %v5049
    %v5168 = vmax.f32 %v4878, %v5051
    %v5169 = vmax.f32 %v4879, %v5053
    %v5170 = vmax.f32 %v5112, %v3830
    %v5171 = vmax.f32 %v5113, %v3831
    %v5172 = vmax.f32 %v5114, %v3832
    %v5173 = vmax.f32 %v5115, %v3833
    %v5174 = vmax.f32 %v5116, %v3834
    %v5175 = vmax.f32 %v5117, %v3835
    %v5176 = vmax.f32 %v5118, %v3836
    %v5177 = vmax.f32 %v5119, %v3837
    %v5178 = vmax.f32 %v5120, %v3838
    %v5179 = vmax.f32 %v5121, %v3839
    %v5180 = vmax.f32 %v5122, %v3840
    %v5181 = vmax.f32 %v5123, %v3841
    %v5182 = vmax.f32 %v5124, %v3842
    %v5183 = vmax.f32 %v5125, %v3843
    %v5184 = vmax.f32 %v5126, %v3844
    %v5185 = vmax.f32 %v5127, %v3845
    %v5186 = vmax.f32 %v5128, %v3846
    %v5187 = vmax.f32 %v5129, %v3847
    %v5188 = vmax.f32 %v5130, %v3848
    %v5189 = vmax.f32 %v5131, %v3849
    %v5190 = vmax.f32 %v5132, %v3850
    %v5191 = vmax.f32 %v5133, %v3851
    %v5192 = vmax.f32 %v5134, %v3852
    %v5193 = vmax.f32 %v5135, %v3853
    %v5194 = vmax.f32 %v5136, %v3854
    %v5195 = vmax.f32 %v5137, %v3855
    %v5196 = vmax.f32 %v5138, %v3856
    %v5197 = vmax.f32 %v5139, %v3857
    %v5198 = vmax.f32 %v5140, %v3858
    %v5199 = vmax.f32 %v5141, %v3859
    %v5200 = vmax.f32 %v5142, %v3860
    %v5201 = vmax.f32 %v5143, %v3861
    %v5202 = vmax.f32 %v5144, %v3862
    %v5203 = vmax.f32 %v5145, %v3863
    %v5204 = vmax.f32 %v5146, %v3864
    %v5205 = vmax.f32 %v5147, %v3865
    %v5206 = vmax.f32 %v5148, %v3866
    %v5207 = vmax.f32 %v5149, %v3867
    %v5208 = vmax.f32 %v5150, %v3868
    %v5209 = vmax.f32 %v5151, %v3869
    %v5210 = vmax.f32 %v5152, %v3870
    %v5211 = vmax.f32 %v5153, %v3871
    %v5212 = vmax.f32 %v5154, %v3872
    %v5213 = vmax.f32 %v5155, %v3873
    %v5214 = vmax.f32 %v5156, %v3874
    %v5215 = vmax.f32 %v5157, %v3875
    %v5216 = vmax.f32 %v5158, %v3876
    %v5217 = vmax.f32 %v5159, %v3877
    %v5218 = vmax.f32 %v5160, %v3878
    %v5219 = vmax.f32 %v5161, %v3879
    %v5220 = vmax.f32 %v5162, %v3880
    %v5221 = vmax.f32 %v5163, %v3881
    %v5222 = vmax.f32 %v5164, %v3882
    %v5223 = vmax.f32 %v5165, %v3883
    %v5224 = vmax.f32 %v5166, %v3884
    %v5225 = vmax.f32 %v5167, %v3885
    %v5226 = vmax.f32 %v5168, %v3886
    %v5227 = vmax.f32 %v5169, %v3887
    %v5228 = vpack.c.bf16 %v5171, %v5170
    %v5229 = vpack.c.bf16 %v5173, %v5172
    %v5230 = vpack.c.bf16 %v5175, %v5174
    %v5231 = vpack.c.bf16 %v5177, %v5176
    %v5232 = vpack.c.bf16 %v5179, %v5178
    %v5233 = vpack.c.bf16 %v5181, %v5180
    %v5234 = vpack.c.bf16 %v5183, %v5182
    %v5235 = vpack.c.bf16 %v5185, %v5184
    %v5236 = vpack.c.bf16 %v5187, %v5186
    %v5237 = vpack.c.bf16 %v5189, %v5188
    %v5238 = vpack.c.bf16 %v5191, %v5190
    %v5239 = vpack.c.bf16 %v5193, %v5192
    %v5240 = vpack.c.bf16 %v5195, %v5194
    %v5241 = vpack.c.bf16 %v5197, %v5196
    %v5242 = vpack.c.bf16 %v5199, %v5198
    %v5243 = vpack.c.bf16 %v5201, %v5200
    %v5244 = vpack.c.bf16 %v5203, %v5202
    %v5245 = vpack.c.bf16 %v5205, %v5204
    %v5246 = vpack.c.bf16 %v5207, %v5206
    %v5247 = vpack.c.bf16 %v5209, %v5208
    %v5248 = vpack.c.bf16 %v5211, %v5210
    %v5249 = vpack.c.bf16 %v5213, %v5212
    %v5250 = vpack.c.bf16 %v5215, %v5214
    %v5251 = vpack.c.bf16 %v5217, %v5216
    %v5252 = vpack.c.bf16 %v5219, %v5218
    %v5253 = vpack.c.bf16 %v5221, %v5220
    %v5254 = vpack.c.bf16 %v5223, %v5222
    %v5255 = vpack.c.bf16 %v5225, %v5224
    %v5256 = vpack.c.bf16 %v5227, %v5226
    %v5286 = vunpack.c.l.b16 %v5228
    %v5287 = vunpack.c.h.b16 %v5228
    %v5288 = vunpack.c.l.b16 %v5229
    %v5289 = vunpack.c.h.b16 %v5229
    %v5290 = vunpack.c.l.b16 %v5230
    %v5291 = vunpack.c.h.b16 %v5230
    %v5292 = vunpack.c.l.b16 %v5231
    %v5293 = vunpack.c.h.b16 %v5231
    %v5294 = vunpack.c.l.b16 %v5232
    %v5295 = vunpack.c.h.b16 %v5232
    %v5296 = vunpack.c.l.b16 %v5233
    %v5297 = vunpack.c.h.b16 %v5233
    %v5298 = vunpack.c.l.b16 %v5234
    %v5299 = vunpack.c.h.b16 %v5234
    %v5300 = vunpack.c.l.b16 %v5235
    %v5301 = vunpack.c.h.b16 %v5235
    %v5302 = vunpack.c.l.b16 %v5236
    %v5303 = vunpack.c.h.b16 %v5236
    %v5304 = vunpack.c.l.b16 %v5237
    %v5305 = vunpack.c.h.b16 %v5237
    %v5306 = vunpack.c.l.b16 %v5238
    %v5307 = vunpack.c.h.b16 %v5238
    %v5308 = vunpack.c.l.b16 %v5239
    %v5309 = vunpack.c.h.b16 %v5239
    %v5310 = vunpack.c.l.b16 %v5240
    %v5311 = vunpack.c.h.b16 %v5240
    %v5312 = vunpack.c.l.b16 %v5241
    %v5313 = vunpack.c.h.b16 %v5241
    %v5314 = vunpack.c.l.b16 %v5242
    %v5315 = vunpack.c.h.b16 %v5242
    %v5316 = vunpack.c.l.b16 %v5243
    %v5317 = vunpack.c.h.b16 %v5243
    %v5318 = vunpack.c.l.b16 %v5244
    %v5319 = vunpack.c.h.b16 %v5244
    %v5320 = vunpack.c.l.b16 %v5245
    %v5321 = vunpack.c.h.b16 %v5245
    %v5322 = vunpack.c.l.b16 %v5246
    %v5323 = vunpack.c.h.b16 %v5246
    %v5324 = vunpack.c.l.b16 %v5247
    %v5325 = vunpack.c.h.b16 %v5247
    %v5326 = vunpack.c.l.b16 %v5248
    %v5327 = vunpack.c.h.b16 %v5248
    %v5328 = vunpack.c.l.b16 %v5249
    %v5329 = vunpack.c.h.b16 %v5249
    %v5330 = vunpack.c.l.b16 %v5250
    %v5331 = vunpack.c.h.b16 %v5250
    %v5332 = vunpack.c.l.b16 %v5251
    %v5333 = vunpack.c.h.b16 %v5251
    %v5334 = vunpack.c.l.b16 %v5252
    %v5335 = vunpack.c.h.b16 %v5252
    %v5336 = vunpack.c.l.b16 %v5253
    %v5337 = vunpack.c.h.b16 %v5253
    %v5338 = vunpack.c.l.b16 %v5254
    %v5339 = vunpack.c.h.b16 %v5254
    %v5340 = vunpack.c.l.b16 %v5255
    %v5341 = vunpack.c.h.b16 %v5255
    %v5342 = vunpack.c.l.b16 %v5256
    %v5343 = vunpack.c.h.b16 %v5256
    %v5344 = vpack.c.b16 %v5286, %v5286
    %v5345 = vpack.c.b16 %v5287, %v5287
    %v5346 = vpack.c.b16 %v5288, %v5288
    %v5347 = vpack.c.b16 %v5289, %v5289
    %v5348 = vpack.c.b16 %v5290, %v5290
    %v5349 = vpack.c.b16 %v5291, %v5291
    %v5350 = vpack.c.b16 %v5292, %v5292
    %v5351 = vpack.c.b16 %v5293, %v5293
    %v5352 = vpack.c.b16 %v5294, %v5294
    %v5353 = vpack.c.b16 %v5295, %v5295
    %v5354 = vpack.c.b16 %v5296, %v5296
    %v5355 = vpack.c.b16 %v5297, %v5297
    %v5356 = vpack.c.b16 %v5298, %v5298
    %v5357 = vpack.c.b16 %v5299, %v5299
    %v5358 = vpack.c.b16 %v5300, %v5300
    %v5359 = vpack.c.b16 %v5301, %v5301
    %v5360 = vpack.c.b16 %v5302, %v5302
    %v5361 = vpack.c.b16 %v5303, %v5303
    %v5362 = vpack.c.b16 %v5304, %v5304
    %v5363 = vpack.c.b16 %v5305, %v5305
    %v5364 = vpack.c.b16 %v5306, %v5306
    %v5365 = vpack.c.b16 %v5307, %v5307
    %v5366 = vpack.c.b16 %v5308, %v5308
    %v5367 = vpack.c.b16 %v5309, %v5309
    %v5368 = vpack.c.b16 %v5310, %v5310
    %v5369 = vpack.c.b16 %v5311, %v5311
    %v5370 = vpack.c.b16 %v5312, %v5312
    %v5371 = vpack.c.b16 %v5313, %v5313
    %v5372 = vpack.c.b16 %v5314, %v5314
    %v5373 = vpack.c.b16 %v5315, %v5315
    %v5374 = vpack.c.b16 %v5316, %v5316
    %v5375 = vpack.c.b16 %v5317, %v5317
    %v5376 = vpack.c.b16 %v5318, %v5318
    %v5377 = vpack.c.b16 %v5319, %v5319
    %v5378 = vpack.c.b16 %v5320, %v5320
    %v5379 = vpack.c.b16 %v5321, %v5321
    %v5380 = vpack.c.b16 %v5322, %v5322
    %v5381 = vpack.c.b16 %v5323, %v5323
    %v5382 = vpack.c.b16 %v5324, %v5324
    %v5383 = vpack.c.b16 %v5325, %v5325
    %v5384 = vpack.c.b16 %v5326, %v5326
    %v5385 = vpack.c.b16 %v5327, %v5327
    %v5386 = vpack.c.b16 %v5328, %v5328
    %v5387 = vpack.c.b16 %v5329, %v5329
    %v5388 = vpack.c.b16 %v5330, %v5330
    %v5389 = vpack.c.b16 %v5331, %v5331
    %v5390 = vpack.c.b16 %v5332, %v5332
    %v5391 = vpack.c.b16 %v5333, %v5333
    %v5392 = vpack.c.b16 %v5334, %v5334
    %v5393 = vpack.c.b16 %v5335, %v5335
    %v5394 = vpack.c.b16 %v5336, %v5336
    %v5395 = vpack.c.b16 %v5337, %v5337
    %v5396 = vpack.c.b16 %v5338, %v5338
    %v5397 = vpack.c.b16 %v5339, %v5339
    %v5398 = vpack.c.b16 %v5340, %v5340
    %v5399 = vpack.c.b16 %v5341, %v5341
    %v5400 = vpack.c.b16 %v5342, %v5342
    %v5401 = vpack.c.b16 %v5343, %v5343
    %5460 = vst [vmem:[#allocation10] sm:$0xf] %v5344
    %5461 = vst [vmem:[#allocation10 + $0x4] sm:$0xf] %v5345
    %5462 = vst [vmem:[#allocation10 + $0x8] sm:$0xf] %v5346
    %5463 = vst [vmem:[#allocation10 + $0xc] sm:$0xf] %v5347
    %5464 = vst [vmem:[#allocation10 + $0x10] sm:$0xf] %v5348
    %5465 = vst [vmem:[#allocation10 + $0x14] sm:$0xf] %v5349
    %5466 = vst [vmem:[#allocation10 + $0x18] sm:$0xf] %v5350
    %5467 = vst [vmem:[#allocation10 + $0x1c] sm:$0xf] %v5351
    %5468 = vst [vmem:[#allocation10 + $0x20] sm:$0xf] %v5352
    %5469 = vst [vmem:[#allocation10 + $0x24] sm:$0xf] %v5353
    %5470 = vst [vmem:[#allocation10 + $0x28] sm:$0xf] %v5354
    %5471 = vst [vmem:[#allocation10 + $0x2c] sm:$0xf] %v5355
    %5472 = vst [vmem:[#allocation10 + $0x30] sm:$0xf] %v5356
    %5473 = vst [vmem:[#allocation10 + $0x34] sm:$0xf] %v5357
    %5474 = vst [vmem:[#allocation10 + $0x38] sm:$0xf] %v5358
    %5475 = vst [vmem:[#allocation10 + $0x3c] sm:$0xf] %v5359
    %5476 = vst [vmem:[#allocation10 + $0x40] sm:$0xf] %v5360
    %5477 = vst [vmem:[#allocation10 + $0x44] sm:$0xf] %v5361
    %5478 = vst [vmem:[#allocation10 + $0x48] sm:$0xf] %v5362
    %5479 = vst [vmem:[#allocation10 + $0x4c] sm:$0xf] %v5363
    %5480 = vst [vmem:[#allocation10 + $0x50] sm:$0xf] %v5364
    %5481 = vst [vmem:[#allocation10 + $0x54] sm:$0xf] %v5365
    %5482 = vst [vmem:[#allocation10 + $0x58] sm:$0xf] %v5366
    %5483 = vst [vmem:[#allocation10 + $0x5c] sm:$0xf] %v5367
    %5484 = vst [vmem:[#allocation10 + $0x60] sm:$0xf] %v5368
    %5485 = vst [vmem:[#allocation10 + $0x64] sm:$0xf] %v5369
    %5486 = vst [vmem:[#allocation10 + $0x68] sm:$0xf] %v5370
    %5487 = vst [vmem:[#allocation10 + $0x6c] sm:$0xf] %v5371
    %5488 = vst [vmem:[#allocation10 + $0x70] sm:$0xf] %v5372
    %5489 = vst [vmem:[#allocation10 + $0x74] sm:$0xf] %v5373
    %5490 = vst [vmem:[#allocation10 + $0x78] sm:$0xf] %v5374
    %5491 = vst [vmem:[#allocation10 + $0x7c] sm:$0xf] %v5375
    %5492 = vst [vmem:[#allocation10 + $0x80] sm:$0xf] %v5376
    %5493 = vst [vmem:[#allocation10 + $0x84] sm:$0xf] %v5377
    %5494 = vst [vmem:[#allocation10 + $0x88] sm:$0xf] %v5378
    %5495 = vst [vmem:[#allocation10 + $0x8c] sm:$0xf] %v5379
    %5496 = vst [vmem:[#allocation10 + $0x90] sm:$0xf] %v5380
    %5497 = vst [vmem:[#allocation10 + $0x94] sm:$0xf] %v5381
    %5498 = vst [vmem:[#allocation10 + $0x98] sm:$0xf] %v5382
    %5499 = vst [vmem:[#allocation10 + $0x9c] sm:$0xf] %v5383
    %5500 = vst [vmem:[#allocation10 + $0xa0] sm:$0xf] %v5384
    %5501 = vst [vmem:[#allocation10 + $0xa4] sm:$0xf] %v5385
    %5502 = vst [vmem:[#allocation10 + $0xa8] sm:$0xf] %v5386
    %5503 = vst [vmem:[#allocation10 + $0xac] sm:$0xf] %v5387
    %5504 = vst [vmem:[#allocation10 + $0xb0] sm:$0xf] %v5388
    %5505 = vst [vmem:[#allocation10 + $0xb4] sm:$0xf] %v5389
    %5506 = vst [vmem:[#allocation10 + $0xb8] sm:$0xf] %v5390
    %5507 = vst [vmem:[#allocation10 + $0xbc] sm:$0xf] %v5391
    %5508 = vst [vmem:[#allocation10 + $0xc0] sm:$0xf] %v5392
    %5509 = vst [vmem:[#allocation10 + $0xc4] sm:$0xf] %v5393
    %5510 = vst [vmem:[#allocation10 + $0xc8] sm:$0xf] %v5394
    %5511 = vst [vmem:[#allocation10 + $0xcc] sm:$0xf] %v5395
    %5512 = vst [vmem:[#allocation10 + $0xd0] sm:$0xf] %v5396
    %5513 = vst [vmem:[#allocation10 + $0xd4] sm:$0xf] %v5397
    %5514 = vst [vmem:[#allocation10 + $0xd8] sm:$0xf] %v5398
    %5515 = vst [vmem:[#allocation10 + $0xdc] sm:$0xf] %v5399
    %5516 = vst [vmem:[#allocation10 + $0xe0] sm:$0xf] %v5400
    %5517 = vst [vmem:[#allocation10 + $0xe4] sm:$0xf] %v5401
    // Predicated region
    $region34: #{alexnet_forward.6} parent=1 // pred_check
      _
    $region35: #{alexnet_forward.6} parent=1 // pred_check_branch
      %5519 = sbr.rel (0) target = $region37
    $region36: #{alexnet_forward.6} parent=1 // pred_region
      %s5521 = ssub.s32 3712, 3712
      %5522 = vsyncadd [#allocation4], %s5521
      %s5523 = sshll.u32 [#allocation10], 4
      %s5524 = int_to_ptr.vmem [resolvable:$true] %s5523
      %5529 = dma.vmem_to_hbm [thread:$0]  %s5524, 3712, %s4, [#allocation4], 64, 64, 4
    $region37: #{alexnet_forward.6} parent=1 // pred_fallthru
      _
    // Predicated region
    $region38: #{alexnet_forward.6} parent=1 // pred_check
      _
    $region39: #{alexnet_forward.6} parent=1 // pred_check_branch
      %5531 = sbr.rel (0) target = $region41
    $region40: #{alexnet_forward.6} parent=1 // pred_region
      %5532 = dma.done [#allocation4], 3712
    $region41: #{alexnet_forward.6} parent=1 // pred_fallthru
      _
    %5533 = vsyncpa [#allocation3], 1
    %5534 = vsyncpa [#allocation6], 1
    %5535 = vsyncpa [#allocation9], 1
    %5536 = vsyncpa [#allocation4], 1

// kernel: alexnet_forward.7
$region0: #{alexnet_forward.7}
  #allocation0 [shape = 'u32[]', space=smem, size = 0x4, offset = 0x4, fixed_abs, tag = 'smem constant byte address 0x4 - core index']
  #allocation1 [shape = 'u32[144,128]{1,0:T(1,128)}', space=vmem, size = 0x12000, scoped, tag = 'internal scratch']
  %s0 = inlined_call_operand.hbm [shape: bf16[128,768], index: 0, kind: input, shape index: {}]
  %s1 = inlined_call_operand.hbm [shape: f32[128,1], index: 1, kind: input, shape index: {}]
  %s2 = inlined_call_operand.hbm [shape: bf16[768,128], index: 2, kind: input, shape index: {}]
  %s3 = inlined_call_operand.hbm [shape: f32[1,128], index: 3, kind: input, shape index: {}]
  %s4 = inlined_call_operand.hbm [shape: bf16[32,128], index: 4, kind: output, shape index: {}]
  %s5 = sld [smem:[#allocation0]]
  $region42: #{alexnet_forward.7} parent=0
    _
  %s7 = ssub.s32 1, %s5
  %s8 = scalar_select 0, %s7, %s5
  $region1: #{alexnet_forward.7} parent=0
    #allocation2 [shape = 'u8[196608]{0}', space=vmem, size = 0x30000, scoped, tag = 'input window, operand 0, single buffered']
    #allocation3 [shape = 's32[1]{0}', space=sflag, size = 0x4, scoped, tag = 'scoped memory for alexnet_forward.7']
    #allocation4 [shape = 's32[1]{0}', space=sflag, size = 0x4, scoped, tag = 'scoped memory for alexnet_forward.7']
    #allocation5 [shape = 'u8[65536]{0}', space=vmem, size = 0x10000, scoped, tag = 'input window, operand 1, single buffered']
    #allocation6 [shape = 's32[1]{0}', space=sflag, size = 0x4, scoped, tag = 'scoped memory for alexnet_forward.7']
    #allocation7 [shape = 'u8[196608]{0}', space=vmem, size = 0x30000, scoped, tag = 'input window, operand 2, single buffered']
    #allocation8 [shape = 'u8[512]{0}', space=vmem, size = 0x400, scoped, tag = 'input window, operand 3, single buffered']
    #allocation9 [shape = 's32[1]{0}', space=sflag, size = 0x4, scoped, tag = 'scoped memory for alexnet_forward.7']
    #allocation10 [shape = 'u8[8192]{0}', space=vmem, size = 0x2000, scoped, tag = 'output window, operand 0, single buffered']
    %9 = vsyncpa [#allocation3], 0
    %10 = vsyncpa [#allocation6], 0
    %11 = vsyncpa [#allocation9], 0
    %12 = vsyncpa [#allocation4], 0
    // Predicated region
    $region2: #{alexnet_forward.7} parent=1 // pred_check
      _
    $region3: #{alexnet_forward.7} parent=1 // pred_check_branch
      %14 = sbr.rel (0) target = $region5
    $region4: #{alexnet_forward.7} parent=1 // pred_region
      %s16 = ssub.s32 6144, 6144
      %17 = vsyncadd [#allocation3], %s16
      %s18 = sshll.u32 [#allocation2], 4
      %s19 = int_to_ptr.vmem [resolvable:$true] %s18
      %24 = dma.hbm_to_vmem [thread:$0]  %s0, 6144, %s19, [#allocation3], 384, 384, 24
    $region5: #{alexnet_forward.7} parent=1 // pred_fallthru
      _
    // Predicated region
    $region6: #{alexnet_forward.7} parent=1 // pred_check
      _
    $region7: #{alexnet_forward.7} parent=1 // pred_check_branch
      %26 = sbr.rel (0) target = $region9
    $region8: #{alexnet_forward.7} parent=1 // pred_region
      %s28 = ssub.s32 2048, 2048
      %29 = vsyncadd [#allocation6], %s28
      %s30 = sshll.u32 [#allocation5], 4
      %s31 = int_to_ptr.vmem [resolvable:$true] %s30
      %36 = dma.hbm_to_vmem [thread:$0]  %s1, 2048, %s31, [#allocation6], 128, 128, 8
    $region9: #{alexnet_forward.7} parent=1 // pred_fallthru
      _
    // Predicated region
    $region10: #{alexnet_forward.7} parent=1 // pred_check
      _
    $region11: #{alexnet_forward.7} parent=1 // pred_check_branch
      %38 = sbr.rel (0) target = $region13
    $region12: #{alexnet_forward.7} parent=1 // pred_region
      %s40 = ssub.s32 6144, 6144
      %41 = vsyncadd [#allocation6], %s40
      %s42 = sshll.u32 [#allocation7], 4
      %s43 = int_to_ptr.vmem [resolvable:$true] %s42
      %48 = dma.hbm_to_vmem [thread:$0]  %s2, 6144, %s43, [#allocation6], 64, 64, 4
    $region13: #{alexnet_forward.7} parent=1 // pred_fallthru
      _
    // Predicated region
    $region14: #{alexnet_forward.7} parent=1 // pred_check
      _
    $region15: #{alexnet_forward.7} parent=1 // pred_check_branch
      %50 = sbr.rel (0) target = $region17
    $region16: #{alexnet_forward.7} parent=1 // pred_region
      %s52 = ssub.s32 16, 16
      %53 = vsyncadd [#allocation9], %s52
      %s55 = sshll.u32 [#allocation8], 4
      %s56 = int_to_ptr.vmem [resolvable:$true] %s55
      %58 = dma.hbm_to_vmem [thread:$0]  %s3, 16, %s56, [#allocation9]
    $region17: #{alexnet_forward.7} parent=1 // pred_fallthru
      _
    // Predicated region
    $region18: #{alexnet_forward.7} parent=1 // pred_check
      _
    $region19: #{alexnet_forward.7} parent=1 // pred_check_branch
      %60 = sbr.rel (0) target = $region21
    $region20: #{alexnet_forward.7} parent=1 // pred_region
      %61 = dma.done [#allocation3], 6144
    $region21: #{alexnet_forward.7} parent=1 // pred_fallthru
      _
    // Predicated region
    $region22: #{alexnet_forward.7} parent=1 // pred_check
      _
    $region23: #{alexnet_forward.7} parent=1 // pred_check_branch
      %63 = sbr.rel (0) target = $region25
    $region24: #{alexnet_forward.7} parent=1 // pred_region
      %64 = dma.done [#allocation6], 2048
    $region25: #{alexnet_forward.7} parent=1 // pred_fallthru
      _
    // Predicated region
    $region26: #{alexnet_forward.7} parent=1 // pred_check
      _
    $region27: #{alexnet_forward.7} parent=1 // pred_check_branch
      %66 = sbr.rel (0) target = $region29
    $region28: #{alexnet_forward.7} parent=1 // pred_region
      %67 = dma.done [#allocation6], 6144
    $region29: #{alexnet_forward.7} parent=1 // pred_fallthru
      _
    // Predicated region
    $region30: #{alexnet_forward.7} parent=1 // pred_check
      _
    $region31: #{alexnet_forward.7} parent=1 // pred_check_branch
      %69 = sbr.rel (0) target = $region33
    $region32: #{alexnet_forward.7} parent=1 // pred_region
      %70 = dma.done [#allocation9], 16
    $region33: #{alexnet_forward.7} parent=1 // pred_fallthru
      _
    %v72 = vld [vmem:[#allocation2] sm:$0xff]
    %v73 = vld [vmem:[#allocation2 + $0x8] sm:$0xff]
    %v74 = vld [vmem:[#allocation2 + $0x10] sm:$0xff]
    %v75 = vld [vmem:[#allocation2 + $0x18] sm:$0xff]
    %v76 = vld [vmem:[#allocation2 + $0x20] sm:$0xff]
    %v77 = vld [vmem:[#allocation2 + $0x28] sm:$0xff]
    %v78 = vld [vmem:[#allocation2 + $0x30] sm:$0xff]
    %v79 = vld [vmem:[#allocation2 + $0x38] sm:$0xff]
    %v80 = vld [vmem:[#allocation2 + $0x40] sm:$0xff]
    %v81 = vld [vmem:[#allocation2 + $0x48] sm:$0xff]
    %v82 = vld [vmem:[#allocation2 + $0x50] sm:$0xff]
    %v83 = vld [vmem:[#allocation2 + $0x58] sm:$0xff]
    %v84 = vld [vmem:[#allocation2 + $0x60] sm:$0xff]
    %v85 = vld [vmem:[#allocation2 + $0x68] sm:$0xff]
    %v86 = vld [vmem:[#allocation2 + $0x70] sm:$0xff]
    %v87 = vld [vmem:[#allocation2 + $0x78] sm:$0xff]
    %v88 = vld [vmem:[#allocation2 + $0x80] sm:$0xff]
    %v89 = vld [vmem:[#allocation2 + $0x88] sm:$0xff]
    %v90 = vld [vmem:[#allocation2 + $0x90] sm:$0xff]
    %v91 = vld [vmem:[#allocation2 + $0x98] sm:$0xff]
    %v92 = vld [vmem:[#allocation2 + $0xa0] sm:$0xff]
    %v93 = vld [vmem:[#allocation2 + $0xa8] sm:$0xff]
    %v94 = vld [vmem:[#allocation2 + $0xb0] sm:$0xff]
    %v95 = vld [vmem:[#allocation2 + $0xb8] sm:$0xff]
    %v96 = vld [vmem:[#allocation2 + $0xc0] sm:$0xff]
    %v97 = vld [vmem:[#allocation2 + $0xc8] sm:$0xff]
    %v98 = vld [vmem:[#allocation2 + $0xd0] sm:$0xff]
    %v99 = vld [vmem:[#allocation2 + $0xd8] sm:$0xff]
    %v100 = vld [vmem:[#allocation2 + $0xe0] sm:$0xff]
    %v101 = vld [vmem:[#allocation2 + $0xe8] sm:$0xff]
    %v102 = vld [vmem:[#allocation2 + $0xf0] sm:$0xff]
    %v103 = vld [vmem:[#allocation2 + $0xf8] sm:$0xff]
    %v104 = vld [vmem:[#allocation2 + $0x100] sm:$0xff]
    %v105 = vld [vmem:[#allocation2 + $0x108] sm:$0xff]
    %v106 = vld [vmem:[#allocation2 + $0x110] sm:$0xff]
    %v107 = vld [vmem:[#allocation2 + $0x118] sm:$0xff]
    %v108 = vld [vmem:[#allocation2 + $0x120] sm:$0xff]
    %v109 = vld [vmem:[#allocation2 + $0x128] sm:$0xff]
    %v110 = vld [vmem:[#allocation2 + $0x130] sm:$0xff]
    %v111 = vld [vmem:[#allocation2 + $0x138] sm:$0xff]
    %v112 = vld [vmem:[#allocation2 + $0x140] sm:$0xff]
    %v113 = vld [vmem:[#allocation2 + $0x148] sm:$0xff]
    %v114 = vld [vmem:[#allocation2 + $0x150] sm:$0xff]
    %v115 = vld [vmem:[#allocation2 + $0x158] sm:$0xff]
    %v116 = vld [vmem:[#allocation2 + $0x160] sm:$0xff]
    %v117 = vld [vmem:[#allocation2 + $0x168] sm:$0xff]
    %v118 = vld [vmem:[#allocation2 + $0x170] sm:$0xff]
    %v119 = vld [vmem:[#allocation2 + $0x178] sm:$0xff]
    %v120 = vld [vmem:[#allocation7] sm:$0xf]
    %v121 = vld [vmem:[#allocation7 + $0x4] sm:$0xf]
    %v122 = vld [vmem:[#allocation7 + $0x8] sm:$0xf]
    %v123 = vld [vmem:[#allocation7 + $0xc] sm:$0xf]
    %v124 = vld [vmem:[#allocation7 + $0x10] sm:$0xf]
    %v125 = vld [vmem:[#allocation7 + $0x14] sm:$0xf]
    %v126 = vld [vmem:[#allocation7 + $0x18] sm:$0xf]
    %v127 = vld [vmem:[#allocation7 + $0x1c] sm:$0xf]
    %v128 = vld [vmem:[#allocation7 + $0x20] sm:$0xf]
    %v129 = vld [vmem:[#allocation7 + $0x24] sm:$0xf]
    %v130 = vld [vmem:[#allocation7 + $0x28] sm:$0xf]
    %v131 = vld [vmem:[#allocation7 + $0x2c] sm:$0xf]
    %v132 = vld [vmem:[#allocation7 + $0x30] sm:$0xf]
    %v133 = vld [vmem:[#allocation7 + $0x34] sm:$0xf]
    %v134 = vld [vmem:[#allocation7 + $0x38] sm:$0xf]
    %v135 = vld [vmem:[#allocation7 + $0x3c] sm:$0xf]
    %v136 = vld [vmem:[#allocation7 + $0x40] sm:$0xf]
    %v137 = vld [vmem:[#allocation7 + $0x44] sm:$0xf]
    %v138 = vld [vmem:[#allocation7 + $0x48] sm:$0xf]
    %v139 = vld [vmem:[#allocation7 + $0x4c] sm:$0xf]
    %v140 = vld [vmem:[#allocation7 + $0x50] sm:$0xf]
    %v141 = vld [vmem:[#allocation7 + $0x54] sm:$0xf]
    %v142 = vld [vmem:[#allocation7 + $0x58] sm:$0xf]
    %v143 = vld [vmem:[#allocation7 + $0x5c] sm:$0xf]
    %v144 = vld [vmem:[#allocation7 + $0x60] sm:$0xf]
    %v145 = vld [vmem:[#allocation7 + $0x64] sm:$0xf]
    %v146 = vld [vmem:[#allocation7 + $0x68] sm:$0xf]
    %v147 = vld [vmem:[#allocation7 + $0x6c] sm:$0xf]
    %v148 = vld [vmem:[#allocation7 + $0x70] sm:$0xf]
    %v149 = vld [vmem:[#allocation7 + $0x74] sm:$0xf]
    %v150 = vld [vmem:[#allocation7 + $0x78] sm:$0xf]
    %v151 = vld [vmem:[#allocation7 + $0x7c] sm:$0xf]
    %v152 = vld [vmem:[#allocation7 + $0x80] sm:$0xf]
    %v153 = vld [vmem:[#allocation7 + $0x84] sm:$0xf]
    %v154 = vld [vmem:[#allocation7 + $0x88] sm:$0xf]
    %v155 = vld [vmem:[#allocation7 + $0x8c] sm:$0xf]
    %v156 = vld [vmem:[#allocation7 + $0x90] sm:$0xf]
    %v157 = vld [vmem:[#allocation7 + $0x94] sm:$0xf]
    %v158 = vld [vmem:[#allocation7 + $0x98] sm:$0xf]
    %v159 = vld [vmem:[#allocation7 + $0x9c] sm:$0xf]
    %v160 = vld [vmem:[#allocation7 + $0xa0] sm:$0xf]
    %v161 = vld [vmem:[#allocation7 + $0xa4] sm:$0xf]
    %v162 = vld [vmem:[#allocation7 + $0xa8] sm:$0xf]
    %v163 = vld [vmem:[#allocation7 + $0xac] sm:$0xf]
    %v164 = vld [vmem:[#allocation7 + $0xb0] sm:$0xf]
    %v165 = vld [vmem:[#allocation7 + $0xb4] sm:$0xf]
    %v166 = vld [vmem:[#allocation7 + $0xb8] sm:$0xf]
    %v167 = vld [vmem:[#allocation7 + $0xbc] sm:$0xf]
    %v168 = vld [vmem:[#allocation7 + $0xc0] sm:$0xf]
    %v169 = vld [vmem:[#allocation7 + $0xc4] sm:$0xf]
    %v170 = vld [vmem:[#allocation7 + $0xc8] sm:$0xf]
    %v171 = vld [vmem:[#allocation7 + $0xcc] sm:$0xf]
    %v172 = vld [vmem:[#allocation7 + $0xd0] sm:$0xf]
    %v173 = vld [vmem:[#allocation7 + $0xd4] sm:$0xf]
    %v174 = vld [vmem:[#allocation7 + $0xd8] sm:$0xf]
    %v175 = vld [vmem:[#allocation7 + $0xdc] sm:$0xf]
    %v176 = vld [vmem:[#allocation7 + $0xe0] sm:$0xf]
    %v177 = vld [vmem:[#allocation7 + $0xe4] sm:$0xf]
    %v178 = vld [vmem:[#allocation7 + $0xe8] sm:$0xf]
    %v179 = vld [vmem:[#allocation7 + $0xec] sm:$0xf]
    %v180 = vld [vmem:[#allocation7 + $0xf0] sm:$0xf]
    %v181 = vld [vmem:[#allocation7 + $0xf4] sm:$0xf]
    %v182 = vld [vmem:[#allocation7 + $0xf8] sm:$0xf]
    %v183 = vld [vmem:[#allocation7 + $0xfc] sm:$0xf]
    %v184 = vld [vmem:[#allocation7 + $0x100] sm:$0xf]
    %v185 = vld [vmem:[#allocation7 + $0x104] sm:$0xf]
    %v186 = vld [vmem:[#allocation7 + $0x108] sm:$0xf]
    %v187 = vld [vmem:[#allocation7 + $0x10c] sm:$0xf]
    %v188 = vld [vmem:[#allocation7 + $0x110] sm:$0xf]
    %v189 = vld [vmem:[#allocation7 + $0x114] sm:$0xf]
    %v190 = vld [vmem:[#allocation7 + $0x118] sm:$0xf]
    %v191 = vld [vmem:[#allocation7 + $0x11c] sm:$0xf]
    %v192 = vld [vmem:[#allocation7 + $0x120] sm:$0xf]
    %v193 = vld [vmem:[#allocation7 + $0x124] sm:$0xf]
    %v194 = vld [vmem:[#allocation7 + $0x128] sm:$0xf]
    %v195 = vld [vmem:[#allocation7 + $0x12c] sm:$0xf]
    %v196 = vld [vmem:[#allocation7 + $0x130] sm:$0xf]
    %v197 = vld [vmem:[#allocation7 + $0x134] sm:$0xf]
    %v198 = vld [vmem:[#allocation7 + $0x138] sm:$0xf]
    %v199 = vld [vmem:[#allocation7 + $0x13c] sm:$0xf]
    %v200 = vld [vmem:[#allocation7 + $0x140] sm:$0xf]
    %v201 = vld [vmem:[#allocation7 + $0x144] sm:$0xf]
    %v202 = vld [vmem:[#allocation7 + $0x148] sm:$0xf]
    %v203 = vld [vmem:[#allocation7 + $0x14c] sm:$0xf]
    %v204 = vld [vmem:[#allocation7 + $0x150] sm:$0xf]
    %v205 = vld [vmem:[#allocation7 + $0x154] sm:$0xf]
    %v206 = vld [vmem:[#allocation7 + $0x158] sm:$0xf]
    %v207 = vld [vmem:[#allocation7 + $0x15c] sm:$0xf]
    %v208 = vld [vmem:[#allocation7 + $0x160] sm:$0xf]
    %v209 = vld [vmem:[#allocation7 + $0x164] sm:$0xf]
    %v210 = vld [vmem:[#allocation7 + $0x168] sm:$0xf]
    %v211 = vld [vmem:[#allocation7 + $0x16c] sm:$0xf]
    %v212 = vld [vmem:[#allocation7 + $0x170] sm:$0xf]
    %v213 = vld [vmem:[#allocation7 + $0x174] sm:$0xf]
    %v214 = vld [vmem:[#allocation7 + $0x178] sm:$0xf]
    %v215 = vld [vmem:[#allocation7 + $0x17c] sm:$0xf]
    %v216 = vld [vmem:[#allocation8] sm:$0x1]
    %v218 = vlaneseq
    %v219 = vshrl.u32 %v218, 7
    %v220 = vsub.s32 0, %v219
    %v221 = vrot.slane %v216, %v220
    %v271 = vunpack.c.l.b16 %v72
    %v272 = vunpack.c.h.b16 %v72
    %v273 = vunpack.c.l.b16 %v73
    %v274 = vunpack.c.h.b16 %v73
    %v275 = vunpack.c.l.b16 %v74
    %v276 = vunpack.c.h.b16 %v74
    %v277 = vunpack.c.l.b16 %v75
    %v278 = vunpack.c.h.b16 %v75
    %v279 = vunpack.c.l.b16 %v76
    %v280 = vunpack.c.h.b16 %v76
    %v281 = vunpack.c.l.b16 %v77
    %v282 = vunpack.c.h.b16 %v77
    %v283 = vunpack.c.l.b16 %v78
    %v284 = vunpack.c.h.b16 %v78
    %v285 = vunpack.c.l.b16 %v79
    %v286 = vunpack.c.h.b16 %v79
    %v287 = vunpack.c.l.b16 %v80
    %v288 = vunpack.c.h.b16 %v80
    %v289 = vunpack.c.l.b16 %v81
    %v290 = vunpack.c.h.b16 %v81
    %v291 = vunpack.c.l.b16 %v82
    %v292 = vunpack.c.h.b16 %v82
    %v293 = vunpack.c.l.b16 %v83
    %v294 = vunpack.c.h.b16 %v83
    %v295 = vunpack.c.l.b16 %v84
    %v296 = vunpack.c.h.b16 %v84
    %v297 = vunpack.c.l.b16 %v85
    %v298 = vunpack.c.h.b16 %v85
    %v299 = vunpack.c.l.b16 %v86
    %v300 = vunpack.c.h.b16 %v86
    %v301 = vunpack.c.l.b16 %v87
    %v302 = vunpack.c.h.b16 %v87
    %v303 = vunpack.c.l.b16 %v88
    %v304 = vunpack.c.h.b16 %v88
    %v305 = vunpack.c.l.b16 %v89
    %v306 = vunpack.c.h.b16 %v89
    %v307 = vunpack.c.l.b16 %v90
    %v308 = vunpack.c.h.b16 %v90
    %v309 = vunpack.c.l.b16 %v91
    %v310 = vunpack.c.h.b16 %v91
    %v311 = vunpack.c.l.b16 %v92
    %v312 = vunpack.c.h.b16 %v92
    %v313 = vunpack.c.l.b16 %v93
    %v314 = vunpack.c.h.b16 %v93
    %v315 = vunpack.c.l.b16 %v94
    %v316 = vunpack.c.h.b16 %v94
    %v317 = vunpack.c.l.b16 %v95
    %v318 = vunpack.c.h.b16 %v95
    %v319 = vunpack.c.l.b16 %v96
    %v320 = vunpack.c.h.b16 %v96
    %v321 = vunpack.c.l.b16 %v97
    %v322 = vunpack.c.h.b16 %v97
    %v323 = vunpack.c.l.b16 %v98
    %v324 = vunpack.c.h.b16 %v98
    %v325 = vunpack.c.l.b16 %v99
    %v326 = vunpack.c.h.b16 %v99
    %v327 = vunpack.c.l.b16 %v100
    %v328 = vunpack.c.h.b16 %v100
    %v329 = vunpack.c.l.b16 %v101
    %v330 = vunpack.c.h.b16 %v101
    %v331 = vunpack.c.l.b16 %v102
    %v332 = vunpack.c.h.b16 %v102
    %v333 = vunpack.c.l.b16 %v103
    %v334 = vunpack.c.h.b16 %v103
    %v335 = vunpack.c.l.b16 %v104
    %v336 = vunpack.c.h.b16 %v104
    %v337 = vunpack.c.l.b16 %v105
    %v338 = vunpack.c.h.b16 %v105
    %v339 = vunpack.c.l.b16 %v106
    %v340 = vunpack.c.h.b16 %v106
    %v341 = vunpack.c.l.b16 %v107
    %v342 = vunpack.c.h.b16 %v107
    %v343 = vunpack.c.l.b16 %v108
    %v344 = vunpack.c.h.b16 %v108
    %v345 = vunpack.c.l.b16 %v109
    %v346 = vunpack.c.h.b16 %v109
    %v347 = vunpack.c.l.b16 %v110
    %v348 = vunpack.c.h.b16 %v110
    %v349 = vunpack.c.l.b16 %v111
    %v350 = vunpack.c.h.b16 %v111
    %v351 = vunpack.c.l.b16 %v112
    %v352 = vunpack.c.h.b16 %v112
    %v353 = vunpack.c.l.b16 %v113
    %v354 = vunpack.c.h.b16 %v113
    %v355 = vunpack.c.l.b16 %v114
    %v356 = vunpack.c.h.b16 %v114
    %v357 = vunpack.c.l.b16 %v115
    %v358 = vunpack.c.h.b16 %v115
    %v359 = vunpack.c.l.b16 %v116
    %v360 = vunpack.c.h.b16 %v116
    %v361 = vunpack.c.l.b16 %v117
    %v362 = vunpack.c.h.b16 %v117
    %v363 = vunpack.c.l.b16 %v118
    %v364 = vunpack.c.h.b16 %v118
    %v365 = vunpack.c.l.b16 %v119
    %v366 = vunpack.c.h.b16 %v119
    %v367 = vpack.c.b16 %v277, %v271
    %v368 = vpack.c.b16 %v278, %v272
    %v369 = vpack.c.b16 %v279, %v273
    %v370 = vpack.c.b16 %v280, %v274
    %v371 = vpack.c.b16 %v281, %v275
    %v372 = vpack.c.b16 %v282, %v276
    %v373 = vpack.c.b16 %v289, %v283
    %v374 = vpack.c.b16 %v290, %v284
    %v375 = vpack.c.b16 %v291, %v285
    %v376 = vpack.c.b16 %v292, %v286
    %v377 = vpack.c.b16 %v293, %v287
    %v378 = vpack.c.b16 %v294, %v288
    %v379 = vpack.c.b16 %v301, %v295
    %v380 = vpack.c.b16 %v302, %v296
    %v381 = vpack.c.b16 %v303, %v297
    %v382 = vpack.c.b16 %v304, %v298
    %v383 = vpack.c.b16 %v305, %v299
    %v384 = vpack.c.b16 %v306, %v300
    %v385 = vpack.c.b16 %v313, %v307
    %v386 = vpack.c.b16 %v314, %v308
    %v387 = vpack.c.b16 %v315, %v309
    %v388 = vpack.c.b16 %v316, %v310
    %v389 = vpack.c.b16 %v317, %v311
    %v390 = vpack.c.b16 %v318, %v312
    %v391 = vpack.c.b16 %v325, %v319
    %v392 = vpack.c.b16 %v326, %v320
    %v393 = vpack.c.b16 %v327, %v321
    %v394 = vpack.c.b16 %v328, %v322
    %v395 = vpack.c.b16 %v329, %v323
    %v396 = vpack.c.b16 %v330, %v324
    %v397 = vpack.c.b16 %v337, %v331
    %v398 = vpack.c.b16 %v338, %v332
    %v399 = vpack.c.b16 %v339, %v333
    %v400 = vpack.c.b16 %v340, %v334
    %v401 = vpack.c.b16 %v341, %v335
    %v402 = vpack.c.b16 %v342, %v336
    %v403 = vpack.c.b16 %v349, %v343
    %v404 = vpack.c.b16 %v350, %v344
    %v405 = vpack.c.b16 %v351, %v345
    %v406 = vpack.c.b16 %v352, %v346
    %v407 = vpack.c.b16 %v353, %v347
    %v408 = vpack.c.b16 %v354, %v348
    %v409 = vpack.c.b16 %v361, %v355
    %v410 = vpack.c.b16 %v362, %v356
    %v411 = vpack.c.b16 %v363, %v357
    %v412 = vpack.c.b16 %v364, %v358
    %v413 = vpack.c.b16 %v365, %v359
    %v414 = vpack.c.b16 %v366, %v360
    %v559 = vunpack.c.l.b16 %v120
    %v560 = vunpack.c.l.b16 %v121
    %v561 = vunpack.c.l.b16 %v122
    %v562 = vunpack.c.l.b16 %v123
    %v563 = vunpack.c.l.b16 %v124
    %v564 = vunpack.c.l.b16 %v125
    %v565 = vunpack.c.l.b16 %v126
    %v566 = vunpack.c.l.b16 %v127
    %v567 = vunpack.c.l.b16 %v128
    %v568 = vunpack.c.l.b16 %v129
    %v569 = vunpack.c.l.b16 %v130
    %v570 = vunpack.c.l.b16 %v131
    %v571 = vunpack.c.l.b16 %v132
    %v572 = vunpack.c.l.b16 %v133
    %v573 = vunpack.c.l.b16 %v134
    %v574 = vunpack.c.l.b16 %v135
    %v575 = vunpack.c.l.b16 %v136
    %v576 = vunpack.c.l.b16 %v137
    %v577 = vunpack.c.l.b16 %v138
    %v578 = vunpack.c.l.b16 %v139
    %v579 = vunpack.c.l.b16 %v140
    %v580 = vunpack.c.l.b16 %v141
    %v581 = vunpack.c.l.b16 %v142
    %v582 = vunpack.c.l.b16 %v143
    %v583 = vunpack.c.l.b16 %v144
    %v584 = vunpack.c.l.b16 %v145
    %v585 = vunpack.c.l.b16 %v146
    %v586 = vunpack.c.l.b16 %v147
    %v587 = vunpack.c.l.b16 %v148
    %v588 = vunpack.c.l.b16 %v149
    %v589 = vunpack.c.l.b16 %v150
    %v590 = vunpack.c.l.b16 %v151
    %v591 = vunpack.c.l.b16 %v152
    %v592 = vunpack.c.l.b16 %v153
    %v593 = vunpack.c.l.b16 %v154
    %v594 = vunpack.c.l.b16 %v155
    %v595 = vunpack.c.l.b16 %v156
    %v596 = vunpack.c.l.b16 %v157
    %v597 = vunpack.c.l.b16 %v158
    %v598 = vunpack.c.l.b16 %v159
    %v599 = vunpack.c.l.b16 %v160
    %v600 = vunpack.c.l.b16 %v161
    %v601 = vunpack.c.l.b16 %v162
    %v602 = vunpack.c.l.b16 %v163
    %v603 = vunpack.c.l.b16 %v164
    %v604 = vunpack.c.l.b16 %v165
    %v605 = vunpack.c.l.b16 %v166
    %v606 = vunpack.c.l.b16 %v167
    %v607 = vunpack.c.l.b16 %v168
    %v608 = vunpack.c.l.b16 %v169
    %v609 = vunpack.c.l.b16 %v170
    %v610 = vunpack.c.l.b16 %v171
    %v611 = vunpack.c.l.b16 %v172
    %v612 = vunpack.c.l.b16 %v173
    %v613 = vunpack.c.l.b16 %v174
    %v614 = vunpack.c.l.b16 %v175
    %v615 = vunpack.c.l.b16 %v176
    %v616 = vunpack.c.l.b16 %v177
    %v617 = vunpack.c.l.b16 %v178
    %v618 = vunpack.c.l.b16 %v179
    %v619 = vunpack.c.l.b16 %v180
    %v620 = vunpack.c.l.b16 %v181
    %v621 = vunpack.c.l.b16 %v182
    %v622 = vunpack.c.l.b16 %v183
    %v623 = vunpack.c.l.b16 %v184
    %v624 = vunpack.c.l.b16 %v185
    %v625 = vunpack.c.l.b16 %v186
    %v626 = vunpack.c.l.b16 %v187
    %v627 = vunpack.c.l.b16 %v188
    %v628 = vunpack.c.l.b16 %v189
    %v629 = vunpack.c.l.b16 %v190
    %v630 = vunpack.c.l.b16 %v191
    %v631 = vunpack.c.l.b16 %v192
    %v632 = vunpack.c.l.b16 %v193
    %v633 = vunpack.c.l.b16 %v194
    %v634 = vunpack.c.l.b16 %v195
    %v635 = vunpack.c.l.b16 %v196
    %v636 = vunpack.c.l.b16 %v197
    %v637 = vunpack.c.l.b16 %v198
    %v638 = vunpack.c.l.b16 %v199
    %v639 = vunpack.c.l.b16 %v200
    %v640 = vunpack.c.l.b16 %v201
    %v641 = vunpack.c.l.b16 %v202
    %v642 = vunpack.c.l.b16 %v203
    %v643 = vunpack.c.l.b16 %v204
    %v644 = vunpack.c.l.b16 %v205
    %v645 = vunpack.c.l.b16 %v206
    %v646 = vunpack.c.l.b16 %v207
    %v647 = vunpack.c.l.b16 %v208
    %v648 = vunpack.c.l.b16 %v209
    %v649 = vunpack.c.l.b16 %v210
    %v650 = vunpack.c.l.b16 %v211
    %v651 = vunpack.c.l.b16 %v212
    %v652 = vunpack.c.l.b16 %v213
    %v653 = vunpack.c.l.b16 %v214
    %v654 = vunpack.c.l.b16 %v215
    %v655 = vpack.c.b16 %v560, %v559
    %v656 = vpack.c.b16 %v562, %v561
    %v657 = vpack.c.b16 %v564, %v563
    %v658 = vpack.c.b16 %v566, %v565
    %v659 = vpack.c.b16 %v568, %v567
    %v660 = vpack.c.b16 %v570, %v569
    %v661 = vpack.c.b16 %v572, %v571
    %v662 = vpack.c.b16 %v574, %v573
    %v663 = vpack.c.b16 %v576, %v575
    %v664 = vpack.c.b16 %v578, %v577
    %v665 = vpack.c.b16 %v580, %v579
    %v666 = vpack.c.b16 %v582, %v581
    %v667 = vpack.c.b16 %v584, %v583
    %v668 = vpack.c.b16 %v586, %v585
    %v669 = vpack.c.b16 %v588, %v587
    %v670 = vpack.c.b16 %v590, %v589
    %v671 = vpack.c.b16 %v592, %v591
    %v672 = vpack.c.b16 %v594, %v593
    %v673 = vpack.c.b16 %v596, %v595
    %v674 = vpack.c.b16 %v598, %v597
    %v675 = vpack.c.b16 %v600, %v599
    %v676 = vpack.c.b16 %v602, %v601
    %v677 = vpack.c.b16 %v604, %v603
    %v678 = vpack.c.b16 %v606, %v605
    %v679 = vpack.c.b16 %v608, %v607
    %v680 = vpack.c.b16 %v610, %v609
    %v681 = vpack.c.b16 %v612, %v611
    %v682 = vpack.c.b16 %v614, %v613
    %v683 = vpack.c.b16 %v616, %v615
    %v684 = vpack.c.b16 %v618, %v617
    %v685 = vpack.c.b16 %v620, %v619
    %v686 = vpack.c.b16 %v622, %v621
    %v687 = vpack.c.b16 %v624, %v623
    %v688 = vpack.c.b16 %v626, %v625
    %v689 = vpack.c.b16 %v628, %v627
    %v690 = vpack.c.b16 %v630, %v629
    %v691 = vpack.c.b16 %v632, %v631
    %v692 = vpack.c.b16 %v634, %v633
    %v693 = vpack.c.b16 %v636, %v635
    %v694 = vpack.c.b16 %v638, %v637
    %v695 = vpack.c.b16 %v640, %v639
    %v696 = vpack.c.b16 %v642, %v641
    %v697 = vpack.c.b16 %v644, %v643
    %v698 = vpack.c.b16 %v646, %v645
    %v699 = vpack.c.b16 %v648, %v647
    %v700 = vpack.c.b16 %v650, %v649
    %v701 = vpack.c.b16 %v652, %v651
    %v702 = vpack.c.b16 %v654, %v653
    %751 = vmatprep.subr.bf16.mxu0 0
    %752 = vmatpush1.bf16.msra.mxu0 %v655
    %753 = vmatprep.subr.bf16.mxu0 0
    %754 = vmatpush1.bf16.msra.mxu0 %v656
    %755 = vmatprep.subr.bf16.mxu0 0
    %756 = vmatpush1.bf16.msra.mxu0 %v657
    %757 = vmatprep.subr.bf16.mxu0 0
    %758 = vmatpush1.bf16.msra.mxu0 %v658
    %759 = vmatprep.subr.bf16.mxu0 0
    %760 = vmatpush1.bf16.msra.mxu0 %v659
    %761 = vmatprep.subr.bf16.mxu0 0
    %762 = vmatpush1.bf16.msra.mxu0 %v660
    %763 = vmatprep.subr.bf16.mxu0 0
    %764 = vmatpush1.bf16.msra.mxu0 %v661
    %765 = vmatprep.subr.bf16.mxu0 0
    %766 = vmatpush1.bf16.msra.mxu0 %v662
    %767 = vmatprep.subr.bf16.mxu0 0
    %768 = vmatpush1.bf16.msra.mxu0 %v663
    %769 = vmatprep.subr.bf16.mxu0 0
    %770 = vmatpush1.bf16.msra.mxu0 %v664
    %771 = vmatprep.subr.bf16.mxu0 0
    %772 = vmatpush1.bf16.msra.mxu0 %v665
    %773 = vmatprep.subr.bf16.mxu0 0
    %774 = vmatpush1.bf16.msra.mxu0 %v666
    %775 = vmatprep.subr.bf16.mxu0 0
    %776 = vmatpush1.bf16.msra.mxu0 %v667
    %777 = vmatprep.subr.bf16.mxu0 0
    %778 = vmatpush1.bf16.msra.mxu0 %v668
    %779 = vmatprep.subr.bf16.mxu0 0
    %780 = vmatpush1.bf16.msra.mxu0 %v669
    %781 = vmatprep.subr.bf16.mxu0 0
    %782 = vmatpush1.bf16.msra.mxu0 %v670
    %783 = vmatprep.mubr.bf16.mxu0 %v368
    %784 = vmatmul.mubr.bf16.gmra.mrb[0].mxu0 %v367
    %v785 = vpop.f32.mrb[0].mxu0
    %v786 = vadd.f32 %v221, %v785
    %v787 = vpop.f32.mrb[0].mxu0
    %v788 = vpop.f32.mrb[0].mxu0
    %v789 = vadd.f32 %v221, %v788
    %v790 = vpop.f32.mrb[0].mxu0
    %791 = vmatprep.mubr.bf16.mxu0 %v374
    %792 = vmatmul.mubr.bf16.gmra.mrb[0].mxu0 %v373
    %v793 = vpop.f32.mrb[0].mxu0
    %v794 = vadd.f32 %v221, %v793
    %v795 = vpop.f32.mrb[0].mxu0
    %v796 = vpop.f32.mrb[0].mxu0
    %v797 = vadd.f32 %v221, %v796
    %v798 = vpop.f32.mrb[0].mxu0
    %799 = vmatprep.mubr.bf16.mxu0 %v380
    %800 = vmatmul.mubr.bf16.gmra.mrb[0].mxu0 %v379
    %v801 = vpop.f32.mrb[0].mxu0
    %v802 = vadd.f32 %v221, %v801
    %v803 = vpop.f32.mrb[0].mxu0
    %v804 = vpop.f32.mrb[0].mxu0
    %v805 = vadd.f32 %v221, %v804
    %v806 = vpop.f32.mrb[0].mxu0
    %807 = vmatprep.mubr.bf16.mxu0 %v386
    %808 = vmatmul.mubr.bf16.gmra.mrb[0].mxu0 %v385
    %v809 = vpop.f32.mrb[0].mxu0
    %v810 = vadd.f32 %v221, %v809
    %v811 = vpop.f32.mrb[0].mxu0
    %v812 = vpop.f32.mrb[0].mxu0
    %v813 = vadd.f32 %v221, %v812
    %v814 = vpop.f32.mrb[0].mxu0
    %815 = vmatprep.mubr.bf16.mxu0 %v392
    %816 = vmatmul.mubr.bf16.gmra.mrb[0].mxu0 %v391
    %v817 = vpop.f32.mrb[0].mxu0
    %v818 = vadd.f32 %v221, %v817
    %v819 = vpop.f32.mrb[0].mxu0
    %v820 = vpop.f32.mrb[0].mxu0
    %v821 = vadd.f32 %v221, %v820
    %v822 = vpop.f32.mrb[0].mxu0
    %823 = vmatprep.mubr.bf16.mxu0 %v398
    %824 = vmatmul.mubr.bf16.gmra.mrb[0].mxu0 %v397
    %v825 = vpop.f32.mrb[0].mxu0
    %v826 = vadd.f32 %v221, %v825
    %v827 = vpop.f32.mrb[0].mxu0
    %v828 = vpop.f32.mrb[0].mxu0
    %v829 = vadd.f32 %v221, %v828
    %v830 = vpop.f32.mrb[0].mxu0
    %831 = vmatprep.mubr.bf16.mxu0 %v404
    %832 = vmatmul.mubr.bf16.gmra.mrb[0].mxu0 %v403
    %v833 = vpop.f32.mrb[0].mxu0
    %v834 = vadd.f32 %v221, %v833
    %v835 = vpop.f32.mrb[0].mxu0
    %v836 = vpop.f32.mrb[0].mxu0
    %v837 = vadd.f32 %v221, %v836
    %v838 = vpop.f32.mrb[0].mxu0
    %839 = vmatprep.mubr.bf16.mxu0 %v410
    %840 = vmatmul.mubr.bf16.gmra.mrb[0].mxu0 %v409
    %v841 = vpop.f32.mrb[0].mxu0
    %v842 = vadd.f32 %v221, %v841
    %v843 = vpop.f32.mrb[0].mxu0
    %v844 = vpop.f32.mrb[0].mxu0
    %v845 = vadd.f32 %v221, %v844
    %v846 = vpop.f32.mrb[0].mxu0
    %847 = vdwg.mxu0
    %848 = vmatprep.subr.bf16.mxu0 0
    %849 = vmatpush1.bf16.msra.mxu0 %v671
    %850 = vmatprep.subr.bf16.mxu0 0
    %851 = vmatpush1.bf16.msra.mxu0 %v672
    %852 = vmatprep.subr.bf16.mxu0 0
    %853 = vmatpush1.bf16.msra.mxu0 %v673
    %854 = vmatprep.subr.bf16.mxu0 0
    %855 = vmatpush1.bf16.msra.mxu0 %v674
    %856 = vmatprep.subr.bf16.mxu0 0
    %857 = vmatpush1.bf16.msra.mxu0 %v675
    %858 = vmatprep.subr.bf16.mxu0 0
    %859 = vmatpush1.bf16.msra.mxu0 %v676
    %860 = vmatprep.subr.bf16.mxu0 0
    %861 = vmatpush1.bf16.msra.mxu0 %v677
    %862 = vmatprep.subr.bf16.mxu0 0
    %863 = vmatpush1.bf16.msra.mxu0 %v678
    %864 = vmatprep.subr.bf16.mxu0 0
    %865 = vmatpush1.bf16.msra.mxu0 %v679
    %866 = vmatprep.subr.bf16.mxu0 0
    %867 = vmatpush1.bf16.msra.mxu0 %v680
    %868 = vmatprep.subr.bf16.mxu0 0
    %869 = vmatpush1.bf16.msra.mxu0 %v681
    %870 = vmatprep.subr.bf16.mxu0 0
    %871 = vmatpush1.bf16.msra.mxu0 %v682
    %872 = vmatprep.subr.bf16.mxu0 0
    %873 = vmatpush1.bf16.msra.mxu0 %v683
    %874 = vmatprep.subr.bf16.mxu0 0
    %875 = vmatpush1.bf16.msra.mxu0 %v684
    %876 = vmatprep.subr.bf16.mxu0 0
    %877 = vmatpush1.bf16.msra.mxu0 %v685
    %878 = vmatprep.subr.bf16.mxu0 0
    %879 = vmatpush1.bf16.msra.mxu0 %v686
    %880 = vmatprep.mubr.bf16.mxu0 %v370
    %881 = vmatmul.mubr.bf16.gmra.mrb[0].mxu0 %v369
    %v882 = vpop.f32.mrb[0].mxu0
    %v883 = vadd.f32 %v786, %v882
    %v884 = vpop.f32.mrb[0].mxu0
    %v885 = vpop.f32.mrb[0].mxu0
    %v886 = vadd.f32 %v789, %v885
    %v887 = vpop.f32.mrb[0].mxu0
    %888 = vmatprep.mubr.bf16.mxu0 %v376
    %889 = vmatmul.mubr.bf16.gmra.mrb[0].mxu0 %v375
    %v890 = vpop.f32.mrb[0].mxu0
    %v891 = vadd.f32 %v794, %v890
    %v892 = vpop.f32.mrb[0].mxu0
    %v893 = vpop.f32.mrb[0].mxu0
    %v894 = vadd.f32 %v797, %v893
    %v895 = vpop.f32.mrb[0].mxu0
    %896 = vmatprep.mubr.bf16.mxu0 %v382
    %897 = vmatmul.mubr.bf16.gmra.mrb[0].mxu0 %v381
    %v898 = vpop.f32.mrb[0].mxu0
    %v899 = vadd.f32 %v802, %v898
    %v900 = vpop.f32.mrb[0].mxu0
    %v901 = vpop.f32.mrb[0].mxu0
    %v902 = vadd.f32 %v805, %v901
    %v903 = vpop.f32.mrb[0].mxu0
    %904 = vmatprep.mubr.bf16.mxu0 %v388
    %905 = vmatmul.mubr.bf16.gmra.mrb[0].mxu0 %v387
    %v906 = vpop.f32.mrb[0].mxu0
    %v907 = vadd.f32 %v810, %v906
    %v908 = vpop.f32.mrb[0].mxu0
    %v909 = vpop.f32.mrb[0].mxu0
    %v910 = vadd.f32 %v813, %v909
    %v911 = vpop.f32.mrb[0].mxu0
    %912 = vmatprep.mubr.bf16.mxu0 %v394
    %913 = vmatmul.mubr.bf16.gmra.mrb[0].mxu0 %v393
    %v914 = vpop.f32.mrb[0].mxu0
    %v915 = vadd.f32 %v818, %v914
    %v916 = vpop.f32.mrb[0].mxu0
    %v917 = vpop.f32.mrb[0].mxu0
    %v918 = vadd.f32 %v821, %v917
    %v919 = vpop.f32.mrb[0].mxu0
    %920 = vmatprep.mubr.bf16.mxu0 %v400
    %921 = vmatmul.mubr.bf16.gmra.mrb[0].mxu0 %v399
    %v922 = vpop.f32.mrb[0].mxu0
    %v923 = vadd.f32 %v826, %v922
    %v924 = vpop.f32.mrb[0].mxu0
    %v925 = vpop.f32.mrb[0].mxu0
    %v926 = vadd.f32 %v829, %v925
    %v927 = vpop.f32.mrb[0].mxu0
    %928 = vmatprep.mubr.bf16.mxu0 %v406
    %929 = vmatmul.mubr.bf16.gmra.mrb[0].mxu0 %v405
    %v930 = vpop.f32.mrb[0].mxu0
    %v931 = vadd.f32 %v834, %v930
    %v932 = vpop.f32.mrb[0].mxu0
    %v933 = vpop.f32.mrb[0].mxu0
    %v934 = vadd.f32 %v837, %v933
    %v935 = vpop.f32.mrb[0].mxu0
    %936 = vmatprep.mubr.bf16.mxu0 %v412
    %937 = vmatmul.mubr.bf16.gmra.mrb[0].mxu0 %v411
    %v938 = vpop.f32.mrb[0].mxu0
    %v939 = vadd.f32 %v842, %v938
    %v940 = vpop.f32.mrb[0].mxu0
    %v941 = vpop.f32.mrb[0].mxu0
    %v942 = vadd.f32 %v845, %v941
    %v943 = vpop.f32.mrb[0].mxu0
    %944 = vdwg.mxu0
    %945 = vmatprep.subr.bf16.mxu0 0
    %946 = vmatpush1.bf16.msra.mxu0 %v687
    %947 = vmatprep.subr.bf16.mxu0 0
    %948 = vmatpush1.bf16.msra.mxu0 %v688
    %949 = vmatprep.subr.bf16.mxu0 0
    %950 = vmatpush1.bf16.msra.mxu0 %v689
    %951 = vmatprep.subr.bf16.mxu0 0
    %952 = vmatpush1.bf16.msra.mxu0 %v690
    %953 = vmatprep.subr.bf16.mxu0 0
    %954 = vmatpush1.bf16.msra.mxu0 %v691
    %955 = vmatprep.subr.bf16.mxu0 0
    %956 = vmatpush1.bf16.msra.mxu0 %v692
    %957 = vmatprep.subr.bf16.mxu0 0
    %958 = vmatpush1.bf16.msra.mxu0 %v693
    %959 = vmatprep.subr.bf16.mxu0 0
    %960 = vmatpush1.bf16.msra.mxu0 %v694
    %961 = vmatprep.subr.bf16.mxu0 0
    %962 = vmatpush1.bf16.msra.mxu0 %v695
    %963 = vmatprep.subr.bf16.mxu0 0
    %964 = vmatpush1.bf16.msra.mxu0 %v696
    %965 = vmatprep.subr.bf16.mxu0 0
    %966 = vmatpush1.bf16.msra.mxu0 %v697
    %967 = vmatprep.subr.bf16.mxu0 0
    %968 = vmatpush1.bf16.msra.mxu0 %v698
    %969 = vmatprep.subr.bf16.mxu0 0
    %970 = vmatpush1.bf16.msra.mxu0 %v699
    %971 = vmatprep.subr.bf16.mxu0 0
    %972 = vmatpush1.bf16.msra.mxu0 %v700
    %973 = vmatprep.subr.bf16.mxu0 0
    %974 = vmatpush1.bf16.msra.mxu0 %v701
    %975 = vmatprep.subr.bf16.mxu0 0
    %976 = vmatpush1.bf16.msra.mxu0 %v702
    %977 = vmatprep.mubr.bf16.mxu0 %v372
    %978 = vmatmul.mubr.bf16.gmra.mrb[0].mxu0 %v371
    %v979 = vpop.f32.mrb[0].mxu0
    %v980 = vadd.f32 %v883, %v979
    %v981 = vpop.f32.mrb[0].mxu0
    %v982 = vpop.f32.mrb[0].mxu0
    %v983 = vadd.f32 %v886, %v982
    %v984 = vpop.f32.mrb[0].mxu0
    %985 = vmatprep.mubr.bf16.mxu0 %v378
    %986 = vmatmul.mubr.bf16.gmra.mrb[0].mxu0 %v377
    %v987 = vpop.f32.mrb[0].mxu0
    %v988 = vadd.f32 %v891, %v987
    %v989 = vpop.f32.mrb[0].mxu0
    %v990 = vpop.f32.mrb[0].mxu0
    %v991 = vadd.f32 %v894, %v990
    %v992 = vpop.f32.mrb[0].mxu0
    %993 = vmatprep.mubr.bf16.mxu0 %v384
    %994 = vmatmul.mubr.bf16.gmra.mrb[0].mxu0 %v383
    %v995 = vpop.f32.mrb[0].mxu0
    %v996 = vadd.f32 %v899, %v995
    %v997 = vpop.f32.mrb[0].mxu0
    %v998 = vpop.f32.mrb[0].mxu0
    %v999 = vadd.f32 %v902, %v998
    %v1000 = vpop.f32.mrb[0].mxu0
    %1001 = vmatprep.mubr.bf16.mxu0 %v390
    %1002 = vmatmul.mubr.bf16.gmra.mrb[0].mxu0 %v389
    %v1003 = vpop.f32.mrb[0].mxu0
    %v1004 = vadd.f32 %v907, %v1003
    %v1005 = vpop.f32.mrb[0].mxu0
    %v1006 = vpop.f32.mrb[0].mxu0
    %v1007 = vadd.f32 %v910, %v1006
    %v1008 = vpop.f32.mrb[0].mxu0
    %1009 = vmatprep.mubr.bf16.mxu0 %v396
    %1010 = vmatmul.mubr.bf16.gmra.mrb[0].mxu0 %v395
    %v1011 = vpop.f32.mrb[0].mxu0
    %v1012 = vadd.f32 %v915, %v1011
    %v1013 = vpop.f32.mrb[0].mxu0
    %v1014 = vpop.f32.mrb[0].mxu0
    %v1015 = vadd.f32 %v918, %v1014
    %v1016 = vpop.f32.mrb[0].mxu0
    %1017 = vmatprep.mubr.bf16.mxu0 %v402
    %1018 = vmatmul.mubr.bf16.gmra.mrb[0].mxu0 %v401
    %v1019 = vpop.f32.mrb[0].mxu0
    %v1020 = vadd.f32 %v923, %v1019
    %v1021 = vpop.f32.mrb[0].mxu0
    %v1022 = vpop.f32.mrb[0].mxu0
    %v1023 = vadd.f32 %v926, %v1022
    %v1024 = vpop.f32.mrb[0].mxu0
    %1025 = vmatprep.mubr.bf16.mxu0 %v408
    %1026 = vmatmul.mubr.bf16.gmra.mrb[0].mxu0 %v407
    %v1027 = vpop.f32.mrb[0].mxu0
    %v1028 = vadd.f32 %v931, %v1027
    %v1029 = vpop.f32.mrb[0].mxu0
    %v1030 = vpop.f32.mrb[0].mxu0
    %v1031 = vadd.f32 %v934, %v1030
    %v1032 = vpop.f32.mrb[0].mxu0
    %1033 = vmatprep.mubr.bf16.mxu0 %v414
    %1034 = vmatmul.mubr.bf16.gmra.mrb[0].mxu0 %v413
    %v1035 = vpop.f32.mrb[0].mxu0
    %v1036 = vadd.f32 %v939, %v1035
    %v1037 = vpop.f32.mrb[0].mxu0
    %v1038 = vpop.f32.mrb[0].mxu0
    %v1039 = vadd.f32 %v942, %v1038
    %v1040 = vpop.f32.mrb[0].mxu0
    %1041 = vdwg.mxu0
    %v1042 = vmax.f32 %v980, 0.0
    %v1043 = vmax.f32 %v983, 0.0
    %v1044 = vmax.f32 %v988, 0.0
    %v1045 = vmax.f32 %v991, 0.0
    %v1046 = vmax.f32 %v996, 0.0
    %v1047 = vmax.f32 %v999, 0.0
    %v1048 = vmax.f32 %v1004, 0.0
    %v1049 = vmax.f32 %v1007, 0.0
    %v1050 = vmax.f32 %v1012, 0.0
    %v1051 = vmax.f32 %v1015, 0.0
    %v1052 = vmax.f32 %v1020, 0.0
    %v1053 = vmax.f32 %v1023, 0.0
    %v1054 = vmax.f32 %v1028, 0.0
    %v1055 = vmax.f32 %v1031, 0.0
    %v1056 = vmax.f32 %v1036, 0.0
    %v1057 = vmax.f32 %v1039, 0.0
    %v1058 = vld [vmem:[#allocation5] sm:$0xff]
    %v1059 = vld [vmem:[#allocation5 + $0x8] sm:$0xff]
    %v1060 = vld [vmem:[#allocation5 + $0x10] sm:$0xff]
    %v1061 = vld [vmem:[#allocation5 + $0x18] sm:$0xff]
    %v1062 = vld [vmem:[#allocation5 + $0x20] sm:$0xff]
    %v1063 = vld [vmem:[#allocation5 + $0x28] sm:$0xff]
    %v1064 = vld [vmem:[#allocation5 + $0x30] sm:$0xff]
    %v1065 = vld [vmem:[#allocation5 + $0x38] sm:$0xff]
    %v1066 = vld [vmem:[#allocation5 + $0x40] sm:$0xff]
    %v1067 = vld [vmem:[#allocation5 + $0x48] sm:$0xff]
    %v1068 = vld [vmem:[#allocation5 + $0x50] sm:$0xff]
    %v1069 = vld [vmem:[#allocation5 + $0x58] sm:$0xff]
    %v1070 = vld [vmem:[#allocation5 + $0x60] sm:$0xff]
    %v1071 = vld [vmem:[#allocation5 + $0x68] sm:$0xff]
    %v1072 = vld [vmem:[#allocation5 + $0x70] sm:$0xff]
    %v1073 = vld [vmem:[#allocation5 + $0x78] sm:$0xff]
    %1075 = vset.pattern.permute.xlu0 0
    %1076 = vperm.xlu0 %1075, %v1058
    %v1077 = vpop.permute.xlu0 %1076
    %1080 = vset.pattern.permute.xlu0 0
    %1081 = vperm.xlu0 %1080, %v1059
    %v1082 = vpop.permute.xlu0 %1081
    %1085 = vset.pattern.permute.xlu0 0
    %1086 = vperm.xlu0 %1085, %v1060
    %v1087 = vpop.permute.xlu0 %1086
    %1090 = vset.pattern.permute.xlu0 0
    %1091 = vperm.xlu0 %1090, %v1061
    %v1092 = vpop.permute.xlu0 %1091
    %1095 = vset.pattern.permute.xlu0 0
    %1096 = vperm.xlu0 %1095, %v1062
    %v1097 = vpop.permute.xlu0 %1096
    %1100 = vset.pattern.permute.xlu0 0
    %1101 = vperm.xlu0 %1100, %v1063
    %v1102 = vpop.permute.xlu0 %1101
    %1105 = vset.pattern.permute.xlu0 0
    %1106 = vperm.xlu0 %1105, %v1064
    %v1107 = vpop.permute.xlu0 %1106
    %1110 = vset.pattern.permute.xlu0 0
    %1111 = vperm.xlu0 %1110, %v1065
    %v1112 = vpop.permute.xlu0 %1111
    %1115 = vset.pattern.permute.xlu0 0
    %1116 = vperm.xlu0 %1115, %v1066
    %v1117 = vpop.permute.xlu0 %1116
    %1120 = vset.pattern.permute.xlu0 0
    %1121 = vperm.xlu0 %1120, %v1067
    %v1122 = vpop.permute.xlu0 %1121
    %1125 = vset.pattern.permute.xlu0 0
    %1126 = vperm.xlu0 %1125, %v1068
    %v1127 = vpop.permute.xlu0 %1126
    %1130 = vset.pattern.permute.xlu0 0
    %1131 = vperm.xlu0 %1130, %v1069
    %v1132 = vpop.permute.xlu0 %1131
    %1135 = vset.pattern.permute.xlu0 0
    %1136 = vperm.xlu0 %1135, %v1070
    %v1137 = vpop.permute.xlu0 %1136
    %1140 = vset.pattern.permute.xlu0 0
    %1141 = vperm.xlu0 %1140, %v1071
    %v1142 = vpop.permute.xlu0 %1141
    %1145 = vset.pattern.permute.xlu0 0
    %1146 = vperm.xlu0 %1145, %v1072
    %v1147 = vpop.permute.xlu0 %1146
    %1150 = vset.pattern.permute.xlu0 0
    %1151 = vperm.xlu0 %1150, %v1073
    %v1152 = vpop.permute.xlu0 %1151
    %v1154 = vmul.f32 %v1042, %v1077
    %v1155 = vmul.f32 %v1043, %v1082
    %v1156 = vmul.f32 %v1044, %v1087
    %v1157 = vmul.f32 %v1045, %v1092
    %v1158 = vmul.f32 %v1046, %v1097
    %v1159 = vmul.f32 %v1047, %v1102
    %v1160 = vmul.f32 %v1048, %v1107
    %v1161 = vmul.f32 %v1049, %v1112
    %v1162 = vmul.f32 %v1050, %v1117
    %v1163 = vmul.f32 %v1051, %v1122
    %v1164 = vmul.f32 %v1052, %v1127
    %v1165 = vmul.f32 %v1053, %v1132
    %v1166 = vmul.f32 %v1054, %v1137
    %v1167 = vmul.f32 %v1055, %v1142
    %v1168 = vmul.f32 %v1056, %v1147
    %v1169 = vmul.f32 %v1057, %v1152
    %vm1175 = vcmask 1046528
    %v1176 = vrot.slane %v1154, 1
    %v1177 = vrot.slane %v1155, 1
    %v1178 = vsel %vm1175, %v1176, %v1177
    %v1179 = vrot.slane %v1156, 1
    %v1180 = vsel %vm1175, %v1177, %v1179
    %v1181 = vrot.slane %v1157, 1
    %v1182 = vsel %vm1175, %v1179, %v1181
    %v1183 = vrot.slane %v1158, 1
    %v1184 = vsel %vm1175, %v1181, %v1183
    %v1189 = vmax.f32 %v1154, %v1178
    %v1190 = vmax.f32 %v1155, %v1180
    %v1191 = vmax.f32 %v1156, %v1182
    %v1192 = vmax.f32 %v1157, %v1184
    %vm1193 = vcmask 1043456
    %v1194 = vrot.slane %v1154, 4
    %v1195 = vrot.slane %v1155, 4
    %v1196 = vsel %vm1193, %v1194, %v1195
    %v1197 = vrot.slane %v1156, 4
    %v1198 = vsel %vm1193, %v1195, %v1197
    %v1199 = vrot.slane %v1157, 4
    %v1200 = vsel %vm1193, %v1197, %v1199
    %v1201 = vrot.slane %v1158, 4
    %v1202 = vsel %vm1193, %v1199, %v1201
    %v1207 = vmax.f32 %v1189, %v1196
    %v1208 = vmax.f32 %v1190, %v1198
    %v1209 = vmax.f32 %v1191, %v1200
    %v1210 = vmax.f32 %v1192, %v1202
    %vm1211 = vcmask 1042432
    %v1212 = vrot.slane %v1154, 5
    %v1213 = vrot.slane %v1155, 5
    %v1214 = vsel %vm1211, %v1212, %v1213
    %v1215 = vrot.slane %v1156, 5
    %v1216 = vsel %vm1211, %v1213, %v1215
    %v1217 = vrot.slane %v1157, 5
    %v1218 = vsel %vm1211, %v1215, %v1217
    %v1219 = vrot.slane %v1158, 5
    %v1220 = vsel %vm1211, %v1217, %v1219
    %v1225 = vmax.f32 %v1207, %v1214
    %v1226 = vmax.f32 %v1208, %v1216
    %v1227 = vmax.f32 %v1209, %v1218
    %v1228 = vmax.f32 %v1210, %v1220
    %v1229 = vmax.f32 %v1225, %v1158
    %v1230 = vmax.f32 %v1226, %v1159
    %v1231 = vmax.f32 %v1227, %v1160
    %v1232 = vmax.f32 %v1228, %v1161
    %v1237 = vrot.slane %v1159, 4
    %v1238 = vsel %vm1193, %v1201, %v1237
    %v1239 = vrot.slane %v1160, 4
    %v1240 = vsel %vm1193, %v1237, %v1239
    %v1241 = vrot.slane %v1161, 4
    %v1242 = vsel %vm1193, %v1239, %v1241
    %v1243 = vrot.slane %v1162, 4
    %v1244 = vsel %vm1193, %v1241, %v1243
    %v1249 = vmax.f32 %v1229, %v1238
    %v1250 = vmax.f32 %v1230, %v1240
    %v1251 = vmax.f32 %v1231, %v1242
    %v1252 = vmax.f32 %v1232, %v1244
    %v1253 = vmax.f32 %v1249, %v1162
    %v1254 = vmax.f32 %v1250, %v1163
    %v1255 = vmax.f32 %v1251, %v1164
    %v1256 = vmax.f32 %v1252, %v1165
    %v1261 = vrot.slane %v1162, 1
    %v1262 = vrot.slane %v1163, 1
    %v1263 = vsel %vm1175, %v1261, %v1262
    %v1264 = vrot.slane %v1164, 1
    %v1265 = vsel %vm1175, %v1262, %v1264
    %v1266 = vrot.slane %v1165, 1
    %v1267 = vsel %vm1175, %v1264, %v1266
    %v1268 = vrot.slane %v1166, 1
    %v1269 = vsel %vm1175, %v1266, %v1268
    %v1274 = vmax.f32 %v1253, %v1263
    %v1275 = vmax.f32 %v1254, %v1265
    %v1276 = vmax.f32 %v1255, %v1267
    %v1277 = vmax.f32 %v1256, %v1269
    %v1278 = vmax.f32 %v1274, %v1166
    %v1279 = vmax.f32 %v1275, %v1167
    %v1280 = vmax.f32 %v1276, %v1168
    %v1281 = vmax.f32 %v1277, %v1169
    %v1282 = vpack.c.bf16 %v1279, %v1278
    %v1283 = vpack.c.bf16 %v1281, %v1280
    %v1286 = vunpack.c.l.b16 %v1282
    %v1287 = vunpack.c.h.b16 %v1282
    %v1288 = vunpack.c.l.b16 %v1283
    %v1289 = vunpack.c.h.b16 %v1283
    %v1290 = vpack.c.b16 %v1286, %v1286
    %v1291 = vpack.c.b16 %v1287, %v1287
    %v1292 = vpack.c.b16 %v1288, %v1288
    %v1293 = vpack.c.b16 %v1289, %v1289
    %1298 = vst [vmem:[#allocation10] sm:$0xf] %v1290
    %1299 = vst [vmem:[#allocation10 + $0x4] sm:$0xf] %v1291
    %1300 = vst [vmem:[#allocation10 + $0x8] sm:$0xf] %v1292
    %1301 = vst [vmem:[#allocation10 + $0xc] sm:$0xf] %v1293
    // Predicated region
    $region34: #{alexnet_forward.7} parent=1 // pred_check
      _
    $region35: #{alexnet_forward.7} parent=1 // pred_check_branch
      %1303 = sbr.rel (0) target = $region37
    $region36: #{alexnet_forward.7} parent=1 // pred_region
      %s1305 = ssub.s32 256, 256
      %1306 = vsyncadd [#allocation4], %s1305
      %s1307 = sshll.u32 [#allocation10], 4
      %s1308 = int_to_ptr.vmem [resolvable:$true] %s1307
      %1313 = dma.vmem_to_hbm [thread:$0]  %s1308, 256, %s4, [#allocation4], 64, 64, 4
    $region37: #{alexnet_forward.7} parent=1 // pred_fallthru
      _
    // Predicated region
    $region38: #{alexnet_forward.7} parent=1 // pred_check
      _
    $region39: #{alexnet_forward.7} parent=1 // pred_check_branch
      %1315 = sbr.rel (0) target = $region41
    $region40: #{alexnet_forward.7} parent=1 // pred_region
      %1316 = dma.done [#allocation4], 256
    $region41: #{alexnet_forward.7} parent=1 // pred_fallthru
      _
    %1317 = vsyncpa [#allocation3], 1
    %1318 = vsyncpa [#allocation6], 1
    %1319 = vsyncpa [#allocation9], 1
    %1320 = vsyncpa [#allocation4], 1

// kernel: alexnet_forward.8
$region0: #{alexnet_forward.8}
  #allocation0 [shape = 'u32[]', space=smem, size = 0x4, offset = 0x4, fixed_abs, tag = 'smem constant byte address 0x4 - core index']
  #allocation1 [shape = 'u32[144,128]{1,0:T(1,128)}', space=vmem, size = 0x12000, scoped, tag = 'internal scratch']
  %s0 = inlined_call_operand.hbm [shape: bf16[80,128], index: 0, kind: input, shape index: {}]
  %s1 = inlined_call_operand.hbm [shape: bf16[9,128,256], index: 1, kind: input, shape index: {}]
  %s2 = inlined_call_operand.hbm [shape: f32[1,256], index: 2, kind: input, shape index: {}]
  %s3 = inlined_call_operand.hbm [shape: bf16[64,256], index: 3, kind: output, shape index: {}]
  %s4 = sld [smem:[#allocation0]]
  $region34: #{alexnet_forward.8} parent=0
    _
  %s6 = ssub.s32 1, %s4
  %s7 = scalar_select 0, %s6, %s4
  $region1: #{alexnet_forward.8} parent=0
    #allocation2 [shape = 'u8[20480]{0}', space=vmem, size = 0x5000, scoped, tag = 'input window, operand 0, single buffered']
    #allocation3 [shape = 's32[1]{0}', space=sflag, size = 0x4, scoped, tag = 'scoped memory for alexnet_forward.8']
    #allocation4 [shape = 's32[1]{0}', space=sflag, size = 0x4, scoped, tag = 'scoped memory for alexnet_forward.8']
    #allocation5 [shape = 'u8[589824]{0}', space=vmem, size = 0x90000, scoped, tag = 'input window, operand 1, single buffered']
    #allocation6 [shape = 's32[1]{0}', space=sflag, size = 0x4, scoped, tag = 'scoped memory for alexnet_forward.8']
    #allocation7 [shape = 'u8[1024]{0}', space=vmem, size = 0x400, scoped, tag = 'input window, operand 2, single buffered']
    #allocation8 [shape = 'u8[32768]{0}', space=vmem, size = 0x8000, scoped, tag = 'output window, operand 0, single buffered']
    %8 = vsyncpa [#allocation3], 0
    %9 = vsyncpa [#allocation6], 0
    %10 = vsyncpa [#allocation4], 0
    // Predicated region
    $region2: #{alexnet_forward.8} parent=1 // pred_check
      _
    $region3: #{alexnet_forward.8} parent=1 // pred_check_branch
      %12 = sbr.rel (0) target = $region5
    $region4: #{alexnet_forward.8} parent=1 // pred_region
      %s14 = ssub.s32 640, 640
      %15 = vsyncadd [#allocation3], %s14
      %s16 = sshll.u32 [#allocation2], 4
      %s17 = int_to_ptr.vmem [resolvable:$true] %s16
      %22 = dma.hbm_to_vmem [thread:$0]  %s0, 640, %s17, [#allocation3], 64, 64, 4
    $region5: #{alexnet_forward.8} parent=1 // pred_fallthru
      _
    // Predicated region
    $region6: #{alexnet_forward.8} parent=1 // pred_check
      _
    $region7: #{alexnet_forward.8} parent=1 // pred_check_branch
      %24 = sbr.rel (0) target = $region9
    $region8: #{alexnet_forward.8} parent=1 // pred_region
      %s26 = ssub.s32 18432, 18432
      %27 = vsyncadd [#allocation6], %s26
      %s28 = sshll.u32 [#allocation5], 4
      %s29 = int_to_ptr.vmem [resolvable:$true] %s28
      %34 = dma.hbm_to_vmem [thread:$0]  %s1, 18432, %s29, [#allocation6], 128, 128, 8
    $region9: #{alexnet_forward.8} parent=1 // pred_fallthru
      _
    // Predicated region
    $region10: #{alexnet_forward.8} parent=1 // pred_check
      _
    $region11: #{alexnet_forward.8} parent=1 // pred_check_branch
      %36 = sbr.rel (0) target = $region13
    $region12: #{alexnet_forward.8} parent=1 // pred_region
      %s38 = ssub.s32 32, 32
      %39 = vsyncadd [#allocation6], %s38
      %s41 = sshll.u32 [#allocation7], 4
      %s42 = int_to_ptr.vmem [resolvable:$true] %s41
      %44 = dma.hbm_to_vmem [thread:$0]  %s2, 32, %s42, [#allocation6]
    $region13: #{alexnet_forward.8} parent=1 // pred_fallthru
      _
    // Predicated region
    $region14: #{alexnet_forward.8} parent=1 // pred_check
      _
    $region15: #{alexnet_forward.8} parent=1 // pred_check_branch
      %46 = sbr.rel (0) target = $region17
    $region16: #{alexnet_forward.8} parent=1 // pred_region
      %47 = dma.done [#allocation3], 640
    $region17: #{alexnet_forward.8} parent=1 // pred_fallthru
      _
    // Predicated region
    $region18: #{alexnet_forward.8} parent=1 // pred_check
      _
    $region19: #{alexnet_forward.8} parent=1 // pred_check_branch
      %49 = sbr.rel (0) target = $region21
    $region20: #{alexnet_forward.8} parent=1 // pred_region
      %50 = dma.done [#allocation6], 18432
    $region21: #{alexnet_forward.8} parent=1 // pred_fallthru
      _
    // Predicated region
    $region22: #{alexnet_forward.8} parent=1 // pred_check
      _
    $region23: #{alexnet_forward.8} parent=1 // pred_check_branch
      %52 = sbr.rel (0) target = $region25
    $region24: #{alexnet_forward.8} parent=1 // pred_region
      %53 = dma.done [#allocation6], 32
    $region25: #{alexnet_forward.8} parent=1 // pred_fallthru
      _
    %v55 = vld [vmem:[#allocation2] sm:$0xf]
    %v56 = vld [vmem:[#allocation2 + $0x4] sm:$0xf]
    %v57 = vld [vmem:[#allocation2 + $0x8] sm:$0xf]
    %v58 = vld [vmem:[#allocation2 + $0xc] sm:$0xf]
    %v59 = vld [vmem:[#allocation2 + $0x10] sm:$0xf]
    %v60 = vld [vmem:[#allocation2 + $0x14] sm:$0xf]
    %v61 = vld [vmem:[#allocation2 + $0x18] sm:$0xf]
    %v62 = vld [vmem:[#allocation2 + $0x1c] sm:$0xf]
    %v63 = vld [vmem:[#allocation2 + $0x20] sm:$0xf]
    %v64 = vld [vmem:[#allocation2 + $0x24] sm:$0xf]
    %v65 = vld [vmem:[#allocation5] sm:$0xff]
    %v66 = vld [vmem:[#allocation5 + $0x8] sm:$0xff]
    %v67 = vld [vmem:[#allocation5 + $0x10] sm:$0xff]
    %v68 = vld [vmem:[#allocation5 + $0x18] sm:$0xff]
    %v69 = vld [vmem:[#allocation5 + $0x20] sm:$0xff]
    %v70 = vld [vmem:[#allocation5 + $0x28] sm:$0xff]
    %v71 = vld [vmem:[#allocation5 + $0x30] sm:$0xff]
    %v72 = vld [vmem:[#allocation5 + $0x38] sm:$0xff]
    %v73 = vld [vmem:[#allocation5 + $0x40] sm:$0xff]
    %v74 = vld [vmem:[#allocation5 + $0x48] sm:$0xff]
    %v75 = vld [vmem:[#allocation5 + $0x50] sm:$0xff]
    %v76 = vld [vmem:[#allocation5 + $0x58] sm:$0xff]
    %v77 = vld [vmem:[#allocation5 + $0x60] sm:$0xff]
    %v78 = vld [vmem:[#allocation5 + $0x68] sm:$0xff]
    %v79 = vld [vmem:[#allocation5 + $0x70] sm:$0xff]
    %v80 = vld [vmem:[#allocation5 + $0x78] sm:$0xff]
    %v81 = vld [vmem:[#allocation7] sm:$0x3]
    %v83 = vlaneseq
    %v84 = vshrl.u32 %v83, 7
    %v85 = vsub.s32 0, %v84
    %v86 = vrot.slane %v81, %v85
    %v87 = vlaneseq
    %v88 = vshrl.u32 %v87, 7
    %v89 = vsub.s32 1, %v88
    %v90 = vrot.slane %v81, %v89
    %v101 = vunpack.c.l.b16 %v55
    %v102 = vunpack.c.l.b16 %v56
    %v103 = vunpack.c.l.b16 %v57
    %v104 = vunpack.c.l.b16 %v58
    %v105 = vunpack.c.l.b16 %v59
    %v106 = vunpack.c.l.b16 %v60
    %v107 = vunpack.c.l.b16 %v61
    %v108 = vunpack.c.l.b16 %v62
    %v109 = vpack.c.b16 %v102, %v101
    %v110 = vpack.c.b16 %v104, %v103
    %v111 = vpack.c.b16 %v106, %v105
    %v112 = vpack.c.b16 %v108, %v107
    %v133 = vunpack.c.l.b16 %v65
    %v134 = vunpack.c.h.b16 %v65
    %v135 = vunpack.c.l.b16 %v66
    %v136 = vunpack.c.h.b16 %v66
    %v137 = vunpack.c.l.b16 %v67
    %v138 = vunpack.c.h.b16 %v67
    %v139 = vunpack.c.l.b16 %v68
    %v140 = vunpack.c.h.b16 %v68
    %v141 = vunpack.c.l.b16 %v69
    %v142 = vunpack.c.h.b16 %v69
    %v143 = vunpack.c.l.b16 %v70
    %v144 = vunpack.c.h.b16 %v70
    %v145 = vunpack.c.l.b16 %v71
    %v146 = vunpack.c.h.b16 %v71
    %v147 = vunpack.c.l.b16 %v72
    %v148 = vunpack.c.h.b16 %v72
    %v149 = vunpack.c.l.b16 %v73
    %v150 = vunpack.c.h.b16 %v73
    %v151 = vunpack.c.l.b16 %v74
    %v152 = vunpack.c.h.b16 %v74
    %v153 = vunpack.c.l.b16 %v75
    %v154 = vunpack.c.h.b16 %v75
    %v155 = vunpack.c.l.b16 %v76
    %v156 = vunpack.c.h.b16 %v76
    %v157 = vunpack.c.l.b16 %v77
    %v158 = vunpack.c.h.b16 %v77
    %v159 = vunpack.c.l.b16 %v78
    %v160 = vunpack.c.h.b16 %v78
    %v161 = vunpack.c.l.b16 %v79
    %v162 = vunpack.c.h.b16 %v79
    %v163 = vunpack.c.l.b16 %v80
    %v164 = vunpack.c.h.b16 %v80
    %v165 = vpack.c.b16 %v135, %v133
    %v166 = vpack.c.b16 %v136, %v134
    %v167 = vpack.c.b16 %v139, %v137
    %v168 = vpack.c.b16 %v140, %v138
    %v169 = vpack.c.b16 %v143, %v141
    %v170 = vpack.c.b16 %v144, %v142
    %v171 = vpack.c.b16 %v147, %v145
    %v172 = vpack.c.b16 %v148, %v146
    %v173 = vpack.c.b16 %v151, %v149
    %v174 = vpack.c.b16 %v152, %v150
    %v175 = vpack.c.b16 %v155, %v153
    %v176 = vpack.c.b16 %v156, %v154
    %v177 = vpack.c.b16 %v159, %v157
    %v178 = vpack.c.b16 %v160, %v158
    %v179 = vpack.c.b16 %v163, %v161
    %v180 = vpack.c.b16 %v164, %v162
    %197 = vmatprep.subr.bf16.mxu0 %v166
    %198 = vmatpush1.bf16.msra.mxu0 %v165
    %199 = vmatprep.subr.bf16.mxu0 %v168
    %200 = vmatpush1.bf16.msra.mxu0 %v167
    %201 = vmatprep.subr.bf16.mxu0 %v170
    %202 = vmatpush1.bf16.msra.mxu0 %v169
    %203 = vmatprep.subr.bf16.mxu0 %v172
    %204 = vmatpush1.bf16.msra.mxu0 %v171
    %205 = vmatprep.subr.bf16.mxu0 %v174
    %206 = vmatpush1.bf16.msra.mxu0 %v173
    %207 = vmatprep.subr.bf16.mxu0 %v176
    %208 = vmatpush1.bf16.msra.mxu0 %v175
    %209 = vmatprep.subr.bf16.mxu0 %v178
    %210 = vmatpush1.bf16.msra.mxu0 %v177
    %211 = vmatprep.subr.bf16.mxu0 %v180
    %212 = vmatpush1.bf16.msra.mxu0 %v179
    %213 = vmatprep.subr.bf16.mxu0 0
    %214 = vmatpush1.bf16.msra.mxu0 0
    %215 = vmatprep.subr.bf16.mxu0 0
    %216 = vmatpush1.bf16.msra.mxu0 0
    %217 = vmatprep.subr.bf16.mxu0 0
    %218 = vmatpush1.bf16.msra.mxu0 0
    %219 = vmatprep.subr.bf16.mxu0 0
    %220 = vmatpush1.bf16.msra.mxu0 0
    %221 = vmatprep.subr.bf16.mxu0 0
    %222 = vmatpush1.bf16.msra.mxu0 0
    %223 = vmatprep.subr.bf16.mxu0 0
    %224 = vmatpush1.bf16.msra.mxu0 0
    %225 = vmatprep.subr.bf16.mxu0 0
    %226 = vmatpush1.bf16.msra.mxu0 0
    %227 = vmatprep.subr.bf16.mxu0 0
    %228 = vmatpush1.bf16.msra.mxu0 0
    %229 = vmatprep.mubr.bf16.mxu0 0
    %230 = vmatmul.mubr.bf16.gmra.mrb[0].mxu0 %v109
    %v231 = vpop.f32.mrb[0].mxu0
    %v232 = vadd.f32 %v86, %v231
    %v233 = vpop.f32.mrb[0].mxu0
    %v234 = vadd.f32 %v90, %v233
    %v235 = vpop.f32.mrb[0].mxu0
    %v236 = vadd.f32 %v86, %v235
    %v237 = vpop.f32.mrb[0].mxu0
    %v238 = vadd.f32 %v90, %v237
    %239 = vmatprep.mubr.bf16.mxu0 0
    %240 = vmatmul.mubr.bf16.gmra.mrb[0].mxu0 %v110
    %v241 = vpop.f32.mrb[0].mxu0
    %v242 = vadd.f32 %v86, %v241
    %v243 = vpop.f32.mrb[0].mxu0
    %v244 = vadd.f32 %v90, %v243
    %v245 = vpop.f32.mrb[0].mxu0
    %v246 = vadd.f32 %v86, %v245
    %v247 = vpop.f32.mrb[0].mxu0
    %v248 = vadd.f32 %v90, %v247
    %249 = vmatprep.mubr.bf16.mxu0 0
    %250 = vmatmul.mubr.bf16.gmra.mrb[0].mxu0 %v111
    %v251 = vpop.f32.mrb[0].mxu0
    %v252 = vadd.f32 %v86, %v251
    %v253 = vpop.f32.mrb[0].mxu0
    %v254 = vadd.f32 %v90, %v253
    %v255 = vpop.f32.mrb[0].mxu0
    %v256 = vadd.f32 %v86, %v255
    %v257 = vpop.f32.mrb[0].mxu0
    %v258 = vadd.f32 %v90, %v257
    %259 = vmatprep.mubr.bf16.mxu0 0
    %260 = vmatmul.mubr.bf16.gmra.mrb[0].mxu0 %v112
    %v261 = vpop.f32.mrb[0].mxu0
    %v262 = vadd.f32 %v86, %v261
    %v263 = vpop.f32.mrb[0].mxu0
    %v264 = vadd.f32 %v90, %v263
    %v265 = vpop.f32.mrb[0].mxu0
    %v266 = vadd.f32 %v86, %v265
    %v267 = vpop.f32.mrb[0].mxu0
    %v268 = vadd.f32 %v90, %v267
    %269 = vdwg.mxu0
    %s270 = scalar_lea.vmem [#allocation5], 128
    %v271 = vld [vmem:[%s270] sm:$0xff]
    %v272 = vld [vmem:[%s270 + $0x8] sm:$0xff]
    %v273 = vld [vmem:[%s270 + $0x10] sm:$0xff]
    %v274 = vld [vmem:[%s270 + $0x18] sm:$0xff]
    %v275 = vld [vmem:[%s270 + $0x20] sm:$0xff]
    %v276 = vld [vmem:[%s270 + $0x28] sm:$0xff]
    %v277 = vld [vmem:[%s270 + $0x30] sm:$0xff]
    %v278 = vld [vmem:[%s270 + $0x38] sm:$0xff]
    %v279 = vld [vmem:[%s270 + $0x40] sm:$0xff]
    %v280 = vld [vmem:[%s270 + $0x48] sm:$0xff]
    %v281 = vld [vmem:[%s270 + $0x50] sm:$0xff]
    %v282 = vld [vmem:[%s270 + $0x58] sm:$0xff]
    %v283 = vld [vmem:[%s270 + $0x60] sm:$0xff]
    %v284 = vld [vmem:[%s270 + $0x68] sm:$0xff]
    %v285 = vld [vmem:[%s270 + $0x70] sm:$0xff]
    %v286 = vld [vmem:[%s270 + $0x78] sm:$0xff]
    %v288 = vunpack.c.l.b16 %v63
    %v289 = vpack.c.b16 %v288, %v288
    %vm290 = vsmask.f32 7424
    %v292 = vshrl.u32 %v109, 16
    %v294 = vshll.u32 %v109, 16
    %v296 = vrot.slane %v294, 1
    %v297 = vor.u32 %v292, %v296
    %v299 = vshll.u32 %v110, 16
    %v301 = vrot.slane %v299, 1
    %v302 = vsel %vm290, %v297, %v301
    %v303 = vshrl.u32 %v110, 16
    %v305 = vor.u32 %v303, %v301
    %v307 = vshll.u32 %v111, 16
    %v309 = vrot.slane %v307, 1
    %v310 = vsel %vm290, %v305, %v309
    %v311 = vshrl.u32 %v111, 16
    %v313 = vor.u32 %v311, %v309
    %v315 = vshll.u32 %v112, 16
    %v317 = vrot.slane %v315, 1
    %v318 = vsel %vm290, %v313, %v317
    %v319 = vshrl.u32 %v112, 16
    %v321 = vor.u32 %v319, %v317
    %v323 = vshll.u32 %v289, 16
    %v325 = vrot.slane %v323, 1
    %v326 = vsel %vm290, %v321, %v325
    %v347 = vunpack.c.l.b16 %v271
    %v348 = vunpack.c.h.b16 %v271
    %v349 = vunpack.c.l.b16 %v272
    %v350 = vunpack.c.h.b16 %v272
    %v351 = vunpack.c.l.b16 %v273
    %v352 = vunpack.c.h.b16 %v273
    %v353 = vunpack.c.l.b16 %v274
    %v354 = vunpack.c.h.b16 %v274
    %v355 = vunpack.c.l.b16 %v275
    %v356 = vunpack.c.h.b16 %v275
    %v357 = vunpack.c.l.b16 %v276
    %v358 = vunpack.c.h.b16 %v276
    %v359 = vunpack.c.l.b16 %v277
    %v360 = vunpack.c.h.b16 %v277
    %v361 = vunpack.c.l.b16 %v278
    %v362 = vunpack.c.h.b16 %v278
    %v363 = vunpack.c.l.b16 %v279
    %v364 = vunpack.c.h.b16 %v279
    %v365 = vunpack.c.l.b16 %v280
    %v366 = vunpack.c.h.b16 %v280
    %v367 = vunpack.c.l.b16 %v281
    %v368 = vunpack.c.h.b16 %v281
    %v369 = vunpack.c.l.b16 %v282
    %v370 = vunpack.c.h.b16 %v282
    %v371 = vunpack.c.l.b16 %v283
    %v372 = vunpack.c.h.b16 %v283
    %v373 = vunpack.c.l.b16 %v284
    %v374 = vunpack.c.h.b16 %v284
    %v375 = vunpack.c.l.b16 %v285
    %v376 = vunpack.c.h.b16 %v285
    %v377 = vunpack.c.l.b16 %v286
    %v378 = vunpack.c.h.b16 %v286
    %v379 = vpack.c.b16 %v349, %v347
    %v380 = vpack.c.b16 %v350, %v348
    %v381 = vpack.c.b16 %v353, %v351
    %v382 = vpack.c.b16 %v354, %v352
    %v383 = vpack.c.b16 %v357, %v355
    %v384 = vpack.c.b16 %v358, %v356
    %v385 = vpack.c.b16 %v361, %v359
    %v386 = vpack.c.b16 %v362, %v360
    %v387 = vpack.c.b16 %v365, %v363
    %v388 = vpack.c.b16 %v366, %v364
    %v389 = vpack.c.b16 %v369, %v367
    %v390 = vpack.c.b16 %v370, %v368
    %v391 = vpack.c.b16 %v373, %v371
    %v392 = vpack.c.b16 %v374, %v372
    %v393 = vpack.c.b16 %v377, %v375
    %v394 = vpack.c.b16 %v378, %v376
    %411 = vmatprep.subr.bf16.mxu0 %v380
    %412 = vmatpush1.bf16.msra.mxu0 %v379
    %413 = vmatprep.subr.bf16.mxu0 %v382
    %414 = vmatpush1.bf16.msra.mxu0 %v381
    %415 = vmatprep.subr.bf16.mxu0 %v384
    %416 = vmatpush1.bf16.msra.mxu0 %v383
    %417 = vmatprep.subr.bf16.mxu0 %v386
    %418 = vmatpush1.bf16.msra.mxu0 %v385
    %419 = vmatprep.subr.bf16.mxu0 %v388
    %420 = vmatpush1.bf16.msra.mxu0 %v387
    %421 = vmatprep.subr.bf16.mxu0 %v390
    %422 = vmatpush1.bf16.msra.mxu0 %v389
    %423 = vmatprep.subr.bf16.mxu0 %v392
    %424 = vmatpush1.bf16.msra.mxu0 %v391
    %425 = vmatprep.subr.bf16.mxu0 %v394
    %426 = vmatpush1.bf16.msra.mxu0 %v393
    %427 = vmatprep.subr.bf16.mxu0 0
    %428 = vmatpush1.bf16.msra.mxu0 0
    %429 = vmatprep.subr.bf16.mxu0 0
    %430 = vmatpush1.bf16.msra.mxu0 0
    %431 = vmatprep.subr.bf16.mxu0 0
    %432 = vmatpush1.bf16.msra.mxu0 0
    %433 = vmatprep.subr.bf16.mxu0 0
    %434 = vmatpush1.bf16.msra.mxu0 0
    %435 = vmatprep.subr.bf16.mxu0 0
    %436 = vmatpush1.bf16.msra.mxu0 0
    %437 = vmatprep.subr.bf16.mxu0 0
    %438 = vmatpush1.bf16.msra.mxu0 0
    %439 = vmatprep.subr.bf16.mxu0 0
    %440 = vmatpush1.bf16.msra.mxu0 0
    %441 = vmatprep.subr.bf16.mxu0 0
    %442 = vmatpush1.bf16.msra.mxu0 0
    %443 = vmatprep.mubr.bf16.mxu0 0
    %444 = vmatmul.mubr.bf16.gmra.mrb[0].mxu0 %v302
    %v445 = vpop.f32.mrb[0].mxu0
    %v446 = vadd.f32 0.0, %v445
    %v447 = vpop.f32.mrb[0].mxu0
    %v448 = vadd.f32 0.0, %v447
    %v449 = vpop.f32.mrb[0].mxu0
    %v450 = vadd.f32 0.0, %v449
    %v451 = vpop.f32.mrb[0].mxu0
    %v452 = vadd.f32 0.0, %v451
    %453 = vmatprep.mubr.bf16.mxu0 0
    %454 = vmatmul.mubr.bf16.gmra.mrb[0].mxu0 %v310
    %v455 = vpop.f32.mrb[0].mxu0
    %v456 = vadd.f32 0.0, %v455
    %v457 = vpop.f32.mrb[0].mxu0
    %v458 = vadd.f32 0.0, %v457
    %v459 = vpop.f32.mrb[0].mxu0
    %v460 = vadd.f32 0.0, %v459
    %v461 = vpop.f32.mrb[0].mxu0
    %v462 = vadd.f32 0.0, %v461
    %463 = vmatprep.mubr.bf16.mxu0 0
    %464 = vmatmul.mubr.bf16.gmra.mrb[0].mxu0 %v318
    %v465 = vpop.f32.mrb[0].mxu0
    %v466 = vadd.f32 0.0, %v465
    %v467 = vpop.f32.mrb[0].mxu0
    %v468 = vadd.f32 0.0, %v467
    %v469 = vpop.f32.mrb[0].mxu0
    %v470 = vadd.f32 0.0, %v469
    %v471 = vpop.f32.mrb[0].mxu0
    %v472 = vadd.f32 0.0, %v471
    %473 = vmatprep.mubr.bf16.mxu0 0
    %474 = vmatmul.mubr.bf16.gmra.mrb[0].mxu0 %v326
    %v475 = vpop.f32.mrb[0].mxu0
    %v476 = vadd.f32 0.0, %v475
    %v477 = vpop.f32.mrb[0].mxu0
    %v478 = vadd.f32 0.0, %v477
    %v479 = vpop.f32.mrb[0].mxu0
    %v480 = vadd.f32 0.0, %v479
    %v481 = vpop.f32.mrb[0].mxu0
    %v482 = vadd.f32 0.0, %v481
    %483 = vdwg.mxu0
    %v484 = vadd.f32 %v232, %v446
    %v485 = vadd.f32 %v234, %v448
    %v486 = vadd.f32 %v236, %v450
    %v487 = vadd.f32 %v238, %v452
    %v488 = vadd.f32 %v242, %v456
    %v489 = vadd.f32 %v244, %v458
    %v490 = vadd.f32 %v246, %v460
    %v491 = vadd.f32 %v248, %v462
    %v492 = vadd.f32 %v252, %v466
    %v493 = vadd.f32 %v254, %v468
    %v494 = vadd.f32 %v256, %v470
    %v495 = vadd.f32 %v258, %v472
    %v496 = vadd.f32 %v262, %v476
    %v497 = vadd.f32 %v264, %v478
    %v498 = vadd.f32 %v266, %v480
    %v499 = vadd.f32 %v268, %v482
    %s500 = scalar_lea.vmem [#allocation5], 256
    %v501 = vld [vmem:[%s500] sm:$0xff]
    %v502 = vld [vmem:[%s500 + $0x8] sm:$0xff]
    %v503 = vld [vmem:[%s500 + $0x10] sm:$0xff]
    %v504 = vld [vmem:[%s500 + $0x18] sm:$0xff]
    %v505 = vld [vmem:[%s500 + $0x20] sm:$0xff]
    %v506 = vld [vmem:[%s500 + $0x28] sm:$0xff]
    %v507 = vld [vmem:[%s500 + $0x30] sm:$0xff]
    %v508 = vld [vmem:[%s500 + $0x38] sm:$0xff]
    %v509 = vld [vmem:[%s500 + $0x40] sm:$0xff]
    %v510 = vld [vmem:[%s500 + $0x48] sm:$0xff]
    %v511 = vld [vmem:[%s500 + $0x50] sm:$0xff]
    %v512 = vld [vmem:[%s500 + $0x58] sm:$0xff]
    %v513 = vld [vmem:[%s500 + $0x60] sm:$0xff]
    %v514 = vld [vmem:[%s500 + $0x68] sm:$0xff]
    %v515 = vld [vmem:[%s500 + $0x70] sm:$0xff]
    %v516 = vld [vmem:[%s500 + $0x78] sm:$0xff]
    %vm517 = vcmask 1046528
    %v518 = vrot.slane %v109, 1
    %v519 = vrot.slane %v110, 1
    %v520 = vsel %vm517, %v518, %v519
    %v521 = vrot.slane %v111, 1
    %v522 = vsel %vm517, %v519, %v521
    %v523 = vrot.slane %v112, 1
    %v524 = vsel %vm517, %v521, %v523
    %v525 = vrot.slane %v289, 1
    %v526 = vsel %vm517, %v523, %v525
    %v547 = vunpack.c.l.b16 %v501
    %v548 = vunpack.c.h.b16 %v501
    %v549 = vunpack.c.l.b16 %v502
    %v550 = vunpack.c.h.b16 %v502
    %v551 = vunpack.c.l.b16 %v503
    %v552 = vunpack.c.h.b16 %v503
    %v553 = vunpack.c.l.b16 %v504
    %v554 = vunpack.c.h.b16 %v504
    %v555 = vunpack.c.l.b16 %v505
    %v556 = vunpack.c.h.b16 %v505
    %v557 = vunpack.c.l.b16 %v506
    %v558 = vunpack.c.h.b16 %v506
    %v559 = vunpack.c.l.b16 %v507
    %v560 = vunpack.c.h.b16 %v507
    %v561 = vunpack.c.l.b16 %v508
    %v562 = vunpack.c.h.b16 %v508
    %v563 = vunpack.c.l.b16 %v509
    %v564 = vunpack.c.h.b16 %v509
    %v565 = vunpack.c.l.b16 %v510
    %v566 = vunpack.c.h.b16 %v510
    %v567 = vunpack.c.l.b16 %v511
    %v568 = vunpack.c.h.b16 %v511
    %v569 = vunpack.c.l.b16 %v512
    %v570 = vunpack.c.h.b16 %v512
    %v571 = vunpack.c.l.b16 %v513
    %v572 = vunpack.c.h.b16 %v513
    %v573 = vunpack.c.l.b16 %v514
    %v574 = vunpack.c.h.b16 %v514
    %v575 = vunpack.c.l.b16 %v515
    %v576 = vunpack.c.h.b16 %v515
    %v577 = vunpack.c.l.b16 %v516
    %v578 = vunpack.c.h.b16 %v516
    %v579 = vpack.c.b16 %v549, %v547
    %v580 = vpack.c.b16 %v550, %v548
    %v581 = vpack.c.b16 %v553, %v551
    %v582 = vpack.c.b16 %v554, %v552
    %v583 = vpack.c.b16 %v557, %v555
    %v584 = vpack.c.b16 %v558, %v556
    %v585 = vpack.c.b16 %v561, %v559
    %v586 = vpack.c.b16 %v562, %v560
    %v587 = vpack.c.b16 %v565, %v563
    %v588 = vpack.c.b16 %v566, %v564
    %v589 = vpack.c.b16 %v569, %v567
    %v590 = vpack.c.b16 %v570, %v568
    %v591 = vpack.c.b16 %v573, %v571
    %v592 = vpack.c.b16 %v574, %v572
    %v593 = vpack.c.b16 %v577, %v575
    %v594 = vpack.c.b16 %v578, %v576
    %611 = vmatprep.subr.bf16.mxu0 %v580
    %612 = vmatpush1.bf16.msra.mxu0 %v579
    %613 = vmatprep.subr.bf16.mxu0 %v582
    %614 = vmatpush1.bf16.msra.mxu0 %v581
    %615 = vmatprep.subr.bf16.mxu0 %v584
    %616 = vmatpush1.bf16.msra.mxu0 %v583
    %617 = vmatprep.subr.bf16.mxu0 %v586
    %618 = vmatpush1.bf16.msra.mxu0 %v585
    %619 = vmatprep.subr.bf16.mxu0 %v588
    %620 = vmatpush1.bf16.msra.mxu0 %v587
    %621 = vmatprep.subr.bf16.mxu0 %v590
    %622 = vmatpush1.bf16.msra.mxu0 %v589
    %623 = vmatprep.subr.bf16.mxu0 %v592
    %624 = vmatpush1.bf16.msra.mxu0 %v591
    %625 = vmatprep.subr.bf16.mxu0 %v594
    %626 = vmatpush1.bf16.msra.mxu0 %v593
    %627 = vmatprep.subr.bf16.mxu0 0
    %628 = vmatpush1.bf16.msra.mxu0 0
    %629 = vmatprep.subr.bf16.mxu0 0
    %630 = vmatpush1.bf16.msra.mxu0 0
    %631 = vmatprep.subr.bf16.mxu0 0
    %632 = vmatpush1.bf16.msra.mxu0 0
    %633 = vmatprep.subr.bf16.mxu0 0
    %634 = vmatpush1.bf16.msra.mxu0 0
    %635 = vmatprep.subr.bf16.mxu0 0
    %636 = vmatpush1.bf16.msra.mxu0 0
    %637 = vmatprep.subr.bf16.mxu0 0
    %638 = vmatpush1.bf16.msra.mxu0 0
    %639 = vmatprep.subr.bf16.mxu0 0
    %640 = vmatpush1.bf16.msra.mxu0 0
    %641 = vmatprep.subr.bf16.mxu0 0
    %642 = vmatpush1.bf16.msra.mxu0 0
    %643 = vmatprep.mubr.bf16.mxu0 0
    %644 = vmatmul.mubr.bf16.gmra.mrb[0].mxu0 %v520
    %v645 = vpop.f32.mrb[0].mxu0
    %v646 = vadd.f32 0.0, %v645
    %v647 = vpop.f32.mrb[0].mxu0
    %v648 = vadd.f32 0.0, %v647
    %v649 = vpop.f32.mrb[0].mxu0
    %v650 = vadd.f32 0.0, %v649
    %v651 = vpop.f32.mrb[0].mxu0
    %v652 = vadd.f32 0.0, %v651
    %653 = vmatprep.mubr.bf16.mxu0 0
    %654 = vmatmul.mubr.bf16.gmra.mrb[0].mxu0 %v522
    %v655 = vpop.f32.mrb[0].mxu0
    %v656 = vadd.f32 0.0, %v655
    %v657 = vpop.f32.mrb[0].mxu0
    %v658 = vadd.f32 0.0, %v657
    %v659 = vpop.f32.mrb[0].mxu0
    %v660 = vadd.f32 0.0, %v659
    %v661 = vpop.f32.mrb[0].mxu0
    %v662 = vadd.f32 0.0, %v661
    %663 = vmatprep.mubr.bf16.mxu0 0
    %664 = vmatmul.mubr.bf16.gmra.mrb[0].mxu0 %v524
    %v665 = vpop.f32.mrb[0].mxu0
    %v666 = vadd.f32 0.0, %v665
    %v667 = vpop.f32.mrb[0].mxu0
    %v668 = vadd.f32 0.0, %v667
    %v669 = vpop.f32.mrb[0].mxu0
    %v670 = vadd.f32 0.0, %v669
    %v671 = vpop.f32.mrb[0].mxu0
    %v672 = vadd.f32 0.0, %v671
    %673 = vmatprep.mubr.bf16.mxu0 0
    %674 = vmatmul.mubr.bf16.gmra.mrb[0].mxu0 %v526
    %v675 = vpop.f32.mrb[0].mxu0
    %v676 = vadd.f32 0.0, %v675
    %v677 = vpop.f32.mrb[0].mxu0
    %v678 = vadd.f32 0.0, %v677
    %v679 = vpop.f32.mrb[0].mxu0
    %v680 = vadd.f32 0.0, %v679
    %v681 = vpop.f32.mrb[0].mxu0
    %v682 = vadd.f32 0.0, %v681
    %683 = vdwg.mxu0
    %v684 = vadd.f32 %v484, %v646
    %v685 = vadd.f32 %v485, %v648
    %v686 = vadd.f32 %v486, %v650
    %v687 = vadd.f32 %v487, %v652
    %v688 = vadd.f32 %v488, %v656
    %v689 = vadd.f32 %v489, %v658
    %v690 = vadd.f32 %v490, %v660
    %v691 = vadd.f32 %v491, %v662
    %v692 = vadd.f32 %v492, %v666
    %v693 = vadd.f32 %v493, %v668
    %v694 = vadd.f32 %v494, %v670
    %v695 = vadd.f32 %v495, %v672
    %v696 = vadd.f32 %v496, %v676
    %v697 = vadd.f32 %v497, %v678
    %v698 = vadd.f32 %v498, %v680
    %v699 = vadd.f32 %v499, %v682
    %s700 = scalar_lea.vmem [#allocation5], 384
    %v701 = vld [vmem:[%s700] sm:$0xff]
    %v702 = vld [vmem:[%s700 + $0x8] sm:$0xff]
    %v703 = vld [vmem:[%s700 + $0x10] sm:$0xff]
    %v704 = vld [vmem:[%s700 + $0x18] sm:$0xff]
    %v705 = vld [vmem:[%s700 + $0x20] sm:$0xff]
    %v706 = vld [vmem:[%s700 + $0x28] sm:$0xff]
    %v707 = vld [vmem:[%s700 + $0x30] sm:$0xff]
    %v708 = vld [vmem:[%s700 + $0x38] sm:$0xff]
    %v709 = vld [vmem:[%s700 + $0x40] sm:$0xff]
    %v710 = vld [vmem:[%s700 + $0x48] sm:$0xff]
    %v711 = vld [vmem:[%s700 + $0x50] sm:$0xff]
    %v712 = vld [vmem:[%s700 + $0x58] sm:$0xff]
    %v713 = vld [vmem:[%s700 + $0x60] sm:$0xff]
    %v714 = vld [vmem:[%s700 + $0x68] sm:$0xff]
    %v715 = vld [vmem:[%s700 + $0x70] sm:$0xff]
    %v716 = vld [vmem:[%s700 + $0x78] sm:$0xff]
    %vm717 = vsmask.f32 5376
    %v718 = vrot.slane %v292, 2
    %v719 = vrot.slane %v294, 3
    %v720 = vor.u32 %v718, %v719
    %v721 = vrot.slane %v303, 2
    %v722 = vrot.slane %v299, 3
    %v723 = vor.u32 %v721, %v722
    %v724 = vsel %vm717, %v720, %v723
    %v725 = vrot.slane %v311, 2
    %v726 = vrot.slane %v307, 3
    %v727 = vor.u32 %v725, %v726
    %v728 = vsel %vm717, %v723, %v727
    %v729 = vrot.slane %v319, 2
    %v730 = vrot.slane %v315, 3
    %v731 = vor.u32 %v729, %v730
    %v732 = vsel %vm717, %v727, %v731
    %v733 = vshrl.u32 %v289, 16
    %v735 = vrot.slane %v733, 2
    %v736 = vrot.slane %v323, 3
    %v737 = vor.u32 %v735, %v736
    %v738 = vsel %vm717, %v731, %v737
    %v759 = vunpack.c.l.b16 %v701
    %v760 = vunpack.c.h.b16 %v701
    %v761 = vunpack.c.l.b16 %v702
    %v762 = vunpack.c.h.b16 %v702
    %v763 = vunpack.c.l.b16 %v703
    %v764 = vunpack.c.h.b16 %v703
    %v765 = vunpack.c.l.b16 %v704
    %v766 = vunpack.c.h.b16 %v704
    %v767 = vunpack.c.l.b16 %v705
    %v768 = vunpack.c.h.b16 %v705
    %v769 = vunpack.c.l.b16 %v706
    %v770 = vunpack.c.h.b16 %v706
    %v771 = vunpack.c.l.b16 %v707
    %v772 = vunpack.c.h.b16 %v707
    %v773 = vunpack.c.l.b16 %v708
    %v774 = vunpack.c.h.b16 %v708
    %v775 = vunpack.c.l.b16 %v709
    %v776 = vunpack.c.h.b16 %v709
    %v777 = vunpack.c.l.b16 %v710
    %v778 = vunpack.c.h.b16 %v710
    %v779 = vunpack.c.l.b16 %v711
    %v780 = vunpack.c.h.b16 %v711
    %v781 = vunpack.c.l.b16 %v712
    %v782 = vunpack.c.h.b16 %v712
    %v783 = vunpack.c.l.b16 %v713
    %v784 = vunpack.c.h.b16 %v713
    %v785 = vunpack.c.l.b16 %v714
    %v786 = vunpack.c.h.b16 %v714
    %v787 = vunpack.c.l.b16 %v715
    %v788 = vunpack.c.h.b16 %v715
    %v789 = vunpack.c.l.b16 %v716
    %v790 = vunpack.c.h.b16 %v716
    %v791 = vpack.c.b16 %v761, %v759
    %v792 = vpack.c.b16 %v762, %v760
    %v793 = vpack.c.b16 %v765, %v763
    %v794 = vpack.c.b16 %v766, %v764
    %v795 = vpack.c.b16 %v769, %v767
    %v796 = vpack.c.b16 %v770, %v768
    %v797 = vpack.c.b16 %v773, %v771
    %v798 = vpack.c.b16 %v774, %v772
    %v799 = vpack.c.b16 %v777, %v775
    %v800 = vpack.c.b16 %v778, %v776
    %v801 = vpack.c.b16 %v781, %v779
    %v802 = vpack.c.b16 %v782, %v780
    %v803 = vpack.c.b16 %v785, %v783
    %v804 = vpack.c.b16 %v786, %v784
    %v805 = vpack.c.b16 %v789, %v787
    %v806 = vpack.c.b16 %v790, %v788
    %823 = vmatprep.subr.bf16.mxu0 %v792
    %824 = vmatpush1.bf16.msra.mxu0 %v791
    %825 = vmatprep.subr.bf16.mxu0 %v794
    %826 = vmatpush1.bf16.msra.mxu0 %v793
    %827 = vmatprep.subr.bf16.mxu0 %v796
    %828 = vmatpush1.bf16.msra.mxu0 %v795
    %829 = vmatprep.subr.bf16.mxu0 %v798
    %830 = vmatpush1.bf16.msra.mxu0 %v797
    %831 = vmatprep.subr.bf16.mxu0 %v800
    %832 = vmatpush1.bf16.msra.mxu0 %v799
    %833 = vmatprep.subr.bf16.mxu0 %v802
    %834 = vmatpush1.bf16.msra.mxu0 %v801
    %835 = vmatprep.subr.bf16.mxu0 %v804
    %836 = vmatpush1.bf16.msra.mxu0 %v803
    %837 = vmatprep.subr.bf16.mxu0 %v806
    %838 = vmatpush1.bf16.msra.mxu0 %v805
    %839 = vmatprep.subr.bf16.mxu0 0
    %840 = vmatpush1.bf16.msra.mxu0 0
    %841 = vmatprep.subr.bf16.mxu0 0
    %842 = vmatpush1.bf16.msra.mxu0 0
    %843 = vmatprep.subr.bf16.mxu0 0
    %844 = vmatpush1.bf16.msra.mxu0 0
    %845 = vmatprep.subr.bf16.mxu0 0
    %846 = vmatpush1.bf16.msra.mxu0 0
    %847 = vmatprep.subr.bf16.mxu0 0
    %848 = vmatpush1.bf16.msra.mxu0 0
    %849 = vmatprep.subr.bf16.mxu0 0
    %850 = vmatpush1.bf16.msra.mxu0 0
    %851 = vmatprep.subr.bf16.mxu0 0
    %852 = vmatpush1.bf16.msra.mxu0 0
    %853 = vmatprep.subr.bf16.mxu0 0
    %854 = vmatpush1.bf16.msra.mxu0 0
    %855 = vmatprep.mubr.bf16.mxu0 0
    %856 = vmatmul.mubr.bf16.gmra.mrb[0].mxu0 %v724
    %v857 = vpop.f32.mrb[0].mxu0
    %v858 = vadd.f32 0.0, %v857
    %v859 = vpop.f32.mrb[0].mxu0
    %v860 = vadd.f32 0.0, %v859
    %v861 = vpop.f32.mrb[0].mxu0
    %v862 = vadd.f32 0.0, %v861
    %v863 = vpop.f32.mrb[0].mxu0
    %v864 = vadd.f32 0.0, %v863
    %865 = vmatprep.mubr.bf16.mxu0 0
    %866 = vmatmul.mubr.bf16.gmra.mrb[0].mxu0 %v728
    %v867 = vpop.f32.mrb[0].mxu0
    %v868 = vadd.f32 0.0, %v867
    %v869 = vpop.f32.mrb[0].mxu0
    %v870 = vadd.f32 0.0, %v869
    %v871 = vpop.f32.mrb[0].mxu0
    %v872 = vadd.f32 0.0, %v871
    %v873 = vpop.f32.mrb[0].mxu0
    %v874 = vadd.f32 0.0, %v873
    %875 = vmatprep.mubr.bf16.mxu0 0
    %876 = vmatmul.mubr.bf16.gmra.mrb[0].mxu0 %v732
    %v877 = vpop.f32.mrb[0].mxu0
    %v878 = vadd.f32 0.0, %v877
    %v879 = vpop.f32.mrb[0].mxu0
    %v880 = vadd.f32 0.0, %v879
    %v881 = vpop.f32.mrb[0].mxu0
    %v882 = vadd.f32 0.0, %v881
    %v883 = vpop.f32.mrb[0].mxu0
    %v884 = vadd.f32 0.0, %v883
    %885 = vmatprep.mubr.bf16.mxu0 0
    %886 = vmatmul.mubr.bf16.gmra.mrb[0].mxu0 %v738
    %v887 = vpop.f32.mrb[0].mxu0
    %v888 = vadd.f32 0.0, %v887
    %v889 = vpop.f32.mrb[0].mxu0
    %v890 = vadd.f32 0.0, %v889
    %v891 = vpop.f32.mrb[0].mxu0
    %v892 = vadd.f32 0.0, %v891
    %v893 = vpop.f32.mrb[0].mxu0
    %v894 = vadd.f32 0.0, %v893
    %895 = vdwg.mxu0
    %v896 = vadd.f32 %v684, %v858
    %v897 = vadd.f32 %v685, %v860
    %v898 = vadd.f32 %v686, %v862
    %v899 = vadd.f32 %v687, %v864
    %v900 = vadd.f32 %v688, %v868
    %v901 = vadd.f32 %v689, %v870
    %v902 = vadd.f32 %v690, %v872
    %v903 = vadd.f32 %v691, %v874
    %v904 = vadd.f32 %v692, %v878
    %v905 = vadd.f32 %v693, %v880
    %v906 = vadd.f32 %v694, %v882
    %v907 = vadd.f32 %v695, %v884
    %v908 = vadd.f32 %v696, %v888
    %v909 = vadd.f32 %v697, %v890
    %v910 = vadd.f32 %v698, %v892
    %v911 = vadd.f32 %v699, %v894
    %s912 = scalar_lea.vmem [#allocation5], 512
    %v913 = vld [vmem:[%s912] sm:$0xff]
    %v914 = vld [vmem:[%s912 + $0x8] sm:$0xff]
    %v915 = vld [vmem:[%s912 + $0x10] sm:$0xff]
    %v916 = vld [vmem:[%s912 + $0x18] sm:$0xff]
    %v917 = vld [vmem:[%s912 + $0x20] sm:$0xff]
    %v918 = vld [vmem:[%s912 + $0x28] sm:$0xff]
    %v919 = vld [vmem:[%s912 + $0x30] sm:$0xff]
    %v920 = vld [vmem:[%s912 + $0x38] sm:$0xff]
    %v921 = vld [vmem:[%s912 + $0x40] sm:$0xff]
    %v922 = vld [vmem:[%s912 + $0x48] sm:$0xff]
    %v923 = vld [vmem:[%s912 + $0x50] sm:$0xff]
    %v924 = vld [vmem:[%s912 + $0x58] sm:$0xff]
    %v925 = vld [vmem:[%s912 + $0x60] sm:$0xff]
    %v926 = vld [vmem:[%s912 + $0x68] sm:$0xff]
    %v927 = vld [vmem:[%s912 + $0x70] sm:$0xff]
    %v928 = vld [vmem:[%s912 + $0x78] sm:$0xff]
    %vm929 = vcmask 1044480
    %v930 = vrot.slane %v109, 3
    %v931 = vrot.slane %v110, 3
    %v932 = vsel %vm929, %v930, %v931
    %v933 = vrot.slane %v111, 3
    %v934 = vsel %vm929, %v931, %v933
    %v935 = vrot.slane %v112, 3
    %v936 = vsel %vm929, %v933, %v935
    %v937 = vrot.slane %v289, 3
    %v938 = vsel %vm929, %v935, %v937
    %v959 = vunpack.c.l.b16 %v913
    %v960 = vunpack.c.h.b16 %v913
    %v961 = vunpack.c.l.b16 %v914
    %v962 = vunpack.c.h.b16 %v914
    %v963 = vunpack.c.l.b16 %v915
    %v964 = vunpack.c.h.b16 %v915
    %v965 = vunpack.c.l.b16 %v916
    %v966 = vunpack.c.h.b16 %v916
    %v967 = vunpack.c.l.b16 %v917
    %v968 = vunpack.c.h.b16 %v917
    %v969 = vunpack.c.l.b16 %v918
    %v970 = vunpack.c.h.b16 %v918
    %v971 = vunpack.c.l.b16 %v919
    %v972 = vunpack.c.h.b16 %v919
    %v973 = vunpack.c.l.b16 %v920
    %v974 = vunpack.c.h.b16 %v920
    %v975 = vunpack.c.l.b16 %v921
    %v976 = vunpack.c.h.b16 %v921
    %v977 = vunpack.c.l.b16 %v922
    %v978 = vunpack.c.h.b16 %v922
    %v979 = vunpack.c.l.b16 %v923
    %v980 = vunpack.c.h.b16 %v923
    %v981 = vunpack.c.l.b16 %v924
    %v982 = vunpack.c.h.b16 %v924
    %v983 = vunpack.c.l.b16 %v925
    %v984 = vunpack.c.h.b16 %v925
    %v985 = vunpack.c.l.b16 %v926
    %v986 = vunpack.c.h.b16 %v926
    %v987 = vunpack.c.l.b16 %v927
    %v988 = vunpack.c.h.b16 %v927
    %v989 = vunpack.c.l.b16 %v928
    %v990 = vunpack.c.h.b16 %v928
    %v991 = vpack.c.b16 %v961, %v959
    %v992 = vpack.c.b16 %v962, %v960
    %v993 = vpack.c.b16 %v965, %v963
    %v994 = vpack.c.b16 %v966, %v964
    %v995 = vpack.c.b16 %v969, %v967
    %v996 = vpack.c.b16 %v970, %v968
    %v997 = vpack.c.b16 %v973, %v971
    %v998 = vpack.c.b16 %v974, %v972
    %v999 = vpack.c.b16 %v977, %v975
    %v1000 = vpack.c.b16 %v978, %v976
    %v1001 = vpack.c.b16 %v981, %v979
    %v1002 = vpack.c.b16 %v982, %v980
    %v1003 = vpack.c.b16 %v985, %v983
    %v1004 = vpack.c.b16 %v986, %v984
    %v1005 = vpack.c.b16 %v989, %v987
    %v1006 = vpack.c.b16 %v990, %v988
    %1023 = vmatprep.subr.bf16.mxu0 %v992
    %1024 = vmatpush1.bf16.msra.mxu0 %v991
    %1025 = vmatprep.subr.bf16.mxu0 %v994
    %1026 = vmatpush1.bf16.msra.mxu0 %v993
    %1027 = vmatprep.subr.bf16.mxu0 %v996
    %1028 = vmatpush1.bf16.msra.mxu0 %v995
    %1029 = vmatprep.subr.bf16.mxu0 %v998
    %1030 = vmatpush1.bf16.msra.mxu0 %v997
    %1031 = vmatprep.subr.bf16.mxu0 %v1000
    %1032 = vmatpush1.bf16.msra.mxu0 %v999
    %1033 = vmatprep.subr.bf16.mxu0 %v1002
    %1034 = vmatpush1.bf16.msra.mxu0 %v1001
    %1035 = vmatprep.subr.bf16.mxu0 %v1004
    %1036 = vmatpush1.bf16.msra.mxu0 %v1003
    %1037 = vmatprep.subr.bf16.mxu0 %v1006
    %1038 = vmatpush1.bf16.msra.mxu0 %v1005
    %1039 = vmatprep.subr.bf16.mxu0 0
    %1040 = vmatpush1.bf16.msra.mxu0 0
    %1041 = vmatprep.subr.bf16.mxu0 0
    %1042 = vmatpush1.bf16.msra.mxu0 0
    %1043 = vmatprep.subr.bf16.mxu0 0
    %1044 = vmatpush1.bf16.msra.mxu0 0
    %1045 = vmatprep.subr.bf16.mxu0 0
    %1046 = vmatpush1.bf16.msra.mxu0 0
    %1047 = vmatprep.subr.bf16.mxu0 0
    %1048 = vmatpush1.bf16.msra.mxu0 0
    %1049 = vmatprep.subr.bf16.mxu0 0
    %1050 = vmatpush1.bf16.msra.mxu0 0
    %1051 = vmatprep.subr.bf16.mxu0 0
    %1052 = vmatpush1.bf16.msra.mxu0 0
    %1053 = vmatprep.subr.bf16.mxu0 0
    %1054 = vmatpush1.bf16.msra.mxu0 0
    %1055 = vmatprep.mubr.bf16.mxu0 0
    %1056 = vmatmul.mubr.bf16.gmra.mrb[0].mxu0 %v932
    %v1057 = vpop.f32.mrb[0].mxu0
    %v1058 = vadd.f32 0.0, %v1057
    %v1059 = vpop.f32.mrb[0].mxu0
    %v1060 = vadd.f32 0.0, %v1059
    %v1061 = vpop.f32.mrb[0].mxu0
    %v1062 = vadd.f32 0.0, %v1061
    %v1063 = vpop.f32.mrb[0].mxu0
    %v1064 = vadd.f32 0.0, %v1063
    %1065 = vmatprep.mubr.bf16.mxu0 0
    %1066 = vmatmul.mubr.bf16.gmra.mrb[0].mxu0 %v934
    %v1067 = vpop.f32.mrb[0].mxu0
    %v1068 = vadd.f32 0.0, %v1067
    %v1069 = vpop.f32.mrb[0].mxu0
    %v1070 = vadd.f32 0.0, %v1069
    %v1071 = vpop.f32.mrb[0].mxu0
    %v1072 = vadd.f32 0.0, %v1071
    %v1073 = vpop.f32.mrb[0].mxu0
    %v1074 = vadd.f32 0.0, %v1073
    %1075 = vmatprep.mubr.bf16.mxu0 0
    %1076 = vmatmul.mubr.bf16.gmra.mrb[0].mxu0 %v936
    %v1077 = vpop.f32.mrb[0].mxu0
    %v1078 = vadd.f32 0.0, %v1077
    %v1079 = vpop.f32.mrb[0].mxu0
    %v1080 = vadd.f32 0.0, %v1079
    %v1081 = vpop.f32.mrb[0].mxu0
    %v1082 = vadd.f32 0.0, %v1081
    %v1083 = vpop.f32.mrb[0].mxu0
    %v1084 = vadd.f32 0.0, %v1083
    %1085 = vmatprep.mubr.bf16.mxu0 0
    %1086 = vmatmul.mubr.bf16.gmra.mrb[0].mxu0 %v938
    %v1087 = vpop.f32.mrb[0].mxu0
    %v1088 = vadd.f32 0.0, %v1087
    %v1089 = vpop.f32.mrb[0].mxu0
    %v1090 = vadd.f32 0.0, %v1089
    %v1091 = vpop.f32.mrb[0].mxu0
    %v1092 = vadd.f32 0.0, %v1091
    %v1093 = vpop.f32.mrb[0].mxu0
    %v1094 = vadd.f32 0.0, %v1093
    %1095 = vdwg.mxu0
    %v1096 = vadd.f32 %v896, %v1058
    %v1097 = vadd.f32 %v897, %v1060
    %v1098 = vadd.f32 %v898, %v1062
    %v1099 = vadd.f32 %v899, %v1064
    %v1100 = vadd.f32 %v900, %v1068
    %v1101 = vadd.f32 %v901, %v1070
    %v1102 = vadd.f32 %v902, %v1072
    %v1103 = vadd.f32 %v903, %v1074
    %v1104 = vadd.f32 %v904, %v1078
    %v1105 = vadd.f32 %v905, %v1080
    %v1106 = vadd.f32 %v906, %v1082
    %v1107 = vadd.f32 %v907, %v1084
    %v1108 = vadd.f32 %v908, %v1088
    %v1109 = vadd.f32 %v909, %v1090
    %v1110 = vadd.f32 %v910, %v1092
    %v1111 = vadd.f32 %v911, %v1094
    %s1112 = scalar_lea.vmem [#allocation5], 640
    %v1113 = vld [vmem:[%s1112] sm:$0xff]
    %v1114 = vld [vmem:[%s1112 + $0x8] sm:$0xff]
    %v1115 = vld [vmem:[%s1112 + $0x10] sm:$0xff]
    %v1116 = vld [vmem:[%s1112 + $0x18] sm:$0xff]
    %v1117 = vld [vmem:[%s1112 + $0x20] sm:$0xff]
    %v1118 = vld [vmem:[%s1112 + $0x28] sm:$0xff]
    %v1119 = vld [vmem:[%s1112 + $0x30] sm:$0xff]
    %v1120 = vld [vmem:[%s1112 + $0x38] sm:$0xff]
    %v1121 = vld [vmem:[%s1112 + $0x40] sm:$0xff]
    %v1122 = vld [vmem:[%s1112 + $0x48] sm:$0xff]
    %v1123 = vld [vmem:[%s1112 + $0x50] sm:$0xff]
    %v1124 = vld [vmem:[%s1112 + $0x58] sm:$0xff]
    %v1125 = vld [vmem:[%s1112 + $0x60] sm:$0xff]
    %v1126 = vld [vmem:[%s1112 + $0x68] sm:$0xff]
    %v1127 = vld [vmem:[%s1112 + $0x70] sm:$0xff]
    %v1128 = vld [vmem:[%s1112 + $0x78] sm:$0xff]
    %vm1129 = vsmask.f32 4352
    %v1130 = vrot.slane %v292, 3
    %v1131 = vrot.slane %v294, 4
    %v1132 = vor.u32 %v1130, %v1131
    %v1133 = vrot.slane %v303, 3
    %v1134 = vrot.slane %v299, 4
    %v1135 = vor.u32 %v1133, %v1134
    %v1136 = vsel %vm1129, %v1132, %v1135
    %v1137 = vrot.slane %v311, 3
    %v1138 = vrot.slane %v307, 4
    %v1139 = vor.u32 %v1137, %v1138
    %v1140 = vsel %vm1129, %v1135, %v1139
    %v1141 = vrot.slane %v319, 3
    %v1142 = vrot.slane %v315, 4
    %v1143 = vor.u32 %v1141, %v1142
    %v1144 = vsel %vm1129, %v1139, %v1143
    %v1145 = vrot.slane %v733, 3
    %v1146 = vrot.slane %v323, 4
    %v1147 = vor.u32 %v1145, %v1146
    %v1148 = vsel %vm1129, %v1143, %v1147
    %v1169 = vunpack.c.l.b16 %v1113
    %v1170 = vunpack.c.h.b16 %v1113
    %v1171 = vunpack.c.l.b16 %v1114
    %v1172 = vunpack.c.h.b16 %v1114
    %v1173 = vunpack.c.l.b16 %v1115
    %v1174 = vunpack.c.h.b16 %v1115
    %v1175 = vunpack.c.l.b16 %v1116
    %v1176 = vunpack.c.h.b16 %v1116
    %v1177 = vunpack.c.l.b16 %v1117
    %v1178 = vunpack.c.h.b16 %v1117
    %v1179 = vunpack.c.l.b16 %v1118
    %v1180 = vunpack.c.h.b16 %v1118
    %v1181 = vunpack.c.l.b16 %v1119
    %v1182 = vunpack.c.h.b16 %v1119
    %v1183 = vunpack.c.l.b16 %v1120
    %v1184 = vunpack.c.h.b16 %v1120
    %v1185 = vunpack.c.l.b16 %v1121
    %v1186 = vunpack.c.h.b16 %v1121
    %v1187 = vunpack.c.l.b16 %v1122
    %v1188 = vunpack.c.h.b16 %v1122
    %v1189 = vunpack.c.l.b16 %v1123
    %v1190 = vunpack.c.h.b16 %v1123
    %v1191 = vunpack.c.l.b16 %v1124
    %v1192 = vunpack.c.h.b16 %v1124
    %v1193 = vunpack.c.l.b16 %v1125
    %v1194 = vunpack.c.h.b16 %v1125
    %v1195 = vunpack.c.l.b16 %v1126
    %v1196 = vunpack.c.h.b16 %v1126
    %v1197 = vunpack.c.l.b16 %v1127
    %v1198 = vunpack.c.h.b16 %v1127
    %v1199 = vunpack.c.l.b16 %v1128
    %v1200 = vunpack.c.h.b16 %v1128
    %v1201 = vpack.c.b16 %v1171, %v1169
    %v1202 = vpack.c.b16 %v1172, %v1170
    %v1203 = vpack.c.b16 %v1175, %v1173
    %v1204 = vpack.c.b16 %v1176, %v1174
    %v1205 = vpack.c.b16 %v1179, %v1177
    %v1206 = vpack.c.b16 %v1180, %v1178
    %v1207 = vpack.c.b16 %v1183, %v1181
    %v1208 = vpack.c.b16 %v1184, %v1182
    %v1209 = vpack.c.b16 %v1187, %v1185
    %v1210 = vpack.c.b16 %v1188, %v1186
    %v1211 = vpack.c.b16 %v1191, %v1189
    %v1212 = vpack.c.b16 %v1192, %v1190
    %v1213 = vpack.c.b16 %v1195, %v1193
    %v1214 = vpack.c.b16 %v1196, %v1194
    %v1215 = vpack.c.b16 %v1199, %v1197
    %v1216 = vpack.c.b16 %v1200, %v1198
    %1233 = vmatprep.subr.bf16.mxu0 %v1202
    %1234 = vmatpush1.bf16.msra.mxu0 %v1201
    %1235 = vmatprep.subr.bf16.mxu0 %v1204
    %1236 = vmatpush1.bf16.msra.mxu0 %v1203
    %1237 = vmatprep.subr.bf16.mxu0 %v1206
    %1238 = vmatpush1.bf16.msra.mxu0 %v1205
    %1239 = vmatprep.subr.bf16.mxu0 %v1208
    %1240 = vmatpush1.bf16.msra.mxu0 %v1207
    %1241 = vmatprep.subr.bf16.mxu0 %v1210
    %1242 = vmatpush1.bf16.msra.mxu0 %v1209
    %1243 = vmatprep.subr.bf16.mxu0 %v1212
    %1244 = vmatpush1.bf16.msra.mxu0 %v1211
    %1245 = vmatprep.subr.bf16.mxu0 %v1214
    %1246 = vmatpush1.bf16.msra.mxu0 %v1213
    %1247 = vmatprep.subr.bf16.mxu0 %v1216
    %1248 = vmatpush1.bf16.msra.mxu0 %v1215
    %1249 = vmatprep.subr.bf16.mxu0 0
    %1250 = vmatpush1.bf16.msra.mxu0 0
    %1251 = vmatprep.subr.bf16.mxu0 0
    %1252 = vmatpush1.bf16.msra.mxu0 0
    %1253 = vmatprep.subr.bf16.mxu0 0
    %1254 = vmatpush1.bf16.msra.mxu0 0
    %1255 = vmatprep.subr.bf16.mxu0 0
    %1256 = vmatpush1.bf16.msra.mxu0 0
    %1257 = vmatprep.subr.bf16.mxu0 0
    %1258 = vmatpush1.bf16.msra.mxu0 0
    %1259 = vmatprep.subr.bf16.mxu0 0
    %1260 = vmatpush1.bf16.msra.mxu0 0
    %1261 = vmatprep.subr.bf16.mxu0 0
    %1262 = vmatpush1.bf16.msra.mxu0 0
    %1263 = vmatprep.subr.bf16.mxu0 0
    %1264 = vmatpush1.bf16.msra.mxu0 0
    %1265 = vmatprep.mubr.bf16.mxu0 0
    %1266 = vmatmul.mubr.bf16.gmra.mrb[0].mxu0 %v1136
    %v1267 = vpop.f32.mrb[0].mxu0
    %v1268 = vadd.f32 0.0, %v1267
    %v1269 = vpop.f32.mrb[0].mxu0
    %v1270 = vadd.f32 0.0, %v1269
    %v1271 = vpop.f32.mrb[0].mxu0
    %v1272 = vadd.f32 0.0, %v1271
    %v1273 = vpop.f32.mrb[0].mxu0
    %v1274 = vadd.f32 0.0, %v1273
    %1275 = vmatprep.mubr.bf16.mxu0 0
    %1276 = vmatmul.mubr.bf16.gmra.mrb[0].mxu0 %v1140
    %v1277 = vpop.f32.mrb[0].mxu0
    %v1278 = vadd.f32 0.0, %v1277
    %v1279 = vpop.f32.mrb[0].mxu0
    %v1280 = vadd.f32 0.0, %v1279
    %v1281 = vpop.f32.mrb[0].mxu0
    %v1282 = vadd.f32 0.0, %v1281
    %v1283 = vpop.f32.mrb[0].mxu0
    %v1284 = vadd.f32 0.0, %v1283
    %1285 = vmatprep.mubr.bf16.mxu0 0
    %1286 = vmatmul.mubr.bf16.gmra.mrb[0].mxu0 %v1144
    %v1287 = vpop.f32.mrb[0].mxu0
    %v1288 = vadd.f32 0.0, %v1287
    %v1289 = vpop.f32.mrb[0].mxu0
    %v1290 = vadd.f32 0.0, %v1289
    %v1291 = vpop.f32.mrb[0].mxu0
    %v1292 = vadd.f32 0.0, %v1291
    %v1293 = vpop.f32.mrb[0].mxu0
    %v1294 = vadd.f32 0.0, %v1293
    %1295 = vmatprep.mubr.bf16.mxu0 0
    %1296 = vmatmul.mubr.bf16.gmra.mrb[0].mxu0 %v1148
    %v1297 = vpop.f32.mrb[0].mxu0
    %v1298 = vadd.f32 0.0, %v1297
    %v1299 = vpop.f32.mrb[0].mxu0
    %v1300 = vadd.f32 0.0, %v1299
    %v1301 = vpop.f32.mrb[0].mxu0
    %v1302 = vadd.f32 0.0, %v1301
    %v1303 = vpop.f32.mrb[0].mxu0
    %v1304 = vadd.f32 0.0, %v1303
    %1305 = vdwg.mxu0
    %v1306 = vadd.f32 %v1096, %v1268
    %v1307 = vadd.f32 %v1097, %v1270
    %v1308 = vadd.f32 %v1098, %v1272
    %v1309 = vadd.f32 %v1099, %v1274
    %v1310 = vadd.f32 %v1100, %v1278
    %v1311 = vadd.f32 %v1101, %v1280
    %v1312 = vadd.f32 %v1102, %v1282
    %v1313 = vadd.f32 %v1103, %v1284
    %v1314 = vadd.f32 %v1104, %v1288
    %v1315 = vadd.f32 %v1105, %v1290
    %v1316 = vadd.f32 %v1106, %v1292
    %v1317 = vadd.f32 %v1107, %v1294
    %v1318 = vadd.f32 %v1108, %v1298
    %v1319 = vadd.f32 %v1109, %v1300
    %v1320 = vadd.f32 %v1110, %v1302
    %v1321 = vadd.f32 %v1111, %v1304
    %s1322 = scalar_lea.vmem [#allocation5], 768
    %v1323 = vld [vmem:[%s1322] sm:$0xff]
    %v1324 = vld [vmem:[%s1322 + $0x8] sm:$0xff]
    %v1325 = vld [vmem:[%s1322 + $0x10] sm:$0xff]
    %v1326 = vld [vmem:[%s1322 + $0x18] sm:$0xff]
    %v1327 = vld [vmem:[%s1322 + $0x20] sm:$0xff]
    %v1328 = vld [vmem:[%s1322 + $0x28] sm:$0xff]
    %v1329 = vld [vmem:[%s1322 + $0x30] sm:$0xff]
    %v1330 = vld [vmem:[%s1322 + $0x38] sm:$0xff]
    %v1331 = vld [vmem:[%s1322 + $0x40] sm:$0xff]
    %v1332 = vld [vmem:[%s1322 + $0x48] sm:$0xff]
    %v1333 = vld [vmem:[%s1322 + $0x50] sm:$0xff]
    %v1334 = vld [vmem:[%s1322 + $0x58] sm:$0xff]
    %v1335 = vld [vmem:[%s1322 + $0x60] sm:$0xff]
    %v1336 = vld [vmem:[%s1322 + $0x68] sm:$0xff]
    %v1337 = vld [vmem:[%s1322 + $0x70] sm:$0xff]
    %v1338 = vld [vmem:[%s1322 + $0x78] sm:$0xff]
    %v1340 = vunpack.c.l.b16 %v64
    %v1341 = vpack.c.b16 %v103, %v102
    %v1342 = vpack.c.b16 %v105, %v104
    %v1343 = vpack.c.b16 %v107, %v106
    %v1344 = vpack.c.b16 %v288, %v108
    %v1345 = vpack.c.b16 %v1340, %v1340
    %v1346 = vrot.slane %v1341, 1
    %v1347 = vrot.slane %v1342, 1
    %v1348 = vsel %vm517, %v1346, %v1347
    %v1349 = vrot.slane %v1343, 1
    %v1350 = vsel %vm517, %v1347, %v1349
    %v1351 = vrot.slane %v1344, 1
    %v1352 = vsel %vm517, %v1349, %v1351
    %v1353 = vrot.slane %v1345, 1
    %v1354 = vsel %vm517, %v1351, %v1353
    %v1375 = vunpack.c.l.b16 %v1323
    %v1376 = vunpack.c.h.b16 %v1323
    %v1377 = vunpack.c.l.b16 %v1324
    %v1378 = vunpack.c.h.b16 %v1324
    %v1379 = vunpack.c.l.b16 %v1325
    %v1380 = vunpack.c.h.b16 %v1325
    %v1381 = vunpack.c.l.b16 %v1326
    %v1382 = vunpack.c.h.b16 %v1326
    %v1383 = vunpack.c.l.b16 %v1327
    %v1384 = vunpack.c.h.b16 %v1327
    %v1385 = vunpack.c.l.b16 %v1328
    %v1386 = vunpack.c.h.b16 %v1328
    %v1387 = vunpack.c.l.b16 %v1329
    %v1388 = vunpack.c.h.b16 %v1329
    %v1389 = vunpack.c.l.b16 %v1330
    %v1390 = vunpack.c.h.b16 %v1330
    %v1391 = vunpack.c.l.b16 %v1331
    %v1392 = vunpack.c.h.b16 %v1331
    %v1393 = vunpack.c.l.b16 %v1332
    %v1394 = vunpack.c.h.b16 %v1332
    %v1395 = vunpack.c.l.b16 %v1333
    %v1396 = vunpack.c.h.b16 %v1333
    %v1397 = vunpack.c.l.b16 %v1334
    %v1398 = vunpack.c.h.b16 %v1334
    %v1399 = vunpack.c.l.b16 %v1335
    %v1400 = vunpack.c.h.b16 %v1335
    %v1401 = vunpack.c.l.b16 %v1336
    %v1402 = vunpack.c.h.b16 %v1336
    %v1403 = vunpack.c.l.b16 %v1337
    %v1404 = vunpack.c.h.b16 %v1337
    %v1405 = vunpack.c.l.b16 %v1338
    %v1406 = vunpack.c.h.b16 %v1338
    %v1407 = vpack.c.b16 %v1377, %v1375
    %v1408 = vpack.c.b16 %v1378, %v1376
    %v1409 = vpack.c.b16 %v1381, %v1379
    %v1410 = vpack.c.b16 %v1382, %v1380
    %v1411 = vpack.c.b16 %v1385, %v1383
    %v1412 = vpack.c.b16 %v1386, %v1384
    %v1413 = vpack.c.b16 %v1389, %v1387
    %v1414 = vpack.c.b16 %v1390, %v1388
    %v1415 = vpack.c.b16 %v1393, %v1391
    %v1416 = vpack.c.b16 %v1394, %v1392
    %v1417 = vpack.c.b16 %v1397, %v1395
    %v1418 = vpack.c.b16 %v1398, %v1396
    %v1419 = vpack.c.b16 %v1401, %v1399
    %v1420 = vpack.c.b16 %v1402, %v1400
    %v1421 = vpack.c.b16 %v1405, %v1403
    %v1422 = vpack.c.b16 %v1406, %v1404
    %1439 = vmatprep.subr.bf16.mxu0 %v1408
    %1440 = vmatpush1.bf16.msra.mxu0 %v1407
    %1441 = vmatprep.subr.bf16.mxu0 %v1410
    %1442 = vmatpush1.bf16.msra.mxu0 %v1409
    %1443 = vmatprep.subr.bf16.mxu0 %v1412
    %1444 = vmatpush1.bf16.msra.mxu0 %v1411
    %1445 = vmatprep.subr.bf16.mxu0 %v1414
    %1446 = vmatpush1.bf16.msra.mxu0 %v1413
    %1447 = vmatprep.subr.bf16.mxu0 %v1416
    %1448 = vmatpush1.bf16.msra.mxu0 %v1415
    %1449 = vmatprep.subr.bf16.mxu0 %v1418
    %1450 = vmatpush1.bf16.msra.mxu0 %v1417
    %1451 = vmatprep.subr.bf16.mxu0 %v1420
    %1452 = vmatpush1.bf16.msra.mxu0 %v1419
    %1453 = vmatprep.subr.bf16.mxu0 %v1422
    %1454 = vmatpush1.bf16.msra.mxu0 %v1421
    %1455 = vmatprep.subr.bf16.mxu0 0
    %1456 = vmatpush1.bf16.msra.mxu0 0
    %1457 = vmatprep.subr.bf16.mxu0 0
    %1458 = vmatpush1.bf16.msra.mxu0 0
    %1459 = vmatprep.subr.bf16.mxu0 0
    %1460 = vmatpush1.bf16.msra.mxu0 0
    %1461 = vmatprep.subr.bf16.mxu0 0
    %1462 = vmatpush1.bf16.msra.mxu0 0
    %1463 = vmatprep.subr.bf16.mxu0 0
    %1464 = vmatpush1.bf16.msra.mxu0 0
    %1465 = vmatprep.subr.bf16.mxu0 0
    %1466 = vmatpush1.bf16.msra.mxu0 0
    %1467 = vmatprep.subr.bf16.mxu0 0
    %1468 = vmatpush1.bf16.msra.mxu0 0
    %1469 = vmatprep.subr.bf16.mxu0 0
    %1470 = vmatpush1.bf16.msra.mxu0 0
    %1471 = vmatprep.mubr.bf16.mxu0 0
    %1472 = vmatmul.mubr.bf16.gmra.mrb[0].mxu0 %v1348
    %v1473 = vpop.f32.mrb[0].mxu0
    %v1474 = vadd.f32 0.0, %v1473
    %v1475 = vpop.f32.mrb[0].mxu0
    %v1476 = vadd.f32 0.0, %v1475
    %v1477 = vpop.f32.mrb[0].mxu0
    %v1478 = vadd.f32 0.0, %v1477
    %v1479 = vpop.f32.mrb[0].mxu0
    %v1480 = vadd.f32 0.0, %v1479
    %1481 = vmatprep.mubr.bf16.mxu0 0
    %1482 = vmatmul.mubr.bf16.gmra.mrb[0].mxu0 %v1350
    %v1483 = vpop.f32.mrb[0].mxu0
    %v1484 = vadd.f32 0.0, %v1483
    %v1485 = vpop.f32.mrb[0].mxu0
    %v1486 = vadd.f32 0.0, %v1485
    %v1487 = vpop.f32.mrb[0].mxu0
    %v1488 = vadd.f32 0.0, %v1487
    %v1489 = vpop.f32.mrb[0].mxu0
    %v1490 = vadd.f32 0.0, %v1489
    %1491 = vmatprep.mubr.bf16.mxu0 0
    %1492 = vmatmul.mubr.bf16.gmra.mrb[0].mxu0 %v1352
    %v1493 = vpop.f32.mrb[0].mxu0
    %v1494 = vadd.f32 0.0, %v1493
    %v1495 = vpop.f32.mrb[0].mxu0
    %v1496 = vadd.f32 0.0, %v1495
    %v1497 = vpop.f32.mrb[0].mxu0
    %v1498 = vadd.f32 0.0, %v1497
    %v1499 = vpop.f32.mrb[0].mxu0
    %v1500 = vadd.f32 0.0, %v1499
    %1501 = vmatprep.mubr.bf16.mxu0 0
    %1502 = vmatmul.mubr.bf16.gmra.mrb[0].mxu0 %v1354
    %v1503 = vpop.f32.mrb[0].mxu0
    %v1504 = vadd.f32 0.0, %v1503
    %v1505 = vpop.f32.mrb[0].mxu0
    %v1506 = vadd.f32 0.0, %v1505
    %v1507 = vpop.f32.mrb[0].mxu0
    %v1508 = vadd.f32 0.0, %v1507
    %v1509 = vpop.f32.mrb[0].mxu0
    %v1510 = vadd.f32 0.0, %v1509
    %1511 = vdwg.mxu0
    %v1512 = vadd.f32 %v1306, %v1474
    %v1513 = vadd.f32 %v1307, %v1476
    %v1514 = vadd.f32 %v1308, %v1478
    %v1515 = vadd.f32 %v1309, %v1480
    %v1516 = vadd.f32 %v1310, %v1484
    %v1517 = vadd.f32 %v1311, %v1486
    %v1518 = vadd.f32 %v1312, %v1488
    %v1519 = vadd.f32 %v1313, %v1490
    %v1520 = vadd.f32 %v1314, %v1494
    %v1521 = vadd.f32 %v1315, %v1496
    %v1522 = vadd.f32 %v1316, %v1498
    %v1523 = vadd.f32 %v1317, %v1500
    %v1524 = vadd.f32 %v1318, %v1504
    %v1525 = vadd.f32 %v1319, %v1506
    %v1526 = vadd.f32 %v1320, %v1508
    %v1527 = vadd.f32 %v1321, %v1510
    %s1528 = scalar_lea.vmem [#allocation5], 896
    %v1529 = vld [vmem:[%s1528] sm:$0xff]
    %v1530 = vld [vmem:[%s1528 + $0x8] sm:$0xff]
    %v1531 = vld [vmem:[%s1528 + $0x10] sm:$0xff]
    %v1532 = vld [vmem:[%s1528 + $0x18] sm:$0xff]
    %v1533 = vld [vmem:[%s1528 + $0x20] sm:$0xff]
    %v1534 = vld [vmem:[%s1528 + $0x28] sm:$0xff]
    %v1535 = vld [vmem:[%s1528 + $0x30] sm:$0xff]
    %v1536 = vld [vmem:[%s1528 + $0x38] sm:$0xff]
    %v1537 = vld [vmem:[%s1528 + $0x40] sm:$0xff]
    %v1538 = vld [vmem:[%s1528 + $0x48] sm:$0xff]
    %v1539 = vld [vmem:[%s1528 + $0x50] sm:$0xff]
    %v1540 = vld [vmem:[%s1528 + $0x58] sm:$0xff]
    %v1541 = vld [vmem:[%s1528 + $0x60] sm:$0xff]
    %v1542 = vld [vmem:[%s1528 + $0x68] sm:$0xff]
    %v1543 = vld [vmem:[%s1528 + $0x70] sm:$0xff]
    %v1544 = vld [vmem:[%s1528 + $0x78] sm:$0xff]
    %vm1545 = vsmask.f32 6400
    %v1547 = vshrl.u32 %v1341, 16
    %v1549 = vrot.slane %v1547, 1
    %v1550 = vshll.u32 %v1341, 16
    %v1552 = vrot.slane %v1550, 2
    %v1553 = vor.u32 %v1549, %v1552
    %v1555 = vshrl.u32 %v1342, 16
    %v1557 = vrot.slane %v1555, 1
    %v1558 = vshll.u32 %v1342, 16
    %v1560 = vrot.slane %v1558, 2
    %v1561 = vor.u32 %v1557, %v1560
    %v1562 = vsel %vm1545, %v1553, %v1561
    %v1564 = vshrl.u32 %v1343, 16
    %v1566 = vrot.slane %v1564, 1
    %v1567 = vshll.u32 %v1343, 16
    %v1569 = vrot.slane %v1567, 2
    %v1570 = vor.u32 %v1566, %v1569
    %v1571 = vsel %vm1545, %v1561, %v1570
    %v1573 = vshrl.u32 %v1344, 16
    %v1575 = vrot.slane %v1573, 1
    %v1576 = vshll.u32 %v1344, 16
    %v1578 = vrot.slane %v1576, 2
    %v1579 = vor.u32 %v1575, %v1578
    %v1580 = vsel %vm1545, %v1570, %v1579
    %v1582 = vshrl.u32 %v1345, 16
    %v1584 = vrot.slane %v1582, 1
    %v1585 = vshll.u32 %v1345, 16
    %v1587 = vrot.slane %v1585, 2
    %v1588 = vor.u32 %v1584, %v1587
    %v1589 = vsel %vm1545, %v1579, %v1588
    %v1610 = vunpack.c.l.b16 %v1529
    %v1611 = vunpack.c.h.b16 %v1529
    %v1612 = vunpack.c.l.b16 %v1530
    %v1613 = vunpack.c.h.b16 %v1530
    %v1614 = vunpack.c.l.b16 %v1531
    %v1615 = vunpack.c.h.b16 %v1531
    %v1616 = vunpack.c.l.b16 %v1532
    %v1617 = vunpack.c.h.b16 %v1532
    %v1618 = vunpack.c.l.b16 %v1533
    %v1619 = vunpack.c.h.b16 %v1533
    %v1620 = vunpack.c.l.b16 %v1534
    %v1621 = vunpack.c.h.b16 %v1534
    %v1622 = vunpack.c.l.b16 %v1535
    %v1623 = vunpack.c.h.b16 %v1535
    %v1624 = vunpack.c.l.b16 %v1536
    %v1625 = vunpack.c.h.b16 %v1536
    %v1626 = vunpack.c.l.b16 %v1537
    %v1627 = vunpack.c.h.b16 %v1537
    %v1628 = vunpack.c.l.b16 %v1538
    %v1629 = vunpack.c.h.b16 %v1538
    %v1630 = vunpack.c.l.b16 %v1539
    %v1631 = vunpack.c.h.b16 %v1539
    %v1632 = vunpack.c.l.b16 %v1540
    %v1633 = vunpack.c.h.b16 %v1540
    %v1634 = vunpack.c.l.b16 %v1541
    %v1635 = vunpack.c.h.b16 %v1541
    %v1636 = vunpack.c.l.b16 %v1542
    %v1637 = vunpack.c.h.b16 %v1542
    %v1638 = vunpack.c.l.b16 %v1543
    %v1639 = vunpack.c.h.b16 %v1543
    %v1640 = vunpack.c.l.b16 %v1544
    %v1641 = vunpack.c.h.b16 %v1544
    %v1642 = vpack.c.b16 %v1612, %v1610
    %v1643 = vpack.c.b16 %v1613, %v1611
    %v1644 = vpack.c.b16 %v1616, %v1614
    %v1645 = vpack.c.b16 %v1617, %v1615
    %v1646 = vpack.c.b16 %v1620, %v1618
    %v1647 = vpack.c.b16 %v1621, %v1619
    %v1648 = vpack.c.b16 %v1624, %v1622
    %v1649 = vpack.c.b16 %v1625, %v1623
    %v1650 = vpack.c.b16 %v1628, %v1626
    %v1651 = vpack.c.b16 %v1629, %v1627
    %v1652 = vpack.c.b16 %v1632, %v1630
    %v1653 = vpack.c.b16 %v1633, %v1631
    %v1654 = vpack.c.b16 %v1636, %v1634
    %v1655 = vpack.c.b16 %v1637, %v1635
    %v1656 = vpack.c.b16 %v1640, %v1638
    %v1657 = vpack.c.b16 %v1641, %v1639
    %1674 = vmatprep.subr.bf16.mxu0 %v1643
    %1675 = vmatpush1.bf16.msra.mxu0 %v1642
    %1676 = vmatprep.subr.bf16.mxu0 %v1645
    %1677 = vmatpush1.bf16.msra.mxu0 %v1644
    %1678 = vmatprep.subr.bf16.mxu0 %v1647
    %1679 = vmatpush1.bf16.msra.mxu0 %v1646
    %1680 = vmatprep.subr.bf16.mxu0 %v1649
    %1681 = vmatpush1.bf16.msra.mxu0 %v1648
    %1682 = vmatprep.subr.bf16.mxu0 %v1651
    %1683 = vmatpush1.bf16.msra.mxu0 %v1650
    %1684 = vmatprep.subr.bf16.mxu0 %v1653
    %1685 = vmatpush1.bf16.msra.mxu0 %v1652
    %1686 = vmatprep.subr.bf16.mxu0 %v1655
    %1687 = vmatpush1.bf16.msra.mxu0 %v1654
    %1688 = vmatprep.subr.bf16.mxu0 %v1657
    %1689 = vmatpush1.bf16.msra.mxu0 %v1656
    %1690 = vmatprep.subr.bf16.mxu0 0
    %1691 = vmatpush1.bf16.msra.mxu0 0
    %1692 = vmatprep.subr.bf16.mxu0 0
    %1693 = vmatpush1.bf16.msra.mxu0 0
    %1694 = vmatprep.subr.bf16.mxu0 0
    %1695 = vmatpush1.bf16.msra.mxu0 0
    %1696 = vmatprep.subr.bf16.mxu0 0
    %1697 = vmatpush1.bf16.msra.mxu0 0
    %1698 = vmatprep.subr.bf16.mxu0 0
    %1699 = vmatpush1.bf16.msra.mxu0 0
    %1700 = vmatprep.subr.bf16.mxu0 0
    %1701 = vmatpush1.bf16.msra.mxu0 0
    %1702 = vmatprep.subr.bf16.mxu0 0
    %1703 = vmatpush1.bf16.msra.mxu0 0
    %1704 = vmatprep.subr.bf16.mxu0 0
    %1705 = vmatpush1.bf16.msra.mxu0 0
    %1706 = vmatprep.mubr.bf16.mxu0 0
    %1707 = vmatmul.mubr.bf16.gmra.mrb[0].mxu0 %v1562
    %v1708 = vpop.f32.mrb[0].mxu0
    %v1709 = vadd.f32 0.0, %v1708
    %v1710 = vpop.f32.mrb[0].mxu0
    %v1711 = vadd.f32 0.0, %v1710
    %v1712 = vpop.f32.mrb[0].mxu0
    %v1713 = vadd.f32 0.0, %v1712
    %v1714 = vpop.f32.mrb[0].mxu0
    %v1715 = vadd.f32 0.0, %v1714
    %1716 = vmatprep.mubr.bf16.mxu0 0
    %1717 = vmatmul.mubr.bf16.gmra.mrb[0].mxu0 %v1571
    %v1718 = vpop.f32.mrb[0].mxu0
    %v1719 = vadd.f32 0.0, %v1718
    %v1720 = vpop.f32.mrb[0].mxu0
    %v1721 = vadd.f32 0.0, %v1720
    %v1722 = vpop.f32.mrb[0].mxu0
    %v1723 = vadd.f32 0.0, %v1722
    %v1724 = vpop.f32.mrb[0].mxu0
    %v1725 = vadd.f32 0.0, %v1724
    %1726 = vmatprep.mubr.bf16.mxu0 0
    %1727 = vmatmul.mubr.bf16.gmra.mrb[0].mxu0 %v1580
    %v1728 = vpop.f32.mrb[0].mxu0
    %v1729 = vadd.f32 0.0, %v1728
    %v1730 = vpop.f32.mrb[0].mxu0
    %v1731 = vadd.f32 0.0, %v1730
    %v1732 = vpop.f32.mrb[0].mxu0
    %v1733 = vadd.f32 0.0, %v1732
    %v1734 = vpop.f32.mrb[0].mxu0
    %v1735 = vadd.f32 0.0, %v1734
    %1736 = vmatprep.mubr.bf16.mxu0 0
    %1737 = vmatmul.mubr.bf16.gmra.mrb[0].mxu0 %v1589
    %v1738 = vpop.f32.mrb[0].mxu0
    %v1739 = vadd.f32 0.0, %v1738
    %v1740 = vpop.f32.mrb[0].mxu0
    %v1741 = vadd.f32 0.0, %v1740
    %v1742 = vpop.f32.mrb[0].mxu0
    %v1743 = vadd.f32 0.0, %v1742
    %v1744 = vpop.f32.mrb[0].mxu0
    %v1745 = vadd.f32 0.0, %v1744
    %1746 = vdwg.mxu0
    %v1747 = vadd.f32 %v1512, %v1709
    %v1748 = vadd.f32 %v1513, %v1711
    %v1749 = vadd.f32 %v1514, %v1713
    %v1750 = vadd.f32 %v1515, %v1715
    %v1751 = vadd.f32 %v1516, %v1719
    %v1752 = vadd.f32 %v1517, %v1721
    %v1753 = vadd.f32 %v1518, %v1723
    %v1754 = vadd.f32 %v1519, %v1725
    %v1755 = vadd.f32 %v1520, %v1729
    %v1756 = vadd.f32 %v1521, %v1731
    %v1757 = vadd.f32 %v1522, %v1733
    %v1758 = vadd.f32 %v1523, %v1735
    %v1759 = vadd.f32 %v1524, %v1739
    %v1760 = vadd.f32 %v1525, %v1741
    %v1761 = vadd.f32 %v1526, %v1743
    %v1762 = vadd.f32 %v1527, %v1745
    %s1763 = scalar_lea.vmem [#allocation5], 1024
    %v1764 = vld [vmem:[%s1763] sm:$0xff]
    %v1765 = vld [vmem:[%s1763 + $0x8] sm:$0xff]
    %v1766 = vld [vmem:[%s1763 + $0x10] sm:$0xff]
    %v1767 = vld [vmem:[%s1763 + $0x18] sm:$0xff]
    %v1768 = vld [vmem:[%s1763 + $0x20] sm:$0xff]
    %v1769 = vld [vmem:[%s1763 + $0x28] sm:$0xff]
    %v1770 = vld [vmem:[%s1763 + $0x30] sm:$0xff]
    %v1771 = vld [vmem:[%s1763 + $0x38] sm:$0xff]
    %v1772 = vld [vmem:[%s1763 + $0x40] sm:$0xff]
    %v1773 = vld [vmem:[%s1763 + $0x48] sm:$0xff]
    %v1774 = vld [vmem:[%s1763 + $0x50] sm:$0xff]
    %v1775 = vld [vmem:[%s1763 + $0x58] sm:$0xff]
    %v1776 = vld [vmem:[%s1763 + $0x60] sm:$0xff]
    %v1777 = vld [vmem:[%s1763 + $0x68] sm:$0xff]
    %v1778 = vld [vmem:[%s1763 + $0x70] sm:$0xff]
    %v1779 = vld [vmem:[%s1763 + $0x78] sm:$0xff]
    %vm1780 = vcmask 1045504
    %v1781 = vrot.slane %v1341, 2
    %v1782 = vrot.slane %v1342, 2
    %v1783 = vsel %vm1780, %v1781, %v1782
    %v1784 = vrot.slane %v1343, 2
    %v1785 = vsel %vm1780, %v1782, %v1784
    %v1786 = vrot.slane %v1344, 2
    %v1787 = vsel %vm1780, %v1784, %v1786
    %v1788 = vrot.slane %v1345, 2
    %v1789 = vsel %vm1780, %v1786, %v1788
    %v1810 = vunpack.c.l.b16 %v1764
    %v1811 = vunpack.c.h.b16 %v1764
    %v1812 = vunpack.c.l.b16 %v1765
    %v1813 = vunpack.c.h.b16 %v1765
    %v1814 = vunpack.c.l.b16 %v1766
    %v1815 = vunpack.c.h.b16 %v1766
    %v1816 = vunpack.c.l.b16 %v1767
    %v1817 = vunpack.c.h.b16 %v1767
    %v1818 = vunpack.c.l.b16 %v1768
    %v1819 = vunpack.c.h.b16 %v1768
    %v1820 = vunpack.c.l.b16 %v1769
    %v1821 = vunpack.c.h.b16 %v1769
    %v1822 = vunpack.c.l.b16 %v1770
    %v1823 = vunpack.c.h.b16 %v1770
    %v1824 = vunpack.c.l.b16 %v1771
    %v1825 = vunpack.c.h.b16 %v1771
    %v1826 = vunpack.c.l.b16 %v1772
    %v1827 = vunpack.c.h.b16 %v1772
    %v1828 = vunpack.c.l.b16 %v1773
    %v1829 = vunpack.c.h.b16 %v1773
    %v1830 = vunpack.c.l.b16 %v1774
    %v1831 = vunpack.c.h.b16 %v1774
    %v1832 = vunpack.c.l.b16 %v1775
    %v1833 = vunpack.c.h.b16 %v1775
    %v1834 = vunpack.c.l.b16 %v1776
    %v1835 = vunpack.c.h.b16 %v1776
    %v1836 = vunpack.c.l.b16 %v1777
    %v1837 = vunpack.c.h.b16 %v1777
    %v1838 = vunpack.c.l.b16 %v1778
    %v1839 = vunpack.c.h.b16 %v1778
    %v1840 = vunpack.c.l.b16 %v1779
    %v1841 = vunpack.c.h.b16 %v1779
    %v1842 = vpack.c.b16 %v1812, %v1810
    %v1843 = vpack.c.b16 %v1813, %v1811
    %v1844 = vpack.c.b16 %v1816, %v1814
    %v1845 = vpack.c.b16 %v1817, %v1815
    %v1846 = vpack.c.b16 %v1820, %v1818
    %v1847 = vpack.c.b16 %v1821, %v1819
    %v1848 = vpack.c.b16 %v1824, %v1822
    %v1849 = vpack.c.b16 %v1825, %v1823
    %v1850 = vpack.c.b16 %v1828, %v1826
    %v1851 = vpack.c.b16 %v1829, %v1827
    %v1852 = vpack.c.b16 %v1832, %v1830
    %v1853 = vpack.c.b16 %v1833, %v1831
    %v1854 = vpack.c.b16 %v1836, %v1834
    %v1855 = vpack.c.b16 %v1837, %v1835
    %v1856 = vpack.c.b16 %v1840, %v1838
    %v1857 = vpack.c.b16 %v1841, %v1839
    %1874 = vmatprep.subr.bf16.mxu0 %v1843
    %1875 = vmatpush1.bf16.msra.mxu0 %v1842
    %1876 = vmatprep.subr.bf16.mxu0 %v1845
    %1877 = vmatpush1.bf16.msra.mxu0 %v1844
    %1878 = vmatprep.subr.bf16.mxu0 %v1847
    %1879 = vmatpush1.bf16.msra.mxu0 %v1846
    %1880 = vmatprep.subr.bf16.mxu0 %v1849
    %1881 = vmatpush1.bf16.msra.mxu0 %v1848
    %1882 = vmatprep.subr.bf16.mxu0 %v1851
    %1883 = vmatpush1.bf16.msra.mxu0 %v1850
    %1884 = vmatprep.subr.bf16.mxu0 %v1853
    %1885 = vmatpush1.bf16.msra.mxu0 %v1852
    %1886 = vmatprep.subr.bf16.mxu0 %v1855
    %1887 = vmatpush1.bf16.msra.mxu0 %v1854
    %1888 = vmatprep.subr.bf16.mxu0 %v1857
    %1889 = vmatpush1.bf16.msra.mxu0 %v1856
    %1890 = vmatprep.subr.bf16.mxu0 0
    %1891 = vmatpush1.bf16.msra.mxu0 0
    %1892 = vmatprep.subr.bf16.mxu0 0
    %1893 = vmatpush1.bf16.msra.mxu0 0
    %1894 = vmatprep.subr.bf16.mxu0 0
    %1895 = vmatpush1.bf16.msra.mxu0 0
    %1896 = vmatprep.subr.bf16.mxu0 0
    %1897 = vmatpush1.bf16.msra.mxu0 0
    %1898 = vmatprep.subr.bf16.mxu0 0
    %1899 = vmatpush1.bf16.msra.mxu0 0
    %1900 = vmatprep.subr.bf16.mxu0 0
    %1901 = vmatpush1.bf16.msra.mxu0 0
    %1902 = vmatprep.subr.bf16.mxu0 0
    %1903 = vmatpush1.bf16.msra.mxu0 0
    %1904 = vmatprep.subr.bf16.mxu0 0
    %1905 = vmatpush1.bf16.msra.mxu0 0
    %1906 = vmatprep.mubr.bf16.mxu0 0
    %1907 = vmatmul.mubr.bf16.gmra.mrb[0].mxu0 %v1783
    %v1908 = vpop.f32.mrb[0].mxu0
    %v1909 = vadd.f32 0.0, %v1908
    %v1910 = vpop.f32.mrb[0].mxu0
    %v1911 = vadd.f32 0.0, %v1910
    %v1912 = vpop.f32.mrb[0].mxu0
    %v1913 = vadd.f32 0.0, %v1912
    %v1914 = vpop.f32.mrb[0].mxu0
    %v1915 = vadd.f32 0.0, %v1914
    %1916 = vmatprep.mubr.bf16.mxu0 0
    %1917 = vmatmul.mubr.bf16.gmra.mrb[0].mxu0 %v1785
    %v1918 = vpop.f32.mrb[0].mxu0
    %v1919 = vadd.f32 0.0, %v1918
    %v1920 = vpop.f32.mrb[0].mxu0
    %v1921 = vadd.f32 0.0, %v1920
    %v1922 = vpop.f32.mrb[0].mxu0
    %v1923 = vadd.f32 0.0, %v1922
    %v1924 = vpop.f32.mrb[0].mxu0
    %v1925 = vadd.f32 0.0, %v1924
    %1926 = vmatprep.mubr.bf16.mxu0 0
    %1927 = vmatmul.mubr.bf16.gmra.mrb[0].mxu0 %v1787
    %v1928 = vpop.f32.mrb[0].mxu0
    %v1929 = vadd.f32 0.0, %v1928
    %v1930 = vpop.f32.mrb[0].mxu0
    %v1931 = vadd.f32 0.0, %v1930
    %v1932 = vpop.f32.mrb[0].mxu0
    %v1933 = vadd.f32 0.0, %v1932
    %v1934 = vpop.f32.mrb[0].mxu0
    %v1935 = vadd.f32 0.0, %v1934
    %1936 = vmatprep.mubr.bf16.mxu0 0
    %1937 = vmatmul.mubr.bf16.gmra.mrb[0].mxu0 %v1789
    %v1938 = vpop.f32.mrb[0].mxu0
    %v1939 = vadd.f32 0.0, %v1938
    %v1940 = vpop.f32.mrb[0].mxu0
    %v1941 = vadd.f32 0.0, %v1940
    %v1942 = vpop.f32.mrb[0].mxu0
    %v1943 = vadd.f32 0.0, %v1942
    %v1944 = vpop.f32.mrb[0].mxu0
    %v1945 = vadd.f32 0.0, %v1944
    %1946 = vdwg.mxu0
    %v1947 = vadd.f32 %v1747, %v1909
    %v1948 = vadd.f32 %v1748, %v1911
    %v1949 = vadd.f32 %v1749, %v1913
    %v1950 = vadd.f32 %v1750, %v1915
    %v1951 = vadd.f32 %v1751, %v1919
    %v1952 = vadd.f32 %v1752, %v1921
    %v1953 = vadd.f32 %v1753, %v1923
    %v1954 = vadd.f32 %v1754, %v1925
    %v1955 = vadd.f32 %v1755, %v1929
    %v1956 = vadd.f32 %v1756, %v1931
    %v1957 = vadd.f32 %v1757, %v1933
    %v1958 = vadd.f32 %v1758, %v1935
    %v1959 = vadd.f32 %v1759, %v1939
    %v1960 = vadd.f32 %v1760, %v1941
    %v1961 = vadd.f32 %v1761, %v1943
    %v1962 = vadd.f32 %v1762, %v1945
    %v1963 = vmax.f32 %v1947, 0.0
    %v1964 = vmax.f32 %v1948, 0.0
    %v1965 = vmax.f32 %v1949, 0.0
    %v1966 = vmax.f32 %v1950, 0.0
    %v1967 = vmax.f32 %v1951, 0.0
    %v1968 = vmax.f32 %v1952, 0.0
    %v1969 = vmax.f32 %v1953, 0.0
    %v1970 = vmax.f32 %v1954, 0.0
    %v1971 = vmax.f32 %v1955, 0.0
    %v1972 = vmax.f32 %v1956, 0.0
    %v1973 = vmax.f32 %v1957, 0.0
    %v1974 = vmax.f32 %v1958, 0.0
    %v1975 = vmax.f32 %v1959, 0.0
    %v1976 = vmax.f32 %v1960, 0.0
    %v1977 = vmax.f32 %v1961, 0.0
    %v1978 = vmax.f32 %v1962, 0.0
    %v1979 = vpack.c.bf16 %v1965, %v1963
    %v1980 = vpack.c.bf16 %v1966, %v1964
    %v1981 = vpack.c.bf16 %v1969, %v1967
    %v1982 = vpack.c.bf16 %v1970, %v1968
    %v1983 = vpack.c.bf16 %v1973, %v1971
    %v1984 = vpack.c.bf16 %v1974, %v1972
    %v1985 = vpack.c.bf16 %v1977, %v1975
    %v1986 = vpack.c.bf16 %v1978, %v1976
    %v1995 = vunpack.c.l.b16 %v1979
    %v1996 = vunpack.c.l.b16 %v1980
    %v1997 = vunpack.c.h.b16 %v1979
    %v1998 = vunpack.c.h.b16 %v1980
    %v1999 = vunpack.c.l.b16 %v1981
    %v2000 = vunpack.c.l.b16 %v1982
    %v2001 = vunpack.c.h.b16 %v1981
    %v2002 = vunpack.c.h.b16 %v1982
    %v2003 = vunpack.c.l.b16 %v1983
    %v2004 = vunpack.c.l.b16 %v1984
    %v2005 = vunpack.c.h.b16 %v1983
    %v2006 = vunpack.c.h.b16 %v1984
    %v2007 = vunpack.c.l.b16 %v1985
    %v2008 = vunpack.c.l.b16 %v1986
    %v2009 = vunpack.c.h.b16 %v1985
    %v2010 = vunpack.c.h.b16 %v1986
    %v2011 = vpack.c.b16 %v1996, %v1995
    %v2012 = vpack.c.b16 %v1998, %v1997
    %v2013 = vpack.c.b16 %v2000, %v1999
    %v2014 = vpack.c.b16 %v2002, %v2001
    %v2015 = vpack.c.b16 %v2004, %v2003
    %v2016 = vpack.c.b16 %v2006, %v2005
    %v2017 = vpack.c.b16 %v2008, %v2007
    %v2018 = vpack.c.b16 %v2010, %v2009
    %2027 = vst [vmem:[#allocation8] sm:$0xff] %v2011
    %2028 = vst [vmem:[#allocation8 + $0x8] sm:$0xff] %v2012
    %2029 = vst [vmem:[#allocation8 + $0x10] sm:$0xff] %v2013
    %2030 = vst [vmem:[#allocation8 + $0x18] sm:$0xff] %v2014
    %2031 = vst [vmem:[#allocation8 + $0x20] sm:$0xff] %v2015
    %2032 = vst [vmem:[#allocation8 + $0x28] sm:$0xff] %v2016
    %2033 = vst [vmem:[#allocation8 + $0x30] sm:$0xff] %v2017
    %2034 = vst [vmem:[#allocation8 + $0x38] sm:$0xff] %v2018
    // Predicated region
    $region26: #{alexnet_forward.8} parent=1 // pred_check
      _
    $region27: #{alexnet_forward.8} parent=1 // pred_check_branch
      %2036 = sbr.rel (0) target = $region29
    $region28: #{alexnet_forward.8} parent=1 // pred_region
      %s2038 = ssub.s32 1024, 1024
      %2039 = vsyncadd [#allocation4], %s2038
      %s2040 = sshll.u32 [#allocation8], 4
      %s2041 = int_to_ptr.vmem [resolvable:$true] %s2040
      %2046 = dma.vmem_to_hbm [thread:$0]  %s2041, 1024, %s3, [#allocation4], 128, 128, 8
    $region29: #{alexnet_forward.8} parent=1 // pred_fallthru
      _
    // Predicated region
    $region30: #{alexnet_forward.8} parent=1 // pred_check
      _
    $region31: #{alexnet_forward.8} parent=1 // pred_check_branch
      %2048 = sbr.rel (0) target = $region33
    $region32: #{alexnet_forward.8} parent=1 // pred_region
      %2049 = dma.done [#allocation4], 1024
    $region33: #{alexnet_forward.8} parent=1 // pred_fallthru
      _
    %2050 = vsyncpa [#allocation3], 1
    %2051 = vsyncpa [#allocation6], 1
    %2052 = vsyncpa [#allocation4], 1

// kernel: alexnet_forward.11
$region0: #{alexnet_forward.11}
  #allocation0 [shape = 'u32[]', space=smem, size = 0x4, offset = 0x4, fixed_abs, tag = 'smem constant byte address 0x4 - core index']
  #allocation1 [shape = 'u32[144,128]{1,0:T(1,128)}', space=vmem, size = 0x12000, scoped, tag = 'internal scratch']
  %s0 = inlined_call_operand.hbm [shape: bf16[2,9,128], index: 0, kind: input, shape index: {}]
  %s1 = inlined_call_operand.hbm [shape: bf16[128,128], index: 1, kind: input, shape index: {}]
  %s2 = inlined_call_operand.hbm [shape: f32[1,128], index: 2, kind: input, shape index: {}]
  %s3 = inlined_call_operand.hbm [shape: bf16[128,128], index: 3, kind: input, shape index: {}]
  %s4 = inlined_call_operand.hbm [shape: f32[1,128], index: 4, kind: input, shape index: {}]
  %s5 = inlined_call_operand.hbm [shape: f32[2,128], index: 5, kind: output, shape index: {}]
  %s6 = sld [smem:[#allocation0]]
  $region50: #{alexnet_forward.11} parent=0
    _
  %s8 = ssub.s32 1, %s6
  %s9 = scalar_select 0, %s8, %s6
  $region1: #{alexnet_forward.11} parent=0
    #allocation2 [shape = 'u8[8192]{0}', space=vmem, size = 0x2000, scoped, tag = 'input window, operand 0, single buffered']
    #allocation3 [shape = 's32[1]{0}', space=sflag, size = 0x4, scoped, tag = 'scoped memory for alexnet_forward.11']
    #allocation4 [shape = 's32[1]{0}', space=sflag, size = 0x4, scoped, tag = 'scoped memory for alexnet_forward.11']
    #allocation5 [shape = 'u8[32768]{0}', space=vmem, size = 0x8000, scoped, tag = 'input window, operand 1, single buffered']
    #allocation6 [shape = 's32[1]{0}', space=sflag, size = 0x4, scoped, tag = 'scoped memory for alexnet_forward.11']
    #allocation7 [shape = 'u8[512]{0}', space=vmem, size = 0x400, scoped, tag = 'input window, operand 2, single buffered']
    #allocation8 [shape = 'u8[32768]{0}', space=vmem, size = 0x8000, scoped, tag = 'input window, operand 3, single buffered']
    #allocation9 [shape = 's32[1]{0}', space=sflag, size = 0x4, scoped, tag = 'scoped memory for alexnet_forward.11']
    #allocation10 [shape = 'u8[512]{0}', space=vmem, size = 0x400, scoped, tag = 'input window, operand 4, single buffered']
    #allocation11 [shape = 'u8[1024]{0}', space=vmem, size = 0x400, scoped, tag = 'output window, operand 0, single buffered']
    %10 = vsyncpa [#allocation3], 0
    %11 = vsyncpa [#allocation6], 0
    %12 = vsyncpa [#allocation9], 0
    %13 = vsyncpa [#allocation4], 0
    // Predicated region
    $region2: #{alexnet_forward.11} parent=1 // pred_check
      _
    $region3: #{alexnet_forward.11} parent=1 // pred_check_branch
      %15 = sbr.rel (0) target = $region5
    $region4: #{alexnet_forward.11} parent=1 // pred_region
      %s17 = ssub.s32 256, 256
      %18 = vsyncadd [#allocation3], %s17
      %s19 = sshll.u32 [#allocation2], 4
      %s20 = int_to_ptr.vmem [resolvable:$true] %s19
      %25 = dma.hbm_to_vmem [thread:$0]  %s0, 256, %s20, [#allocation3], 64, 64, 4
    $region5: #{alexnet_forward.11} parent=1 // pred_fallthru
      _
    // Predicated region
    $region6: #{alexnet_forward.11} parent=1 // pred_check
      _
    $region7: #{alexnet_forward.11} parent=1 // pred_check_branch
      %27 = sbr.rel (0) target = $region9
    $region8: #{alexnet_forward.11} parent=1 // pred_region
      %s29 = ssub.s32 1024, 1024
      %30 = vsyncadd [#allocation6], %s29
      %s31 = sshll.u32 [#allocation5], 4
      %s32 = int_to_ptr.vmem [resolvable:$true] %s31
      %37 = dma.hbm_to_vmem [thread:$0]  %s1, 1024, %s32, [#allocation6], 64, 64, 4
    $region9: #{alexnet_forward.11} parent=1 // pred_fallthru
      _
    // Predicated region
    $region10: #{alexnet_forward.11} parent=1 // pred_check
      _
    $region11: #{alexnet_forward.11} parent=1 // pred_check_branch
      %39 = sbr.rel (0) target = $region13
    $region12: #{alexnet_forward.11} parent=1 // pred_region
      %s41 = ssub.s32 16, 16
      %42 = vsyncadd [#allocation6], %s41
      %s44 = sshll.u32 [#allocation7], 4
      %s45 = int_to_ptr.vmem [resolvable:$true] %s44
      %47 = dma.hbm_to_vmem [thread:$0]  %s2, 16, %s45, [#allocation6]
    $region13: #{alexnet_forward.11} parent=1 // pred_fallthru
      _
    // Predicated region
    $region14: #{alexnet_forward.11} parent=1 // pred_check
      _
    $region15: #{alexnet_forward.11} parent=1 // pred_check_branch
      %49 = sbr.rel (0) target = $region17
    $region16: #{alexnet_forward.11} parent=1 // pred_region
      %s51 = ssub.s32 1024, 1024
      %52 = vsyncadd [#allocation9], %s51
      %s53 = sshll.u32 [#allocation8], 4
      %s54 = int_to_ptr.vmem [resolvable:$true] %s53
      %59 = dma.hbm_to_vmem [thread:$0]  %s3, 1024, %s54, [#allocation9], 64, 64, 4
    $region17: #{alexnet_forward.11} parent=1 // pred_fallthru
      _
    // Predicated region
    $region18: #{alexnet_forward.11} parent=1 // pred_check
      _
    $region19: #{alexnet_forward.11} parent=1 // pred_check_branch
      %61 = sbr.rel (0) target = $region21
    $region20: #{alexnet_forward.11} parent=1 // pred_region
      %s63 = ssub.s32 16, 16
      %64 = vsyncadd [#allocation9], %s63
      %s66 = sshll.u32 [#allocation10], 4
      %s67 = int_to_ptr.vmem [resolvable:$true] %s66
      %69 = dma.hbm_to_vmem [thread:$0]  %s4, 16, %s67, [#allocation9]
    $region21: #{alexnet_forward.11} parent=1 // pred_fallthru
      _
    // Predicated region
    $region22: #{alexnet_forward.11} parent=1 // pred_check
      _
    $region23: #{alexnet_forward.11} parent=1 // pred_check_branch
      %71 = sbr.rel (0) target = $region25
    $region24: #{alexnet_forward.11} parent=1 // pred_region
      %72 = dma.done [#allocation3], 256
    $region25: #{alexnet_forward.11} parent=1 // pred_fallthru
      _
    // Predicated region
    $region26: #{alexnet_forward.11} parent=1 // pred_check
      _
    $region27: #{alexnet_forward.11} parent=1 // pred_check_branch
      %74 = sbr.rel (0) target = $region29
    $region28: #{alexnet_forward.11} parent=1 // pred_region
      %75 = dma.done [#allocation6], 1024
    $region29: #{alexnet_forward.11} parent=1 // pred_fallthru
      _
    // Predicated region
    $region30: #{alexnet_forward.11} parent=1 // pred_check
      _
    $region31: #{alexnet_forward.11} parent=1 // pred_check_branch
      %77 = sbr.rel (0) target = $region33
    $region32: #{alexnet_forward.11} parent=1 // pred_region
      %78 = dma.done [#allocation6], 16
    $region33: #{alexnet_forward.11} parent=1 // pred_fallthru
      _
    // Predicated region
    $region34: #{alexnet_forward.11} parent=1 // pred_check
      _
    $region35: #{alexnet_forward.11} parent=1 // pred_check_branch
      %80 = sbr.rel (0) target = $region37
    $region36: #{alexnet_forward.11} parent=1 // pred_region
      %81 = dma.done [#allocation9], 1024
    $region37: #{alexnet_forward.11} parent=1 // pred_fallthru
      _
    // Predicated region
    $region38: #{alexnet_forward.11} parent=1 // pred_check
      _
    $region39: #{alexnet_forward.11} parent=1 // pred_check_branch
      %83 = sbr.rel (0) target = $region41
    $region40: #{alexnet_forward.11} parent=1 // pred_region
      %84 = dma.done [#allocation9], 16
    $region41: #{alexnet_forward.11} parent=1 // pred_fallthru
      _
    %v87 = vld [vmem:[#allocation2] sm:$0xf]
    %v88 = vld [vmem:[#allocation2 + $0x4] sm:$0x1]
    %v89 = vld [vmem:[#allocation2 + $0x8] sm:$0xf]
    %v90 = vld [vmem:[#allocation2 + $0xc] sm:$0x1]
    %v95 = vunpack.c.l.b16 %v87
    %v96 = vunpack.c.l.b16 %v88
    %v97 = vunpack.c.l.b16 %v89
    %v98 = vunpack.c.l.b16 %v90
    %v99 = vpack.c.b16 %v96, %v95
    %v100 = vpack.c.b16 %v98, %v97
    %vm103 = vcmask 1044480
    %vm104 = vsmask.f32 4352
    %vm105 = vmand %vm103, %vm104
    %v106 = vsel %vm105, %v99, 4286644096
    %v107 = vunpack.i.l.bf16 %v106
    %v108 = vunpack.i.h.bf16 %v106
    %v109 = vmax.f32 %v107, %v108
    %v110 = vrot.slane %v109, 4
    %v111 = vmax.f32 %v109, %v110
    %v112 = vrot.slane %v111, 2
    %v113 = vmax.f32 %v111, %v112
    %v114 = vrot.slane %v113, 1
    %v115 = vmax.f32 %v113, %v114
    %v116 = vpack.i.bf16 %v115, %v115
    %v117 = vsel %vm105, %v100, 4286644096
    %v118 = vunpack.i.l.bf16 %v117
    %v119 = vunpack.i.h.bf16 %v117
    %v120 = vmax.f32 %v118, %v119
    %v121 = vrot.slane %v120, 4
    %v122 = vmax.f32 %v120, %v121
    %v123 = vrot.slane %v122, 2
    %v124 = vmax.f32 %v122, %v123
    %v125 = vrot.slane %v124, 1
    %v126 = vmax.f32 %v124, %v125
    %v127 = vpack.i.bf16 %v126, %v126
    %v128 = vld [vmem:[#allocation5] sm:$0xf]
    %v129 = vld [vmem:[#allocation5 + $0x4] sm:$0xf]
    %v130 = vld [vmem:[#allocation5 + $0x8] sm:$0xf]
    %v131 = vld [vmem:[#allocation5 + $0xc] sm:$0xf]
    %v132 = vld [vmem:[#allocation5 + $0x10] sm:$0xf]
    %v133 = vld [vmem:[#allocation5 + $0x14] sm:$0xf]
    %v134 = vld [vmem:[#allocation5 + $0x18] sm:$0xf]
    %v135 = vld [vmem:[#allocation5 + $0x1c] sm:$0xf]
    %v136 = vld [vmem:[#allocation5 + $0x20] sm:$0xf]
    %v137 = vld [vmem:[#allocation5 + $0x24] sm:$0xf]
    %v138 = vld [vmem:[#allocation5 + $0x28] sm:$0xf]
    %v139 = vld [vmem:[#allocation5 + $0x2c] sm:$0xf]
    %v140 = vld [vmem:[#allocation5 + $0x30] sm:$0xf]
    %v141 = vld [vmem:[#allocation5 + $0x34] sm:$0xf]
    %v142 = vld [vmem:[#allocation5 + $0x38] sm:$0xf]
    %v143 = vld [vmem:[#allocation5 + $0x3c] sm:$0xf]
    %v144 = vld [vmem:[#allocation7] sm:$0x1]
    %v146 = vlaneseq
    %v147 = vshrl.u32 %v146, 7
    %v148 = vsub.s32 0, %v147
    %v149 = vrot.slane %v144, %v148
    %v153 = vunpack.c.l.b16 %v116
    %v154 = vunpack.c.l.b16 %v127
    %vm155 = vcmask 1041409
    %v156 = vsel %vm155, %v154, %v153
    %v157 = vpack.c.b16 %v156, %v156
    %v175 = vunpack.c.l.b16 %v128
    %v176 = vunpack.c.l.b16 %v129
    %v177 = vunpack.c.l.b16 %v130
    %v178 = vunpack.c.l.b16 %v131
    %v179 = vunpack.c.l.b16 %v132
    %v180 = vunpack.c.l.b16 %v133
    %v181 = vunpack.c.l.b16 %v134
    %v182 = vunpack.c.l.b16 %v135
    %v183 = vunpack.c.l.b16 %v136
    %v184 = vunpack.c.l.b16 %v137
    %v185 = vunpack.c.l.b16 %v138
    %v186 = vunpack.c.l.b16 %v139
    %v187 = vunpack.c.l.b16 %v140
    %v188 = vunpack.c.l.b16 %v141
    %v189 = vunpack.c.l.b16 %v142
    %v190 = vunpack.c.l.b16 %v143
    %v191 = vpack.c.b16 %v176, %v175
    %v192 = vpack.c.b16 %v178, %v177
    %v193 = vpack.c.b16 %v180, %v179
    %v194 = vpack.c.b16 %v182, %v181
    %v195 = vpack.c.b16 %v184, %v183
    %v196 = vpack.c.b16 %v186, %v185
    %v197 = vpack.c.b16 %v188, %v187
    %v198 = vpack.c.b16 %v190, %v189
    %207 = vmatprep.subr.bf16.mxu0 0
    %208 = vmatpush1.bf16.msra.mxu0 %v191
    %209 = vmatprep.subr.bf16.mxu0 0
    %210 = vmatpush1.bf16.msra.mxu0 %v192
    %211 = vmatprep.subr.bf16.mxu0 0
    %212 = vmatpush1.bf16.msra.mxu0 %v193
    %213 = vmatprep.subr.bf16.mxu0 0
    %214 = vmatpush1.bf16.msra.mxu0 %v194
    %215 = vmatprep.subr.bf16.mxu0 0
    %216 = vmatpush1.bf16.msra.mxu0 %v195
    %217 = vmatprep.subr.bf16.mxu0 0
    %218 = vmatpush1.bf16.msra.mxu0 %v196
    %219 = vmatprep.subr.bf16.mxu0 0
    %220 = vmatpush1.bf16.msra.mxu0 %v197
    %221 = vmatprep.subr.bf16.mxu0 0
    %222 = vmatpush1.bf16.msra.mxu0 %v198
    %223 = vmatprep.subr.bf16.mxu0 0
    %224 = vmatpush1.bf16.msra.mxu0 0
    %225 = vmatprep.subr.bf16.mxu0 0
    %226 = vmatpush1.bf16.msra.mxu0 0
    %227 = vmatprep.subr.bf16.mxu0 0
    %228 = vmatpush1.bf16.msra.mxu0 0
    %229 = vmatprep.subr.bf16.mxu0 0
    %230 = vmatpush1.bf16.msra.mxu0 0
    %231 = vmatprep.subr.bf16.mxu0 0
    %232 = vmatpush1.bf16.msra.mxu0 0
    %233 = vmatprep.subr.bf16.mxu0 0
    %234 = vmatpush1.bf16.msra.mxu0 0
    %235 = vmatprep.subr.bf16.mxu0 0
    %236 = vmatpush1.bf16.msra.mxu0 0
    %237 = vmatprep.subr.bf16.mxu0 0
    %238 = vmatpush1.bf16.msra.mxu0 0
    %239 = vmatprep.mubr.bf16.mxu0 0
    %240 = vmatmul.mubr.bf16.gmra.mrb[0].mxu0 %v157
    %v241 = vpop.f32.mrb[0].mxu0
    %v242 = vadd.f32 %v149, %v241
    %v243 = vpop.f32.mrb[0].mxu0
    %v244 = vpop.f32.mrb[0].mxu0
    %v245 = vpop.f32.mrb[0].mxu0
    %246 = vdwg.mxu0
    %v247 = vmax.f32 %v242, 0.0
    %v248 = vpack.c.bf16 %v247, %v247
    %v249 = vld [vmem:[#allocation8] sm:$0xf]
    %v250 = vld [vmem:[#allocation8 + $0x4] sm:$0xf]
    %v251 = vld [vmem:[#allocation8 + $0x8] sm:$0xf]
    %v252 = vld [vmem:[#allocation8 + $0xc] sm:$0xf]
    %v253 = vld [vmem:[#allocation8 + $0x10] sm:$0xf]
    %v254 = vld [vmem:[#allocation8 + $0x14] sm:$0xf]
    %v255 = vld [vmem:[#allocation8 + $0x18] sm:$0xf]
    %v256 = vld [vmem:[#allocation8 + $0x1c] sm:$0xf]
    %v257 = vld [vmem:[#allocation8 + $0x20] sm:$0xf]
    %v258 = vld [vmem:[#allocation8 + $0x24] sm:$0xf]
    %v259 = vld [vmem:[#allocation8 + $0x28] sm:$0xf]
    %v260 = vld [vmem:[#allocation8 + $0x2c] sm:$0xf]
    %v261 = vld [vmem:[#allocation8 + $0x30] sm:$0xf]
    %v262 = vld [vmem:[#allocation8 + $0x34] sm:$0xf]
    %v263 = vld [vmem:[#allocation8 + $0x38] sm:$0xf]
    %v264 = vld [vmem:[#allocation8 + $0x3c] sm:$0xf]
    %v265 = vld [vmem:[#allocation10] sm:$0x1]
    %v267 = vlaneseq
    %v268 = vshrl.u32 %v267, 7
    %v269 = vsub.s32 0, %v268
    %v270 = vrot.slane %v265, %v269
    %v288 = vunpack.c.l.b16 %v249
    %v289 = vunpack.c.l.b16 %v250
    %v290 = vunpack.c.l.b16 %v251
    %v291 = vunpack.c.l.b16 %v252
    %v292 = vunpack.c.l.b16 %v253
    %v293 = vunpack.c.l.b16 %v254
    %v294 = vunpack.c.l.b16 %v255
    %v295 = vunpack.c.l.b16 %v256
    %v296 = vunpack.c.l.b16 %v257
    %v297 = vunpack.c.l.b16 %v258
    %v298 = vunpack.c.l.b16 %v259
    %v299 = vunpack.c.l.b16 %v260
    %v300 = vunpack.c.l.b16 %v261
    %v301 = vunpack.c.l.b16 %v262
    %v302 = vunpack.c.l.b16 %v263
    %v303 = vunpack.c.l.b16 %v264
    %v304 = vpack.c.b16 %v289, %v288
    %v305 = vpack.c.b16 %v291, %v290
    %v306 = vpack.c.b16 %v293, %v292
    %v307 = vpack.c.b16 %v295, %v294
    %v308 = vpack.c.b16 %v297, %v296
    %v309 = vpack.c.b16 %v299, %v298
    %v310 = vpack.c.b16 %v301, %v300
    %v311 = vpack.c.b16 %v303, %v302
    %320 = vmatprep.subr.bf16.mxu0 0
    %321 = vmatpush1.bf16.msra.mxu0 %v304
    %322 = vmatprep.subr.bf16.mxu0 0
    %323 = vmatpush1.bf16.msra.mxu0 %v305
    %324 = vmatprep.subr.bf16.mxu0 0
    %325 = vmatpush1.bf16.msra.mxu0 %v306
    %326 = vmatprep.subr.bf16.mxu0 0
    %327 = vmatpush1.bf16.msra.mxu0 %v307
    %328 = vmatprep.subr.bf16.mxu0 0
    %329 = vmatpush1.bf16.msra.mxu0 %v308
    %330 = vmatprep.subr.bf16.mxu0 0
    %331 = vmatpush1.bf16.msra.mxu0 %v309
    %332 = vmatprep.subr.bf16.mxu0 0
    %333 = vmatpush1.bf16.msra.mxu0 %v310
    %334 = vmatprep.subr.bf16.mxu0 0
    %335 = vmatpush1.bf16.msra.mxu0 %v311
    %336 = vmatprep.subr.bf16.mxu0 0
    %337 = vmatpush1.bf16.msra.mxu0 0
    %338 = vmatprep.subr.bf16.mxu0 0
    %339 = vmatpush1.bf16.msra.mxu0 0
    %340 = vmatprep.subr.bf16.mxu0 0
    %341 = vmatpush1.bf16.msra.mxu0 0
    %342 = vmatprep.subr.bf16.mxu0 0
    %343 = vmatpush1.bf16.msra.mxu0 0
    %344 = vmatprep.subr.bf16.mxu0 0
    %345 = vmatpush1.bf16.msra.mxu0 0
    %346 = vmatprep.subr.bf16.mxu0 0
    %347 = vmatpush1.bf16.msra.mxu0 0
    %348 = vmatprep.subr.bf16.mxu0 0
    %349 = vmatpush1.bf16.msra.mxu0 0
    %350 = vmatprep.subr.bf16.mxu0 0
    %351 = vmatpush1.bf16.msra.mxu0 0
    %352 = vmatprep.mubr.bf16.mxu0 0
    %353 = vmatmul.mubr.bf16.gmra.mrb[0].mxu0 %v248
    %v354 = vpop.f32.mrb[0].mxu0
    %v355 = vadd.f32 %v270, %v354
    %v356 = vpop.f32.mrb[0].mxu0
    %v357 = vpop.f32.mrb[0].mxu0
    %v358 = vpop.f32.mrb[0].mxu0
    %359 = vdwg.mxu0
    %v360 = vlaneseq
    %v361 = vand.u32 %v360, 127
    %vm362 = vcmp.lt.s32.totalorder %v361, 10
    %v363 = vsel %vm362, %v355, -inf
    %vm364 = vcmask 1041408
    %v365 = vsel %vm364, %v363, -inf
    %366 = vmax.xlane.f32.xlu0 %v365
    %v367 = vpop.xlane.xlu0 %366
    %v368 = vsub.f32 %v363, %v367
    %v369 = vmul.f32 %v368, 1.442695
    %v370 = vpow.pop %v369
    %v371 = vsel %vm364, %v370, 0.0
    %372 = vadd.xlane.f32.xlu0 %v371
    %v373 = vpop.xlane.xlu0 %372
    %v374 = vrcp.pop %v373
    %v375 = vmul.f32 %v370, %v374
    %376 = vst [vmem:[#allocation11] sm:$0x3] %v375
    // Predicated region
    $region42: #{alexnet_forward.11} parent=1 // pred_check
      _
    $region43: #{alexnet_forward.11} parent=1 // pred_check_branch
      %378 = sbr.rel (0) target = $region45
    $region44: #{alexnet_forward.11} parent=1 // pred_region
      %s380 = ssub.s32 32, 32
      %381 = vsyncadd [#allocation4], %s380
      %s383 = sshll.u32 [#allocation11], 4
      %s384 = int_to_ptr.vmem [resolvable:$true] %s383
      %386 = dma.vmem_to_hbm [thread:$0]  %s384, 32, %s5, [#allocation4]
    $region45: #{alexnet_forward.11} parent=1 // pred_fallthru
      _
    // Predicated region
    $region46: #{alexnet_forward.11} parent=1 // pred_check
      _
    $region47: #{alexnet_forward.11} parent=1 // pred_check_branch
      %388 = sbr.rel (0) target = $region49
    $region48: #{alexnet_forward.11} parent=1 // pred_region
      %389 = dma.done [#allocation4], 32
    $region49: #{alexnet_forward.11} parent=1 // pred_fallthru
      _
    %390 = vsyncpa [#allocation3], 1
    %391 = vsyncpa [#allocation6], 1
    %392 = vsyncpa [#allocation9], 1
    %393 = vsyncpa [#allocation4], 1

// kernel: alexnet_forward.10
$region0: #{alexnet_forward.10}
  #allocation0 [shape = 'u32[]', space=smem, size = 0x4, offset = 0x4, fixed_abs, tag = 'smem constant byte address 0x4 - core index']
  #allocation1 [shape = 'u32[144,128]{1,0:T(1,128)}', space=vmem, size = 0x12000, scoped, tag = 'internal scratch']
  %s0 = inlined_call_operand.hbm [shape: bf16[80,128], index: 0, kind: input, shape index: {}]
  %s1 = inlined_call_operand.hbm [shape: bf16[9,128,128], index: 1, kind: input, shape index: {}]
  %s2 = inlined_call_operand.hbm [shape: f32[1,128], index: 2, kind: input, shape index: {}]
  %s3 = inlined_call_operand.hbm [shape: bf16[64,128], index: 3, kind: output, shape index: {}]
  %s4 = sld [smem:[#allocation0]]
  $region34: #{alexnet_forward.10} parent=0
    _
  %s6 = ssub.s32 1, %s4
  %s7 = scalar_select 0, %s6, %s4
  $region1: #{alexnet_forward.10} parent=0
    #allocation2 [shape = 'u8[20480]{0}', space=vmem, size = 0x5000, scoped, tag = 'input window, operand 0, single buffered']
    #allocation3 [shape = 's32[1]{0}', space=sflag, size = 0x4, scoped, tag = 'scoped memory for alexnet_forward.10']
    #allocation4 [shape = 's32[1]{0}', space=sflag, size = 0x4, scoped, tag = 'scoped memory for alexnet_forward.10']
    #allocation5 [shape = 'u8[294912]{0}', space=vmem, size = 0x48000, scoped, tag = 'input window, operand 1, single buffered']
    #allocation6 [shape = 's32[1]{0}', space=sflag, size = 0x4, scoped, tag = 'scoped memory for alexnet_forward.10']
    #allocation7 [shape = 'u8[512]{0}', space=vmem, size = 0x400, scoped, tag = 'input window, operand 2, single buffered']
    #allocation8 [shape = 'u8[16384]{0}', space=vmem, size = 0x4000, scoped, tag = 'output window, operand 0, single buffered']
    %8 = vsyncpa [#allocation3], 0
    %9 = vsyncpa [#allocation6], 0
    %10 = vsyncpa [#allocation4], 0
    // Predicated region
    $region2: #{alexnet_forward.10} parent=1 // pred_check
      _
    $region3: #{alexnet_forward.10} parent=1 // pred_check_branch
      %12 = sbr.rel (0) target = $region5
    $region4: #{alexnet_forward.10} parent=1 // pred_region
      %s14 = ssub.s32 640, 640
      %15 = vsyncadd [#allocation3], %s14
      %s16 = sshll.u32 [#allocation2], 4
      %s17 = int_to_ptr.vmem [resolvable:$true] %s16
      %22 = dma.hbm_to_vmem [thread:$0]  %s0, 640, %s17, [#allocation3], 64, 64, 4
    $region5: #{alexnet_forward.10} parent=1 // pred_fallthru
      _
    // Predicated region
    $region6: #{alexnet_forward.10} parent=1 // pred_check
      _
    $region7: #{alexnet_forward.10} parent=1 // pred_check_branch
      %24 = sbr.rel (0) target = $region9
    $region8: #{alexnet_forward.10} parent=1 // pred_region
      %s26 = ssub.s32 9216, 9216
      %27 = vsyncadd [#allocation6], %s26
      %s28 = sshll.u32 [#allocation5], 4
      %s29 = int_to_ptr.vmem [resolvable:$true] %s28
      %34 = dma.hbm_to_vmem [thread:$0]  %s1, 9216, %s29, [#allocation6], 64, 64, 4
    $region9: #{alexnet_forward.10} parent=1 // pred_fallthru
      _
    // Predicated region
    $region10: #{alexnet_forward.10} parent=1 // pred_check
      _
    $region11: #{alexnet_forward.10} parent=1 // pred_check_branch
      %36 = sbr.rel (0) target = $region13
    $region12: #{alexnet_forward.10} parent=1 // pred_region
      %s38 = ssub.s32 16, 16
      %39 = vsyncadd [#allocation6], %s38
      %s41 = sshll.u32 [#allocation7], 4
      %s42 = int_to_ptr.vmem [resolvable:$true] %s41
      %44 = dma.hbm_to_vmem [thread:$0]  %s2, 16, %s42, [#allocation6]
    $region13: #{alexnet_forward.10} parent=1 // pred_fallthru
      _
    // Predicated region
    $region14: #{alexnet_forward.10} parent=1 // pred_check
      _
    $region15: #{alexnet_forward.10} parent=1 // pred_check_branch
      %46 = sbr.rel (0) target = $region17
    $region16: #{alexnet_forward.10} parent=1 // pred_region
      %47 = dma.done [#allocation3], 640
    $region17: #{alexnet_forward.10} parent=1 // pred_fallthru
      _
    // Predicated region
    $region18: #{alexnet_forward.10} parent=1 // pred_check
      _
    $region19: #{alexnet_forward.10} parent=1 // pred_check_branch
      %49 = sbr.rel (0) target = $region21
    $region20: #{alexnet_forward.10} parent=1 // pred_region
      %50 = dma.done [#allocation6], 9216
    $region21: #{alexnet_forward.10} parent=1 // pred_fallthru
      _
    // Predicated region
    $region22: #{alexnet_forward.10} parent=1 // pred_check
      _
    $region23: #{alexnet_forward.10} parent=1 // pred_check_branch
      %52 = sbr.rel (0) target = $region25
    $region24: #{alexnet_forward.10} parent=1 // pred_region
      %53 = dma.done [#allocation6], 16
    $region25: #{alexnet_forward.10} parent=1 // pred_fallthru
      _
    %v55 = vld [vmem:[#allocation2] sm:$0xf]
    %v56 = vld [vmem:[#allocation2 + $0x4] sm:$0xf]
    %v57 = vld [vmem:[#allocation2 + $0x8] sm:$0xf]
    %v58 = vld [vmem:[#allocation2 + $0xc] sm:$0xf]
    %v59 = vld [vmem:[#allocation2 + $0x10] sm:$0xf]
    %v60 = vld [vmem:[#allocation2 + $0x14] sm:$0xf]
    %v61 = vld [vmem:[#allocation2 + $0x18] sm:$0xf]
    %v62 = vld [vmem:[#allocation2 + $0x1c] sm:$0xf]
    %v63 = vld [vmem:[#allocation2 + $0x20] sm:$0xf]
    %v64 = vld [vmem:[#allocation2 + $0x24] sm:$0xf]
    %v65 = vld [vmem:[#allocation5] sm:$0xf]
    %v66 = vld [vmem:[#allocation5 + $0x4] sm:$0xf]
    %v67 = vld [vmem:[#allocation5 + $0x8] sm:$0xf]
    %v68 = vld [vmem:[#allocation5 + $0xc] sm:$0xf]
    %v69 = vld [vmem:[#allocation5 + $0x10] sm:$0xf]
    %v70 = vld [vmem:[#allocation5 + $0x14] sm:$0xf]
    %v71 = vld [vmem:[#allocation5 + $0x18] sm:$0xf]
    %v72 = vld [vmem:[#allocation5 + $0x1c] sm:$0xf]
    %v73 = vld [vmem:[#allocation5 + $0x20] sm:$0xf]
    %v74 = vld [vmem:[#allocation5 + $0x24] sm:$0xf]
    %v75 = vld [vmem:[#allocation5 + $0x28] sm:$0xf]
    %v76 = vld [vmem:[#allocation5 + $0x2c] sm:$0xf]
    %v77 = vld [vmem:[#allocation5 + $0x30] sm:$0xf]
    %v78 = vld [vmem:[#allocation5 + $0x34] sm:$0xf]
    %v79 = vld [vmem:[#allocation5 + $0x38] sm:$0xf]
    %v80 = vld [vmem:[#allocation5 + $0x3c] sm:$0xf]
    %v81 = vld [vmem:[#allocation7] sm:$0x1]
    %v83 = vlaneseq
    %v84 = vshrl.u32 %v83, 7
    %v85 = vsub.s32 0, %v84
    %v86 = vrot.slane %v81, %v85
    %v96 = vunpack.c.l.b16 %v55
    %v97 = vunpack.c.l.b16 %v56
    %v98 = vunpack.c.l.b16 %v57
    %v99 = vunpack.c.l.b16 %v58
    %v100 = vunpack.c.l.b16 %v59
    %v101 = vunpack.c.l.b16 %v60
    %v102 = vunpack.c.l.b16 %v61
    %v103 = vunpack.c.l.b16 %v62
    %v104 = vpack.c.b16 %v97, %v96
    %v105 = vpack.c.b16 %v99, %v98
    %v106 = vpack.c.b16 %v101, %v100
    %v107 = vpack.c.b16 %v103, %v102
    %v128 = vunpack.c.l.b16 %v65
    %v129 = vunpack.c.l.b16 %v66
    %v130 = vunpack.c.l.b16 %v67
    %v131 = vunpack.c.l.b16 %v68
    %v132 = vunpack.c.l.b16 %v69
    %v133 = vunpack.c.l.b16 %v70
    %v134 = vunpack.c.l.b16 %v71
    %v135 = vunpack.c.l.b16 %v72
    %v136 = vunpack.c.l.b16 %v73
    %v137 = vunpack.c.l.b16 %v74
    %v138 = vunpack.c.l.b16 %v75
    %v139 = vunpack.c.l.b16 %v76
    %v140 = vunpack.c.l.b16 %v77
    %v141 = vunpack.c.l.b16 %v78
    %v142 = vunpack.c.l.b16 %v79
    %v143 = vunpack.c.l.b16 %v80
    %v144 = vpack.c.b16 %v129, %v128
    %v145 = vpack.c.b16 %v131, %v130
    %v146 = vpack.c.b16 %v133, %v132
    %v147 = vpack.c.b16 %v135, %v134
    %v148 = vpack.c.b16 %v137, %v136
    %v149 = vpack.c.b16 %v139, %v138
    %v150 = vpack.c.b16 %v141, %v140
    %v151 = vpack.c.b16 %v143, %v142
    %160 = vmatprep.subr.bf16.mxu0 0
    %161 = vmatpush1.bf16.msra.mxu0 %v144
    %162 = vmatprep.subr.bf16.mxu0 0
    %163 = vmatpush1.bf16.msra.mxu0 %v145
    %164 = vmatprep.subr.bf16.mxu0 0
    %165 = vmatpush1.bf16.msra.mxu0 %v146
    %166 = vmatprep.subr.bf16.mxu0 0
    %167 = vmatpush1.bf16.msra.mxu0 %v147
    %168 = vmatprep.subr.bf16.mxu0 0
    %169 = vmatpush1.bf16.msra.mxu0 %v148
    %170 = vmatprep.subr.bf16.mxu0 0
    %171 = vmatpush1.bf16.msra.mxu0 %v149
    %172 = vmatprep.subr.bf16.mxu0 0
    %173 = vmatpush1.bf16.msra.mxu0 %v150
    %174 = vmatprep.subr.bf16.mxu0 0
    %175 = vmatpush1.bf16.msra.mxu0 %v151
    %176 = vmatprep.subr.bf16.mxu0 0
    %177 = vmatpush1.bf16.msra.mxu0 0
    %178 = vmatprep.subr.bf16.mxu0 0
    %179 = vmatpush1.bf16.msra.mxu0 0
    %180 = vmatprep.subr.bf16.mxu0 0
    %181 = vmatpush1.bf16.msra.mxu0 0
    %182 = vmatprep.subr.bf16.mxu0 0
    %183 = vmatpush1.bf16.msra.mxu0 0
    %184 = vmatprep.subr.bf16.mxu0 0
    %185 = vmatpush1.bf16.msra.mxu0 0
    %186 = vmatprep.subr.bf16.mxu0 0
    %187 = vmatpush1.bf16.msra.mxu0 0
    %188 = vmatprep.subr.bf16.mxu0 0
    %189 = vmatpush1.bf16.msra.mxu0 0
    %190 = vmatprep.subr.bf16.mxu0 0
    %191 = vmatpush1.bf16.msra.mxu0 0
    %192 = vmatprep.mubr.bf16.mxu0 0
    %193 = vmatmul.mubr.bf16.gmra.mrb[0].mxu0 %v104
    %v194 = vpop.f32.mrb[0].mxu0
    %v195 = vadd.f32 %v86, %v194
    %v196 = vpop.f32.mrb[0].mxu0
    %v197 = vpop.f32.mrb[0].mxu0
    %v198 = vadd.f32 %v86, %v197
    %v199 = vpop.f32.mrb[0].mxu0
    %200 = vmatprep.mubr.bf16.mxu0 0
    %201 = vmatmul.mubr.bf16.gmra.mrb[0].mxu0 %v105
    %v202 = vpop.f32.mrb[0].mxu0
    %v203 = vadd.f32 %v86, %v202
    %v204 = vpop.f32.mrb[0].mxu0
    %v205 = vpop.f32.mrb[0].mxu0
    %v206 = vadd.f32 %v86, %v205
    %v207 = vpop.f32.mrb[0].mxu0
    %208 = vmatprep.mubr.bf16.mxu0 0
    %209 = vmatmul.mubr.bf16.gmra.mrb[0].mxu0 %v106
    %v210 = vpop.f32.mrb[0].mxu0
    %v211 = vadd.f32 %v86, %v210
    %v212 = vpop.f32.mrb[0].mxu0
    %v213 = vpop.f32.mrb[0].mxu0
    %v214 = vadd.f32 %v86, %v213
    %v215 = vpop.f32.mrb[0].mxu0
    %216 = vmatprep.mubr.bf16.mxu0 0
    %217 = vmatmul.mubr.bf16.gmra.mrb[0].mxu0 %v107
    %v218 = vpop.f32.mrb[0].mxu0
    %v219 = vadd.f32 %v86, %v218
    %v220 = vpop.f32.mrb[0].mxu0
    %v221 = vpop.f32.mrb[0].mxu0
    %v222 = vadd.f32 %v86, %v221
    %v223 = vpop.f32.mrb[0].mxu0
    %224 = vdwg.mxu0
    %s225 = scalar_lea.vmem [#allocation5], 64
    %v226 = vld [vmem:[%s225] sm:$0xf]
    %v227 = vld [vmem:[%s225 + $0x4] sm:$0xf]
    %v228 = vld [vmem:[%s225 + $0x8] sm:$0xf]
    %v229 = vld [vmem:[%s225 + $0xc] sm:$0xf]
    %v230 = vld [vmem:[%s225 + $0x10] sm:$0xf]
    %v231 = vld [vmem:[%s225 + $0x14] sm:$0xf]
    %v232 = vld [vmem:[%s225 + $0x18] sm:$0xf]
    %v233 = vld [vmem:[%s225 + $0x1c] sm:$0xf]
    %v234 = vld [vmem:[%s225 + $0x20] sm:$0xf]
    %v235 = vld [vmem:[%s225 + $0x24] sm:$0xf]
    %v236 = vld [vmem:[%s225 + $0x28] sm:$0xf]
    %v237 = vld [vmem:[%s225 + $0x2c] sm:$0xf]
    %v238 = vld [vmem:[%s225 + $0x30] sm:$0xf]
    %v239 = vld [vmem:[%s225 + $0x34] sm:$0xf]
    %v240 = vld [vmem:[%s225 + $0x38] sm:$0xf]
    %v241 = vld [vmem:[%s225 + $0x3c] sm:$0xf]
    %v243 = vunpack.c.l.b16 %v63
    %v244 = vpack.c.b16 %v243, %v243
    %vm245 = vsmask.f32 7424
    %v247 = vshrl.u32 %v104, 16
    %v249 = vshll.u32 %v104, 16
    %v251 = vrot.slane %v249, 1
    %v252 = vor.u32 %v247, %v251
    %v254 = vshll.u32 %v105, 16
    %v256 = vrot.slane %v254, 1
    %v257 = vsel %vm245, %v252, %v256
    %v258 = vshrl.u32 %v105, 16
    %v260 = vor.u32 %v258, %v256
    %v262 = vshll.u32 %v106, 16
    %v264 = vrot.slane %v262, 1
    %v265 = vsel %vm245, %v260, %v264
    %v266 = vshrl.u32 %v106, 16
    %v268 = vor.u32 %v266, %v264
    %v270 = vshll.u32 %v107, 16
    %v272 = vrot.slane %v270, 1
    %v273 = vsel %vm245, %v268, %v272
    %v274 = vshrl.u32 %v107, 16
    %v276 = vor.u32 %v274, %v272
    %v278 = vshll.u32 %v244, 16
    %v280 = vrot.slane %v278, 1
    %v281 = vsel %vm245, %v276, %v280
    %v302 = vunpack.c.l.b16 %v226
    %v303 = vunpack.c.l.b16 %v227
    %v304 = vunpack.c.l.b16 %v228
    %v305 = vunpack.c.l.b16 %v229
    %v306 = vunpack.c.l.b16 %v230
    %v307 = vunpack.c.l.b16 %v231
    %v308 = vunpack.c.l.b16 %v232
    %v309 = vunpack.c.l.b16 %v233
    %v310 = vunpack.c.l.b16 %v234
    %v311 = vunpack.c.l.b16 %v235
    %v312 = vunpack.c.l.b16 %v236
    %v313 = vunpack.c.l.b16 %v237
    %v314 = vunpack.c.l.b16 %v238
    %v315 = vunpack.c.l.b16 %v239
    %v316 = vunpack.c.l.b16 %v240
    %v317 = vunpack.c.l.b16 %v241
    %v318 = vpack.c.b16 %v303, %v302
    %v319 = vpack.c.b16 %v305, %v304
    %v320 = vpack.c.b16 %v307, %v306
    %v321 = vpack.c.b16 %v309, %v308
    %v322 = vpack.c.b16 %v311, %v310
    %v323 = vpack.c.b16 %v313, %v312
    %v324 = vpack.c.b16 %v315, %v314
    %v325 = vpack.c.b16 %v317, %v316
    %334 = vmatprep.subr.bf16.mxu0 0
    %335 = vmatpush1.bf16.msra.mxu0 %v318
    %336 = vmatprep.subr.bf16.mxu0 0
    %337 = vmatpush1.bf16.msra.mxu0 %v319
    %338 = vmatprep.subr.bf16.mxu0 0
    %339 = vmatpush1.bf16.msra.mxu0 %v320
    %340 = vmatprep.subr.bf16.mxu0 0
    %341 = vmatpush1.bf16.msra.mxu0 %v321
    %342 = vmatprep.subr.bf16.mxu0 0
    %343 = vmatpush1.bf16.msra.mxu0 %v322
    %344 = vmatprep.subr.bf16.mxu0 0
    %345 = vmatpush1.bf16.msra.mxu0 %v323
    %346 = vmatprep.subr.bf16.mxu0 0
    %347 = vmatpush1.bf16.msra.mxu0 %v324
    %348 = vmatprep.subr.bf16.mxu0 0
    %349 = vmatpush1.bf16.msra.mxu0 %v325
    %350 = vmatprep.subr.bf16.mxu0 0
    %351 = vmatpush1.bf16.msra.mxu0 0
    %352 = vmatprep.subr.bf16.mxu0 0
    %353 = vmatpush1.bf16.msra.mxu0 0
    %354 = vmatprep.subr.bf16.mxu0 0
    %355 = vmatpush1.bf16.msra.mxu0 0
    %356 = vmatprep.subr.bf16.mxu0 0
    %357 = vmatpush1.bf16.msra.mxu0 0
    %358 = vmatprep.subr.bf16.mxu0 0
    %359 = vmatpush1.bf16.msra.mxu0 0
    %360 = vmatprep.subr.bf16.mxu0 0
    %361 = vmatpush1.bf16.msra.mxu0 0
    %362 = vmatprep.subr.bf16.mxu0 0
    %363 = vmatpush1.bf16.msra.mxu0 0
    %364 = vmatprep.subr.bf16.mxu0 0
    %365 = vmatpush1.bf16.msra.mxu0 0
    %366 = vmatprep.mubr.bf16.mxu0 0
    %367 = vmatmul.mubr.bf16.gmra.mrb[0].mxu0 %v257
    %v368 = vpop.f32.mrb[0].mxu0
    %v369 = vadd.f32 0.0, %v368
    %v370 = vpop.f32.mrb[0].mxu0
    %v371 = vpop.f32.mrb[0].mxu0
    %v372 = vadd.f32 0.0, %v371
    %v373 = vpop.f32.mrb[0].mxu0
    %374 = vmatprep.mubr.bf16.mxu0 0
    %375 = vmatmul.mubr.bf16.gmra.mrb[0].mxu0 %v265
    %v376 = vpop.f32.mrb[0].mxu0
    %v377 = vadd.f32 0.0, %v376
    %v378 = vpop.f32.mrb[0].mxu0
    %v379 = vpop.f32.mrb[0].mxu0
    %v380 = vadd.f32 0.0, %v379
    %v381 = vpop.f32.mrb[0].mxu0
    %382 = vmatprep.mubr.bf16.mxu0 0
    %383 = vmatmul.mubr.bf16.gmra.mrb[0].mxu0 %v273
    %v384 = vpop.f32.mrb[0].mxu0
    %v385 = vadd.f32 0.0, %v384
    %v386 = vpop.f32.mrb[0].mxu0
    %v387 = vpop.f32.mrb[0].mxu0
    %v388 = vadd.f32 0.0, %v387
    %v389 = vpop.f32.mrb[0].mxu0
    %390 = vmatprep.mubr.bf16.mxu0 0
    %391 = vmatmul.mubr.bf16.gmra.mrb[0].mxu0 %v281
    %v392 = vpop.f32.mrb[0].mxu0
    %v393 = vadd.f32 0.0, %v392
    %v394 = vpop.f32.mrb[0].mxu0
    %v395 = vpop.f32.mrb[0].mxu0
    %v396 = vadd.f32 0.0, %v395
    %v397 = vpop.f32.mrb[0].mxu0
    %398 = vdwg.mxu0
    %v399 = vadd.f32 %v195, %v369
    %v400 = vadd.f32 %v198, %v372
    %v401 = vadd.f32 %v203, %v377
    %v402 = vadd.f32 %v206, %v380
    %v403 = vadd.f32 %v211, %v385
    %v404 = vadd.f32 %v214, %v388
    %v405 = vadd.f32 %v219, %v393
    %v406 = vadd.f32 %v222, %v396
    %s407 = scalar_lea.vmem [#allocation5], 128
    %v408 = vld [vmem:[%s407] sm:$0xf]
    %v409 = vld [vmem:[%s407 + $0x4] sm:$0xf]
    %v410 = vld [vmem:[%s407 + $0x8] sm:$0xf]
    %v411 = vld [vmem:[%s407 + $0xc] sm:$0xf]
    %v412 = vld [vmem:[%s407 + $0x10] sm:$0xf]
    %v413 = vld [vmem:[%s407 + $0x14] sm:$0xf]
    %v414 = vld [vmem:[%s407 + $0x18] sm:$0xf]
    %v415 = vld [vmem:[%s407 + $0x1c] sm:$0xf]
    %v416 = vld [vmem:[%s407 + $0x20] sm:$0xf]
    %v417 = vld [vmem:[%s407 + $0x24] sm:$0xf]
    %v418 = vld [vmem:[%s407 + $0x28] sm:$0xf]
    %v419 = vld [vmem:[%s407 + $0x2c] sm:$0xf]
    %v420 = vld [vmem:[%s407 + $0x30] sm:$0xf]
    %v421 = vld [vmem:[%s407 + $0x34] sm:$0xf]
    %v422 = vld [vmem:[%s407 + $0x38] sm:$0xf]
    %v423 = vld [vmem:[%s407 + $0x3c] sm:$0xf]
    %vm424 = vcmask 1046528
    %v425 = vrot.slane %v104, 1
    %v426 = vrot.slane %v105, 1
    %v427 = vsel %vm424, %v425, %v426
    %v428 = vrot.slane %v106, 1
    %v429 = vsel %vm424, %v426, %v428
    %v430 = vrot.slane %v107, 1
    %v431 = vsel %vm424, %v428, %v430
    %v432 = vrot.slane %v244, 1
    %v433 = vsel %vm424, %v430, %v432
    %v454 = vunpack.c.l.b16 %v408
    %v455 = vunpack.c.l.b16 %v409
    %v456 = vunpack.c.l.b16 %v410
    %v457 = vunpack.c.l.b16 %v411
    %v458 = vunpack.c.l.b16 %v412
    %v459 = vunpack.c.l.b16 %v413
    %v460 = vunpack.c.l.b16 %v414
    %v461 = vunpack.c.l.b16 %v415
    %v462 = vunpack.c.l.b16 %v416
    %v463 = vunpack.c.l.b16 %v417
    %v464 = vunpack.c.l.b16 %v418
    %v465 = vunpack.c.l.b16 %v419
    %v466 = vunpack.c.l.b16 %v420
    %v467 = vunpack.c.l.b16 %v421
    %v468 = vunpack.c.l.b16 %v422
    %v469 = vunpack.c.l.b16 %v423
    %v470 = vpack.c.b16 %v455, %v454
    %v471 = vpack.c.b16 %v457, %v456
    %v472 = vpack.c.b16 %v459, %v458
    %v473 = vpack.c.b16 %v461, %v460
    %v474 = vpack.c.b16 %v463, %v462
    %v475 = vpack.c.b16 %v465, %v464
    %v476 = vpack.c.b16 %v467, %v466
    %v477 = vpack.c.b16 %v469, %v468
    %486 = vmatprep.subr.bf16.mxu0 0
    %487 = vmatpush1.bf16.msra.mxu0 %v470
    %488 = vmatprep.subr.bf16.mxu0 0
    %489 = vmatpush1.bf16.msra.mxu0 %v471
    %490 = vmatprep.subr.bf16.mxu0 0
    %491 = vmatpush1.bf16.msra.mxu0 %v472
    %492 = vmatprep.subr.bf16.mxu0 0
    %493 = vmatpush1.bf16.msra.mxu0 %v473
    %494 = vmatprep.subr.bf16.mxu0 0
    %495 = vmatpush1.bf16.msra.mxu0 %v474
    %496 = vmatprep.subr.bf16.mxu0 0
    %497 = vmatpush1.bf16.msra.mxu0 %v475
    %498 = vmatprep.subr.bf16.mxu0 0
    %499 = vmatpush1.bf16.msra.mxu0 %v476
    %500 = vmatprep.subr.bf16.mxu0 0
    %501 = vmatpush1.bf16.msra.mxu0 %v477
    %502 = vmatprep.subr.bf16.mxu0 0
    %503 = vmatpush1.bf16.msra.mxu0 0
    %504 = vmatprep.subr.bf16.mxu0 0
    %505 = vmatpush1.bf16.msra.mxu0 0
    %506 = vmatprep.subr.bf16.mxu0 0
    %507 = vmatpush1.bf16.msra.mxu0 0
    %508 = vmatprep.subr.bf16.mxu0 0
    %509 = vmatpush1.bf16.msra.mxu0 0
    %510 = vmatprep.subr.bf16.mxu0 0
    %511 = vmatpush1.bf16.msra.mxu0 0
    %512 = vmatprep.subr.bf16.mxu0 0
    %513 = vmatpush1.bf16.msra.mxu0 0
    %514 = vmatprep.subr.bf16.mxu0 0
    %515 = vmatpush1.bf16.msra.mxu0 0
    %516 = vmatprep.subr.bf16.mxu0 0
    %517 = vmatpush1.bf16.msra.mxu0 0
    %518 = vmatprep.mubr.bf16.mxu0 0
    %519 = vmatmul.mubr.bf16.gmra.mrb[0].mxu0 %v427
    %v520 = vpop.f32.mrb[0].mxu0
    %v521 = vadd.f32 0.0, %v520
    %v522 = vpop.f32.mrb[0].mxu0
    %v523 = vpop.f32.mrb[0].mxu0
    %v524 = vadd.f32 0.0, %v523
    %v525 = vpop.f32.mrb[0].mxu0
    %526 = vmatprep.mubr.bf16.mxu0 0
    %527 = vmatmul.mubr.bf16.gmra.mrb[0].mxu0 %v429
    %v528 = vpop.f32.mrb[0].mxu0
    %v529 = vadd.f32 0.0, %v528
    %v530 = vpop.f32.mrb[0].mxu0
    %v531 = vpop.f32.mrb[0].mxu0
    %v532 = vadd.f32 0.0, %v531
    %v533 = vpop.f32.mrb[0].mxu0
    %534 = vmatprep.mubr.bf16.mxu0 0
    %535 = vmatmul.mubr.bf16.gmra.mrb[0].mxu0 %v431
    %v536 = vpop.f32.mrb[0].mxu0
    %v537 = vadd.f32 0.0, %v536
    %v538 = vpop.f32.mrb[0].mxu0
    %v539 = vpop.f32.mrb[0].mxu0
    %v540 = vadd.f32 0.0, %v539
    %v541 = vpop.f32.mrb[0].mxu0
    %542 = vmatprep.mubr.bf16.mxu0 0
    %543 = vmatmul.mubr.bf16.gmra.mrb[0].mxu0 %v433
    %v544 = vpop.f32.mrb[0].mxu0
    %v545 = vadd.f32 0.0, %v544
    %v546 = vpop.f32.mrb[0].mxu0
    %v547 = vpop.f32.mrb[0].mxu0
    %v548 = vadd.f32 0.0, %v547
    %v549 = vpop.f32.mrb[0].mxu0
    %550 = vdwg.mxu0
    %v551 = vadd.f32 %v399, %v521
    %v552 = vadd.f32 %v400, %v524
    %v553 = vadd.f32 %v401, %v529
    %v554 = vadd.f32 %v402, %v532
    %v555 = vadd.f32 %v403, %v537
    %v556 = vadd.f32 %v404, %v540
    %v557 = vadd.f32 %v405, %v545
    %v558 = vadd.f32 %v406, %v548
    %s559 = scalar_lea.vmem [#allocation5], 192
    %v560 = vld [vmem:[%s559] sm:$0xf]
    %v561 = vld [vmem:[%s559 + $0x4] sm:$0xf]
    %v562 = vld [vmem:[%s559 + $0x8] sm:$0xf]
    %v563 = vld [vmem:[%s559 + $0xc] sm:$0xf]
    %v564 = vld [vmem:[%s559 + $0x10] sm:$0xf]
    %v565 = vld [vmem:[%s559 + $0x14] sm:$0xf]
    %v566 = vld [vmem:[%s559 + $0x18] sm:$0xf]
    %v567 = vld [vmem:[%s559 + $0x1c] sm:$0xf]
    %v568 = vld [vmem:[%s559 + $0x20] sm:$0xf]
    %v569 = vld [vmem:[%s559 + $0x24] sm:$0xf]
    %v570 = vld [vmem:[%s559 + $0x28] sm:$0xf]
    %v571 = vld [vmem:[%s559 + $0x2c] sm:$0xf]
    %v572 = vld [vmem:[%s559 + $0x30] sm:$0xf]
    %v573 = vld [vmem:[%s559 + $0x34] sm:$0xf]
    %v574 = vld [vmem:[%s559 + $0x38] sm:$0xf]
    %v575 = vld [vmem:[%s559 + $0x3c] sm:$0xf]
    %vm576 = vsmask.f32 5376
    %v577 = vrot.slane %v247, 2
    %v578 = vrot.slane %v249, 3
    %v579 = vor.u32 %v577, %v578
    %v580 = vrot.slane %v258, 2
    %v581 = vrot.slane %v254, 3
    %v582 = vor.u32 %v580, %v581
    %v583 = vsel %vm576, %v579, %v582
    %v584 = vrot.slane %v266, 2
    %v585 = vrot.slane %v262, 3
    %v586 = vor.u32 %v584, %v585
    %v587 = vsel %vm576, %v582, %v586
    %v588 = vrot.slane %v274, 2
    %v589 = vrot.slane %v270, 3
    %v590 = vor.u32 %v588, %v589
    %v591 = vsel %vm576, %v586, %v590
    %v592 = vshrl.u32 %v244, 16
    %v594 = vrot.slane %v592, 2
    %v595 = vrot.slane %v278, 3
    %v596 = vor.u32 %v594, %v595
    %v597 = vsel %vm576, %v590, %v596
    %v618 = vunpack.c.l.b16 %v560
    %v619 = vunpack.c.l.b16 %v561
    %v620 = vunpack.c.l.b16 %v562
    %v621 = vunpack.c.l.b16 %v563
    %v622 = vunpack.c.l.b16 %v564
    %v623 = vunpack.c.l.b16 %v565
    %v624 = vunpack.c.l.b16 %v566
    %v625 = vunpack.c.l.b16 %v567
    %v626 = vunpack.c.l.b16 %v568
    %v627 = vunpack.c.l.b16 %v569
    %v628 = vunpack.c.l.b16 %v570
    %v629 = vunpack.c.l.b16 %v571
    %v630 = vunpack.c.l.b16 %v572
    %v631 = vunpack.c.l.b16 %v573
    %v632 = vunpack.c.l.b16 %v574
    %v633 = vunpack.c.l.b16 %v575
    %v634 = vpack.c.b16 %v619, %v618
    %v635 = vpack.c.b16 %v621, %v620
    %v636 = vpack.c.b16 %v623, %v622
    %v637 = vpack.c.b16 %v625, %v624
    %v638 = vpack.c.b16 %v627, %v626
    %v639 = vpack.c.b16 %v629, %v628
    %v640 = vpack.c.b16 %v631, %v630
    %v641 = vpack.c.b16 %v633, %v632
    %650 = vmatprep.subr.bf16.mxu0 0
    %651 = vmatpush1.bf16.msra.mxu0 %v634
    %652 = vmatprep.subr.bf16.mxu0 0
    %653 = vmatpush1.bf16.msra.mxu0 %v635
    %654 = vmatprep.subr.bf16.mxu0 0
    %655 = vmatpush1.bf16.msra.mxu0 %v636
    %656 = vmatprep.subr.bf16.mxu0 0
    %657 = vmatpush1.bf16.msra.mxu0 %v637
    %658 = vmatprep.subr.bf16.mxu0 0
    %659 = vmatpush1.bf16.msra.mxu0 %v638
    %660 = vmatprep.subr.bf16.mxu0 0
    %661 = vmatpush1.bf16.msra.mxu0 %v639
    %662 = vmatprep.subr.bf16.mxu0 0
    %663 = vmatpush1.bf16.msra.mxu0 %v640
    %664 = vmatprep.subr.bf16.mxu0 0
    %665 = vmatpush1.bf16.msra.mxu0 %v641
    %666 = vmatprep.subr.bf16.mxu0 0
    %667 = vmatpush1.bf16.msra.mxu0 0
    %668 = vmatprep.subr.bf16.mxu0 0
    %669 = vmatpush1.bf16.msra.mxu0 0
    %670 = vmatprep.subr.bf16.mxu0 0
    %671 = vmatpush1.bf16.msra.mxu0 0
    %672 = vmatprep.subr.bf16.mxu0 0
    %673 = vmatpush1.bf16.msra.mxu0 0
    %674 = vmatprep.subr.bf16.mxu0 0
    %675 = vmatpush1.bf16.msra.mxu0 0
    %676 = vmatprep.subr.bf16.mxu0 0
    %677 = vmatpush1.bf16.msra.mxu0 0
    %678 = vmatprep.subr.bf16.mxu0 0
    %679 = vmatpush1.bf16.msra.mxu0 0
    %680 = vmatprep.subr.bf16.mxu0 0
    %681 = vmatpush1.bf16.msra.mxu0 0
    %682 = vmatprep.mubr.bf16.mxu0 0
    %683 = vmatmul.mubr.bf16.gmra.mrb[0].mxu0 %v583
    %v684 = vpop.f32.mrb[0].mxu0
    %v685 = vadd.f32 0.0, %v684
    %v686 = vpop.f32.mrb[0].mxu0
    %v687 = vpop.f32.mrb[0].mxu0
    %v688 = vadd.f32 0.0, %v687
    %v689 = vpop.f32.mrb[0].mxu0
    %690 = vmatprep.mubr.bf16.mxu0 0
    %691 = vmatmul.mubr.bf16.gmra.mrb[0].mxu0 %v587
    %v692 = vpop.f32.mrb[0].mxu0
    %v693 = vadd.f32 0.0, %v692
    %v694 = vpop.f32.mrb[0].mxu0
    %v695 = vpop.f32.mrb[0].mxu0
    %v696 = vadd.f32 0.0, %v695
    %v697 = vpop.f32.mrb[0].mxu0
    %698 = vmatprep.mubr.bf16.mxu0 0
    %699 = vmatmul.mubr.bf16.gmra.mrb[0].mxu0 %v591
    %v700 = vpop.f32.mrb[0].mxu0
    %v701 = vadd.f32 0.0, %v700
    %v702 = vpop.f32.mrb[0].mxu0
    %v703 = vpop.f32.mrb[0].mxu0
    %v704 = vadd.f32 0.0, %v703
    %v705 = vpop.f32.mrb[0].mxu0
    %706 = vmatprep.mubr.bf16.mxu0 0
    %707 = vmatmul.mubr.bf16.gmra.mrb[0].mxu0 %v597
    %v708 = vpop.f32.mrb[0].mxu0
    %v709 = vadd.f32 0.0, %v708
    %v710 = vpop.f32.mrb[0].mxu0
    %v711 = vpop.f32.mrb[0].mxu0
    %v712 = vadd.f32 0.0, %v711
    %v713 = vpop.f32.mrb[0].mxu0
    %714 = vdwg.mxu0
    %v715 = vadd.f32 %v551, %v685
    %v716 = vadd.f32 %v552, %v688
    %v717 = vadd.f32 %v553, %v693
    %v718 = vadd.f32 %v554, %v696
    %v719 = vadd.f32 %v555, %v701
    %v720 = vadd.f32 %v556, %v704
    %v721 = vadd.f32 %v557, %v709
    %v722 = vadd.f32 %v558, %v712
    %s723 = scalar_lea.vmem [#allocation5], 256
    %v724 = vld [vmem:[%s723] sm:$0xf]
    %v725 = vld [vmem:[%s723 + $0x4] sm:$0xf]
    %v726 = vld [vmem:[%s723 + $0x8] sm:$0xf]
    %v727 = vld [vmem:[%s723 + $0xc] sm:$0xf]
    %v728 = vld [vmem:[%s723 + $0x10] sm:$0xf]
    %v729 = vld [vmem:[%s723 + $0x14] sm:$0xf]
    %v730 = vld [vmem:[%s723 + $0x18] sm:$0xf]
    %v731 = vld [vmem:[%s723 + $0x1c] sm:$0xf]
    %v732 = vld [vmem:[%s723 + $0x20] sm:$0xf]
    %v733 = vld [vmem:[%s723 + $0x24] sm:$0xf]
    %v734 = vld [vmem:[%s723 + $0x28] sm:$0xf]
    %v735 = vld [vmem:[%s723 + $0x2c] sm:$0xf]
    %v736 = vld [vmem:[%s723 + $0x30] sm:$0xf]
    %v737 = vld [vmem:[%s723 + $0x34] sm:$0xf]
    %v738 = vld [vmem:[%s723 + $0x38] sm:$0xf]
    %v739 = vld [vmem:[%s723 + $0x3c] sm:$0xf]
    %vm740 = vcmask 1044480
    %v741 = vrot.slane %v104, 3
    %v742 = vrot.slane %v105, 3
    %v743 = vsel %vm740, %v741, %v742
    %v744 = vrot.slane %v106, 3
    %v745 = vsel %vm740, %v742, %v744
    %v746 = vrot.slane %v107, 3
    %v747 = vsel %vm740, %v744, %v746
    %v748 = vrot.slane %v244, 3
    %v749 = vsel %vm740, %v746, %v748
    %v770 = vunpack.c.l.b16 %v724
    %v771 = vunpack.c.l.b16 %v725
    %v772 = vunpack.c.l.b16 %v726
    %v773 = vunpack.c.l.b16 %v727
    %v774 = vunpack.c.l.b16 %v728
    %v775 = vunpack.c.l.b16 %v729
    %v776 = vunpack.c.l.b16 %v730
    %v777 = vunpack.c.l.b16 %v731
    %v778 = vunpack.c.l.b16 %v732
    %v779 = vunpack.c.l.b16 %v733
    %v780 = vunpack.c.l.b16 %v734
    %v781 = vunpack.c.l.b16 %v735
    %v782 = vunpack.c.l.b16 %v736
    %v783 = vunpack.c.l.b16 %v737
    %v784 = vunpack.c.l.b16 %v738
    %v785 = vunpack.c.l.b16 %v739
    %v786 = vpack.c.b16 %v771, %v770
    %v787 = vpack.c.b16 %v773, %v772
    %v788 = vpack.c.b16 %v775, %v774
    %v789 = vpack.c.b16 %v777, %v776
    %v790 = vpack.c.b16 %v779, %v778
    %v791 = vpack.c.b16 %v781, %v780
    %v792 = vpack.c.b16 %v783, %v782
    %v793 = vpack.c.b16 %v785, %v784
    %802 = vmatprep.subr.bf16.mxu0 0
    %803 = vmatpush1.bf16.msra.mxu0 %v786
    %804 = vmatprep.subr.bf16.mxu0 0
    %805 = vmatpush1.bf16.msra.mxu0 %v787
    %806 = vmatprep.subr.bf16.mxu0 0
    %807 = vmatpush1.bf16.msra.mxu0 %v788
    %808 = vmatprep.subr.bf16.mxu0 0
    %809 = vmatpush1.bf16.msra.mxu0 %v789
    %810 = vmatprep.subr.bf16.mxu0 0
    %811 = vmatpush1.bf16.msra.mxu0 %v790
    %812 = vmatprep.subr.bf16.mxu0 0
    %813 = vmatpush1.bf16.msra.mxu0 %v791
    %814 = vmatprep.subr.bf16.mxu0 0
    %815 = vmatpush1.bf16.msra.mxu0 %v792
    %816 = vmatprep.subr.bf16.mxu0 0
    %817 = vmatpush1.bf16.msra.mxu0 %v793
    %818 = vmatprep.subr.bf16.mxu0 0
    %819 = vmatpush1.bf16.msra.mxu0 0
    %820 = vmatprep.subr.bf16.mxu0 0
    %821 = vmatpush1.bf16.msra.mxu0 0
    %822 = vmatprep.subr.bf16.mxu0 0
    %823 = vmatpush1.bf16.msra.mxu0 0
    %824 = vmatprep.subr.bf16.mxu0 0
    %825 = vmatpush1.bf16.msra.mxu0 0
    %826 = vmatprep.subr.bf16.mxu0 0
    %827 = vmatpush1.bf16.msra.mxu0 0
    %828 = vmatprep.subr.bf16.mxu0 0
    %829 = vmatpush1.bf16.msra.mxu0 0
    %830 = vmatprep.subr.bf16.mxu0 0
    %831 = vmatpush1.bf16.msra.mxu0 0
    %832 = vmatprep.subr.bf16.mxu0 0
    %833 = vmatpush1.bf16.msra.mxu0 0
    %834 = vmatprep.mubr.bf16.mxu0 0
    %835 = vmatmul.mubr.bf16.gmra.mrb[0].mxu0 %v743
    %v836 = vpop.f32.mrb[0].mxu0
    %v837 = vadd.f32 0.0, %v836
    %v838 = vpop.f32.mrb[0].mxu0
    %v839 = vpop.f32.mrb[0].mxu0
    %v840 = vadd.f32 0.0, %v839
    %v841 = vpop.f32.mrb[0].mxu0
    %842 = vmatprep.mubr.bf16.mxu0 0
    %843 = vmatmul.mubr.bf16.gmra.mrb[0].mxu0 %v745
    %v844 = vpop.f32.mrb[0].mxu0
    %v845 = vadd.f32 0.0, %v844
    %v846 = vpop.f32.mrb[0].mxu0
    %v847 = vpop.f32.mrb[0].mxu0
    %v848 = vadd.f32 0.0, %v847
    %v849 = vpop.f32.mrb[0].mxu0
    %850 = vmatprep.mubr.bf16.mxu0 0
    %851 = vmatmul.mubr.bf16.gmra.mrb[0].mxu0 %v747
    %v852 = vpop.f32.mrb[0].mxu0
    %v853 = vadd.f32 0.0, %v852
    %v854 = vpop.f32.mrb[0].mxu0
    %v855 = vpop.f32.mrb[0].mxu0
    %v856 = vadd.f32 0.0, %v855
    %v857 = vpop.f32.mrb[0].mxu0
    %858 = vmatprep.mubr.bf16.mxu0 0
    %859 = vmatmul.mubr.bf16.gmra.mrb[0].mxu0 %v749
    %v860 = vpop.f32.mrb[0].mxu0
    %v861 = vadd.f32 0.0, %v860
    %v862 = vpop.f32.mrb[0].mxu0
    %v863 = vpop.f32.mrb[0].mxu0
    %v864 = vadd.f32 0.0, %v863
    %v865 = vpop.f32.mrb[0].mxu0
    %866 = vdwg.mxu0
    %v867 = vadd.f32 %v715, %v837
    %v868 = vadd.f32 %v716, %v840
    %v869 = vadd.f32 %v717, %v845
    %v870 = vadd.f32 %v718, %v848
    %v871 = vadd.f32 %v719, %v853
    %v872 = vadd.f32 %v720, %v856
    %v873 = vadd.f32 %v721, %v861
    %v874 = vadd.f32 %v722, %v864
    %s875 = scalar_lea.vmem [#allocation5], 320
    %v876 = vld [vmem:[%s875] sm:$0xf]
    %v877 = vld [vmem:[%s875 + $0x4] sm:$0xf]
    %v878 = vld [vmem:[%s875 + $0x8] sm:$0xf]
    %v879 = vld [vmem:[%s875 + $0xc] sm:$0xf]
    %v880 = vld [vmem:[%s875 + $0x10] sm:$0xf]
    %v881 = vld [vmem:[%s875 + $0x14] sm:$0xf]
    %v882 = vld [vmem:[%s875 + $0x18] sm:$0xf]
    %v883 = vld [vmem:[%s875 + $0x1c] sm:$0xf]
    %v884 = vld [vmem:[%s875 + $0x20] sm:$0xf]
    %v885 = vld [vmem:[%s875 + $0x24] sm:$0xf]
    %v886 = vld [vmem:[%s875 + $0x28] sm:$0xf]
    %v887 = vld [vmem:[%s875 + $0x2c] sm:$0xf]
    %v888 = vld [vmem:[%s875 + $0x30] sm:$0xf]
    %v889 = vld [vmem:[%s875 + $0x34] sm:$0xf]
    %v890 = vld [vmem:[%s875 + $0x38] sm:$0xf]
    %v891 = vld [vmem:[%s875 + $0x3c] sm:$0xf]
    %vm892 = vsmask.f32 4352
    %v893 = vrot.slane %v247, 3
    %v894 = vrot.slane %v249, 4
    %v895 = vor.u32 %v893, %v894
    %v896 = vrot.slane %v258, 3
    %v897 = vrot.slane %v254, 4
    %v898 = vor.u32 %v896, %v897
    %v899 = vsel %vm892, %v895, %v898
    %v900 = vrot.slane %v266, 3
    %v901 = vrot.slane %v262, 4
    %v902 = vor.u32 %v900, %v901
    %v903 = vsel %vm892, %v898, %v902
    %v904 = vrot.slane %v274, 3
    %v905 = vrot.slane %v270, 4
    %v906 = vor.u32 %v904, %v905
    %v907 = vsel %vm892, %v902, %v906
    %v908 = vrot.slane %v592, 3
    %v909 = vrot.slane %v278, 4
    %v910 = vor.u32 %v908, %v909
    %v911 = vsel %vm892, %v906, %v910
    %v932 = vunpack.c.l.b16 %v876
    %v933 = vunpack.c.l.b16 %v877
    %v934 = vunpack.c.l.b16 %v878
    %v935 = vunpack.c.l.b16 %v879
    %v936 = vunpack.c.l.b16 %v880
    %v937 = vunpack.c.l.b16 %v881
    %v938 = vunpack.c.l.b16 %v882
    %v939 = vunpack.c.l.b16 %v883
    %v940 = vunpack.c.l.b16 %v884
    %v941 = vunpack.c.l.b16 %v885
    %v942 = vunpack.c.l.b16 %v886
    %v943 = vunpack.c.l.b16 %v887
    %v944 = vunpack.c.l.b16 %v888
    %v945 = vunpack.c.l.b16 %v889
    %v946 = vunpack.c.l.b16 %v890
    %v947 = vunpack.c.l.b16 %v891
    %v948 = vpack.c.b16 %v933, %v932
    %v949 = vpack.c.b16 %v935, %v934
    %v950 = vpack.c.b16 %v937, %v936
    %v951 = vpack.c.b16 %v939, %v938
    %v952 = vpack.c.b16 %v941, %v940
    %v953 = vpack.c.b16 %v943, %v942
    %v954 = vpack.c.b16 %v945, %v944
    %v955 = vpack.c.b16 %v947, %v946
    %964 = vmatprep.subr.bf16.mxu0 0
    %965 = vmatpush1.bf16.msra.mxu0 %v948
    %966 = vmatprep.subr.bf16.mxu0 0
    %967 = vmatpush1.bf16.msra.mxu0 %v949
    %968 = vmatprep.subr.bf16.mxu0 0
    %969 = vmatpush1.bf16.msra.mxu0 %v950
    %970 = vmatprep.subr.bf16.mxu0 0
    %971 = vmatpush1.bf16.msra.mxu0 %v951
    %972 = vmatprep.subr.bf16.mxu0 0
    %973 = vmatpush1.bf16.msra.mxu0 %v952
    %974 = vmatprep.subr.bf16.mxu0 0
    %975 = vmatpush1.bf16.msra.mxu0 %v953
    %976 = vmatprep.subr.bf16.mxu0 0
    %977 = vmatpush1.bf16.msra.mxu0 %v954
    %978 = vmatprep.subr.bf16.mxu0 0
    %979 = vmatpush1.bf16.msra.mxu0 %v955
    %980 = vmatprep.subr.bf16.mxu0 0
    %981 = vmatpush1.bf16.msra.mxu0 0
    %982 = vmatprep.subr.bf16.mxu0 0
    %983 = vmatpush1.bf16.msra.mxu0 0
    %984 = vmatprep.subr.bf16.mxu0 0
    %985 = vmatpush1.bf16.msra.mxu0 0
    %986 = vmatprep.subr.bf16.mxu0 0
    %987 = vmatpush1.bf16.msra.mxu0 0
    %988 = vmatprep.subr.bf16.mxu0 0
    %989 = vmatpush1.bf16.msra.mxu0 0
    %990 = vmatprep.subr.bf16.mxu0 0
    %991 = vmatpush1.bf16.msra.mxu0 0
    %992 = vmatprep.subr.bf16.mxu0 0
    %993 = vmatpush1.bf16.msra.mxu0 0
    %994 = vmatprep.subr.bf16.mxu0 0
    %995 = vmatpush1.bf16.msra.mxu0 0
    %996 = vmatprep.mubr.bf16.mxu0 0
    %997 = vmatmul.mubr.bf16.gmra.mrb[0].mxu0 %v899
    %v998 = vpop.f32.mrb[0].mxu0
    %v999 = vadd.f32 0.0, %v998
    %v1000 = vpop.f32.mrb[0].mxu0
    %v1001 = vpop.f32.mrb[0].mxu0
    %v1002 = vadd.f32 0.0, %v1001
    %v1003 = vpop.f32.mrb[0].mxu0
    %1004 = vmatprep.mubr.bf16.mxu0 0
    %1005 = vmatmul.mubr.bf16.gmra.mrb[0].mxu0 %v903
    %v1006 = vpop.f32.mrb[0].mxu0
    %v1007 = vadd.f32 0.0, %v1006
    %v1008 = vpop.f32.mrb[0].mxu0
    %v1009 = vpop.f32.mrb[0].mxu0
    %v1010 = vadd.f32 0.0, %v1009
    %v1011 = vpop.f32.mrb[0].mxu0
    %1012 = vmatprep.mubr.bf16.mxu0 0
    %1013 = vmatmul.mubr.bf16.gmra.mrb[0].mxu0 %v907
    %v1014 = vpop.f32.mrb[0].mxu0
    %v1015 = vadd.f32 0.0, %v1014
    %v1016 = vpop.f32.mrb[0].mxu0
    %v1017 = vpop.f32.mrb[0].mxu0
    %v1018 = vadd.f32 0.0, %v1017
    %v1019 = vpop.f32.mrb[0].mxu0
    %1020 = vmatprep.mubr.bf16.mxu0 0
    %1021 = vmatmul.mubr.bf16.gmra.mrb[0].mxu0 %v911
    %v1022 = vpop.f32.mrb[0].mxu0
    %v1023 = vadd.f32 0.0, %v1022
    %v1024 = vpop.f32.mrb[0].mxu0
    %v1025 = vpop.f32.mrb[0].mxu0
    %v1026 = vadd.f32 0.0, %v1025
    %v1027 = vpop.f32.mrb[0].mxu0
    %1028 = vdwg.mxu0
    %v1029 = vadd.f32 %v867, %v999
    %v1030 = vadd.f32 %v868, %v1002
    %v1031 = vadd.f32 %v869, %v1007
    %v1032 = vadd.f32 %v870, %v1010
    %v1033 = vadd.f32 %v871, %v1015
    %v1034 = vadd.f32 %v872, %v1018
    %v1035 = vadd.f32 %v873, %v1023
    %v1036 = vadd.f32 %v874, %v1026
    %s1037 = scalar_lea.vmem [#allocation5], 384
    %v1038 = vld [vmem:[%s1037] sm:$0xf]
    %v1039 = vld [vmem:[%s1037 + $0x4] sm:$0xf]
    %v1040 = vld [vmem:[%s1037 + $0x8] sm:$0xf]
    %v1041 = vld [vmem:[%s1037 + $0xc] sm:$0xf]
    %v1042 = vld [vmem:[%s1037 + $0x10] sm:$0xf]
    %v1043 = vld [vmem:[%s1037 + $0x14] sm:$0xf]
    %v1044 = vld [vmem:[%s1037 + $0x18] sm:$0xf]
    %v1045 = vld [vmem:[%s1037 + $0x1c] sm:$0xf]
    %v1046 = vld [vmem:[%s1037 + $0x20] sm:$0xf]
    %v1047 = vld [vmem:[%s1037 + $0x24] sm:$0xf]
    %v1048 = vld [vmem:[%s1037 + $0x28] sm:$0xf]
    %v1049 = vld [vmem:[%s1037 + $0x2c] sm:$0xf]
    %v1050 = vld [vmem:[%s1037 + $0x30] sm:$0xf]
    %v1051 = vld [vmem:[%s1037 + $0x34] sm:$0xf]
    %v1052 = vld [vmem:[%s1037 + $0x38] sm:$0xf]
    %v1053 = vld [vmem:[%s1037 + $0x3c] sm:$0xf]
    %v1055 = vunpack.c.l.b16 %v64
    %v1056 = vpack.c.b16 %v98, %v97
    %v1057 = vpack.c.b16 %v100, %v99
    %v1058 = vpack.c.b16 %v102, %v101
    %v1059 = vpack.c.b16 %v243, %v103
    %v1060 = vpack.c.b16 %v1055, %v1055
    %v1061 = vrot.slane %v1056, 1
    %v1062 = vrot.slane %v1057, 1
    %v1063 = vsel %vm424, %v1061, %v1062
    %v1064 = vrot.slane %v1058, 1
    %v1065 = vsel %vm424, %v1062, %v1064
    %v1066 = vrot.slane %v1059, 1
    %v1067 = vsel %vm424, %v1064, %v1066
    %v1068 = vrot.slane %v1060, 1
    %v1069 = vsel %vm424, %v1066, %v1068
    %v1090 = vunpack.c.l.b16 %v1038
    %v1091 = vunpack.c.l.b16 %v1039
    %v1092 = vunpack.c.l.b16 %v1040
    %v1093 = vunpack.c.l.b16 %v1041
    %v1094 = vunpack.c.l.b16 %v1042
    %v1095 = vunpack.c.l.b16 %v1043
    %v1096 = vunpack.c.l.b16 %v1044
    %v1097 = vunpack.c.l.b16 %v1045
    %v1098 = vunpack.c.l.b16 %v1046
    %v1099 = vunpack.c.l.b16 %v1047
    %v1100 = vunpack.c.l.b16 %v1048
    %v1101 = vunpack.c.l.b16 %v1049
    %v1102 = vunpack.c.l.b16 %v1050
    %v1103 = vunpack.c.l.b16 %v1051
    %v1104 = vunpack.c.l.b16 %v1052
    %v1105 = vunpack.c.l.b16 %v1053
    %v1106 = vpack.c.b16 %v1091, %v1090
    %v1107 = vpack.c.b16 %v1093, %v1092
    %v1108 = vpack.c.b16 %v1095, %v1094
    %v1109 = vpack.c.b16 %v1097, %v1096
    %v1110 = vpack.c.b16 %v1099, %v1098
    %v1111 = vpack.c.b16 %v1101, %v1100
    %v1112 = vpack.c.b16 %v1103, %v1102
    %v1113 = vpack.c.b16 %v1105, %v1104
    %1122 = vmatprep.subr.bf16.mxu0 0
    %1123 = vmatpush1.bf16.msra.mxu0 %v1106
    %1124 = vmatprep.subr.bf16.mxu0 0
    %1125 = vmatpush1.bf16.msra.mxu0 %v1107
    %1126 = vmatprep.subr.bf16.mxu0 0
    %1127 = vmatpush1.bf16.msra.mxu0 %v1108
    %1128 = vmatprep.subr.bf16.mxu0 0
    %1129 = vmatpush1.bf16.msra.mxu0 %v1109
    %1130 = vmatprep.subr.bf16.mxu0 0
    %1131 = vmatpush1.bf16.msra.mxu0 %v1110
    %1132 = vmatprep.subr.bf16.mxu0 0
    %1133 = vmatpush1.bf16.msra.mxu0 %v1111
    %1134 = vmatprep.subr.bf16.mxu0 0
    %1135 = vmatpush1.bf16.msra.mxu0 %v1112
    %1136 = vmatprep.subr.bf16.mxu0 0
    %1137 = vmatpush1.bf16.msra.mxu0 %v1113
    %1138 = vmatprep.subr.bf16.mxu0 0
    %1139 = vmatpush1.bf16.msra.mxu0 0
    %1140 = vmatprep.subr.bf16.mxu0 0
    %1141 = vmatpush1.bf16.msra.mxu0 0
    %1142 = vmatprep.subr.bf16.mxu0 0
    %1143 = vmatpush1.bf16.msra.mxu0 0
    %1144 = vmatprep.subr.bf16.mxu0 0
    %1145 = vmatpush1.bf16.msra.mxu0 0
    %1146 = vmatprep.subr.bf16.mxu0 0
    %1147 = vmatpush1.bf16.msra.mxu0 0
    %1148 = vmatprep.subr.bf16.mxu0 0
    %1149 = vmatpush1.bf16.msra.mxu0 0
    %1150 = vmatprep.subr.bf16.mxu0 0
    %1151 = vmatpush1.bf16.msra.mxu0 0
    %1152 = vmatprep.subr.bf16.mxu0 0
    %1153 = vmatpush1.bf16.msra.mxu0 0
    %1154 = vmatprep.mubr.bf16.mxu0 0
    %1155 = vmatmul.mubr.bf16.gmra.mrb[0].mxu0 %v1063
    %v1156 = vpop.f32.mrb[0].mxu0
    %v1157 = vadd.f32 0.0, %v1156
    %v1158 = vpop.f32.mrb[0].mxu0
    %v1159 = vpop.f32.mrb[0].mxu0
    %v1160 = vadd.f32 0.0, %v1159
    %v1161 = vpop.f32.mrb[0].mxu0
    %1162 = vmatprep.mubr.bf16.mxu0 0
    %1163 = vmatmul.mubr.bf16.gmra.mrb[0].mxu0 %v1065
    %v1164 = vpop.f32.mrb[0].mxu0
    %v1165 = vadd.f32 0.0, %v1164
    %v1166 = vpop.f32.mrb[0].mxu0
    %v1167 = vpop.f32.mrb[0].mxu0
    %v1168 = vadd.f32 0.0, %v1167
    %v1169 = vpop.f32.mrb[0].mxu0
    %1170 = vmatprep.mubr.bf16.mxu0 0
    %1171 = vmatmul.mubr.bf16.gmra.mrb[0].mxu0 %v1067
    %v1172 = vpop.f32.mrb[0].mxu0
    %v1173 = vadd.f32 0.0, %v1172
    %v1174 = vpop.f32.mrb[0].mxu0
    %v1175 = vpop.f32.mrb[0].mxu0
    %v1176 = vadd.f32 0.0, %v1175
    %v1177 = vpop.f32.mrb[0].mxu0
    %1178 = vmatprep.mubr.bf16.mxu0 0
    %1179 = vmatmul.mubr.bf16.gmra.mrb[0].mxu0 %v1069
    %v1180 = vpop.f32.mrb[0].mxu0
    %v1181 = vadd.f32 0.0, %v1180
    %v1182 = vpop.f32.mrb[0].mxu0
    %v1183 = vpop.f32.mrb[0].mxu0
    %v1184 = vadd.f32 0.0, %v1183
    %v1185 = vpop.f32.mrb[0].mxu0
    %1186 = vdwg.mxu0
    %v1187 = vadd.f32 %v1029, %v1157
    %v1188 = vadd.f32 %v1030, %v1160
    %v1189 = vadd.f32 %v1031, %v1165
    %v1190 = vadd.f32 %v1032, %v1168
    %v1191 = vadd.f32 %v1033, %v1173
    %v1192 = vadd.f32 %v1034, %v1176
    %v1193 = vadd.f32 %v1035, %v1181
    %v1194 = vadd.f32 %v1036, %v1184
    %s1195 = scalar_lea.vmem [#allocation5], 448
    %v1196 = vld [vmem:[%s1195] sm:$0xf]
    %v1197 = vld [vmem:[%s1195 + $0x4] sm:$0xf]
    %v1198 = vld [vmem:[%s1195 + $0x8] sm:$0xf]
    %v1199 = vld [vmem:[%s1195 + $0xc] sm:$0xf]
    %v1200 = vld [vmem:[%s1195 + $0x10] sm:$0xf]
    %v1201 = vld [vmem:[%s1195 + $0x14] sm:$0xf]
    %v1202 = vld [vmem:[%s1195 + $0x18] sm:$0xf]
    %v1203 = vld [vmem:[%s1195 + $0x1c] sm:$0xf]
    %v1204 = vld [vmem:[%s1195 + $0x20] sm:$0xf]
    %v1205 = vld [vmem:[%s1195 + $0x24] sm:$0xf]
    %v1206 = vld [vmem:[%s1195 + $0x28] sm:$0xf]
    %v1207 = vld [vmem:[%s1195 + $0x2c] sm:$0xf]
    %v1208 = vld [vmem:[%s1195 + $0x30] sm:$0xf]
    %v1209 = vld [vmem:[%s1195 + $0x34] sm:$0xf]
    %v1210 = vld [vmem:[%s1195 + $0x38] sm:$0xf]
    %v1211 = vld [vmem:[%s1195 + $0x3c] sm:$0xf]
    %vm1212 = vsmask.f32 6400
    %v1214 = vshrl.u32 %v1056, 16
    %v1216 = vrot.slane %v1214, 1
    %v1217 = vshll.u32 %v1056, 16
    %v1219 = vrot.slane %v1217, 2
    %v1220 = vor.u32 %v1216, %v1219
    %v1222 = vshrl.u32 %v1057, 16
    %v1224 = vrot.slane %v1222, 1
    %v1225 = vshll.u32 %v1057, 16
    %v1227 = vrot.slane %v1225, 2
    %v1228 = vor.u32 %v1224, %v1227
    %v1229 = vsel %vm1212, %v1220, %v1228
    %v1231 = vshrl.u32 %v1058, 16
    %v1233 = vrot.slane %v1231, 1
    %v1234 = vshll.u32 %v1058, 16
    %v1236 = vrot.slane %v1234, 2
    %v1237 = vor.u32 %v1233, %v1236
    %v1238 = vsel %vm1212, %v1228, %v1237
    %v1240 = vshrl.u32 %v1059, 16
    %v1242 = vrot.slane %v1240, 1
    %v1243 = vshll.u32 %v1059, 16
    %v1245 = vrot.slane %v1243, 2
    %v1246 = vor.u32 %v1242, %v1245
    %v1247 = vsel %vm1212, %v1237, %v1246
    %v1249 = vshrl.u32 %v1060, 16
    %v1251 = vrot.slane %v1249, 1
    %v1252 = vshll.u32 %v1060, 16
    %v1254 = vrot.slane %v1252, 2
    %v1255 = vor.u32 %v1251, %v1254
    %v1256 = vsel %vm1212, %v1246, %v1255
    %v1277 = vunpack.c.l.b16 %v1196
    %v1278 = vunpack.c.l.b16 %v1197
    %v1279 = vunpack.c.l.b16 %v1198
    %v1280 = vunpack.c.l.b16 %v1199
    %v1281 = vunpack.c.l.b16 %v1200
    %v1282 = vunpack.c.l.b16 %v1201
    %v1283 = vunpack.c.l.b16 %v1202
    %v1284 = vunpack.c.l.b16 %v1203
    %v1285 = vunpack.c.l.b16 %v1204
    %v1286 = vunpack.c.l.b16 %v1205
    %v1287 = vunpack.c.l.b16 %v1206
    %v1288 = vunpack.c.l.b16 %v1207
    %v1289 = vunpack.c.l.b16 %v1208
    %v1290 = vunpack.c.l.b16 %v1209
    %v1291 = vunpack.c.l.b16 %v1210
    %v1292 = vunpack.c.l.b16 %v1211
    %v1293 = vpack.c.b16 %v1278, %v1277
    %v1294 = vpack.c.b16 %v1280, %v1279
    %v1295 = vpack.c.b16 %v1282, %v1281
    %v1296 = vpack.c.b16 %v1284, %v1283
    %v1297 = vpack.c.b16 %v1286, %v1285
    %v1298 = vpack.c.b16 %v1288, %v1287
    %v1299 = vpack.c.b16 %v1290, %v1289
    %v1300 = vpack.c.b16 %v1292, %v1291
    %1309 = vmatprep.subr.bf16.mxu0 0
    %1310 = vmatpush1.bf16.msra.mxu0 %v1293
    %1311 = vmatprep.subr.bf16.mxu0 0
    %1312 = vmatpush1.bf16.msra.mxu0 %v1294
    %1313 = vmatprep.subr.bf16.mxu0 0
    %1314 = vmatpush1.bf16.msra.mxu0 %v1295
    %1315 = vmatprep.subr.bf16.mxu0 0
    %1316 = vmatpush1.bf16.msra.mxu0 %v1296
    %1317 = vmatprep.subr.bf16.mxu0 0
    %1318 = vmatpush1.bf16.msra.mxu0 %v1297
    %1319 = vmatprep.subr.bf16.mxu0 0
    %1320 = vmatpush1.bf16.msra.mxu0 %v1298
    %1321 = vmatprep.subr.bf16.mxu0 0
    %1322 = vmatpush1.bf16.msra.mxu0 %v1299
    %1323 = vmatprep.subr.bf16.mxu0 0
    %1324 = vmatpush1.bf16.msra.mxu0 %v1300
    %1325 = vmatprep.subr.bf16.mxu0 0
    %1326 = vmatpush1.bf16.msra.mxu0 0
    %1327 = vmatprep.subr.bf16.mxu0 0
    %1328 = vmatpush1.bf16.msra.mxu0 0
    %1329 = vmatprep.subr.bf16.mxu0 0
    %1330 = vmatpush1.bf16.msra.mxu0 0
    %1331 = vmatprep.subr.bf16.mxu0 0
    %1332 = vmatpush1.bf16.msra.mxu0 0
    %1333 = vmatprep.subr.bf16.mxu0 0
    %1334 = vmatpush1.bf16.msra.mxu0 0
    %1335 = vmatprep.subr.bf16.mxu0 0
    %1336 = vmatpush1.bf16.msra.mxu0 0
    %1337 = vmatprep.subr.bf16.mxu0 0
    %1338 = vmatpush1.bf16.msra.mxu0 0
    %1339 = vmatprep.subr.bf16.mxu0 0
    %1340 = vmatpush1.bf16.msra.mxu0 0
    %1341 = vmatprep.mubr.bf16.mxu0 0
    %1342 = vmatmul.mubr.bf16.gmra.mrb[0].mxu0 %v1229
    %v1343 = vpop.f32.mrb[0].mxu0
    %v1344 = vadd.f32 0.0, %v1343
    %v1345 = vpop.f32.mrb[0].mxu0
    %v1346 = vpop.f32.mrb[0].mxu0
    %v1347 = vadd.f32 0.0, %v1346
    %v1348 = vpop.f32.mrb[0].mxu0
    %1349 = vmatprep.mubr.bf16.mxu0 0
    %1350 = vmatmul.mubr.bf16.gmra.mrb[0].mxu0 %v1238
    %v1351 = vpop.f32.mrb[0].mxu0
    %v1352 = vadd.f32 0.0, %v1351
    %v1353 = vpop.f32.mrb[0].mxu0
    %v1354 = vpop.f32.mrb[0].mxu0
    %v1355 = vadd.f32 0.0, %v1354
    %v1356 = vpop.f32.mrb[0].mxu0
    %1357 = vmatprep.mubr.bf16.mxu0 0
    %1358 = vmatmul.mubr.bf16.gmra.mrb[0].mxu0 %v1247
    %v1359 = vpop.f32.mrb[0].mxu0
    %v1360 = vadd.f32 0.0, %v1359
    %v1361 = vpop.f32.mrb[0].mxu0
    %v1362 = vpop.f32.mrb[0].mxu0
    %v1363 = vadd.f32 0.0, %v1362
    %v1364 = vpop.f32.mrb[0].mxu0
    %1365 = vmatprep.mubr.bf16.mxu0 0
    %1366 = vmatmul.mubr.bf16.gmra.mrb[0].mxu0 %v1256
    %v1367 = vpop.f32.mrb[0].mxu0
    %v1368 = vadd.f32 0.0, %v1367
    %v1369 = vpop.f32.mrb[0].mxu0
    %v1370 = vpop.f32.mrb[0].mxu0
    %v1371 = vadd.f32 0.0, %v1370
    %v1372 = vpop.f32.mrb[0].mxu0
    %1373 = vdwg.mxu0
    %v1374 = vadd.f32 %v1187, %v1344
    %v1375 = vadd.f32 %v1188, %v1347
    %v1376 = vadd.f32 %v1189, %v1352
    %v1377 = vadd.f32 %v1190, %v1355
    %v1378 = vadd.f32 %v1191, %v1360
    %v1379 = vadd.f32 %v1192, %v1363
    %v1380 = vadd.f32 %v1193, %v1368
    %v1381 = vadd.f32 %v1194, %v1371
    %s1382 = scalar_lea.vmem [#allocation5], 512
    %v1383 = vld [vmem:[%s1382] sm:$0xf]
    %v1384 = vld [vmem:[%s1382 + $0x4] sm:$0xf]
    %v1385 = vld [vmem:[%s1382 + $0x8] sm:$0xf]
    %v1386 = vld [vmem:[%s1382 + $0xc] sm:$0xf]
    %v1387 = vld [vmem:[%s1382 + $0x10] sm:$0xf]
    %v1388 = vld [vmem:[%s1382 + $0x14] sm:$0xf]
    %v1389 = vld [vmem:[%s1382 + $0x18] sm:$0xf]
    %v1390 = vld [vmem:[%s1382 + $0x1c] sm:$0xf]
    %v1391 = vld [vmem:[%s1382 + $0x20] sm:$0xf]
    %v1392 = vld [vmem:[%s1382 + $0x24] sm:$0xf]
    %v1393 = vld [vmem:[%s1382 + $0x28] sm:$0xf]
    %v1394 = vld [vmem:[%s1382 + $0x2c] sm:$0xf]
    %v1395 = vld [vmem:[%s1382 + $0x30] sm:$0xf]
    %v1396 = vld [vmem:[%s1382 + $0x34] sm:$0xf]
    %v1397 = vld [vmem:[%s1382 + $0x38] sm:$0xf]
    %v1398 = vld [vmem:[%s1382 + $0x3c] sm:$0xf]
    %vm1399 = vcmask 1045504
    %v1400 = vrot.slane %v1056, 2
    %v1401 = vrot.slane %v1057, 2
    %v1402 = vsel %vm1399, %v1400, %v1401
    %v1403 = vrot.slane %v1058, 2
    %v1404 = vsel %vm1399, %v1401, %v1403
    %v1405 = vrot.slane %v1059, 2
    %v1406 = vsel %vm1399, %v1403, %v1405
    %v1407 = vrot.slane %v1060, 2
    %v1408 = vsel %vm1399, %v1405, %v1407
    %v1429 = vunpack.c.l.b16 %v1383
    %v1430 = vunpack.c.l.b16 %v1384
    %v1431 = vunpack.c.l.b16 %v1385
    %v1432 = vunpack.c.l.b16 %v1386
    %v1433 = vunpack.c.l.b16 %v1387
    %v1434 = vunpack.c.l.b16 %v1388
    %v1435 = vunpack.c.l.b16 %v1389
    %v1436 = vunpack.c.l.b16 %v1390
    %v1437 = vunpack.c.l.b16 %v1391
    %v1438 = vunpack.c.l.b16 %v1392
    %v1439 = vunpack.c.l.b16 %v1393
    %v1440 = vunpack.c.l.b16 %v1394
    %v1441 = vunpack.c.l.b16 %v1395
    %v1442 = vunpack.c.l.b16 %v1396
    %v1443 = vunpack.c.l.b16 %v1397
    %v1444 = vunpack.c.l.b16 %v1398
    %v1445 = vpack.c.b16 %v1430, %v1429
    %v1446 = vpack.c.b16 %v1432, %v1431
    %v1447 = vpack.c.b16 %v1434, %v1433
    %v1448 = vpack.c.b16 %v1436, %v1435
    %v1449 = vpack.c.b16 %v1438, %v1437
    %v1450 = vpack.c.b16 %v1440, %v1439
    %v1451 = vpack.c.b16 %v1442, %v1441
    %v1452 = vpack.c.b16 %v1444, %v1443
    %1461 = vmatprep.subr.bf16.mxu0 0
    %1462 = vmatpush1.bf16.msra.mxu0 %v1445
    %1463 = vmatprep.subr.bf16.mxu0 0
    %1464 = vmatpush1.bf16.msra.mxu0 %v1446
    %1465 = vmatprep.subr.bf16.mxu0 0
    %1466 = vmatpush1.bf16.msra.mxu0 %v1447
    %1467 = vmatprep.subr.bf16.mxu0 0
    %1468 = vmatpush1.bf16.msra.mxu0 %v1448
    %1469 = vmatprep.subr.bf16.mxu0 0
    %1470 = vmatpush1.bf16.msra.mxu0 %v1449
    %1471 = vmatprep.subr.bf16.mxu0 0
    %1472 = vmatpush1.bf16.msra.mxu0 %v1450
    %1473 = vmatprep.subr.bf16.mxu0 0
    %1474 = vmatpush1.bf16.msra.mxu0 %v1451
    %1475 = vmatprep.subr.bf16.mxu0 0
    %1476 = vmatpush1.bf16.msra.mxu0 %v1452
    %1477 = vmatprep.subr.bf16.mxu0 0
    %1478 = vmatpush1.bf16.msra.mxu0 0
    %1479 = vmatprep.subr.bf16.mxu0 0
    %1480 = vmatpush1.bf16.msra.mxu0 0
    %1481 = vmatprep.subr.bf16.mxu0 0
    %1482 = vmatpush1.bf16.msra.mxu0 0
    %1483 = vmatprep.subr.bf16.mxu0 0
    %1484 = vmatpush1.bf16.msra.mxu0 0
    %1485 = vmatprep.subr.bf16.mxu0 0
    %1486 = vmatpush1.bf16.msra.mxu0 0
    %1487 = vmatprep.subr.bf16.mxu0 0
    %1488 = vmatpush1.bf16.msra.mxu0 0
    %1489 = vmatprep.subr.bf16.mxu0 0
    %1490 = vmatpush1.bf16.msra.mxu0 0
    %1491 = vmatprep.subr.bf16.mxu0 0
    %1492 = vmatpush1.bf16.msra.mxu0 0
    %1493 = vmatprep.mubr.bf16.mxu0 0
    %1494 = vmatmul.mubr.bf16.gmra.mrb[0].mxu0 %v1402
    %v1495 = vpop.f32.mrb[0].mxu0
    %v1496 = vadd.f32 0.0, %v1495
    %v1497 = vpop.f32.mrb[0].mxu0
    %v1498 = vpop.f32.mrb[0].mxu0
    %v1499 = vadd.f32 0.0, %v1498
    %v1500 = vpop.f32.mrb[0].mxu0
    %1501 = vmatprep.mubr.bf16.mxu0 0
    %1502 = vmatmul.mubr.bf16.gmra.mrb[0].mxu0 %v1404
    %v1503 = vpop.f32.mrb[0].mxu0
    %v1504 = vadd.f32 0.0, %v1503
    %v1505 = vpop.f32.mrb[0].mxu0
    %v1506 = vpop.f32.mrb[0].mxu0
    %v1507 = vadd.f32 0.0, %v1506
    %v1508 = vpop.f32.mrb[0].mxu0
    %1509 = vmatprep.mubr.bf16.mxu0 0
    %1510 = vmatmul.mubr.bf16.gmra.mrb[0].mxu0 %v1406
    %v1511 = vpop.f32.mrb[0].mxu0
    %v1512 = vadd.f32 0.0, %v1511
    %v1513 = vpop.f32.mrb[0].mxu0
    %v1514 = vpop.f32.mrb[0].mxu0
    %v1515 = vadd.f32 0.0, %v1514
    %v1516 = vpop.f32.mrb[0].mxu0
    %1517 = vmatprep.mubr.bf16.mxu0 0
    %1518 = vmatmul.mubr.bf16.gmra.mrb[0].mxu0 %v1408
    %v1519 = vpop.f32.mrb[0].mxu0
    %v1520 = vadd.f32 0.0, %v1519
    %v1521 = vpop.f32.mrb[0].mxu0
    %v1522 = vpop.f32.mrb[0].mxu0
    %v1523 = vadd.f32 0.0, %v1522
    %v1524 = vpop.f32.mrb[0].mxu0
    %1525 = vdwg.mxu0
    %v1526 = vadd.f32 %v1374, %v1496
    %v1527 = vadd.f32 %v1375, %v1499
    %v1528 = vadd.f32 %v1376, %v1504
    %v1529 = vadd.f32 %v1377, %v1507
    %v1530 = vadd.f32 %v1378, %v1512
    %v1531 = vadd.f32 %v1379, %v1515
    %v1532 = vadd.f32 %v1380, %v1520
    %v1533 = vadd.f32 %v1381, %v1523
    %v1534 = vmax.f32 %v1526, 0.0
    %v1535 = vmax.f32 %v1527, 0.0
    %v1536 = vmax.f32 %v1528, 0.0
    %v1537 = vmax.f32 %v1529, 0.0
    %v1538 = vmax.f32 %v1530, 0.0
    %v1539 = vmax.f32 %v1531, 0.0
    %v1540 = vmax.f32 %v1532, 0.0
    %v1541 = vmax.f32 %v1533, 0.0
    %v1542 = vpack.c.bf16 %v1535, %v1534
    %v1543 = vpack.c.bf16 %v1537, %v1536
    %v1544 = vpack.c.bf16 %v1539, %v1538
    %v1545 = vpack.c.bf16 %v1541, %v1540
    %v1550 = vunpack.c.l.b16 %v1542
    %v1551 = vunpack.c.h.b16 %v1542
    %v1552 = vunpack.c.l.b16 %v1543
    %v1553 = vunpack.c.h.b16 %v1543
    %v1554 = vunpack.c.l.b16 %v1544
    %v1555 = vunpack.c.h.b16 %v1544
    %v1556 = vunpack.c.l.b16 %v1545
    %v1557 = vunpack.c.h.b16 %v1545
    %v1558 = vpack.c.b16 %v1550, %v1550
    %v1559 = vpack.c.b16 %v1551, %v1551
    %v1560 = vpack.c.b16 %v1552, %v1552
    %v1561 = vpack.c.b16 %v1553, %v1553
    %v1562 = vpack.c.b16 %v1554, %v1554
    %v1563 = vpack.c.b16 %v1555, %v1555
    %v1564 = vpack.c.b16 %v1556, %v1556
    %v1565 = vpack.c.b16 %v1557, %v1557
    %1574 = vst [vmem:[#allocation8] sm:$0xf] %v1558
    %1575 = vst [vmem:[#allocation8 + $0x4] sm:$0xf] %v1559
    %1576 = vst [vmem:[#allocation8 + $0x8] sm:$0xf] %v1560
    %1577 = vst [vmem:[#allocation8 + $0xc] sm:$0xf] %v1561
    %1578 = vst [vmem:[#allocation8 + $0x10] sm:$0xf] %v1562
    %1579 = vst [vmem:[#allocation8 + $0x14] sm:$0xf] %v1563
    %1580 = vst [vmem:[#allocation8 + $0x18] sm:$0xf] %v1564
    %1581 = vst [vmem:[#allocation8 + $0x1c] sm:$0xf] %v1565
    // Predicated region
    $region26: #{alexnet_forward.10} parent=1 // pred_check
      _
    $region27: #{alexnet_forward.10} parent=1 // pred_check_branch
      %1583 = sbr.rel (0) target = $region29
    $region28: #{alexnet_forward.10} parent=1 // pred_region
      %s1585 = ssub.s32 512, 512
      %1586 = vsyncadd [#allocation4], %s1585
      %s1587 = sshll.u32 [#allocation8], 4
      %s1588 = int_to_ptr.vmem [resolvable:$true] %s1587
      %1593 = dma.vmem_to_hbm [thread:$0]  %s1588, 512, %s3, [#allocation4], 64, 64, 4
    $region29: #{alexnet_forward.10} parent=1 // pred_fallthru
      _
    // Predicated region
    $region30: #{alexnet_forward.10} parent=1 // pred_check
      _
    $region31: #{alexnet_forward.10} parent=1 // pred_check_branch
      %1595 = sbr.rel (0) target = $region33
    $region32: #{alexnet_forward.10} parent=1 // pred_region
      %1596 = dma.done [#allocation4], 512
    $region33: #{alexnet_forward.10} parent=1 // pred_fallthru
      _
    %1597 = vsyncpa [#allocation3], 1
    %1598 = vsyncpa [#allocation6], 1
    %1599 = vsyncpa [#allocation4], 1

// kernel: alexnet_forward.9
$region0: #{alexnet_forward.9}
  #allocation0 [shape = 'u32[]', space=smem, size = 0x4, offset = 0x4, fixed_abs, tag = 'smem constant byte address 0x4 - core index']
  #allocation1 [shape = 'u32[144,128]{1,0:T(1,128)}', space=vmem, size = 0x12000, scoped, tag = 'internal scratch']
  %s0 = inlined_call_operand.hbm [shape: bf16[80,256], index: 0, kind: input, shape index: {}]
  %s1 = inlined_call_operand.hbm [shape: bf16[9,256,128], index: 1, kind: input, shape index: {}]
  %s2 = inlined_call_operand.hbm [shape: f32[1,128], index: 2, kind: input, shape index: {}]
  %s3 = inlined_call_operand.hbm [shape: bf16[64,128], index: 3, kind: output, shape index: {}]
  %s4 = sld [smem:[#allocation0]]
  $region34: #{alexnet_forward.9} parent=0
    _
  %s6 = ssub.s32 1, %s4
  %s7 = scalar_select 0, %s6, %s4
  $region1: #{alexnet_forward.9} parent=0
    #allocation2 [shape = 'u8[40960]{0}', space=vmem, size = 0xa000, scoped, tag = 'input window, operand 0, single buffered']
    #allocation3 [shape = 's32[1]{0}', space=sflag, size = 0x4, scoped, tag = 'scoped memory for alexnet_forward.9']
    #allocation4 [shape = 's32[1]{0}', space=sflag, size = 0x4, scoped, tag = 'scoped memory for alexnet_forward.9']
    #allocation5 [shape = 'u8[589824]{0}', space=vmem, size = 0x90000, scoped, tag = 'input window, operand 1, single buffered']
    #allocation6 [shape = 's32[1]{0}', space=sflag, size = 0x4, scoped, tag = 'scoped memory for alexnet_forward.9']
    #allocation7 [shape = 'u8[512]{0}', space=vmem, size = 0x400, scoped, tag = 'input window, operand 2, single buffered']
    #allocation8 [shape = 'u8[16384]{0}', space=vmem, size = 0x4000, scoped, tag = 'output window, operand 0, single buffered']
    %8 = vsyncpa [#allocation3], 0
    %9 = vsyncpa [#allocation6], 0
    %10 = vsyncpa [#allocation4], 0
    // Predicated region
    $region2: #{alexnet_forward.9} parent=1 // pred_check
      _
    $region3: #{alexnet_forward.9} parent=1 // pred_check_branch
      %12 = sbr.rel (0) target = $region5
    $region4: #{alexnet_forward.9} parent=1 // pred_region
      %s14 = ssub.s32 1280, 1280
      %15 = vsyncadd [#allocation3], %s14
      %s16 = sshll.u32 [#allocation2], 4
      %s17 = int_to_ptr.vmem [resolvable:$true] %s16
      %22 = dma.hbm_to_vmem [thread:$0]  %s0, 1280, %s17, [#allocation3], 128, 128, 8
    $region5: #{alexnet_forward.9} parent=1 // pred_fallthru
      _
    // Predicated region
    $region6: #{alexnet_forward.9} parent=1 // pred_check
      _
    $region7: #{alexnet_forward.9} parent=1 // pred_check_branch
      %24 = sbr.rel (0) target = $region9
    $region8: #{alexnet_forward.9} parent=1 // pred_region
      %s26 = ssub.s32 18432, 18432
      %27 = vsyncadd [#allocation6], %s26
      %s28 = sshll.u32 [#allocation5], 4
      %s29 = int_to_ptr.vmem [resolvable:$true] %s28
      %34 = dma.hbm_to_vmem [thread:$0]  %s1, 18432, %s29, [#allocation6], 64, 64, 4
    $region9: #{alexnet_forward.9} parent=1 // pred_fallthru
      _
    // Predicated region
    $region10: #{alexnet_forward.9} parent=1 // pred_check
      _
    $region11: #{alexnet_forward.9} parent=1 // pred_check_branch
      %36 = sbr.rel (0) target = $region13
    $region12: #{alexnet_forward.9} parent=1 // pred_region
      %s38 = ssub.s32 16, 16
      %39 = vsyncadd [#allocation6], %s38
      %s41 = sshll.u32 [#allocation7], 4
      %s42 = int_to_ptr.vmem [resolvable:$true] %s41
      %44 = dma.hbm_to_vmem [thread:$0]  %s2, 16, %s42, [#allocation6]
    $region13: #{alexnet_forward.9} parent=1 // pred_fallthru
      _
    // Predicated region
    $region14: #{alexnet_forward.9} parent=1 // pred_check
      _
    $region15: #{alexnet_forward.9} parent=1 // pred_check_branch
      %46 = sbr.rel (0) target = $region17
    $region16: #{alexnet_forward.9} parent=1 // pred_region
      %47 = dma.done [#allocation3], 1280
    $region17: #{alexnet_forward.9} parent=1 // pred_fallthru
      _
    // Predicated region
    $region18: #{alexnet_forward.9} parent=1 // pred_check
      _
    $region19: #{alexnet_forward.9} parent=1 // pred_check_branch
      %49 = sbr.rel (0) target = $region21
    $region20: #{alexnet_forward.9} parent=1 // pred_region
      %50 = dma.done [#allocation6], 18432
    $region21: #{alexnet_forward.9} parent=1 // pred_fallthru
      _
    // Predicated region
    $region22: #{alexnet_forward.9} parent=1 // pred_check
      _
    $region23: #{alexnet_forward.9} parent=1 // pred_check_branch
      %52 = sbr.rel (0) target = $region25
    $region24: #{alexnet_forward.9} parent=1 // pred_region
      %53 = dma.done [#allocation6], 16
    $region25: #{alexnet_forward.9} parent=1 // pred_fallthru
      _
    %v55 = vld [vmem:[#allocation2] sm:$0xff]
    %v56 = vld [vmem:[#allocation2 + $0x8] sm:$0xff]
    %v57 = vld [vmem:[#allocation2 + $0x10] sm:$0xff]
    %v58 = vld [vmem:[#allocation2 + $0x18] sm:$0xff]
    %v59 = vld [vmem:[#allocation2 + $0x20] sm:$0xff]
    %v60 = vld [vmem:[#allocation2 + $0x28] sm:$0xff]
    %v61 = vld [vmem:[#allocation2 + $0x30] sm:$0xff]
    %v62 = vld [vmem:[#allocation2 + $0x38] sm:$0xff]
    %v63 = vld [vmem:[#allocation2 + $0x40] sm:$0xff]
    %v64 = vld [vmem:[#allocation2 + $0x48] sm:$0xff]
    %v65 = vld [vmem:[#allocation5] sm:$0xf]
    %v66 = vld [vmem:[#allocation5 + $0x4] sm:$0xf]
    %v67 = vld [vmem:[#allocation5 + $0x8] sm:$0xf]
    %v68 = vld [vmem:[#allocation5 + $0xc] sm:$0xf]
    %v69 = vld [vmem:[#allocation5 + $0x10] sm:$0xf]
    %v70 = vld [vmem:[#allocation5 + $0x14] sm:$0xf]
    %v71 = vld [vmem:[#allocation5 + $0x18] sm:$0xf]
    %v72 = vld [vmem:[#allocation5 + $0x1c] sm:$0xf]
    %v73 = vld [vmem:[#allocation5 + $0x20] sm:$0xf]
    %v74 = vld [vmem:[#allocation5 + $0x24] sm:$0xf]
    %v75 = vld [vmem:[#allocation5 + $0x28] sm:$0xf]
    %v76 = vld [vmem:[#allocation5 + $0x2c] sm:$0xf]
    %v77 = vld [vmem:[#allocation5 + $0x30] sm:$0xf]
    %v78 = vld [vmem:[#allocation5 + $0x34] sm:$0xf]
    %v79 = vld [vmem:[#allocation5 + $0x38] sm:$0xf]
    %v80 = vld [vmem:[#allocation5 + $0x3c] sm:$0xf]
    %v81 = vld [vmem:[#allocation5 + $0x40] sm:$0xf]
    %v82 = vld [vmem:[#allocation5 + $0x44] sm:$0xf]
    %v83 = vld [vmem:[#allocation5 + $0x48] sm:$0xf]
    %v84 = vld [vmem:[#allocation5 + $0x4c] sm:$0xf]
    %v85 = vld [vmem:[#allocation5 + $0x50] sm:$0xf]
    %v86 = vld [vmem:[#allocation5 + $0x54] sm:$0xf]
    %v87 = vld [vmem:[#allocation5 + $0x58] sm:$0xf]
    %v88 = vld [vmem:[#allocation5 + $0x5c] sm:$0xf]
    %v89 = vld [vmem:[#allocation5 + $0x60] sm:$0xf]
    %v90 = vld [vmem:[#allocation5 + $0x64] sm:$0xf]
    %v91 = vld [vmem:[#allocation5 + $0x68] sm:$0xf]
    %v92 = vld [vmem:[#allocation5 + $0x6c] sm:$0xf]
    %v93 = vld [vmem:[#allocation5 + $0x70] sm:$0xf]
    %v94 = vld [vmem:[#allocation5 + $0x74] sm:$0xf]
    %v95 = vld [vmem:[#allocation5 + $0x78] sm:$0xf]
    %v96 = vld [vmem:[#allocation5 + $0x7c] sm:$0xf]
    %v97 = vld [vmem:[#allocation7] sm:$0x1]
    %v99 = vlaneseq
    %v100 = vshrl.u32 %v99, 7
    %v101 = vsub.s32 0, %v100
    %v102 = vrot.slane %v97, %v101
    %v112 = vunpack.c.l.b16 %v55
    %v113 = vunpack.c.h.b16 %v55
    %v114 = vunpack.c.l.b16 %v56
    %v115 = vunpack.c.h.b16 %v56
    %v116 = vunpack.c.l.b16 %v57
    %v117 = vunpack.c.h.b16 %v57
    %v118 = vunpack.c.l.b16 %v58
    %v119 = vunpack.c.h.b16 %v58
    %v120 = vunpack.c.l.b16 %v59
    %v121 = vunpack.c.h.b16 %v59
    %v122 = vunpack.c.l.b16 %v60
    %v123 = vunpack.c.h.b16 %v60
    %v124 = vunpack.c.l.b16 %v61
    %v125 = vunpack.c.h.b16 %v61
    %v126 = vunpack.c.l.b16 %v62
    %v127 = vunpack.c.h.b16 %v62
    %v128 = vpack.c.b16 %v114, %v112
    %v129 = vpack.c.b16 %v115, %v113
    %v130 = vpack.c.b16 %v118, %v116
    %v131 = vpack.c.b16 %v119, %v117
    %v132 = vpack.c.b16 %v122, %v120
    %v133 = vpack.c.b16 %v123, %v121
    %v134 = vpack.c.b16 %v126, %v124
    %v135 = vpack.c.b16 %v127, %v125
    %v176 = vunpack.c.l.b16 %v65
    %v177 = vunpack.c.l.b16 %v66
    %v178 = vunpack.c.l.b16 %v67
    %v179 = vunpack.c.l.b16 %v68
    %v180 = vunpack.c.l.b16 %v69
    %v181 = vunpack.c.l.b16 %v70
    %v182 = vunpack.c.l.b16 %v71
    %v183 = vunpack.c.l.b16 %v72
    %v184 = vunpack.c.l.b16 %v73
    %v185 = vunpack.c.l.b16 %v74
    %v186 = vunpack.c.l.b16 %v75
    %v187 = vunpack.c.l.b16 %v76
    %v188 = vunpack.c.l.b16 %v77
    %v189 = vunpack.c.l.b16 %v78
    %v190 = vunpack.c.l.b16 %v79
    %v191 = vunpack.c.l.b16 %v80
    %v192 = vunpack.c.l.b16 %v81
    %v193 = vunpack.c.l.b16 %v82
    %v194 = vunpack.c.l.b16 %v83
    %v195 = vunpack.c.l.b16 %v84
    %v196 = vunpack.c.l.b16 %v85
    %v197 = vunpack.c.l.b16 %v86
    %v198 = vunpack.c.l.b16 %v87
    %v199 = vunpack.c.l.b16 %v88
    %v200 = vunpack.c.l.b16 %v89
    %v201 = vunpack.c.l.b16 %v90
    %v202 = vunpack.c.l.b16 %v91
    %v203 = vunpack.c.l.b16 %v92
    %v204 = vunpack.c.l.b16 %v93
    %v205 = vunpack.c.l.b16 %v94
    %v206 = vunpack.c.l.b16 %v95
    %v207 = vunpack.c.l.b16 %v96
    %v208 = vpack.c.b16 %v177, %v176
    %v209 = vpack.c.b16 %v179, %v178
    %v210 = vpack.c.b16 %v181, %v180
    %v211 = vpack.c.b16 %v183, %v182
    %v212 = vpack.c.b16 %v185, %v184
    %v213 = vpack.c.b16 %v187, %v186
    %v214 = vpack.c.b16 %v189, %v188
    %v215 = vpack.c.b16 %v191, %v190
    %v216 = vpack.c.b16 %v193, %v192
    %v217 = vpack.c.b16 %v195, %v194
    %v218 = vpack.c.b16 %v197, %v196
    %v219 = vpack.c.b16 %v199, %v198
    %v220 = vpack.c.b16 %v201, %v200
    %v221 = vpack.c.b16 %v203, %v202
    %v222 = vpack.c.b16 %v205, %v204
    %v223 = vpack.c.b16 %v207, %v206
    %240 = vmatprep.subr.bf16.mxu0 0
    %241 = vmatpush1.bf16.msra.mxu0 %v208
    %242 = vmatprep.subr.bf16.mxu0 0
    %243 = vmatpush1.bf16.msra.mxu0 %v209
    %244 = vmatprep.subr.bf16.mxu0 0
    %245 = vmatpush1.bf16.msra.mxu0 %v210
    %246 = vmatprep.subr.bf16.mxu0 0
    %247 = vmatpush1.bf16.msra.mxu0 %v211
    %248 = vmatprep.subr.bf16.mxu0 0
    %249 = vmatpush1.bf16.msra.mxu0 %v212
    %250 = vmatprep.subr.bf16.mxu0 0
    %251 = vmatpush1.bf16.msra.mxu0 %v213
    %252 = vmatprep.subr.bf16.mxu0 0
    %253 = vmatpush1.bf16.msra.mxu0 %v214
    %254 = vmatprep.subr.bf16.mxu0 0
    %255 = vmatpush1.bf16.msra.mxu0 %v215
    %256 = vmatprep.subr.bf16.mxu0 0
    %257 = vmatpush1.bf16.msra.mxu0 %v216
    %258 = vmatprep.subr.bf16.mxu0 0
    %259 = vmatpush1.bf16.msra.mxu0 %v217
    %260 = vmatprep.subr.bf16.mxu0 0
    %261 = vmatpush1.bf16.msra.mxu0 %v218
    %262 = vmatprep.subr.bf16.mxu0 0
    %263 = vmatpush1.bf16.msra.mxu0 %v219
    %264 = vmatprep.subr.bf16.mxu0 0
    %265 = vmatpush1.bf16.msra.mxu0 %v220
    %266 = vmatprep.subr.bf16.mxu0 0
    %267 = vmatpush1.bf16.msra.mxu0 %v221
    %268 = vmatprep.subr.bf16.mxu0 0
    %269 = vmatpush1.bf16.msra.mxu0 %v222
    %270 = vmatprep.subr.bf16.mxu0 0
    %271 = vmatpush1.bf16.msra.mxu0 %v223
    %272 = vmatprep.mubr.bf16.mxu0 %v129
    %273 = vmatmul.mubr.bf16.gmra.mrb[0].mxu0 %v128
    %v274 = vpop.f32.mrb[0].mxu0
    %v275 = vadd.f32 %v102, %v274
    %v276 = vpop.f32.mrb[0].mxu0
    %v277 = vpop.f32.mrb[0].mxu0
    %v278 = vadd.f32 %v102, %v277
    %v279 = vpop.f32.mrb[0].mxu0
    %280 = vmatprep.mubr.bf16.mxu0 %v131
    %281 = vmatmul.mubr.bf16.gmra.mrb[0].mxu0 %v130
    %v282 = vpop.f32.mrb[0].mxu0
    %v283 = vadd.f32 %v102, %v282
    %v284 = vpop.f32.mrb[0].mxu0
    %v285 = vpop.f32.mrb[0].mxu0
    %v286 = vadd.f32 %v102, %v285
    %v287 = vpop.f32.mrb[0].mxu0
    %288 = vmatprep.mubr.bf16.mxu0 %v133
    %289 = vmatmul.mubr.bf16.gmra.mrb[0].mxu0 %v132
    %v290 = vpop.f32.mrb[0].mxu0
    %v291 = vadd.f32 %v102, %v290
    %v292 = vpop.f32.mrb[0].mxu0
    %v293 = vpop.f32.mrb[0].mxu0
    %v294 = vadd.f32 %v102, %v293
    %v295 = vpop.f32.mrb[0].mxu0
    %296 = vmatprep.mubr.bf16.mxu0 %v135
    %297 = vmatmul.mubr.bf16.gmra.mrb[0].mxu0 %v134
    %v298 = vpop.f32.mrb[0].mxu0
    %v299 = vadd.f32 %v102, %v298
    %v300 = vpop.f32.mrb[0].mxu0
    %v301 = vpop.f32.mrb[0].mxu0
    %v302 = vadd.f32 %v102, %v301
    %v303 = vpop.f32.mrb[0].mxu0
    %304 = vdwg.mxu0
    %s305 = scalar_lea.vmem [#allocation5], 128
    %v306 = vld [vmem:[%s305] sm:$0xf]
    %v307 = vld [vmem:[%s305 + $0x4] sm:$0xf]
    %v308 = vld [vmem:[%s305 + $0x8] sm:$0xf]
    %v309 = vld [vmem:[%s305 + $0xc] sm:$0xf]
    %v310 = vld [vmem:[%s305 + $0x10] sm:$0xf]
    %v311 = vld [vmem:[%s305 + $0x14] sm:$0xf]
    %v312 = vld [vmem:[%s305 + $0x18] sm:$0xf]
    %v313 = vld [vmem:[%s305 + $0x1c] sm:$0xf]
    %v314 = vld [vmem:[%s305 + $0x20] sm:$0xf]
    %v315 = vld [vmem:[%s305 + $0x24] sm:$0xf]
    %v316 = vld [vmem:[%s305 + $0x28] sm:$0xf]
    %v317 = vld [vmem:[%s305 + $0x2c] sm:$0xf]
    %v318 = vld [vmem:[%s305 + $0x30] sm:$0xf]
    %v319 = vld [vmem:[%s305 + $0x34] sm:$0xf]
    %v320 = vld [vmem:[%s305 + $0x38] sm:$0xf]
    %v321 = vld [vmem:[%s305 + $0x3c] sm:$0xf]
    %v322 = vld [vmem:[%s305 + $0x40] sm:$0xf]
    %v323 = vld [vmem:[%s305 + $0x44] sm:$0xf]
    %v324 = vld [vmem:[%s305 + $0x48] sm:$0xf]
    %v325 = vld [vmem:[%s305 + $0x4c] sm:$0xf]
    %v326 = vld [vmem:[%s305 + $0x50] sm:$0xf]
    %v327 = vld [vmem:[%s305 + $0x54] sm:$0xf]
    %v328 = vld [vmem:[%s305 + $0x58] sm:$0xf]
    %v329 = vld [vmem:[%s305 + $0x5c] sm:$0xf]
    %v330 = vld [vmem:[%s305 + $0x60] sm:$0xf]
    %v331 = vld [vmem:[%s305 + $0x64] sm:$0xf]
    %v332 = vld [vmem:[%s305 + $0x68] sm:$0xf]
    %v333 = vld [vmem:[%s305 + $0x6c] sm:$0xf]
    %v334 = vld [vmem:[%s305 + $0x70] sm:$0xf]
    %v335 = vld [vmem:[%s305 + $0x74] sm:$0xf]
    %v336 = vld [vmem:[%s305 + $0x78] sm:$0xf]
    %v337 = vld [vmem:[%s305 + $0x7c] sm:$0xf]
    %v339 = vunpack.c.l.b16 %v63
    %v340 = vunpack.c.h.b16 %v63
    %v341 = vpack.c.b16 %v339, %v339
    %v342 = vpack.c.b16 %v340, %v340
    %vm343 = vsmask.f32 7424
    %v345 = vshrl.u32 %v128, 16
    %v347 = vshll.u32 %v128, 16
    %v349 = vrot.slane %v347, 1
    %v350 = vor.u32 %v345, %v349
    %v352 = vshll.u32 %v130, 16
    %v354 = vrot.slane %v352, 1
    %v355 = vsel %vm343, %v350, %v354
    %v357 = vshrl.u32 %v129, 16
    %v359 = vshll.u32 %v129, 16
    %v361 = vrot.slane %v359, 1
    %v362 = vor.u32 %v357, %v361
    %v364 = vshll.u32 %v131, 16
    %v366 = vrot.slane %v364, 1
    %v367 = vsel %vm343, %v362, %v366
    %v368 = vshrl.u32 %v130, 16
    %v370 = vor.u32 %v368, %v354
    %v372 = vshll.u32 %v132, 16
    %v374 = vrot.slane %v372, 1
    %v375 = vsel %vm343, %v370, %v374
    %v376 = vshrl.u32 %v131, 16
    %v378 = vor.u32 %v376, %v366
    %v380 = vshll.u32 %v133, 16
    %v382 = vrot.slane %v380, 1
    %v383 = vsel %vm343, %v378, %v382
    %v384 = vshrl.u32 %v132, 16
    %v386 = vor.u32 %v384, %v374
    %v388 = vshll.u32 %v134, 16
    %v390 = vrot.slane %v388, 1
    %v391 = vsel %vm343, %v386, %v390
    %v392 = vshrl.u32 %v133, 16
    %v394 = vor.u32 %v392, %v382
    %v396 = vshll.u32 %v135, 16
    %v398 = vrot.slane %v396, 1
    %v399 = vsel %vm343, %v394, %v398
    %v400 = vshrl.u32 %v134, 16
    %v402 = vor.u32 %v400, %v390
    %v404 = vshll.u32 %v341, 16
    %v406 = vrot.slane %v404, 1
    %v407 = vsel %vm343, %v402, %v406
    %v408 = vshrl.u32 %v135, 16
    %v410 = vor.u32 %v408, %v398
    %v412 = vshll.u32 %v342, 16
    %v414 = vrot.slane %v412, 1
    %v415 = vsel %vm343, %v410, %v414
    %v456 = vunpack.c.l.b16 %v306
    %v457 = vunpack.c.l.b16 %v307
    %v458 = vunpack.c.l.b16 %v308
    %v459 = vunpack.c.l.b16 %v309
    %v460 = vunpack.c.l.b16 %v310
    %v461 = vunpack.c.l.b16 %v311
    %v462 = vunpack.c.l.b16 %v312
    %v463 = vunpack.c.l.b16 %v313
    %v464 = vunpack.c.l.b16 %v314
    %v465 = vunpack.c.l.b16 %v315
    %v466 = vunpack.c.l.b16 %v316
    %v467 = vunpack.c.l.b16 %v317
    %v468 = vunpack.c.l.b16 %v318
    %v469 = vunpack.c.l.b16 %v319
    %v470 = vunpack.c.l.b16 %v320
    %v471 = vunpack.c.l.b16 %v321
    %v472 = vunpack.c.l.b16 %v322
    %v473 = vunpack.c.l.b16 %v323
    %v474 = vunpack.c.l.b16 %v324
    %v475 = vunpack.c.l.b16 %v325
    %v476 = vunpack.c.l.b16 %v326
    %v477 = vunpack.c.l.b16 %v327
    %v478 = vunpack.c.l.b16 %v328
    %v479 = vunpack.c.l.b16 %v329
    %v480 = vunpack.c.l.b16 %v330
    %v481 = vunpack.c.l.b16 %v331
    %v482 = vunpack.c.l.b16 %v332
    %v483 = vunpack.c.l.b16 %v333
    %v484 = vunpack.c.l.b16 %v334
    %v485 = vunpack.c.l.b16 %v335
    %v486 = vunpack.c.l.b16 %v336
    %v487 = vunpack.c.l.b16 %v337
    %v488 = vpack.c.b16 %v457, %v456
    %v489 = vpack.c.b16 %v459, %v458
    %v490 = vpack.c.b16 %v461, %v460
    %v491 = vpack.c.b16 %v463, %v462
    %v492 = vpack.c.b16 %v465, %v464
    %v493 = vpack.c.b16 %v467, %v466
    %v494 = vpack.c.b16 %v469, %v468
    %v495 = vpack.c.b16 %v471, %v470
    %v496 = vpack.c.b16 %v473, %v472
    %v497 = vpack.c.b16 %v475, %v474
    %v498 = vpack.c.b16 %v477, %v476
    %v499 = vpack.c.b16 %v479, %v478
    %v500 = vpack.c.b16 %v481, %v480
    %v501 = vpack.c.b16 %v483, %v482
    %v502 = vpack.c.b16 %v485, %v484
    %v503 = vpack.c.b16 %v487, %v486
    %520 = vmatprep.subr.bf16.mxu0 0
    %521 = vmatpush1.bf16.msra.mxu0 %v488
    %522 = vmatprep.subr.bf16.mxu0 0
    %523 = vmatpush1.bf16.msra.mxu0 %v489
    %524 = vmatprep.subr.bf16.mxu0 0
    %525 = vmatpush1.bf16.msra.mxu0 %v490
    %526 = vmatprep.subr.bf16.mxu0 0
    %527 = vmatpush1.bf16.msra.mxu0 %v491
    %528 = vmatprep.subr.bf16.mxu0 0
    %529 = vmatpush1.bf16.msra.mxu0 %v492
    %530 = vmatprep.subr.bf16.mxu0 0
    %531 = vmatpush1.bf16.msra.mxu0 %v493
    %532 = vmatprep.subr.bf16.mxu0 0
    %533 = vmatpush1.bf16.msra.mxu0 %v494
    %534 = vmatprep.subr.bf16.mxu0 0
    %535 = vmatpush1.bf16.msra.mxu0 %v495
    %536 = vmatprep.subr.bf16.mxu0 0
    %537 = vmatpush1.bf16.msra.mxu0 %v496
    %538 = vmatprep.subr.bf16.mxu0 0
    %539 = vmatpush1.bf16.msra.mxu0 %v497
    %540 = vmatprep.subr.bf16.mxu0 0
    %541 = vmatpush1.bf16.msra.mxu0 %v498
    %542 = vmatprep.subr.bf16.mxu0 0
    %543 = vmatpush1.bf16.msra.mxu0 %v499
    %544 = vmatprep.subr.bf16.mxu0 0
    %545 = vmatpush1.bf16.msra.mxu0 %v500
    %546 = vmatprep.subr.bf16.mxu0 0
    %547 = vmatpush1.bf16.msra.mxu0 %v501
    %548 = vmatprep.subr.bf16.mxu0 0
    %549 = vmatpush1.bf16.msra.mxu0 %v502
    %550 = vmatprep.subr.bf16.mxu0 0
    %551 = vmatpush1.bf16.msra.mxu0 %v503
    %552 = vmatprep.mubr.bf16.mxu0 %v367
    %553 = vmatmul.mubr.bf16.gmra.mrb[0].mxu0 %v355
    %v554 = vpop.f32.mrb[0].mxu0
    %v555 = vadd.f32 0.0, %v554
    %v556 = vpop.f32.mrb[0].mxu0
    %v557 = vpop.f32.mrb[0].mxu0
    %v558 = vadd.f32 0.0, %v557
    %v559 = vpop.f32.mrb[0].mxu0
    %560 = vmatprep.mubr.bf16.mxu0 %v383
    %561 = vmatmul.mubr.bf16.gmra.mrb[0].mxu0 %v375
    %v562 = vpop.f32.mrb[0].mxu0
    %v563 = vadd.f32 0.0, %v562
    %v564 = vpop.f32.mrb[0].mxu0
    %v565 = vpop.f32.mrb[0].mxu0
    %v566 = vadd.f32 0.0, %v565
    %v567 = vpop.f32.mrb[0].mxu0
    %568 = vmatprep.mubr.bf16.mxu0 %v399
    %569 = vmatmul.mubr.bf16.gmra.mrb[0].mxu0 %v391
    %v570 = vpop.f32.mrb[0].mxu0
    %v571 = vadd.f32 0.0, %v570
    %v572 = vpop.f32.mrb[0].mxu0
    %v573 = vpop.f32.mrb[0].mxu0
    %v574 = vadd.f32 0.0, %v573
    %v575 = vpop.f32.mrb[0].mxu0
    %576 = vmatprep.mubr.bf16.mxu0 %v415
    %577 = vmatmul.mubr.bf16.gmra.mrb[0].mxu0 %v407
    %v578 = vpop.f32.mrb[0].mxu0
    %v579 = vadd.f32 0.0, %v578
    %v580 = vpop.f32.mrb[0].mxu0
    %v581 = vpop.f32.mrb[0].mxu0
    %v582 = vadd.f32 0.0, %v581
    %v583 = vpop.f32.mrb[0].mxu0
    %584 = vdwg.mxu0
    %v585 = vadd.f32 %v275, %v555
    %v586 = vadd.f32 %v278, %v558
    %v587 = vadd.f32 %v283, %v563
    %v588 = vadd.f32 %v286, %v566
    %v589 = vadd.f32 %v291, %v571
    %v590 = vadd.f32 %v294, %v574
    %v591 = vadd.f32 %v299, %v579
    %v592 = vadd.f32 %v302, %v582
    %s593 = scalar_lea.vmem [#allocation5], 256
    %v594 = vld [vmem:[%s593] sm:$0xf]
    %v595 = vld [vmem:[%s593 + $0x4] sm:$0xf]
    %v596 = vld [vmem:[%s593 + $0x8] sm:$0xf]
    %v597 = vld [vmem:[%s593 + $0xc] sm:$0xf]
    %v598 = vld [vmem:[%s593 + $0x10] sm:$0xf]
    %v599 = vld [vmem:[%s593 + $0x14] sm:$0xf]
    %v600 = vld [vmem:[%s593 + $0x18] sm:$0xf]
    %v601 = vld [vmem:[%s593 + $0x1c] sm:$0xf]
    %v602 = vld [vmem:[%s593 + $0x20] sm:$0xf]
    %v603 = vld [vmem:[%s593 + $0x24] sm:$0xf]
    %v604 = vld [vmem:[%s593 + $0x28] sm:$0xf]
    %v605 = vld [vmem:[%s593 + $0x2c] sm:$0xf]
    %v606 = vld [vmem:[%s593 + $0x30] sm:$0xf]
    %v607 = vld [vmem:[%s593 + $0x34] sm:$0xf]
    %v608 = vld [vmem:[%s593 + $0x38] sm:$0xf]
    %v609 = vld [vmem:[%s593 + $0x3c] sm:$0xf]
    %v610 = vld [vmem:[%s593 + $0x40] sm:$0xf]
    %v611 = vld [vmem:[%s593 + $0x44] sm:$0xf]
    %v612 = vld [vmem:[%s593 + $0x48] sm:$0xf]
    %v613 = vld [vmem:[%s593 + $0x4c] sm:$0xf]
    %v614 = vld [vmem:[%s593 + $0x50] sm:$0xf]
    %v615 = vld [vmem:[%s593 + $0x54] sm:$0xf]
    %v616 = vld [vmem:[%s593 + $0x58] sm:$0xf]
    %v617 = vld [vmem:[%s593 + $0x5c] sm:$0xf]
    %v618 = vld [vmem:[%s593 + $0x60] sm:$0xf]
    %v619 = vld [vmem:[%s593 + $0x64] sm:$0xf]
    %v620 = vld [vmem:[%s593 + $0x68] sm:$0xf]
    %v621 = vld [vmem:[%s593 + $0x6c] sm:$0xf]
    %v622 = vld [vmem:[%s593 + $0x70] sm:$0xf]
    %v623 = vld [vmem:[%s593 + $0x74] sm:$0xf]
    %v624 = vld [vmem:[%s593 + $0x78] sm:$0xf]
    %v625 = vld [vmem:[%s593 + $0x7c] sm:$0xf]
    %vm626 = vcmask 1046528
    %v627 = vrot.slane %v128, 1
    %v628 = vrot.slane %v130, 1
    %v629 = vsel %vm626, %v627, %v628
    %v630 = vrot.slane %v129, 1
    %v631 = vrot.slane %v131, 1
    %v632 = vsel %vm626, %v630, %v631
    %v633 = vrot.slane %v132, 1
    %v634 = vsel %vm626, %v628, %v633
    %v635 = vrot.slane %v133, 1
    %v636 = vsel %vm626, %v631, %v635
    %v637 = vrot.slane %v134, 1
    %v638 = vsel %vm626, %v633, %v637
    %v639 = vrot.slane %v135, 1
    %v640 = vsel %vm626, %v635, %v639
    %v641 = vrot.slane %v341, 1
    %v642 = vsel %vm626, %v637, %v641
    %v643 = vrot.slane %v342, 1
    %v644 = vsel %vm626, %v639, %v643
    %v685 = vunpack.c.l.b16 %v594
    %v686 = vunpack.c.l.b16 %v595
    %v687 = vunpack.c.l.b16 %v596
    %v688 = vunpack.c.l.b16 %v597
    %v689 = vunpack.c.l.b16 %v598
    %v690 = vunpack.c.l.b16 %v599
    %v691 = vunpack.c.l.b16 %v600
    %v692 = vunpack.c.l.b16 %v601
    %v693 = vunpack.c.l.b16 %v602
    %v694 = vunpack.c.l.b16 %v603
    %v695 = vunpack.c.l.b16 %v604
    %v696 = vunpack.c.l.b16 %v605
    %v697 = vunpack.c.l.b16 %v606
    %v698 = vunpack.c.l.b16 %v607
    %v699 = vunpack.c.l.b16 %v608
    %v700 = vunpack.c.l.b16 %v609
    %v701 = vunpack.c.l.b16 %v610
    %v702 = vunpack.c.l.b16 %v611
    %v703 = vunpack.c.l.b16 %v612
    %v704 = vunpack.c.l.b16 %v613
    %v705 = vunpack.c.l.b16 %v614
    %v706 = vunpack.c.l.b16 %v615
    %v707 = vunpack.c.l.b16 %v616
    %v708 = vunpack.c.l.b16 %v617
    %v709 = vunpack.c.l.b16 %v618
    %v710 = vunpack.c.l.b16 %v619
    %v711 = vunpack.c.l.b16 %v620
    %v712 = vunpack.c.l.b16 %v621
    %v713 = vunpack.c.l.b16 %v622
    %v714 = vunpack.c.l.b16 %v623
    %v715 = vunpack.c.l.b16 %v624
    %v716 = vunpack.c.l.b16 %v625
    %v717 = vpack.c.b16 %v686, %v685
    %v718 = vpack.c.b16 %v688, %v687
    %v719 = vpack.c.b16 %v690, %v689
    %v720 = vpack.c.b16 %v692, %v691
    %v721 = vpack.c.b16 %v694, %v693
    %v722 = vpack.c.b16 %v696, %v695
    %v723 = vpack.c.b16 %v698, %v697
    %v724 = vpack.c.b16 %v700, %v699
    %v725 = vpack.c.b16 %v702, %v701
    %v726 = vpack.c.b16 %v704, %v703
    %v727 = vpack.c.b16 %v706, %v705
    %v728 = vpack.c.b16 %v708, %v707
    %v729 = vpack.c.b16 %v710, %v709
    %v730 = vpack.c.b16 %v712, %v711
    %v731 = vpack.c.b16 %v714, %v713
    %v732 = vpack.c.b16 %v716, %v715
    %749 = vmatprep.subr.bf16.mxu0 0
    %750 = vmatpush1.bf16.msra.mxu0 %v717
    %751 = vmatprep.subr.bf16.mxu0 0
    %752 = vmatpush1.bf16.msra.mxu0 %v718
    %753 = vmatprep.subr.bf16.mxu0 0
    %754 = vmatpush1.bf16.msra.mxu0 %v719
    %755 = vmatprep.subr.bf16.mxu0 0
    %756 = vmatpush1.bf16.msra.mxu0 %v720
    %757 = vmatprep.subr.bf16.mxu0 0
    %758 = vmatpush1.bf16.msra.mxu0 %v721
    %759 = vmatprep.subr.bf16.mxu0 0
    %760 = vmatpush1.bf16.msra.mxu0 %v722
    %761 = vmatprep.subr.bf16.mxu0 0
    %762 = vmatpush1.bf16.msra.mxu0 %v723
    %763 = vmatprep.subr.bf16.mxu0 0
    %764 = vmatpush1.bf16.msra.mxu0 %v724
    %765 = vmatprep.subr.bf16.mxu0 0
    %766 = vmatpush1.bf16.msra.mxu0 %v725
    %767 = vmatprep.subr.bf16.mxu0 0
    %768 = vmatpush1.bf16.msra.mxu0 %v726
    %769 = vmatprep.subr.bf16.mxu0 0
    %770 = vmatpush1.bf16.msra.mxu0 %v727
    %771 = vmatprep.subr.bf16.mxu0 0
    %772 = vmatpush1.bf16.msra.mxu0 %v728
    %773 = vmatprep.subr.bf16.mxu0 0
    %774 = vmatpush1.bf16.msra.mxu0 %v729
    %775 = vmatprep.subr.bf16.mxu0 0
    %776 = vmatpush1.bf16.msra.mxu0 %v730
    %777 = vmatprep.subr.bf16.mxu0 0
    %778 = vmatpush1.bf16.msra.mxu0 %v731
    %779 = vmatprep.subr.bf16.mxu0 0
    %780 = vmatpush1.bf16.msra.mxu0 %v732
    %781 = vmatprep.mubr.bf16.mxu0 %v632
    %782 = vmatmul.mubr.bf16.gmra.mrb[0].mxu0 %v629
    %v783 = vpop.f32.mrb[0].mxu0
    %v784 = vadd.f32 0.0, %v783
    %v785 = vpop.f32.mrb[0].mxu0
    %v786 = vpop.f32.mrb[0].mxu0
    %v787 = vadd.f32 0.0, %v786
    %v788 = vpop.f32.mrb[0].mxu0
    %789 = vmatprep.mubr.bf16.mxu0 %v636
    %790 = vmatmul.mubr.bf16.gmra.mrb[0].mxu0 %v634
    %v791 = vpop.f32.mrb[0].mxu0
    %v792 = vadd.f32 0.0, %v791
    %v793 = vpop.f32.mrb[0].mxu0
    %v794 = vpop.f32.mrb[0].mxu0
    %v795 = vadd.f32 0.0, %v794
    %v796 = vpop.f32.mrb[0].mxu0
    %797 = vmatprep.mubr.bf16.mxu0 %v640
    %798 = vmatmul.mubr.bf16.gmra.mrb[0].mxu0 %v638
    %v799 = vpop.f32.mrb[0].mxu0
    %v800 = vadd.f32 0.0, %v799
    %v801 = vpop.f32.mrb[0].mxu0
    %v802 = vpop.f32.mrb[0].mxu0
    %v803 = vadd.f32 0.0, %v802
    %v804 = vpop.f32.mrb[0].mxu0
    %805 = vmatprep.mubr.bf16.mxu0 %v644
    %806 = vmatmul.mubr.bf16.gmra.mrb[0].mxu0 %v642
    %v807 = vpop.f32.mrb[0].mxu0
    %v808 = vadd.f32 0.0, %v807
    %v809 = vpop.f32.mrb[0].mxu0
    %v810 = vpop.f32.mrb[0].mxu0
    %v811 = vadd.f32 0.0, %v810
    %v812 = vpop.f32.mrb[0].mxu0
    %813 = vdwg.mxu0
    %v814 = vadd.f32 %v585, %v784
    %v815 = vadd.f32 %v586, %v787
    %v816 = vadd.f32 %v587, %v792
    %v817 = vadd.f32 %v588, %v795
    %v818 = vadd.f32 %v589, %v800
    %v819 = vadd.f32 %v590, %v803
    %v820 = vadd.f32 %v591, %v808
    %v821 = vadd.f32 %v592, %v811
    %s822 = scalar_lea.vmem [#allocation5], 384
    %v823 = vld [vmem:[%s822] sm:$0xf]
    %v824 = vld [vmem:[%s822 + $0x4] sm:$0xf]
    %v825 = vld [vmem:[%s822 + $0x8] sm:$0xf]
    %v826 = vld [vmem:[%s822 + $0xc] sm:$0xf]
    %v827 = vld [vmem:[%s822 + $0x10] sm:$0xf]
    %v828 = vld [vmem:[%s822 + $0x14] sm:$0xf]
    %v829 = vld [vmem:[%s822 + $0x18] sm:$0xf]
    %v830 = vld [vmem:[%s822 + $0x1c] sm:$0xf]
    %v831 = vld [vmem:[%s822 + $0x20] sm:$0xf]
    %v832 = vld [vmem:[%s822 + $0x24] sm:$0xf]
    %v833 = vld [vmem:[%s822 + $0x28] sm:$0xf]
    %v834 = vld [vmem:[%s822 + $0x2c] sm:$0xf]
    %v835 = vld [vmem:[%s822 + $0x30] sm:$0xf]
    %v836 = vld [vmem:[%s822 + $0x34] sm:$0xf]
    %v837 = vld [vmem:[%s822 + $0x38] sm:$0xf]
    %v838 = vld [vmem:[%s822 + $0x3c] sm:$0xf]
    %v839 = vld [vmem:[%s822 + $0x40] sm:$0xf]
    %v840 = vld [vmem:[%s822 + $0x44] sm:$0xf]
    %v841 = vld [vmem:[%s822 + $0x48] sm:$0xf]
    %v842 = vld [vmem:[%s822 + $0x4c] sm:$0xf]
    %v843 = vld [vmem:[%s822 + $0x50] sm:$0xf]
    %v844 = vld [vmem:[%s822 + $0x54] sm:$0xf]
    %v845 = vld [vmem:[%s822 + $0x58] sm:$0xf]
    %v846 = vld [vmem:[%s822 + $0x5c] sm:$0xf]
    %v847 = vld [vmem:[%s822 + $0x60] sm:$0xf]
    %v848 = vld [vmem:[%s822 + $0x64] sm:$0xf]
    %v849 = vld [vmem:[%s822 + $0x68] sm:$0xf]
    %v850 = vld [vmem:[%s822 + $0x6c] sm:$0xf]
    %v851 = vld [vmem:[%s822 + $0x70] sm:$0xf]
    %v852 = vld [vmem:[%s822 + $0x74] sm:$0xf]
    %v853 = vld [vmem:[%s822 + $0x78] sm:$0xf]
    %v854 = vld [vmem:[%s822 + $0x7c] sm:$0xf]
    %vm855 = vsmask.f32 5376
    %v856 = vrot.slane %v345, 2
    %v857 = vrot.slane %v347, 3
    %v858 = vor.u32 %v856, %v857
    %v859 = vrot.slane %v368, 2
    %v860 = vrot.slane %v352, 3
    %v861 = vor.u32 %v859, %v860
    %v862 = vsel %vm855, %v858, %v861
    %v863 = vrot.slane %v357, 2
    %v864 = vrot.slane %v359, 3
    %v865 = vor.u32 %v863, %v864
    %v866 = vrot.slane %v376, 2
    %v867 = vrot.slane %v364, 3
    %v868 = vor.u32 %v866, %v867
    %v869 = vsel %vm855, %v865, %v868
    %v870 = vrot.slane %v384, 2
    %v871 = vrot.slane %v372, 3
    %v872 = vor.u32 %v870, %v871
    %v873 = vsel %vm855, %v861, %v872
    %v874 = vrot.slane %v392, 2
    %v875 = vrot.slane %v380, 3
    %v876 = vor.u32 %v874, %v875
    %v877 = vsel %vm855, %v868, %v876
    %v878 = vrot.slane %v400, 2
    %v879 = vrot.slane %v388, 3
    %v880 = vor.u32 %v878, %v879
    %v881 = vsel %vm855, %v872, %v880
    %v882 = vrot.slane %v408, 2
    %v883 = vrot.slane %v396, 3
    %v884 = vor.u32 %v882, %v883
    %v885 = vsel %vm855, %v876, %v884
    %v886 = vshrl.u32 %v341, 16
    %v888 = vrot.slane %v886, 2
    %v889 = vrot.slane %v404, 3
    %v890 = vor.u32 %v888, %v889
    %v891 = vsel %vm855, %v880, %v890
    %v892 = vshrl.u32 %v342, 16
    %v894 = vrot.slane %v892, 2
    %v895 = vrot.slane %v412, 3
    %v896 = vor.u32 %v894, %v895
    %v897 = vsel %vm855, %v884, %v896
    %v938 = vunpack.c.l.b16 %v823
    %v939 = vunpack.c.l.b16 %v824
    %v940 = vunpack.c.l.b16 %v825
    %v941 = vunpack.c.l.b16 %v826
    %v942 = vunpack.c.l.b16 %v827
    %v943 = vunpack.c.l.b16 %v828
    %v944 = vunpack.c.l.b16 %v829
    %v945 = vunpack.c.l.b16 %v830
    %v946 = vunpack.c.l.b16 %v831
    %v947 = vunpack.c.l.b16 %v832
    %v948 = vunpack.c.l.b16 %v833
    %v949 = vunpack.c.l.b16 %v834
    %v950 = vunpack.c.l.b16 %v835
    %v951 = vunpack.c.l.b16 %v836
    %v952 = vunpack.c.l.b16 %v837
    %v953 = vunpack.c.l.b16 %v838
    %v954 = vunpack.c.l.b16 %v839
    %v955 = vunpack.c.l.b16 %v840
    %v956 = vunpack.c.l.b16 %v841
    %v957 = vunpack.c.l.b16 %v842
    %v958 = vunpack.c.l.b16 %v843
    %v959 = vunpack.c.l.b16 %v844
    %v960 = vunpack.c.l.b16 %v845
    %v961 = vunpack.c.l.b16 %v846
    %v962 = vunpack.c.l.b16 %v847
    %v963 = vunpack.c.l.b16 %v848
    %v964 = vunpack.c.l.b16 %v849
    %v965 = vunpack.c.l.b16 %v850
    %v966 = vunpack.c.l.b16 %v851
    %v967 = vunpack.c.l.b16 %v852
    %v968 = vunpack.c.l.b16 %v853
    %v969 = vunpack.c.l.b16 %v854
    %v970 = vpack.c.b16 %v939, %v938
    %v971 = vpack.c.b16 %v941, %v940
    %v972 = vpack.c.b16 %v943, %v942
    %v973 = vpack.c.b16 %v945, %v944
    %v974 = vpack.c.b16 %v947, %v946
    %v975 = vpack.c.b16 %v949, %v948
    %v976 = vpack.c.b16 %v951, %v950
    %v977 = vpack.c.b16 %v953, %v952
    %v978 = vpack.c.b16 %v955, %v954
    %v979 = vpack.c.b16 %v957, %v956
    %v980 = vpack.c.b16 %v959, %v958
    %v981 = vpack.c.b16 %v961, %v960
    %v982 = vpack.c.b16 %v963, %v962
    %v983 = vpack.c.b16 %v965, %v964
    %v984 = vpack.c.b16 %v967, %v966
    %v985 = vpack.c.b16 %v969, %v968
    %1002 = vmatprep.subr.bf16.mxu0 0
    %1003 = vmatpush1.bf16.msra.mxu0 %v970
    %1004 = vmatprep.subr.bf16.mxu0 0
    %1005 = vmatpush1.bf16.msra.mxu0 %v971
    %1006 = vmatprep.subr.bf16.mxu0 0
    %1007 = vmatpush1.bf16.msra.mxu0 %v972
    %1008 = vmatprep.subr.bf16.mxu0 0
    %1009 = vmatpush1.bf16.msra.mxu0 %v973
    %1010 = vmatprep.subr.bf16.mxu0 0
    %1011 = vmatpush1.bf16.msra.mxu0 %v974
    %1012 = vmatprep.subr.bf16.mxu0 0
    %1013 = vmatpush1.bf16.msra.mxu0 %v975
    %1014 = vmatprep.subr.bf16.mxu0 0
    %1015 = vmatpush1.bf16.msra.mxu0 %v976
    %1016 = vmatprep.subr.bf16.mxu0 0
    %1017 = vmatpush1.bf16.msra.mxu0 %v977
    %1018 = vmatprep.subr.bf16.mxu0 0
    %1019 = vmatpush1.bf16.msra.mxu0 %v978
    %1020 = vmatprep.subr.bf16.mxu0 0
    %1021 = vmatpush1.bf16.msra.mxu0 %v979
    %1022 = vmatprep.subr.bf16.mxu0 0
    %1023 = vmatpush1.bf16.msra.mxu0 %v980
    %1024 = vmatprep.subr.bf16.mxu0 0
    %1025 = vmatpush1.bf16.msra.mxu0 %v981
    %1026 = vmatprep.subr.bf16.mxu0 0
    %1027 = vmatpush1.bf16.msra.mxu0 %v982
    %1028 = vmatprep.subr.bf16.mxu0 0
    %1029 = vmatpush1.bf16.msra.mxu0 %v983
    %1030 = vmatprep.subr.bf16.mxu0 0
    %1031 = vmatpush1.bf16.msra.mxu0 %v984
    %1032 = vmatprep.subr.bf16.mxu0 0
    %1033 = vmatpush1.bf16.msra.mxu0 %v985
    %1034 = vmatprep.mubr.bf16.mxu0 %v869
    %1035 = vmatmul.mubr.bf16.gmra.mrb[0].mxu0 %v862
    %v1036 = vpop.f32.mrb[0].mxu0
    %v1037 = vadd.f32 0.0, %v1036
    %v1038 = vpop.f32.mrb[0].mxu0
    %v1039 = vpop.f32.mrb[0].mxu0
    %v1040 = vadd.f32 0.0, %v1039
    %v1041 = vpop.f32.mrb[0].mxu0
    %1042 = vmatprep.mubr.bf16.mxu0 %v877
    %1043 = vmatmul.mubr.bf16.gmra.mrb[0].mxu0 %v873
    %v1044 = vpop.f32.mrb[0].mxu0
    %v1045 = vadd.f32 0.0, %v1044
    %v1046 = vpop.f32.mrb[0].mxu0
    %v1047 = vpop.f32.mrb[0].mxu0
    %v1048 = vadd.f32 0.0, %v1047
    %v1049 = vpop.f32.mrb[0].mxu0
    %1050 = vmatprep.mubr.bf16.mxu0 %v885
    %1051 = vmatmul.mubr.bf16.gmra.mrb[0].mxu0 %v881
    %v1052 = vpop.f32.mrb[0].mxu0
    %v1053 = vadd.f32 0.0, %v1052
    %v1054 = vpop.f32.mrb[0].mxu0
    %v1055 = vpop.f32.mrb[0].mxu0
    %v1056 = vadd.f32 0.0, %v1055
    %v1057 = vpop.f32.mrb[0].mxu0
    %1058 = vmatprep.mubr.bf16.mxu0 %v897
    %1059 = vmatmul.mubr.bf16.gmra.mrb[0].mxu0 %v891
    %v1060 = vpop.f32.mrb[0].mxu0
    %v1061 = vadd.f32 0.0, %v1060
    %v1062 = vpop.f32.mrb[0].mxu0
    %v1063 = vpop.f32.mrb[0].mxu0
    %v1064 = vadd.f32 0.0, %v1063
    %v1065 = vpop.f32.mrb[0].mxu0
    %1066 = vdwg.mxu0
    %v1067 = vadd.f32 %v814, %v1037
    %v1068 = vadd.f32 %v815, %v1040
    %v1069 = vadd.f32 %v816, %v1045
    %v1070 = vadd.f32 %v817, %v1048
    %v1071 = vadd.f32 %v818, %v1053
    %v1072 = vadd.f32 %v819, %v1056
    %v1073 = vadd.f32 %v820, %v1061
    %v1074 = vadd.f32 %v821, %v1064
    %s1075 = scalar_lea.vmem [#allocation5], 512
    %v1076 = vld [vmem:[%s1075] sm:$0xf]
    %v1077 = vld [vmem:[%s1075 + $0x4] sm:$0xf]
    %v1078 = vld [vmem:[%s1075 + $0x8] sm:$0xf]
    %v1079 = vld [vmem:[%s1075 + $0xc] sm:$0xf]
    %v1080 = vld [vmem:[%s1075 + $0x10] sm:$0xf]
    %v1081 = vld [vmem:[%s1075 + $0x14] sm:$0xf]
    %v1082 = vld [vmem:[%s1075 + $0x18] sm:$0xf]
    %v1083 = vld [vmem:[%s1075 + $0x1c] sm:$0xf]
    %v1084 = vld [vmem:[%s1075 + $0x20] sm:$0xf]
    %v1085 = vld [vmem:[%s1075 + $0x24] sm:$0xf]
    %v1086 = vld [vmem:[%s1075 + $0x28] sm:$0xf]
    %v1087 = vld [vmem:[%s1075 + $0x2c] sm:$0xf]
    %v1088 = vld [vmem:[%s1075 + $0x30] sm:$0xf]
    %v1089 = vld [vmem:[%s1075 + $0x34] sm:$0xf]
    %v1090 = vld [vmem:[%s1075 + $0x38] sm:$0xf]
    %v1091 = vld [vmem:[%s1075 + $0x3c] sm:$0xf]
    %v1092 = vld [vmem:[%s1075 + $0x40] sm:$0xf]
    %v1093 = vld [vmem:[%s1075 + $0x44] sm:$0xf]
    %v1094 = vld [vmem:[%s1075 + $0x48] sm:$0xf]
    %v1095 = vld [vmem:[%s1075 + $0x4c] sm:$0xf]
    %v1096 = vld [vmem:[%s1075 + $0x50] sm:$0xf]
    %v1097 = vld [vmem:[%s1075 + $0x54] sm:$0xf]
    %v1098 = vld [vmem:[%s1075 + $0x58] sm:$0xf]
    %v1099 = vld [vmem:[%s1075 + $0x5c] sm:$0xf]
    %v1100 = vld [vmem:[%s1075 + $0x60] sm:$0xf]
    %v1101 = vld [vmem:[%s1075 + $0x64] sm:$0xf]
    %v1102 = vld [vmem:[%s1075 + $0x68] sm:$0xf]
    %v1103 = vld [vmem:[%s1075 + $0x6c] sm:$0xf]
    %v1104 = vld [vmem:[%s1075 + $0x70] sm:$0xf]
    %v1105 = vld [vmem:[%s1075 + $0x74] sm:$0xf]
    %v1106 = vld [vmem:[%s1075 + $0x78] sm:$0xf]
    %v1107 = vld [vmem:[%s1075 + $0x7c] sm:$0xf]
    %vm1108 = vcmask 1044480
    %v1109 = vrot.slane %v128, 3
    %v1110 = vrot.slane %v130, 3
    %v1111 = vsel %vm1108, %v1109, %v1110
    %v1112 = vrot.slane %v129, 3
    %v1113 = vrot.slane %v131, 3
    %v1114 = vsel %vm1108, %v1112, %v1113
    %v1115 = vrot.slane %v132, 3
    %v1116 = vsel %vm1108, %v1110, %v1115
    %v1117 = vrot.slane %v133, 3
    %v1118 = vsel %vm1108, %v1113, %v1117
    %v1119 = vrot.slane %v134, 3
    %v1120 = vsel %vm1108, %v1115, %v1119
    %v1121 = vrot.slane %v135, 3
    %v1122 = vsel %vm1108, %v1117, %v1121
    %v1123 = vrot.slane %v341, 3
    %v1124 = vsel %vm1108, %v1119, %v1123
    %v1125 = vrot.slane %v342, 3
    %v1126 = vsel %vm1108, %v1121, %v1125
    %v1167 = vunpack.c.l.b16 %v1076
    %v1168 = vunpack.c.l.b16 %v1077
    %v1169 = vunpack.c.l.b16 %v1078
    %v1170 = vunpack.c.l.b16 %v1079
    %v1171 = vunpack.c.l.b16 %v1080
    %v1172 = vunpack.c.l.b16 %v1081
    %v1173 = vunpack.c.l.b16 %v1082
    %v1174 = vunpack.c.l.b16 %v1083
    %v1175 = vunpack.c.l.b16 %v1084
    %v1176 = vunpack.c.l.b16 %v1085
    %v1177 = vunpack.c.l.b16 %v1086
    %v1178 = vunpack.c.l.b16 %v1087
    %v1179 = vunpack.c.l.b16 %v1088
    %v1180 = vunpack.c.l.b16 %v1089
    %v1181 = vunpack.c.l.b16 %v1090
    %v1182 = vunpack.c.l.b16 %v1091
    %v1183 = vunpack.c.l.b16 %v1092
    %v1184 = vunpack.c.l.b16 %v1093
    %v1185 = vunpack.c.l.b16 %v1094
    %v1186 = vunpack.c.l.b16 %v1095
    %v1187 = vunpack.c.l.b16 %v1096
    %v1188 = vunpack.c.l.b16 %v1097
    %v1189 = vunpack.c.l.b16 %v1098
    %v1190 = vunpack.c.l.b16 %v1099
    %v1191 = vunpack.c.l.b16 %v1100
    %v1192 = vunpack.c.l.b16 %v1101
    %v1193 = vunpack.c.l.b16 %v1102
    %v1194 = vunpack.c.l.b16 %v1103
    %v1195 = vunpack.c.l.b16 %v1104
    %v1196 = vunpack.c.l.b16 %v1105
    %v1197 = vunpack.c.l.b16 %v1106
    %v1198 = vunpack.c.l.b16 %v1107
    %v1199 = vpack.c.b16 %v1168, %v1167
    %v1200 = vpack.c.b16 %v1170, %v1169
    %v1201 = vpack.c.b16 %v1172, %v1171
    %v1202 = vpack.c.b16 %v1174, %v1173
    %v1203 = vpack.c.b16 %v1176, %v1175
    %v1204 = vpack.c.b16 %v1178, %v1177
    %v1205 = vpack.c.b16 %v1180, %v1179
    %v1206 = vpack.c.b16 %v1182, %v1181
    %v1207 = vpack.c.b16 %v1184, %v1183
    %v1208 = vpack.c.b16 %v1186, %v1185
    %v1209 = vpack.c.b16 %v1188, %v1187
    %v1210 = vpack.c.b16 %v1190, %v1189
    %v1211 = vpack.c.b16 %v1192, %v1191
    %v1212 = vpack.c.b16 %v1194, %v1193
    %v1213 = vpack.c.b16 %v1196, %v1195
    %v1214 = vpack.c.b16 %v1198, %v1197
    %1231 = vmatprep.subr.bf16.mxu0 0
    %1232 = vmatpush1.bf16.msra.mxu0 %v1199
    %1233 = vmatprep.subr.bf16.mxu0 0
    %1234 = vmatpush1.bf16.msra.mxu0 %v1200
    %1235 = vmatprep.subr.bf16.mxu0 0
    %1236 = vmatpush1.bf16.msra.mxu0 %v1201
    %1237 = vmatprep.subr.bf16.mxu0 0
    %1238 = vmatpush1.bf16.msra.mxu0 %v1202
    %1239 = vmatprep.subr.bf16.mxu0 0
    %1240 = vmatpush1.bf16.msra.mxu0 %v1203
    %1241 = vmatprep.subr.bf16.mxu0 0
    %1242 = vmatpush1.bf16.msra.mxu0 %v1204
    %1243 = vmatprep.subr.bf16.mxu0 0
    %1244 = vmatpush1.bf16.msra.mxu0 %v1205
    %1245 = vmatprep.subr.bf16.mxu0 0
    %1246 = vmatpush1.bf16.msra.mxu0 %v1206
    %1247 = vmatprep.subr.bf16.mxu0 0
    %1248 = vmatpush1.bf16.msra.mxu0 %v1207
    %1249 = vmatprep.subr.bf16.mxu0 0
    %1250 = vmatpush1.bf16.msra.mxu0 %v1208
    %1251 = vmatprep.subr.bf16.mxu0 0
    %1252 = vmatpush1.bf16.msra.mxu0 %v1209
    %1253 = vmatprep.subr.bf16.mxu0 0
    %1254 = vmatpush1.bf16.msra.mxu0 %v1210
    %1255 = vmatprep.subr.bf16.mxu0 0
    %1256 = vmatpush1.bf16.msra.mxu0 %v1211
    %1257 = vmatprep.subr.bf16.mxu0 0
    %1258 = vmatpush1.bf16.msra.mxu0 %v1212
    %1259 = vmatprep.subr.bf16.mxu0 0
    %1260 = vmatpush1.bf16.msra.mxu0 %v1213
    %1261 = vmatprep.subr.bf16.mxu0 0
    %1262 = vmatpush1.bf16.msra.mxu0 %v1214
    %1263 = vmatprep.mubr.bf16.mxu0 %v1114
    %1264 = vmatmul.mubr.bf16.gmra.mrb[0].mxu0 %v1111
    %v1265 = vpop.f32.mrb[0].mxu0
    %v1266 = vadd.f32 0.0, %v1265
    %v1267 = vpop.f32.mrb[0].mxu0
    %v1268 = vpop.f32.mrb[0].mxu0
    %v1269 = vadd.f32 0.0, %v1268
    %v1270 = vpop.f32.mrb[0].mxu0
    %1271 = vmatprep.mubr.bf16.mxu0 %v1118
    %1272 = vmatmul.mubr.bf16.gmra.mrb[0].mxu0 %v1116
    %v1273 = vpop.f32.mrb[0].mxu0
    %v1274 = vadd.f32 0.0, %v1273
    %v1275 = vpop.f32.mrb[0].mxu0
    %v1276 = vpop.f32.mrb[0].mxu0
    %v1277 = vadd.f32 0.0, %v1276
    %v1278 = vpop.f32.mrb[0].mxu0
    %1279 = vmatprep.mubr.bf16.mxu0 %v1122
    %1280 = vmatmul.mubr.bf16.gmra.mrb[0].mxu0 %v1120
    %v1281 = vpop.f32.mrb[0].mxu0
    %v1282 = vadd.f32 0.0, %v1281
    %v1283 = vpop.f32.mrb[0].mxu0
    %v1284 = vpop.f32.mrb[0].mxu0
    %v1285 = vadd.f32 0.0, %v1284
    %v1286 = vpop.f32.mrb[0].mxu0
    %1287 = vmatprep.mubr.bf16.mxu0 %v1126
    %1288 = vmatmul.mubr.bf16.gmra.mrb[0].mxu0 %v1124
    %v1289 = vpop.f32.mrb[0].mxu0
    %v1290 = vadd.f32 0.0, %v1289
    %v1291 = vpop.f32.mrb[0].mxu0
    %v1292 = vpop.f32.mrb[0].mxu0
    %v1293 = vadd.f32 0.0, %v1292
    %v1294 = vpop.f32.mrb[0].mxu0
    %1295 = vdwg.mxu0
    %v1296 = vadd.f32 %v1067, %v1266
    %v1297 = vadd.f32 %v1068, %v1269
    %v1298 = vadd.f32 %v1069, %v1274
    %v1299 = vadd.f32 %v1070, %v1277
    %v1300 = vadd.f32 %v1071, %v1282
    %v1301 = vadd.f32 %v1072, %v1285
    %v1302 = vadd.f32 %v1073, %v1290
    %v1303 = vadd.f32 %v1074, %v1293
    %s1304 = scalar_lea.vmem [#allocation5], 640
    %v1305 = vld [vmem:[%s1304] sm:$0xf]
    %v1306 = vld [vmem:[%s1304 + $0x4] sm:$0xf]
    %v1307 = vld [vmem:[%s1304 + $0x8] sm:$0xf]
    %v1308 = vld [vmem:[%s1304 + $0xc] sm:$0xf]
    %v1309 = vld [vmem:[%s1304 + $0x10] sm:$0xf]
    %v1310 = vld [vmem:[%s1304 + $0x14] sm:$0xf]
    %v1311 = vld [vmem:[%s1304 + $0x18] sm:$0xf]
    %v1312 = vld [vmem:[%s1304 + $0x1c] sm:$0xf]
    %v1313 = vld [vmem:[%s1304 + $0x20] sm:$0xf]
    %v1314 = vld [vmem:[%s1304 + $0x24] sm:$0xf]
    %v1315 = vld [vmem:[%s1304 + $0x28] sm:$0xf]
    %v1316 = vld [vmem:[%s1304 + $0x2c] sm:$0xf]
    %v1317 = vld [vmem:[%s1304 + $0x30] sm:$0xf]
    %v1318 = vld [vmem:[%s1304 + $0x34] sm:$0xf]
    %v1319 = vld [vmem:[%s1304 + $0x38] sm:$0xf]
    %v1320 = vld [vmem:[%s1304 + $0x3c] sm:$0xf]
    %v1321 = vld [vmem:[%s1304 + $0x40] sm:$0xf]
    %v1322 = vld [vmem:[%s1304 + $0x44] sm:$0xf]
    %v1323 = vld [vmem:[%s1304 + $0x48] sm:$0xf]
    %v1324 = vld [vmem:[%s1304 + $0x4c] sm:$0xf]
    %v1325 = vld [vmem:[%s1304 + $0x50] sm:$0xf]
    %v1326 = vld [vmem:[%s1304 + $0x54] sm:$0xf]
    %v1327 = vld [vmem:[%s1304 + $0x58] sm:$0xf]
    %v1328 = vld [vmem:[%s1304 + $0x5c] sm:$0xf]
    %v1329 = vld [vmem:[%s1304 + $0x60] sm:$0xf]
    %v1330 = vld [vmem:[%s1304 + $0x64] sm:$0xf]
    %v1331 = vld [vmem:[%s1304 + $0x68] sm:$0xf]
    %v1332 = vld [vmem:[%s1304 + $0x6c] sm:$0xf]
    %v1333 = vld [vmem:[%s1304 + $0x70] sm:$0xf]
    %v1334 = vld [vmem:[%s1304 + $0x74] sm:$0xf]
    %v1335 = vld [vmem:[%s1304 + $0x78] sm:$0xf]
    %v1336 = vld [vmem:[%s1304 + $0x7c] sm:$0xf]
    %vm1337 = vsmask.f32 4352
    %v1338 = vrot.slane %v345, 3
    %v1339 = vrot.slane %v347, 4
    %v1340 = vor.u32 %v1338, %v1339
    %v1341 = vrot.slane %v368, 3
    %v1342 = vrot.slane %v352, 4
    %v1343 = vor.u32 %v1341, %v1342
    %v1344 = vsel %vm1337, %v1340, %v1343
    %v1345 = vrot.slane %v357, 3
    %v1346 = vrot.slane %v359, 4
    %v1347 = vor.u32 %v1345, %v1346
    %v1348 = vrot.slane %v376, 3
    %v1349 = vrot.slane %v364, 4
    %v1350 = vor.u32 %v1348, %v1349
    %v1351 = vsel %vm1337, %v1347, %v1350
    %v1352 = vrot.slane %v384, 3
    %v1353 = vrot.slane %v372, 4
    %v1354 = vor.u32 %v1352, %v1353
    %v1355 = vsel %vm1337, %v1343, %v1354
    %v1356 = vrot.slane %v392, 3
    %v1357 = vrot.slane %v380, 4
    %v1358 = vor.u32 %v1356, %v1357
    %v1359 = vsel %vm1337, %v1350, %v1358
    %v1360 = vrot.slane %v400, 3
    %v1361 = vrot.slane %v388, 4
    %v1362 = vor.u32 %v1360, %v1361
    %v1363 = vsel %vm1337, %v1354, %v1362
    %v1364 = vrot.slane %v408, 3
    %v1365 = vrot.slane %v396, 4
    %v1366 = vor.u32 %v1364, %v1365
    %v1367 = vsel %vm1337, %v1358, %v1366
    %v1368 = vrot.slane %v886, 3
    %v1369 = vrot.slane %v404, 4
    %v1370 = vor.u32 %v1368, %v1369
    %v1371 = vsel %vm1337, %v1362, %v1370
    %v1372 = vrot.slane %v892, 3
    %v1373 = vrot.slane %v412, 4
    %v1374 = vor.u32 %v1372, %v1373
    %v1375 = vsel %vm1337, %v1366, %v1374
    %v1416 = vunpack.c.l.b16 %v1305
    %v1417 = vunpack.c.l.b16 %v1306
    %v1418 = vunpack.c.l.b16 %v1307
    %v1419 = vunpack.c.l.b16 %v1308
    %v1420 = vunpack.c.l.b16 %v1309
    %v1421 = vunpack.c.l.b16 %v1310
    %v1422 = vunpack.c.l.b16 %v1311
    %v1423 = vunpack.c.l.b16 %v1312
    %v1424 = vunpack.c.l.b16 %v1313
    %v1425 = vunpack.c.l.b16 %v1314
    %v1426 = vunpack.c.l.b16 %v1315
    %v1427 = vunpack.c.l.b16 %v1316
    %v1428 = vunpack.c.l.b16 %v1317
    %v1429 = vunpack.c.l.b16 %v1318
    %v1430 = vunpack.c.l.b16 %v1319
    %v1431 = vunpack.c.l.b16 %v1320
    %v1432 = vunpack.c.l.b16 %v1321
    %v1433 = vunpack.c.l.b16 %v1322
    %v1434 = vunpack.c.l.b16 %v1323
    %v1435 = vunpack.c.l.b16 %v1324
    %v1436 = vunpack.c.l.b16 %v1325
    %v1437 = vunpack.c.l.b16 %v1326
    %v1438 = vunpack.c.l.b16 %v1327
    %v1439 = vunpack.c.l.b16 %v1328
    %v1440 = vunpack.c.l.b16 %v1329
    %v1441 = vunpack.c.l.b16 %v1330
    %v1442 = vunpack.c.l.b16 %v1331
    %v1443 = vunpack.c.l.b16 %v1332
    %v1444 = vunpack.c.l.b16 %v1333
    %v1445 = vunpack.c.l.b16 %v1334
    %v1446 = vunpack.c.l.b16 %v1335
    %v1447 = vunpack.c.l.b16 %v1336
    %v1448 = vpack.c.b16 %v1417, %v1416
    %v1449 = vpack.c.b16 %v1419, %v1418
    %v1450 = vpack.c.b16 %v1421, %v1420
    %v1451 = vpack.c.b16 %v1423, %v1422
    %v1452 = vpack.c.b16 %v1425, %v1424
    %v1453 = vpack.c.b16 %v1427, %v1426
    %v1454 = vpack.c.b16 %v1429, %v1428
    %v1455 = vpack.c.b16 %v1431, %v1430
    %v1456 = vpack.c.b16 %v1433, %v1432
    %v1457 = vpack.c.b16 %v1435, %v1434
    %v1458 = vpack.c.b16 %v1437, %v1436
    %v1459 = vpack.c.b16 %v1439, %v1438
    %v1460 = vpack.c.b16 %v1441, %v1440
    %v1461 = vpack.c.b16 %v1443, %v1442
    %v1462 = vpack.c.b16 %v1445, %v1444
    %v1463 = vpack.c.b16 %v1447, %v1446
    %1480 = vmatprep.subr.bf16.mxu0 0
    %1481 = vmatpush1.bf16.msra.mxu0 %v1448
    %1482 = vmatprep.subr.bf16.mxu0 0
    %1483 = vmatpush1.bf16.msra.mxu0 %v1449
    %1484 = vmatprep.subr.bf16.mxu0 0
    %1485 = vmatpush1.bf16.msra.mxu0 %v1450
    %1486 = vmatprep.subr.bf16.mxu0 0
    %1487 = vmatpush1.bf16.msra.mxu0 %v1451
    %1488 = vmatprep.subr.bf16.mxu0 0
    %1489 = vmatpush1.bf16.msra.mxu0 %v1452
    %1490 = vmatprep.subr.bf16.mxu0 0
    %1491 = vmatpush1.bf16.msra.mxu0 %v1453
    %1492 = vmatprep.subr.bf16.mxu0 0
    %1493 = vmatpush1.bf16.msra.mxu0 %v1454
    %1494 = vmatprep.subr.bf16.mxu0 0
    %1495 = vmatpush1.bf16.msra.mxu0 %v1455
    %1496 = vmatprep.subr.bf16.mxu0 0
    %1497 = vmatpush1.bf16.msra.mxu0 %v1456
    %1498 = vmatprep.subr.bf16.mxu0 0
    %1499 = vmatpush1.bf16.msra.mxu0 %v1457
    %1500 = vmatprep.subr.bf16.mxu0 0
    %1501 = vmatpush1.bf16.msra.mxu0 %v1458
    %1502 = vmatprep.subr.bf16.mxu0 0
    %1503 = vmatpush1.bf16.msra.mxu0 %v1459
    %1504 = vmatprep.subr.bf16.mxu0 0
    %1505 = vmatpush1.bf16.msra.mxu0 %v1460
    %1506 = vmatprep.subr.bf16.mxu0 0
    %1507 = vmatpush1.bf16.msra.mxu0 %v1461
    %1508 = vmatprep.subr.bf16.mxu0 0
    %1509 = vmatpush1.bf16.msra.mxu0 %v1462
    %1510 = vmatprep.subr.bf16.mxu0 0
    %1511 = vmatpush1.bf16.msra.mxu0 %v1463
    %1512 = vmatprep.mubr.bf16.mxu0 %v1351
    %1513 = vmatmul.mubr.bf16.gmra.mrb[0].mxu0 %v1344
    %v1514 = vpop.f32.mrb[0].mxu0
    %v1515 = vadd.f32 0.0, %v1514
    %v1516 = vpop.f32.mrb[0].mxu0
    %v1517 = vpop.f32.mrb[0].mxu0
    %v1518 = vadd.f32 0.0, %v1517
    %v1519 = vpop.f32.mrb[0].mxu0
    %1520 = vmatprep.mubr.bf16.mxu0 %v1359
    %1521 = vmatmul.mubr.bf16.gmra.mrb[0].mxu0 %v1355
    %v1522 = vpop.f32.mrb[0].mxu0
    %v1523 = vadd.f32 0.0, %v1522
    %v1524 = vpop.f32.mrb[0].mxu0
    %v1525 = vpop.f32.mrb[0].mxu0
    %v1526 = vadd.f32 0.0, %v1525
    %v1527 = vpop.f32.mrb[0].mxu0
    %1528 = vmatprep.mubr.bf16.mxu0 %v1367
    %1529 = vmatmul.mubr.bf16.gmra.mrb[0].mxu0 %v1363
    %v1530 = vpop.f32.mrb[0].mxu0
    %v1531 = vadd.f32 0.0, %v1530
    %v1532 = vpop.f32.mrb[0].mxu0
    %v1533 = vpop.f32.mrb[0].mxu0
    %v1534 = vadd.f32 0.0, %v1533
    %v1535 = vpop.f32.mrb[0].mxu0
    %1536 = vmatprep.mubr.bf16.mxu0 %v1375
    %1537 = vmatmul.mubr.bf16.gmra.mrb[0].mxu0 %v1371
    %v1538 = vpop.f32.mrb[0].mxu0
    %v1539 = vadd.f32 0.0, %v1538
    %v1540 = vpop.f32.mrb[0].mxu0
    %v1541 = vpop.f32.mrb[0].mxu0
    %v1542 = vadd.f32 0.0, %v1541
    %v1543 = vpop.f32.mrb[0].mxu0
    %1544 = vdwg.mxu0
    %v1545 = vadd.f32 %v1296, %v1515
    %v1546 = vadd.f32 %v1297, %v1518
    %v1547 = vadd.f32 %v1298, %v1523
    %v1548 = vadd.f32 %v1299, %v1526
    %v1549 = vadd.f32 %v1300, %v1531
    %v1550 = vadd.f32 %v1301, %v1534
    %v1551 = vadd.f32 %v1302, %v1539
    %v1552 = vadd.f32 %v1303, %v1542
    %s1553 = scalar_lea.vmem [#allocation5], 768
    %v1554 = vld [vmem:[%s1553] sm:$0xf]
    %v1555 = vld [vmem:[%s1553 + $0x4] sm:$0xf]
    %v1556 = vld [vmem:[%s1553 + $0x8] sm:$0xf]
    %v1557 = vld [vmem:[%s1553 + $0xc] sm:$0xf]
    %v1558 = vld [vmem:[%s1553 + $0x10] sm:$0xf]
    %v1559 = vld [vmem:[%s1553 + $0x14] sm:$0xf]
    %v1560 = vld [vmem:[%s1553 + $0x18] sm:$0xf]
    %v1561 = vld [vmem:[%s1553 + $0x1c] sm:$0xf]
    %v1562 = vld [vmem:[%s1553 + $0x20] sm:$0xf]
    %v1563 = vld [vmem:[%s1553 + $0x24] sm:$0xf]
    %v1564 = vld [vmem:[%s1553 + $0x28] sm:$0xf]
    %v1565 = vld [vmem:[%s1553 + $0x2c] sm:$0xf]
    %v1566 = vld [vmem:[%s1553 + $0x30] sm:$0xf]
    %v1567 = vld [vmem:[%s1553 + $0x34] sm:$0xf]
    %v1568 = vld [vmem:[%s1553 + $0x38] sm:$0xf]
    %v1569 = vld [vmem:[%s1553 + $0x3c] sm:$0xf]
    %v1570 = vld [vmem:[%s1553 + $0x40] sm:$0xf]
    %v1571 = vld [vmem:[%s1553 + $0x44] sm:$0xf]
    %v1572 = vld [vmem:[%s1553 + $0x48] sm:$0xf]
    %v1573 = vld [vmem:[%s1553 + $0x4c] sm:$0xf]
    %v1574 = vld [vmem:[%s1553 + $0x50] sm:$0xf]
    %v1575 = vld [vmem:[%s1553 + $0x54] sm:$0xf]
    %v1576 = vld [vmem:[%s1553 + $0x58] sm:$0xf]
    %v1577 = vld [vmem:[%s1553 + $0x5c] sm:$0xf]
    %v1578 = vld [vmem:[%s1553 + $0x60] sm:$0xf]
    %v1579 = vld [vmem:[%s1553 + $0x64] sm:$0xf]
    %v1580 = vld [vmem:[%s1553 + $0x68] sm:$0xf]
    %v1581 = vld [vmem:[%s1553 + $0x6c] sm:$0xf]
    %v1582 = vld [vmem:[%s1553 + $0x70] sm:$0xf]
    %v1583 = vld [vmem:[%s1553 + $0x74] sm:$0xf]
    %v1584 = vld [vmem:[%s1553 + $0x78] sm:$0xf]
    %v1585 = vld [vmem:[%s1553 + $0x7c] sm:$0xf]
    %v1587 = vunpack.c.l.b16 %v64
    %v1588 = vunpack.c.h.b16 %v64
    %v1589 = vpack.c.b16 %v116, %v114
    %v1590 = vpack.c.b16 %v117, %v115
    %v1591 = vpack.c.b16 %v120, %v118
    %v1592 = vpack.c.b16 %v121, %v119
    %v1593 = vpack.c.b16 %v124, %v122
    %v1594 = vpack.c.b16 %v125, %v123
    %v1595 = vpack.c.b16 %v339, %v126
    %v1596 = vpack.c.b16 %v340, %v127
    %v1597 = vpack.c.b16 %v1587, %v1587
    %v1598 = vpack.c.b16 %v1588, %v1588
    %v1599 = vrot.slane %v1589, 1
    %v1600 = vrot.slane %v1591, 1
    %v1601 = vsel %vm626, %v1599, %v1600
    %v1602 = vrot.slane %v1590, 1
    %v1603 = vrot.slane %v1592, 1
    %v1604 = vsel %vm626, %v1602, %v1603
    %v1605 = vrot.slane %v1593, 1
    %v1606 = vsel %vm626, %v1600, %v1605
    %v1607 = vrot.slane %v1594, 1
    %v1608 = vsel %vm626, %v1603, %v1607
    %v1609 = vrot.slane %v1595, 1
    %v1610 = vsel %vm626, %v1605, %v1609
    %v1611 = vrot.slane %v1596, 1
    %v1612 = vsel %vm626, %v1607, %v1611
    %v1613 = vrot.slane %v1597, 1
    %v1614 = vsel %vm626, %v1609, %v1613
    %v1615 = vrot.slane %v1598, 1
    %v1616 = vsel %vm626, %v1611, %v1615
    %v1657 = vunpack.c.l.b16 %v1554
    %v1658 = vunpack.c.l.b16 %v1555
    %v1659 = vunpack.c.l.b16 %v1556
    %v1660 = vunpack.c.l.b16 %v1557
    %v1661 = vunpack.c.l.b16 %v1558
    %v1662 = vunpack.c.l.b16 %v1559
    %v1663 = vunpack.c.l.b16 %v1560
    %v1664 = vunpack.c.l.b16 %v1561
    %v1665 = vunpack.c.l.b16 %v1562
    %v1666 = vunpack.c.l.b16 %v1563
    %v1667 = vunpack.c.l.b16 %v1564
    %v1668 = vunpack.c.l.b16 %v1565
    %v1669 = vunpack.c.l.b16 %v1566
    %v1670 = vunpack.c.l.b16 %v1567
    %v1671 = vunpack.c.l.b16 %v1568
    %v1672 = vunpack.c.l.b16 %v1569
    %v1673 = vunpack.c.l.b16 %v1570
    %v1674 = vunpack.c.l.b16 %v1571
    %v1675 = vunpack.c.l.b16 %v1572
    %v1676 = vunpack.c.l.b16 %v1573
    %v1677 = vunpack.c.l.b16 %v1574
    %v1678 = vunpack.c.l.b16 %v1575
    %v1679 = vunpack.c.l.b16 %v1576
    %v1680 = vunpack.c.l.b16 %v1577
    %v1681 = vunpack.c.l.b16 %v1578
    %v1682 = vunpack.c.l.b16 %v1579
    %v1683 = vunpack.c.l.b16 %v1580
    %v1684 = vunpack.c.l.b16 %v1581
    %v1685 = vunpack.c.l.b16 %v1582
    %v1686 = vunpack.c.l.b16 %v1583
    %v1687 = vunpack.c.l.b16 %v1584
    %v1688 = vunpack.c.l.b16 %v1585
    %v1689 = vpack.c.b16 %v1658, %v1657
    %v1690 = vpack.c.b16 %v1660, %v1659
    %v1691 = vpack.c.b16 %v1662, %v1661
    %v1692 = vpack.c.b16 %v1664, %v1663
    %v1693 = vpack.c.b16 %v1666, %v1665
    %v1694 = vpack.c.b16 %v1668, %v1667
    %v1695 = vpack.c.b16 %v1670, %v1669
    %v1696 = vpack.c.b16 %v1672, %v1671
    %v1697 = vpack.c.b16 %v1674, %v1673
    %v1698 = vpack.c.b16 %v1676, %v1675
    %v1699 = vpack.c.b16 %v1678, %v1677
    %v1700 = vpack.c.b16 %v1680, %v1679
    %v1701 = vpack.c.b16 %v1682, %v1681
    %v1702 = vpack.c.b16 %v1684, %v1683
    %v1703 = vpack.c.b16 %v1686, %v1685
    %v1704 = vpack.c.b16 %v1688, %v1687
    %1721 = vmatprep.subr.bf16.mxu0 0
    %1722 = vmatpush1.bf16.msra.mxu0 %v1689
    %1723 = vmatprep.subr.bf16.mxu0 0
    %1724 = vmatpush1.bf16.msra.mxu0 %v1690
    %1725 = vmatprep.subr.bf16.mxu0 0
    %1726 = vmatpush1.bf16.msra.mxu0 %v1691
    %1727 = vmatprep.subr.bf16.mxu0 0
    %1728 = vmatpush1.bf16.msra.mxu0 %v1692
    %1729 = vmatprep.subr.bf16.mxu0 0
    %1730 = vmatpush1.bf16.msra.mxu0 %v1693
    %1731 = vmatprep.subr.bf16.mxu0 0
    %1732 = vmatpush1.bf16.msra.mxu0 %v1694
    %1733 = vmatprep.subr.bf16.mxu0 0
    %1734 = vmatpush1.bf16.msra.mxu0 %v1695
    %1735 = vmatprep.subr.bf16.mxu0 0
    %1736 = vmatpush1.bf16.msra.mxu0 %v1696
    %1737 = vmatprep.subr.bf16.mxu0 0
    %1738 = vmatpush1.bf16.msra.mxu0 %v1697
    %1739 = vmatprep.subr.bf16.mxu0 0
    %1740 = vmatpush1.bf16.msra.mxu0 %v1698
    %1741 = vmatprep.subr.bf16.mxu0 0
    %1742 = vmatpush1.bf16.msra.mxu0 %v1699
    %1743 = vmatprep.subr.bf16.mxu0 0
    %1744 = vmatpush1.bf16.msra.mxu0 %v1700
    %1745 = vmatprep.subr.bf16.mxu0 0
    %1746 = vmatpush1.bf16.msra.mxu0 %v1701
    %1747 = vmatprep.subr.bf16.mxu0 0
    %1748 = vmatpush1.bf16.msra.mxu0 %v1702
    %1749 = vmatprep.subr.bf16.mxu0 0
    %1750 = vmatpush1.bf16.msra.mxu0 %v1703
    %1751 = vmatprep.subr.bf16.mxu0 0
    %1752 = vmatpush1.bf16.msra.mxu0 %v1704
    %1753 = vmatprep.mubr.bf16.mxu0 %v1604
    %1754 = vmatmul.mubr.bf16.gmra.mrb[0].mxu0 %v1601
    %v1755 = vpop.f32.mrb[0].mxu0
    %v1756 = vadd.f32 0.0, %v1755
    %v1757 = vpop.f32.mrb[0].mxu0
    %v1758 = vpop.f32.mrb[0].mxu0
    %v1759 = vadd.f32 0.0, %v1758
    %v1760 = vpop.f32.mrb[0].mxu0
    %1761 = vmatprep.mubr.bf16.mxu0 %v1608
    %1762 = vmatmul.mubr.bf16.gmra.mrb[0].mxu0 %v1606
    %v1763 = vpop.f32.mrb[0].mxu0
    %v1764 = vadd.f32 0.0, %v1763
    %v1765 = vpop.f32.mrb[0].mxu0
    %v1766 = vpop.f32.mrb[0].mxu0
    %v1767 = vadd.f32 0.0, %v1766
    %v1768 = vpop.f32.mrb[0].mxu0
    %1769 = vmatprep.mubr.bf16.mxu0 %v1612
    %1770 = vmatmul.mubr.bf16.gmra.mrb[0].mxu0 %v1610
    %v1771 = vpop.f32.mrb[0].mxu0
    %v1772 = vadd.f32 0.0, %v1771
    %v1773 = vpop.f32.mrb[0].mxu0
    %v1774 = vpop.f32.mrb[0].mxu0
    %v1775 = vadd.f32 0.0, %v1774
    %v1776 = vpop.f32.mrb[0].mxu0
    %1777 = vmatprep.mubr.bf16.mxu0 %v1616
    %1778 = vmatmul.mubr.bf16.gmra.mrb[0].mxu0 %v1614
    %v1779 = vpop.f32.mrb[0].mxu0
    %v1780 = vadd.f32 0.0, %v1779
    %v1781 = vpop.f32.mrb[0].mxu0
    %v1782 = vpop.f32.mrb[0].mxu0
    %v1783 = vadd.f32 0.0, %v1782
    %v1784 = vpop.f32.mrb[0].mxu0
    %1785 = vdwg.mxu0
    %v1786 = vadd.f32 %v1545, %v1756
    %v1787 = vadd.f32 %v1546, %v1759
    %v1788 = vadd.f32 %v1547, %v1764
    %v1789 = vadd.f32 %v1548, %v1767
    %v1790 = vadd.f32 %v1549, %v1772
    %v1791 = vadd.f32 %v1550, %v1775
    %v1792 = vadd.f32 %v1551, %v1780
    %v1793 = vadd.f32 %v1552, %v1783
    %s1794 = scalar_lea.vmem [#allocation5], 896
    %v1795 = vld [vmem:[%s1794] sm:$0xf]
    %v1796 = vld [vmem:[%s1794 + $0x4] sm:$0xf]
    %v1797 = vld [vmem:[%s1794 + $0x8] sm:$0xf]
    %v1798 = vld [vmem:[%s1794 + $0xc] sm:$0xf]
    %v1799 = vld [vmem:[%s1794 + $0x10] sm:$0xf]
    %v1800 = vld [vmem:[%s1794 + $0x14] sm:$0xf]
    %v1801 = vld [vmem:[%s1794 + $0x18] sm:$0xf]
    %v1802 = vld [vmem:[%s1794 + $0x1c] sm:$0xf]
    %v1803 = vld [vmem:[%s1794 + $0x20] sm:$0xf]
    %v1804 = vld [vmem:[%s1794 + $0x24] sm:$0xf]
    %v1805 = vld [vmem:[%s1794 + $0x28] sm:$0xf]
    %v1806 = vld [vmem:[%s1794 + $0x2c] sm:$0xf]
    %v1807 = vld [vmem:[%s1794 + $0x30] sm:$0xf]
    %v1808 = vld [vmem:[%s1794 + $0x34] sm:$0xf]
    %v1809 = vld [vmem:[%s1794 + $0x38] sm:$0xf]
    %v1810 = vld [vmem:[%s1794 + $0x3c] sm:$0xf]
    %v1811 = vld [vmem:[%s1794 + $0x40] sm:$0xf]
    %v1812 = vld [vmem:[%s1794 + $0x44] sm:$0xf]
    %v1813 = vld [vmem:[%s1794 + $0x48] sm:$0xf]
    %v1814 = vld [vmem:[%s1794 + $0x4c] sm:$0xf]
    %v1815 = vld [vmem:[%s1794 + $0x50] sm:$0xf]
    %v1816 = vld [vmem:[%s1794 + $0x54] sm:$0xf]
    %v1817 = vld [vmem:[%s1794 + $0x58] sm:$0xf]
    %v1818 = vld [vmem:[%s1794 + $0x5c] sm:$0xf]
    %v1819 = vld [vmem:[%s1794 + $0x60] sm:$0xf]
    %v1820 = vld [vmem:[%s1794 + $0x64] sm:$0xf]
    %v1821 = vld [vmem:[%s1794 + $0x68] sm:$0xf]
    %v1822 = vld [vmem:[%s1794 + $0x6c] sm:$0xf]
    %v1823 = vld [vmem:[%s1794 + $0x70] sm:$0xf]
    %v1824 = vld [vmem:[%s1794 + $0x74] sm:$0xf]
    %v1825 = vld [vmem:[%s1794 + $0x78] sm:$0xf]
    %v1826 = vld [vmem:[%s1794 + $0x7c] sm:$0xf]
    %vm1827 = vsmask.f32 6400
    %v1829 = vshrl.u32 %v1589, 16
    %v1831 = vrot.slane %v1829, 1
    %v1832 = vshll.u32 %v1589, 16
    %v1834 = vrot.slane %v1832, 2
    %v1835 = vor.u32 %v1831, %v1834
    %v1837 = vshrl.u32 %v1591, 16
    %v1839 = vrot.slane %v1837, 1
    %v1840 = vshll.u32 %v1591, 16
    %v1842 = vrot.slane %v1840, 2
    %v1843 = vor.u32 %v1839, %v1842
    %v1844 = vsel %vm1827, %v1835, %v1843
    %v1846 = vshrl.u32 %v1590, 16
    %v1848 = vrot.slane %v1846, 1
    %v1849 = vshll.u32 %v1590, 16
    %v1851 = vrot.slane %v1849, 2
    %v1852 = vor.u32 %v1848, %v1851
    %v1854 = vshrl.u32 %v1592, 16
    %v1856 = vrot.slane %v1854, 1
    %v1857 = vshll.u32 %v1592, 16
    %v1859 = vrot.slane %v1857, 2
    %v1860 = vor.u32 %v1856, %v1859
    %v1861 = vsel %vm1827, %v1852, %v1860
    %v1863 = vshrl.u32 %v1593, 16
    %v1865 = vrot.slane %v1863, 1
    %v1866 = vshll.u32 %v1593, 16
    %v1868 = vrot.slane %v1866, 2
    %v1869 = vor.u32 %v1865, %v1868
    %v1870 = vsel %vm1827, %v1843, %v1869
    %v1872 = vshrl.u32 %v1594, 16
    %v1874 = vrot.slane %v1872, 1
    %v1875 = vshll.u32 %v1594, 16
    %v1877 = vrot.slane %v1875, 2
    %v1878 = vor.u32 %v1874, %v1877
    %v1879 = vsel %vm1827, %v1860, %v1878
    %v1881 = vshrl.u32 %v1595, 16
    %v1883 = vrot.slane %v1881, 1
    %v1884 = vshll.u32 %v1595, 16
    %v1886 = vrot.slane %v1884, 2
    %v1887 = vor.u32 %v1883, %v1886
    %v1888 = vsel %vm1827, %v1869, %v1887
    %v1890 = vshrl.u32 %v1596, 16
    %v1892 = vrot.slane %v1890, 1
    %v1893 = vshll.u32 %v1596, 16
    %v1895 = vrot.slane %v1893, 2
    %v1896 = vor.u32 %v1892, %v1895
    %v1897 = vsel %vm1827, %v1878, %v1896
    %v1899 = vshrl.u32 %v1597, 16
    %v1901 = vrot.slane %v1899, 1
    %v1902 = vshll.u32 %v1597, 16
    %v1904 = vrot.slane %v1902, 2
    %v1905 = vor.u32 %v1901, %v1904
    %v1906 = vsel %vm1827, %v1887, %v1905
    %v1908 = vshrl.u32 %v1598, 16
    %v1910 = vrot.slane %v1908, 1
    %v1911 = vshll.u32 %v1598, 16
    %v1913 = vrot.slane %v1911, 2
    %v1914 = vor.u32 %v1910, %v1913
    %v1915 = vsel %vm1827, %v1896, %v1914
    %v1956 = vunpack.c.l.b16 %v1795
    %v1957 = vunpack.c.l.b16 %v1796
    %v1958 = vunpack.c.l.b16 %v1797
    %v1959 = vunpack.c.l.b16 %v1798
    %v1960 = vunpack.c.l.b16 %v1799
    %v1961 = vunpack.c.l.b16 %v1800
    %v1962 = vunpack.c.l.b16 %v1801
    %v1963 = vunpack.c.l.b16 %v1802
    %v1964 = vunpack.c.l.b16 %v1803
    %v1965 = vunpack.c.l.b16 %v1804
    %v1966 = vunpack.c.l.b16 %v1805
    %v1967 = vunpack.c.l.b16 %v1806
    %v1968 = vunpack.c.l.b16 %v1807
    %v1969 = vunpack.c.l.b16 %v1808
    %v1970 = vunpack.c.l.b16 %v1809
    %v1971 = vunpack.c.l.b16 %v1810
    %v1972 = vunpack.c.l.b16 %v1811
    %v1973 = vunpack.c.l.b16 %v1812
    %v1974 = vunpack.c.l.b16 %v1813
    %v1975 = vunpack.c.l.b16 %v1814
    %v1976 = vunpack.c.l.b16 %v1815
    %v1977 = vunpack.c.l.b16 %v1816
    %v1978 = vunpack.c.l.b16 %v1817
    %v1979 = vunpack.c.l.b16 %v1818
    %v1980 = vunpack.c.l.b16 %v1819
    %v1981 = vunpack.c.l.b16 %v1820
    %v1982 = vunpack.c.l.b16 %v1821
    %v1983 = vunpack.c.l.b16 %v1822
    %v1984 = vunpack.c.l.b16 %v1823
    %v1985 = vunpack.c.l.b16 %v1824
    %v1986 = vunpack.c.l.b16 %v1825
    %v1987 = vunpack.c.l.b16 %v1826
    %v1988 = vpack.c.b16 %v1957, %v1956
    %v1989 = vpack.c.b16 %v1959, %v1958
    %v1990 = vpack.c.b16 %v1961, %v1960
    %v1991 = vpack.c.b16 %v1963, %v1962
    %v1992 = vpack.c.b16 %v1965, %v1964
    %v1993 = vpack.c.b16 %v1967, %v1966
    %v1994 = vpack.c.b16 %v1969, %v1968
    %v1995 = vpack.c.b16 %v1971, %v1970
    %v1996 = vpack.c.b16 %v1973, %v1972
    %v1997 = vpack.c.b16 %v1975, %v1974
    %v1998 = vpack.c.b16 %v1977, %v1976
    %v1999 = vpack.c.b16 %v1979, %v1978
    %v2000 = vpack.c.b16 %v1981, %v1980
    %v2001 = vpack.c.b16 %v1983, %v1982
    %v2002 = vpack.c.b16 %v1985, %v1984
    %v2003 = vpack.c.b16 %v1987, %v1986
    %2020 = vmatprep.subr.bf16.mxu0 0
    %2021 = vmatpush1.bf16.msra.mxu0 %v1988
    %2022 = vmatprep.subr.bf16.mxu0 0
    %2023 = vmatpush1.bf16.msra.mxu0 %v1989
    %2024 = vmatprep.subr.bf16.mxu0 0
    %2025 = vmatpush1.bf16.msra.mxu0 %v1990
    %2026 = vmatprep.subr.bf16.mxu0 0
    %2027 = vmatpush1.bf16.msra.mxu0 %v1991
    %2028 = vmatprep.subr.bf16.mxu0 0
    %2029 = vmatpush1.bf16.msra.mxu0 %v1992
    %2030 = vmatprep.subr.bf16.mxu0 0
    %2031 = vmatpush1.bf16.msra.mxu0 %v1993
    %2032 = vmatprep.subr.bf16.mxu0 0
    %2033 = vmatpush1.bf16.msra.mxu0 %v1994
    %2034 = vmatprep.subr.bf16.mxu0 0
    %2035 = vmatpush1.bf16.msra.mxu0 %v1995
    %2036 = vmatprep.subr.bf16.mxu0 0
    %2037 = vmatpush1.bf16.msra.mxu0 %v1996
    %2038 = vmatprep.subr.bf16.mxu0 0
    %2039 = vmatpush1.bf16.msra.mxu0 %v1997
    %2040 = vmatprep.subr.bf16.mxu0 0
    %2041 = vmatpush1.bf16.msra.mxu0 %v1998
    %2042 = vmatprep.subr.bf16.mxu0 0
    %2043 = vmatpush1.bf16.msra.mxu0 %v1999
    %2044 = vmatprep.subr.bf16.mxu0 0
    %2045 = vmatpush1.bf16.msra.mxu0 %v2000
    %2046 = vmatprep.subr.bf16.mxu0 0
    %2047 = vmatpush1.bf16.msra.mxu0 %v2001
    %2048 = vmatprep.subr.bf16.mxu0 0
    %2049 = vmatpush1.bf16.msra.mxu0 %v2002
    %2050 = vmatprep.subr.bf16.mxu0 0
    %2051 = vmatpush1.bf16.msra.mxu0 %v2003
    %2052 = vmatprep.mubr.bf16.mxu0 %v1861
    %2053 = vmatmul.mubr.bf16.gmra.mrb[0].mxu0 %v1844
    %v2054 = vpop.f32.mrb[0].mxu0
    %v2055 = vadd.f32 0.0, %v2054
    %v2056 = vpop.f32.mrb[0].mxu0
    %v2057 = vpop.f32.mrb[0].mxu0
    %v2058 = vadd.f32 0.0, %v2057
    %v2059 = vpop.f32.mrb[0].mxu0
    %2060 = vmatprep.mubr.bf16.mxu0 %v1879
    %2061 = vmatmul.mubr.bf16.gmra.mrb[0].mxu0 %v1870
    %v2062 = vpop.f32.mrb[0].mxu0
    %v2063 = vadd.f32 0.0, %v2062
    %v2064 = vpop.f32.mrb[0].mxu0
    %v2065 = vpop.f32.mrb[0].mxu0
    %v2066 = vadd.f32 0.0, %v2065
    %v2067 = vpop.f32.mrb[0].mxu0
    %2068 = vmatprep.mubr.bf16.mxu0 %v1897
    %2069 = vmatmul.mubr.bf16.gmra.mrb[0].mxu0 %v1888
    %v2070 = vpop.f32.mrb[0].mxu0
    %v2071 = vadd.f32 0.0, %v2070
    %v2072 = vpop.f32.mrb[0].mxu0
    %v2073 = vpop.f32.mrb[0].mxu0
    %v2074 = vadd.f32 0.0, %v2073
    %v2075 = vpop.f32.mrb[0].mxu0
    %2076 = vmatprep.mubr.bf16.mxu0 %v1915
    %2077 = vmatmul.mubr.bf16.gmra.mrb[0].mxu0 %v1906
    %v2078 = vpop.f32.mrb[0].mxu0
    %v2079 = vadd.f32 0.0, %v2078
    %v2080 = vpop.f32.mrb[0].mxu0
    %v2081 = vpop.f32.mrb[0].mxu0
    %v2082 = vadd.f32 0.0, %v2081
    %v2083 = vpop.f32.mrb[0].mxu0
    %2084 = vdwg.mxu0
    %v2085 = vadd.f32 %v1786, %v2055
    %v2086 = vadd.f32 %v1787, %v2058
    %v2087 = vadd.f32 %v1788, %v2063
    %v2088 = vadd.f32 %v1789, %v2066
    %v2089 = vadd.f32 %v1790, %v2071
    %v2090 = vadd.f32 %v1791, %v2074
    %v2091 = vadd.f32 %v1792, %v2079
    %v2092 = vadd.f32 %v1793, %v2082
    %s2093 = scalar_lea.vmem [#allocation5], 1024
    %v2094 = vld [vmem:[%s2093] sm:$0xf]
    %v2095 = vld [vmem:[%s2093 + $0x4] sm:$0xf]
    %v2096 = vld [vmem:[%s2093 + $0x8] sm:$0xf]
    %v2097 = vld [vmem:[%s2093 + $0xc] sm:$0xf]
    %v2098 = vld [vmem:[%s2093 + $0x10] sm:$0xf]
    %v2099 = vld [vmem:[%s2093 + $0x14] sm:$0xf]
    %v2100 = vld [vmem:[%s2093 + $0x18] sm:$0xf]
    %v2101 = vld [vmem:[%s2093 + $0x1c] sm:$0xf]
    %v2102 = vld [vmem:[%s2093 + $0x20] sm:$0xf]
    %v2103 = vld [vmem:[%s2093 + $0x24] sm:$0xf]
    %v2104 = vld [vmem:[%s2093 + $0x28] sm:$0xf]
    %v2105 = vld [vmem:[%s2093 + $0x2c] sm:$0xf]
    %v2106 = vld [vmem:[%s2093 + $0x30] sm:$0xf]
    %v2107 = vld [vmem:[%s2093 + $0x34] sm:$0xf]
    %v2108 = vld [vmem:[%s2093 + $0x38] sm:$0xf]
    %v2109 = vld [vmem:[%s2093 + $0x3c] sm:$0xf]
    %v2110 = vld [vmem:[%s2093 + $0x40] sm:$0xf]
    %v2111 = vld [vmem:[%s2093 + $0x44] sm:$0xf]
    %v2112 = vld [vmem:[%s2093 + $0x48] sm:$0xf]
    %v2113 = vld [vmem:[%s2093 + $0x4c] sm:$0xf]
    %v2114 = vld [vmem:[%s2093 + $0x50] sm:$0xf]
    %v2115 = vld [vmem:[%s2093 + $0x54] sm:$0xf]
    %v2116 = vld [vmem:[%s2093 + $0x58] sm:$0xf]
    %v2117 = vld [vmem:[%s2093 + $0x5c] sm:$0xf]
    %v2118 = vld [vmem:[%s2093 + $0x60] sm:$0xf]
    %v2119 = vld [vmem:[%s2093 + $0x64] sm:$0xf]
    %v2120 = vld [vmem:[%s2093 + $0x68] sm:$0xf]
    %v2121 = vld [vmem:[%s2093 + $0x6c] sm:$0xf]
    %v2122 = vld [vmem:[%s2093 + $0x70] sm:$0xf]
    %v2123 = vld [vmem:[%s2093 + $0x74] sm:$0xf]
    %v2124 = vld [vmem:[%s2093 + $0x78] sm:$0xf]
    %v2125 = vld [vmem:[%s2093 + $0x7c] sm:$0xf]
    %vm2126 = vcmask 1045504
    %v2127 = vrot.slane %v1589, 2
    %v2128 = vrot.slane %v1591, 2
    %v2129 = vsel %vm2126, %v2127, %v2128
    %v2130 = vrot.slane %v1590, 2
    %v2131 = vrot.slane %v1592, 2
    %v2132 = vsel %vm2126, %v2130, %v2131
    %v2133 = vrot.slane %v1593, 2
    %v2134 = vsel %vm2126, %v2128, %v2133
    %v2135 = vrot.slane %v1594, 2
    %v2136 = vsel %vm2126, %v2131, %v2135
    %v2137 = vrot.slane %v1595, 2
    %v2138 = vsel %vm2126, %v2133, %v2137
    %v2139 = vrot.slane %v1596, 2
    %v2140 = vsel %vm2126, %v2135, %v2139
    %v2141 = vrot.slane %v1597, 2
    %v2142 = vsel %vm2126, %v2137, %v2141
    %v2143 = vrot.slane %v1598, 2
    %v2144 = vsel %vm2126, %v2139, %v2143
    %v2185 = vunpack.c.l.b16 %v2094
    %v2186 = vunpack.c.l.b16 %v2095
    %v2187 = vunpack.c.l.b16 %v2096
    %v2188 = vunpack.c.l.b16 %v2097
    %v2189 = vunpack.c.l.b16 %v2098
    %v2190 = vunpack.c.l.b16 %v2099
    %v2191 = vunpack.c.l.b16 %v2100
    %v2192 = vunpack.c.l.b16 %v2101
    %v2193 = vunpack.c.l.b16 %v2102
    %v2194 = vunpack.c.l.b16 %v2103
    %v2195 = vunpack.c.l.b16 %v2104
    %v2196 = vunpack.c.l.b16 %v2105
    %v2197 = vunpack.c.l.b16 %v2106
    %v2198 = vunpack.c.l.b16 %v2107
    %v2199 = vunpack.c.l.b16 %v2108
    %v2200 = vunpack.c.l.b16 %v2109
    %v2201 = vunpack.c.l.b16 %v2110
    %v2202 = vunpack.c.l.b16 %v2111
    %v2203 = vunpack.c.l.b16 %v2112
    %v2204 = vunpack.c.l.b16 %v2113
    %v2205 = vunpack.c.l.b16 %v2114
    %v2206 = vunpack.c.l.b16 %v2115
    %v2207 = vunpack.c.l.b16 %v2116
    %v2208 = vunpack.c.l.b16 %v2117
    %v2209 = vunpack.c.l.b16 %v2118
    %v2210 = vunpack.c.l.b16 %v2119
    %v2211 = vunpack.c.l.b16 %v2120
    %v2212 = vunpack.c.l.b16 %v2121
    %v2213 = vunpack.c.l.b16 %v2122
    %v2214 = vunpack.c.l.b16 %v2123
    %v2215 = vunpack.c.l.b16 %v2124
    %v2216 = vunpack.c.l.b16 %v2125
    %v2217 = vpack.c.b16 %v2186, %v2185
    %v2218 = vpack.c.b16 %v2188, %v2187
    %v2219 = vpack.c.b16 %v2190, %v2189
    %v2220 = vpack.c.b16 %v2192, %v2191
    %v2221 = vpack.c.b16 %v2194, %v2193
    %v2222 = vpack.c.b16 %v2196, %v2195
    %v2223 = vpack.c.b16 %v2198, %v2197
    %v2224 = vpack.c.b16 %v2200, %v2199
    %v2225 = vpack.c.b16 %v2202, %v2201
    %v2226 = vpack.c.b16 %v2204, %v2203
    %v2227 = vpack.c.b16 %v2206, %v2205
    %v2228 = vpack.c.b16 %v2208, %v2207
    %v2229 = vpack.c.b16 %v2210, %v2209
    %v2230 = vpack.c.b16 %v2212, %v2211
    %v2231 = vpack.c.b16 %v2214, %v2213
    %v2232 = vpack.c.b16 %v2216, %v2215
    %2249 = vmatprep.subr.bf16.mxu0 0
    %2250 = vmatpush1.bf16.msra.mxu0 %v2217
    %2251 = vmatprep.subr.bf16.mxu0 0
    %2252 = vmatpush1.bf16.msra.mxu0 %v2218
    %2253 = vmatprep.subr.bf16.mxu0 0
    %2254 = vmatpush1.bf16.msra.mxu0 %v2219
    %2255 = vmatprep.subr.bf16.mxu0 0
    %2256 = vmatpush1.bf16.msra.mxu0 %v2220
    %2257 = vmatprep.subr.bf16.mxu0 0
    %2258 = vmatpush1.bf16.msra.mxu0 %v2221
    %2259 = vmatprep.subr.bf16.mxu0 0
    %2260 = vmatpush1.bf16.msra.mxu0 %v2222
    %2261 = vmatprep.subr.bf16.mxu0 0
    %2262 = vmatpush1.bf16.msra.mxu0 %v2223
    %2263 = vmatprep.subr.bf16.mxu0 0
    %2264 = vmatpush1.bf16.msra.mxu0 %v2224
    %2265 = vmatprep.subr.bf16.mxu0 0
    %2266 = vmatpush1.bf16.msra.mxu0 %v2225
    %2267 = vmatprep.subr.bf16.mxu0 0
    %2268 = vmatpush1.bf16.msra.mxu0 %v2226
    %2269 = vmatprep.subr.bf16.mxu0 0
    %2270 = vmatpush1.bf16.msra.mxu0 %v2227
    %2271 = vmatprep.subr.bf16.mxu0 0
    %2272 = vmatpush1.bf16.msra.mxu0 %v2228
    %2273 = vmatprep.subr.bf16.mxu0 0
    %2274 = vmatpush1.bf16.msra.mxu0 %v2229
    %2275 = vmatprep.subr.bf16.mxu0 0
    %2276 = vmatpush1.bf16.msra.mxu0 %v2230
    %2277 = vmatprep.subr.bf16.mxu0 0
    %2278 = vmatpush1.bf16.msra.mxu0 %v2231
    %2279 = vmatprep.subr.bf16.mxu0 0
    %2280 = vmatpush1.bf16.msra.mxu0 %v2232
    %2281 = vmatprep.mubr.bf16.mxu0 %v2132
    %2282 = vmatmul.mubr.bf16.gmra.mrb[0].mxu0 %v2129
    %v2283 = vpop.f32.mrb[0].mxu0
    %v2284 = vadd.f32 0.0, %v2283
    %v2285 = vpop.f32.mrb[0].mxu0
    %v2286 = vpop.f32.mrb[0].mxu0
    %v2287 = vadd.f32 0.0, %v2286
    %v2288 = vpop.f32.mrb[0].mxu0
    %2289 = vmatprep.mubr.bf16.mxu0 %v2136
    %2290 = vmatmul.mubr.bf16.gmra.mrb[0].mxu0 %v2134
    %v2291 = vpop.f32.mrb[0].mxu0
    %v2292 = vadd.f32 0.0, %v2291
    %v2293 = vpop.f32.mrb[0].mxu0
    %v2294 = vpop.f32.mrb[0].mxu0
    %v2295 = vadd.f32 0.0, %v2294
    %v2296 = vpop.f32.mrb[0].mxu0
    %2297 = vmatprep.mubr.bf16.mxu0 %v2140
    %2298 = vmatmul.mubr.bf16.gmra.mrb[0].mxu0 %v2138
    %v2299 = vpop.f32.mrb[0].mxu0
    %v2300 = vadd.f32 0.0, %v2299
    %v2301 = vpop.f32.mrb[0].mxu0
    %v2302 = vpop.f32.mrb[0].mxu0
    %v2303 = vadd.f32 0.0, %v2302
    %v2304 = vpop.f32.mrb[0].mxu0
    %2305 = vmatprep.mubr.bf16.mxu0 %v2144
    %2306 = vmatmul.mubr.bf16.gmra.mrb[0].mxu0 %v2142
    %v2307 = vpop.f32.mrb[0].mxu0
    %v2308 = vadd.f32 0.0, %v2307
    %v2309 = vpop.f32.mrb[0].mxu0
    %v2310 = vpop.f32.mrb[0].mxu0
    %v2311 = vadd.f32 0.0, %v2310
    %v2312 = vpop.f32.mrb[0].mxu0
    %2313 = vdwg.mxu0
    %v2314 = vadd.f32 %v2085, %v2284
    %v2315 = vadd.f32 %v2086, %v2287
    %v2316 = vadd.f32 %v2087, %v2292
    %v2317 = vadd.f32 %v2088, %v2295
    %v2318 = vadd.f32 %v2089, %v2300
    %v2319 = vadd.f32 %v2090, %v2303
    %v2320 = vadd.f32 %v2091, %v2308
    %v2321 = vadd.f32 %v2092, %v2311
    %v2322 = vmax.f32 %v2314, 0.0
    %v2323 = vmax.f32 %v2315, 0.0
    %v2324 = vmax.f32 %v2316, 0.0
    %v2325 = vmax.f32 %v2317, 0.0
    %v2326 = vmax.f32 %v2318, 0.0
    %v2327 = vmax.f32 %v2319, 0.0
    %v2328 = vmax.f32 %v2320, 0.0
    %v2329 = vmax.f32 %v2321, 0.0
    %v2330 = vpack.c.bf16 %v2323, %v2322
    %v2331 = vpack.c.bf16 %v2325, %v2324
    %v2332 = vpack.c.bf16 %v2327, %v2326
    %v2333 = vpack.c.bf16 %v2329, %v2328
    %v2338 = vunpack.c.l.b16 %v2330
    %v2339 = vunpack.c.h.b16 %v2330
    %v2340 = vunpack.c.l.b16 %v2331
    %v2341 = vunpack.c.h.b16 %v2331
    %v2342 = vunpack.c.l.b16 %v2332
    %v2343 = vunpack.c.h.b16 %v2332
    %v2344 = vunpack.c.l.b16 %v2333
    %v2345 = vunpack.c.h.b16 %v2333
    %v2346 = vpack.c.b16 %v2338, %v2338
    %v2347 = vpack.c.b16 %v2339, %v2339
    %v2348 = vpack.c.b16 %v2340, %v2340
    %v2349 = vpack.c.b16 %v2341, %v2341
    %v2350 = vpack.c.b16 %v2342, %v2342
    %v2351 = vpack.c.b16 %v2343, %v2343
    %v2352 = vpack.c.b16 %v2344, %v2344
    %v2353 = vpack.c.b16 %v2345, %v2345
    %2362 = vst [vmem:[#allocation8] sm:$0xf] %v2346
    %2363 = vst [vmem:[#allocation8 + $0x4] sm:$0xf] %v2347
    %2364 = vst [vmem:[#allocation8 + $0x8] sm:$0xf] %v2348
    %2365 = vst [vmem:[#allocation8 + $0xc] sm:$0xf] %v2349
    %2366 = vst [vmem:[#allocation8 + $0x10] sm:$0xf] %v2350
    %2367 = vst [vmem:[#allocation8 + $0x14] sm:$0xf] %v2351
    %2368 = vst [vmem:[#allocation8 + $0x18] sm:$0xf] %v2352
    %2369 = vst [vmem:[#allocation8 + $0x1c] sm:$0xf] %v2353
    // Predicated region
    $region26: #{alexnet_forward.9} parent=1 // pred_check
      _
    $region27: #{alexnet_forward.9} parent=1 // pred_check_branch
      %2371 = sbr.rel (0) target = $region29
    $region28: #{alexnet_forward.9} parent=1 // pred_region
      %s2373 = ssub.s32 512, 512
      %2374 = vsyncadd [#allocation4], %s2373
      %s2375 = sshll.u32 [#allocation8], 4
      %s2376 = int_to_ptr.vmem [resolvable:$true] %s2375
      %2381 = dma.vmem_to_hbm [thread:$0]  %s2376, 512, %s3, [#allocation4], 64, 64, 4
    $region29: #{alexnet_forward.9} parent=1 // pred_fallthru
      _
    // Predicated region
    $region30: #{alexnet_forward.9} parent=1 // pred_check
      _
    $region31: #{alexnet_forward.9} parent=1 // pred_check_branch
      %2383 = sbr.rel (0) target = $region33
    $region32: #{alexnet_forward.9} parent=1 // pred_region
      %2384 = dma.done [#allocation4], 512
    $region33: #{alexnet_forward.9} parent=1 // pred_fallthru
      _
    %2385 = vsyncpa [#allocation3], 1
    %2386 = vsyncpa [#allocation6], 1
    %2387 = vsyncpa [#allocation4], 1

</llo_original>
